<compile_context>
chip_gen: v7x
topology: tpu7x:2x2x1
jax: 0.10.0
libtpu: 0.0.40
codegen_flags: <defaults>
</compile_context>

<pallas_src>
import math

import jax
import jax.numpy as jnp
from jax.experimental import pallas as pl
from jax.experimental.pallas import tpu as pltpu

# ----------------------- config (small shapes consistent with the module) -----------------------
B = 2              # batch
S = 8              # token_size (sequence length)
H = 32             # hidden size  (768 in bert-base-uncased, scaled down)
NH = 4             # attention heads
DH = H // NH       # head dim
FFN = 64           # intermediate (FFN) size
NUM_LAYERS = 3     # encoder layers (12 in bert-base, scaled down)
MAX_LAYERS = 2     # parasite history window (module arg max_layers)
ADAPTER = 16       # Parasite adapter_size
VOCAB = 50
TYPE_VOCAB = 2
MAX_POS = 16
NUM_CLASSES = 2
LN_EPS = 1e-12     # BERT LayerNorm eps

ATTN_SCALE = 1.0 / math.sqrt(DH)
INV_SQRT2 = 1.0 / math.sqrt(2.0)

PER_LAYER_ARGS = 18   # 6 parasite tensors + 12 encoder tensors


# ----------------------------------- in-kernel math helpers -------------------------------------

def _erf_poly(x):
    # Abramowitz & Stegun 7.1.26 polynomial erf, |abs err| < 1.5e-7.  VPU + EUP only, so the
    # exact-GELU epilogue never leaves VMEM (no erf-lowering probe / XLA fallback path).
    a1, a2, a3, a4, a5 = 0.254829592, -0.284496736, 1.421413741, -1.453152027, 1.061405429
    p = 0.3275911
    ax = jnp.abs(x)
    t = 1.0 / (1.0 + p * ax)
    poly = t * (a1 + t * (a2 + t * (a3 + t * (a4 + t * a5))))
    y = 1.0 - poly * jnp.exp(-ax * ax)
    return jnp.where(x >= 0.0, y, -y)


def _gelu(x):
    # nn.GELU() default (exact erf form), approximated in-kernel to ~1.5e-7.
    return 0.5 * x * (1.0 + _erf_poly(x * INV_SQRT2))


def _layernorm(x, g, b):
    mu = jnp.mean(x, axis=-1, keepdims=True)
    xc = x - mu
    var = jnp.mean(xc * xc, axis=-1, keepdims=True)
    return xc * jax.lax.rsqrt(var + LN_EPS) * g + b


def _mm(a, b):
    return jnp.dot(a, b, preferred_element_type=jnp.float32)


# ----------------------------------- fused forward kernel ---------------------------------------

def _fused_forward_kernel(*refs):
    # refs = [emb_sum, mask, eln_g, eln_b, (18 per-layer tensors) * NUM_LAYERS, out]
    out_ref = refs[-1]
    it = iter(refs[:-1])
    emb_ref = next(it)                 # [1, S, H] block (this batch element)
    mask_ref = next(it)                # [1, 1, S] block
    eln_g = next(it)[...]              # [1, H]
    eln_b = next(it)[...]              # [1, H]

    layer_refs = [[next(it) for _ in range(PER_LAYER_ARGS)] for _ in range(NUM_LAYERS)]

    mask_row = mask_ref[0]             # [1, S]  raw 0/1 mask, added to scores (matches module)
    x_emb = _layernorm(emb_ref[0], eln_g, eln_b)      # [S, H]  BertEmbeddings LayerNorm

    prevs = [x_emb]
    for i in range(NUM_LAYERS):
        (pp_w, pp_bias, pp_w1, pp_b1, pp_w2, pp_b2,
         qkv_w, qkv_b, ao_w, ao_b, aln_g, aln_b,
         i_w, i_b, o_w, o_b, oln_g, oln_b) = layer_refs[i]

        # ---- Parasite: tensordot over (layer, token) + bias -> Linear -> GELU -> Linear
        start = max(0, i - MAX_LAYERS + 1)
        stack = prevs[start:]                          # list of [S, H] VMEM-resident values
        pp = pp_w[...]                                 # [L, S]
        act = _mm(pp[0:1, :], stack[0])                # [1, H]
        for l in range(1, len(stack)):
            act = act + _mm(pp[l:l + 1, :], stack[l])
        act = act + pp_bias[...]
        h1 = _gelu(_mm(act, pp_w1[...]) + pp_b1[...])  # [1, ADAPTER]
        pi = _mm(h1, pp_w2[...]) + pp_b2[...]          # [1, H]

        # ---- BertLayer on (prev + parasite), everything stays in VMEM
        x_in = prevs[-1] + pi                          # [S, H] (pi broadcast over tokens)

        qkv = _mm(x_in, qkv_w[...]) + qkv_b[...]       # [S, 3H]  fused Q/K/V projection
        ao_w_v = ao_w[...]                             # [H, H]
        attn = None
        for h in range(NH):
            qh = qkv[:, h * DH:(h + 1) * DH]
            kh = qkv[:, H + h * DH:H + (h + 1) * DH]
            vh = qkv[:, 2 * H + h * DH:2 * H + (h + 1) * DH]
            s = jax.lax.dot_general(qh, kh, (((1,), (1,)), ((), ())),
                                    preferred_element_type=jnp.float32) * ATTN_SCALE
            s = s + mask_row                           # extended mask broadcast over query axis
            s = s - jnp.max(s, axis=-1, keepdims=True)
            p = jnp.exp(s)
            # approx reciprocal on the EUP slot (~6e-5 relative tolerance vs. exact divide)
            p = p * pl.reciprocal(jnp.sum(p, axis=-1, keepdims=True), approx=True)
            ctx_h = _mm(p, vh)                         # [S, DH]
            # head-merge + output projection folded: ctx @ Wo == sum_h ctx_h @ Wo[h*DH:(h+1)*DH]
            part = _mm(ctx_h, ao_w_v[h * DH:(h + 1) * DH, :])
            attn = part if attn is None else attn + part
        attn = attn + ao_b[...]
        x_a = _layernorm(attn + x_in, aln_g[...], aln_b[...])     # BertSelfOutput

        inter = _gelu(_mm(x_a, i_w[...]) + i_b[...])              # BertIntermediate (GELU)
        out = _mm(inter, o_w[...]) + o_b[...]                     # BertOutput dense
        x_o = _layernorm(out + x_a, oln_g[...], oln_b[...])
        prevs.append(x_o)

    out_ref[0] = prevs[-1][0:1, :]                     # pooled CLS token -> [1, H]


def fused_forward(emb_sum, mask3, flat_weights):
    """emb_sum [B,S,H], mask3 [B,1,S], flat_weights: small 2-D arrays (VMEM-resident)."""
    def resident_spec(a):
        nd = a.ndim
        return pl.BlockSpec(a.shape, lambda b, _nd=nd: (0,) * _nd)

    in_specs = [
        pl.BlockSpec((1, S, H), lambda b: (b, 0, 0)),   # per-batch embedding block
        pl.BlockSpec((1, 1, S), lambda b: (b, 0, 0)),   # per-batch attention mask
    ] + [resident_spec(w) for w in flat_weights]

    pooled = pl.pallas_call(
        _fused_forward_kernel,
        out_shape=jax.ShapeDtypeStruct((B, 1, H), jnp.float32),
        grid=(B,),
        in_specs=in_specs,
        out_specs=pl.BlockSpec((1, 1, H), lambda b: (b, 0, 0)),
        compiler_params=pltpu.CompilerParams(
            dimension_semantics=("parallel",),          # batch elems independent -> 2nd TC on v7x
        ),
    )(emb_sum, mask3, *flat_weights)
    return pooled[:, 0, :]                              # [B, H]


# ----------------------------------- model (glue + fused kernel) --------------------------------

def model_forward(params, input_ids, attention_mask, token_type_ids, labels):
    b, s = input_ids.shape

    # Embedding table gathers stay in XLA (data-dependent indexing); LayerNorm happens in-kernel.
    pos = jnp.arange(s)
    pe = params['embeddings']
    emb_sum = (pe['word_emb'][input_ids]
               + pe['pos_emb'][pos][None, :, :]
               + pe['type_emb'][token_type_ids])                       # [B, S, H]

    # extended_attention_mask = attention_mask[:, None, None, :], added RAW to the scores
    # (exactly as the torch module does — masked tokens still receive +0, unmasked +1).
    mask3 = attention_mask.astype(jnp.float32)[:, None, :]             # [B, 1, S]

    flat = [pe['ln_g'].reshape(1, H), pe['ln_b'].reshape(1, H)]
    for i in range(NUM_LAYERS):
        pp = params['parasites'][i]
        lp = params['layers'][i]
        flat += [pp['params'], pp['bias'].reshape(1, H),
                 pp['w1'], pp['b1'].reshape(1, ADAPTER),
                 pp['w2'], pp['b2'].reshape(1, H)]
        flat += [lp['qkv_w'], lp['qkv_b'].reshape(1, 3 * H),
                 lp['ao_w'], lp['ao_b'].reshape(1, H),
                 lp['aln_g'].reshape(1, H), lp['aln_b'].reshape(1, H),
                 lp['i_w'], lp['i_b'].reshape(1, FFN),
                 lp['o_w'], lp['o_b'].reshape(1, H),
                 lp['oln_g'].reshape(1, H), lp['oln_b'].reshape(1, H)]

    pooled = fused_forward(emb_sum, mask3, flat)                       # [B, H]

    # Tiny 2x32x2 classifier + sigmoid + CrossEntropyLoss(sigmoid(logits), labels) in plain XLA
    logits = pooled @ params['out_w'] + params['out_b']
    output = jax.nn.sigmoid(logits)
    log_probs = jax.nn.log_softmax(output, axis=-1)
    loss = -jnp.mean(log_probs[jnp.arange(b), labels])
    return loss, output


# ----------------------------------- deterministic param init -----------------------------------

def init_params(key):
    kit = iter(jax.random.split(key, 128))

    def nrm(shape, scale=0.02):
        return (scale * jax.random.normal(next(kit), shape)).astype(jnp.float32)

    zeros = lambda shape: jnp.zeros(shape, jnp.float32)
    ones = lambda shape: jnp.ones(shape, jnp.float32)

    embeddings = dict(word_emb=nrm((VOCAB, H)), pos_emb=nrm((MAX_POS, H)),
                      type_emb=nrm((TYPE_VOCAB, H)), ln_g=ones((H,)), ln_b=zeros((H,)))

    layers = []
    for _ in range(NUM_LAYERS):
        layers.append(dict(
            qkv_w=nrm((H, 3 * H)), qkv_b=zeros((3 * H,)),   # concatenated Q/K/V projection
            ao_w=nrm((H, H)), ao_b=zeros((H,)),
            aln_g=ones((H,)), aln_b=zeros((H,)),
            i_w=nrm((H, FFN)), i_b=zeros((FFN,)),
            o_w=nrm((FFN, H)), o_b=zeros((H,)),
            oln_g=ones((H,)), oln_b=zeros((H,)),
        ))

    parasites = []
    for i in range(1, NUM_LAYERS + 1):
        L = min(MAX_LAYERS, i)
        parasites.append(dict(
            params=nrm((L, S), scale=0.1),   # torch init is zeros; small nonzero to exercise kernel
            bias=nrm((H,), scale=0.02),
            w1=nrm((H, ADAPTER)), b1=zeros((ADAPTER,)),
            w2=nrm((ADAPTER, H)), b2=zeros((H,)),
        ))

    return dict(embeddings=embeddings, layers=layers, parasites=parasites,
                out_w=nrm((H, NUM_CLASSES)), out_b=zeros((NUM_CLASSES,)))


# ----------------------------------------- main --------------------------------------------------

if __name__ == "__main__":
    key = jax.random.PRNGKey(0)
    pkey, ikey, lkey = jax.random.split(key, 3)

    params = init_params(pkey)
    input_ids = jax.random.randint(ikey, (B, S), 0, VOCAB)
    attention_mask = jnp.ones((B, S), jnp.float32).at[:, -2:].set(0.0)
    token_type_ids = jnp.zeros((B, S), jnp.int32)
    labels = jax.random.randint(lkey, (B,), 0, NUM_CLASSES)

    fwd = jax.jit(model_forward)
    loss, logits = fwd(params, input_ids, attention_mask, token_type_ids, labels)
    jax.block_until_ready((loss, logits))
    print("KERNEL_OK")
</pallas_src>

<mosaic_0001>
module attributes {stable_mosaic.version = 11 : i64} {
  func.func @_fused_forward_kernel(%arg0: i32, %arg1: memref<1x8x32xf32, #tpu.memory_space<vmem>>, %arg2: memref<1x1x8xf32, #tpu.memory_space<vmem>>, %arg3: memref<1x32xf32, #tpu.memory_space<vmem>>, %arg4: memref<1x32xf32, #tpu.memory_space<vmem>>, %arg5: memref<1x8xf32, #tpu.memory_space<vmem>>, %arg6: memref<1x32xf32, #tpu.memory_space<vmem>>, %arg7: memref<32x16xf32, #tpu.memory_space<vmem>>, %arg8: memref<1x16xf32, #tpu.memory_space<vmem>>, %arg9: memref<16x32xf32, #tpu.memory_space<vmem>>, %arg10: memref<1x32xf32, #tpu.memory_space<vmem>>, %arg11: memref<32x96xf32, #tpu.memory_space<vmem>>, %arg12: memref<1x96xf32, #tpu.memory_space<vmem>>, %arg13: memref<32x32xf32, #tpu.memory_space<vmem>>, %arg14: memref<1x32xf32, #tpu.memory_space<vmem>>, %arg15: memref<1x32xf32, #tpu.memory_space<vmem>>, %arg16: memref<1x32xf32, #tpu.memory_space<vmem>>, %arg17: memref<32x64xf32, #tpu.memory_space<vmem>>, %arg18: memref<1x64xf32, #tpu.memory_space<vmem>>, %arg19: memref<64x32xf32, #tpu.memory_space<vmem>>, %arg20: memref<1x32xf32, #tpu.memory_space<vmem>>, %arg21: memref<1x32xf32, #tpu.memory_space<vmem>>, %arg22: memref<1x32xf32, #tpu.memory_space<vmem>>, %arg23: memref<2x8xf32, #tpu.memory_space<vmem>>, %arg24: memref<1x32xf32, #tpu.memory_space<vmem>>, %arg25: memref<32x16xf32, #tpu.memory_space<vmem>>, %arg26: memref<1x16xf32, #tpu.memory_space<vmem>>, %arg27: memref<16x32xf32, #tpu.memory_space<vmem>>, %arg28: memref<1x32xf32, #tpu.memory_space<vmem>>, %arg29: memref<32x96xf32, #tpu.memory_space<vmem>>, %arg30: memref<1x96xf32, #tpu.memory_space<vmem>>, %arg31: memref<32x32xf32, #tpu.memory_space<vmem>>, %arg32: memref<1x32xf32, #tpu.memory_space<vmem>>, %arg33: memref<1x32xf32, #tpu.memory_space<vmem>>, %arg34: memref<1x32xf32, #tpu.memory_space<vmem>>, %arg35: memref<32x64xf32, #tpu.memory_space<vmem>>, %arg36: memref<1x64xf32, #tpu.memory_space<vmem>>, %arg37: memref<64x32xf32, #tpu.memory_space<vmem>>, %arg38: memref<1x32xf32, #tpu.memory_space<vmem>>, %arg39: memref<1x32xf32, #tpu.memory_space<vmem>>, %arg40: memref<1x32xf32, #tpu.memory_space<vmem>>, %arg41: memref<2x8xf32, #tpu.memory_space<vmem>>, %arg42: memref<1x32xf32, #tpu.memory_space<vmem>>, %arg43: memref<32x16xf32, #tpu.memory_space<vmem>>, %arg44: memref<1x16xf32, #tpu.memory_space<vmem>>, %arg45: memref<16x32xf32, #tpu.memory_space<vmem>>, %arg46: memref<1x32xf32, #tpu.memory_space<vmem>>, %arg47: memref<32x96xf32, #tpu.memory_space<vmem>>, %arg48: memref<1x96xf32, #tpu.memory_space<vmem>>, %arg49: memref<32x32xf32, #tpu.memory_space<vmem>>, %arg50: memref<1x32xf32, #tpu.memory_space<vmem>>, %arg51: memref<1x32xf32, #tpu.memory_space<vmem>>, %arg52: memref<1x32xf32, #tpu.memory_space<vmem>>, %arg53: memref<32x64xf32, #tpu.memory_space<vmem>>, %arg54: memref<1x64xf32, #tpu.memory_space<vmem>>, %arg55: memref<64x32xf32, #tpu.memory_space<vmem>>, %arg56: memref<1x32xf32, #tpu.memory_space<vmem>>, %arg57: memref<1x32xf32, #tpu.memory_space<vmem>>, %arg58: memref<1x32xf32, #tpu.memory_space<vmem>>, %arg59: memref<1x1x32xf32, #tpu.memory_space<vmem>>) attributes {dimension_semantics = [#tpu.dimension_semantics<parallel>], iteration_bounds = array<i64: 2>, scalar_prefetch = 0 : i64, scratch_operands = 0 : i64, tpu.core_type = #tpu.core_type<tc>, window_params = [{transform_indices = @transform_0, window_bounds = array<i64: 1, 8, 32>}, {transform_indices = @transform_1, window_bounds = array<i64: 1, 1, 8>}, {pipeline_mode = #tpu.pipeline_mode<synchronous>, transform_indices = @transform_2, window_bounds = array<i64: 1, 32>}, {pipeline_mode = #tpu.pipeline_mode<synchronous>, transform_indices = @transform_3, window_bounds = array<i64: 1, 32>}, {pipeline_mode = #tpu.pipeline_mode<synchronous>, transform_indices = @transform_4, window_bounds = array<i64: 1, 8>}, {pipeline_mode = #tpu.pipeline_mode<synchronous>, transform_indices = @transform_5, window_bounds = array<i64: 1, 32>}, {pipeline_mode = #tpu.pipeline_mode<synchronous>, transform_indices = @transform_6, window_bounds = array<i64: 32, 16>}, {pipeline_mode = #tpu.pipeline_mode<synchronous>, transform_indices = @transform_7, window_bounds = array<i64: 1, 16>}, {pipeline_mode = #tpu.pipeline_mode<synchronous>, transform_indices = @transform_8, window_bounds = array<i64: 16, 32>}, {pipeline_mode = #tpu.pipeline_mode<synchronous>, transform_indices = @transform_9, window_bounds = array<i64: 1, 32>}, {pipeline_mode = #tpu.pipeline_mode<synchronous>, transform_indices = @transform_10, window_bounds = array<i64: 32, 96>}, {pipeline_mode = #tpu.pipeline_mode<synchronous>, transform_indices = @transform_11, window_bounds = array<i64: 1, 96>}, {pipeline_mode = #tpu.pipeline_mode<synchronous>, transform_indices = @transform_12, window_bounds = array<i64: 32, 32>}, {pipeline_mode = #tpu.pipeline_mode<synchronous>, transform_indices = @transform_13, window_bounds = array<i64: 1, 32>}, {pipeline_mode = #tpu.pipeline_mode<synchronous>, transform_indices = @transform_14, window_bounds = array<i64: 1, 32>}, {pipeline_mode = #tpu.pipeline_mode<synchronous>, transform_indices = @transform_15, window_bounds = array<i64: 1, 32>}, {pipeline_mode = #tpu.pipeline_mode<synchronous>, transform_indices = @transform_16, window_bounds = array<i64: 32, 64>}, {pipeline_mode = #tpu.pipeline_mode<synchronous>, transform_indices = @transform_17, window_bounds = array<i64: 1, 64>}, {pipeline_mode = #tpu.pipeline_mode<synchronous>, transform_indices = @transform_18, window_bounds = array<i64: 64, 32>}, {pipeline_mode = #tpu.pipeline_mode<synchronous>, transform_indices = @transform_19, window_bounds = array<i64: 1, 32>}, {pipeline_mode = #tpu.pipeline_mode<synchronous>, transform_indices = @transform_20, window_bounds = array<i64: 1, 32>}, {pipeline_mode = #tpu.pipeline_mode<synchronous>, transform_indices = @transform_21, window_bounds = array<i64: 1, 32>}, {pipeline_mode = #tpu.pipeline_mode<synchronous>, transform_indices = @transform_22, window_bounds = array<i64: 2, 8>}, {pipeline_mode = #tpu.pipeline_mode<synchronous>, transform_indices = @transform_23, window_bounds = array<i64: 1, 32>}, {pipeline_mode = #tpu.pipeline_mode<synchronous>, transform_indices = @transform_24, window_bounds = array<i64: 32, 16>}, {pipeline_mode = #tpu.pipeline_mode<synchronous>, transform_indices = @transform_25, window_bounds = array<i64: 1, 16>}, {pipeline_mode = #tpu.pipeline_mode<synchronous>, transform_indices = @transform_26, window_bounds = array<i64: 16, 32>}, {pipeline_mode = #tpu.pipeline_mode<synchronous>, transform_indices = @transform_27, window_bounds = array<i64: 1, 32>}, {pipeline_mode = #tpu.pipeline_mode<synchronous>, transform_indices = @transform_28, window_bounds = array<i64: 32, 96>}, {pipeline_mode = #tpu.pipeline_mode<synchronous>, transform_indices = @transform_29, window_bounds = array<i64: 1, 96>}, {pipeline_mode = #tpu.pipeline_mode<synchronous>, transform_indices = @transform_30, window_bounds = array<i64: 32, 32>}, {pipeline_mode = #tpu.pipeline_mode<synchronous>, transform_indices = @transform_31, window_bounds = array<i64: 1, 32>}, {pipeline_mode = #tpu.pipeline_mode<synchronous>, transform_indices = @transform_32, window_bounds = array<i64: 1, 32>}, {pipeline_mode = #tpu.pipeline_mode<synchronous>, transform_indices = @transform_33, window_bounds = array<i64: 1, 32>}, {pipeline_mode = #tpu.pipeline_mode<synchronous>, transform_indices = @transform_34, window_bounds = array<i64: 32, 64>}, {pipeline_mode = #tpu.pipeline_mode<synchronous>, transform_indices = @transform_35, window_bounds = array<i64: 1, 64>}, {pipeline_mode = #tpu.pipeline_mode<synchronous>, transform_indices = @transform_36, window_bounds = array<i64: 64, 32>}, {pipeline_mode = #tpu.pipeline_mode<synchronous>, transform_indices = @transform_37, window_bounds = array<i64: 1, 32>}, {pipeline_mode = #tpu.pipeline_mode<synchronous>, transform_indices = @transform_38, window_bounds = array<i64: 1, 32>}, {pipeline_mode = #tpu.pipeline_mode<synchronous>, transform_indices = @transform_39, window_bounds = array<i64: 1, 32>}, {pipeline_mode = #tpu.pipeline_mode<synchronous>, transform_indices = @transform_40, window_bounds = array<i64: 2, 8>}, {pipeline_mode = #tpu.pipeline_mode<synchronous>, transform_indices = @transform_41, window_bounds = array<i64: 1, 32>}, {pipeline_mode = #tpu.pipeline_mode<synchronous>, transform_indices = @transform_42, window_bounds = array<i64: 32, 16>}, {pipeline_mode = #tpu.pipeline_mode<synchronous>, transform_indices = @transform_43, window_bounds = array<i64: 1, 16>}, {pipeline_mode = #tpu.pipeline_mode<synchronous>, transform_indices = @transform_44, window_bounds = array<i64: 16, 32>}, {pipeline_mode = #tpu.pipeline_mode<synchronous>, transform_indices = @transform_45, window_bounds = array<i64: 1, 32>}, {pipeline_mode = #tpu.pipeline_mode<synchronous>, transform_indices = @transform_46, window_bounds = array<i64: 32, 96>}, {pipeline_mode = #tpu.pipeline_mode<synchronous>, transform_indices = @transform_47, window_bounds = array<i64: 1, 96>}, {pipeline_mode = #tpu.pipeline_mode<synchronous>, transform_indices = @transform_48, window_bounds = array<i64: 32, 32>}, {pipeline_mode = #tpu.pipeline_mode<synchronous>, transform_indices = @transform_49, window_bounds = array<i64: 1, 32>}, {pipeline_mode = #tpu.pipeline_mode<synchronous>, transform_indices = @transform_50, window_bounds = array<i64: 1, 32>}, {pipeline_mode = #tpu.pipeline_mode<synchronous>, transform_indices = @transform_51, window_bounds = array<i64: 1, 32>}, {pipeline_mode = #tpu.pipeline_mode<synchronous>, transform_indices = @transform_52, window_bounds = array<i64: 32, 64>}, {pipeline_mode = #tpu.pipeline_mode<synchronous>, transform_indices = @transform_53, window_bounds = array<i64: 1, 64>}, {pipeline_mode = #tpu.pipeline_mode<synchronous>, transform_indices = @transform_54, window_bounds = array<i64: 64, 32>}, {pipeline_mode = #tpu.pipeline_mode<synchronous>, transform_indices = @transform_55, window_bounds = array<i64: 1, 32>}, {pipeline_mode = #tpu.pipeline_mode<synchronous>, transform_indices = @transform_56, window_bounds = array<i64: 1, 32>}, {pipeline_mode = #tpu.pipeline_mode<synchronous>, transform_indices = @transform_57, window_bounds = array<i64: 1, 32>}, {transform_indices = @transform_58, window_bounds = array<i64: 1, 1, 32>}]} {
    %c0 = arith.constant 0 : index
    %c0_0 = arith.constant 0 : index
    %0 = vector.load %arg3[%c0, %c0_0] : memref<1x32xf32, #tpu.memory_space<vmem>>, vector<1x32xf32>
    %c0_1 = arith.constant 0 : index
    %c0_2 = arith.constant 0 : index
    %1 = vector.load %arg4[%c0_1, %c0_2] : memref<1x32xf32, #tpu.memory_space<vmem>>, vector<1x32xf32>
    %c0_3 = arith.constant 0 : index
    %c0_4 = arith.constant 0 : index
    %c0_5 = arith.constant 0 : index
    %2 = vector.load %arg2[%c0_3, %c0_4, %c0_5] : memref<1x1x8xf32, #tpu.memory_space<vmem>>, vector<1x1x8xf32>
    %3 = vector.shape_cast %2 : vector<1x1x8xf32> to vector<1x8xf32>
    %c0_6 = arith.constant 0 : index
    %c0_7 = arith.constant 0 : index
    %c0_8 = arith.constant 0 : index
    %4 = vector.load %arg1[%c0_6, %c0_7, %c0_8] : memref<1x8x32xf32, #tpu.memory_space<vmem>>, vector<1x8x32xf32>
    %5 = vector.shape_cast %4 : vector<1x8x32xf32> to vector<8x32xf32>
    %cst = arith.constant dense<0.000000e+00> : vector<8xf32>
    %6 = vector.multi_reduction <add>, %5, %cst [1] : vector<8x32xf32> to vector<8xf32>
    %7 = vector.shape_cast %6 : vector<8xf32> to vector<8x1xf32>
    %cst_9 = arith.constant 3.200000e+01 : f32
    %8 = vector.broadcast %cst_9 : f32 to vector<8x1xf32>
    %9 = arith.divf %7, %8 : vector<8x1xf32>
    %10 = vector.broadcast %9 : vector<8x1xf32> to vector<8x32xf32>
    %11 = arith.subf %5, %10 : vector<8x32xf32>
    %12 = arith.mulf %11, %11 : vector<8x32xf32>
    %cst_10 = arith.constant dense<0.000000e+00> : vector<8xf32>
    %13 = vector.multi_reduction <add>, %12, %cst_10 [1] : vector<8x32xf32> to vector<8xf32>
    %14 = vector.shape_cast %13 : vector<8xf32> to vector<8x1xf32>
    %cst_11 = arith.constant 3.200000e+01 : f32
    %15 = vector.broadcast %cst_11 : f32 to vector<8x1xf32>
    %16 = arith.divf %14, %15 : vector<8x1xf32>
    %cst_12 = arith.constant 9.99999996E-13 : f32
    %17 = vector.broadcast %cst_12 : f32 to vector<8x1xf32>
    %18 = arith.addf %16, %17 : vector<8x1xf32>
    %19 = math.rsqrt %18 : vector<8x1xf32>
    %20 = vector.broadcast %19 : vector<8x1xf32> to vector<8x32xf32>
    %21 = arith.mulf %11, %20 : vector<8x32xf32>
    %22 = vector.broadcast %0 : vector<1x32xf32> to vector<8x32xf32>
    %23 = arith.mulf %21, %22 : vector<8x32xf32>
    %24 = vector.broadcast %1 : vector<1x32xf32> to vector<8x32xf32>
    %25 = arith.addf %23, %24 : vector<8x32xf32>
    %c0_13 = arith.constant 0 : index
    %c0_14 = arith.constant 0 : index
    %26 = vector.load %arg5[%c0_13, %c0_14] : memref<1x8xf32, #tpu.memory_space<vmem>>, vector<1x8xf32>
    %cst_15 = arith.constant dense<0.000000e+00> : vector<1x32xf32>
    %27 = tpu.matmul %26, %25, %cst_15 {dimension_numbers = #tpu.dot_dimension_numbers<[1], [0], [0], [1], [0, 0, 1, 1], [], []>} : vector<1x8xf32>, vector<8x32xf32>, vector<1x32xf32> -> vector<1x32xf32>
    %c0_16 = arith.constant 0 : index
    %c0_17 = arith.constant 0 : index
    %28 = vector.load %arg6[%c0_16, %c0_17] : memref<1x32xf32, #tpu.memory_space<vmem>>, vector<1x32xf32>
    %29 = arith.addf %27, %28 : vector<1x32xf32>
    %c0_18 = arith.constant 0 : index
    %c0_19 = arith.constant 0 : index
    %30 = vector.load %arg7[%c0_18, %c0_19] : memref<32x16xf32, #tpu.memory_space<vmem>>, vector<32x16xf32>
    %cst_20 = arith.constant dense<0.000000e+00> : vector<1x16xf32>
    %31 = tpu.matmul %29, %30, %cst_20 {dimension_numbers = #tpu.dot_dimension_numbers<[1], [0], [0], [1], [0, 0, 1, 1], [], []>} : vector<1x32xf32>, vector<32x16xf32>, vector<1x16xf32> -> vector<1x16xf32>
    %c0_21 = arith.constant 0 : index
    %c0_22 = arith.constant 0 : index
    %32 = vector.load %arg8[%c0_21, %c0_22] : memref<1x16xf32, #tpu.memory_space<vmem>>, vector<1x16xf32>
    %33 = arith.addf %31, %32 : vector<1x16xf32>
    %cst_23 = arith.constant 5.000000e-01 : f32
    %34 = vector.broadcast %cst_23 : f32 to vector<1x16xf32>
    %35 = arith.mulf %34, %33 : vector<1x16xf32>
    %cst_24 = arith.constant 0.707106769 : f32
    %36 = vector.broadcast %cst_24 : f32 to vector<1x16xf32>
    %37 = arith.mulf %33, %36 : vector<1x16xf32>
    %38 = math.absf %37 : vector<1x16xf32>
    %cst_25 = arith.constant 0.327591091 : f32
    %39 = vector.broadcast %cst_25 : f32 to vector<1x16xf32>
    %40 = arith.mulf %39, %38 : vector<1x16xf32>
    %cst_26 = arith.constant 1.000000e+00 : f32
    %41 = vector.broadcast %cst_26 : f32 to vector<1x16xf32>
    %42 = arith.addf %41, %40 : vector<1x16xf32>
    %cst_27 = arith.constant 1.000000e+00 : f32
    %43 = vector.broadcast %cst_27 : f32 to vector<1x16xf32>
    %44 = arith.divf %43, %42 : vector<1x16xf32>
    %cst_28 = arith.constant 1.06140542 : f32
    %45 = vector.broadcast %cst_28 : f32 to vector<1x16xf32>
    %46 = arith.mulf %44, %45 : vector<1x16xf32>
    %cst_29 = arith.constant -1.45315206 : f32
    %47 = vector.broadcast %cst_29 : f32 to vector<1x16xf32>
    %48 = arith.addf %47, %46 : vector<1x16xf32>
    %49 = arith.mulf %44, %48 : vector<1x16xf32>
    %cst_30 = arith.constant 1.42141378 : f32
    %50 = vector.broadcast %cst_30 : f32 to vector<1x16xf32>
    %51 = arith.addf %50, %49 : vector<1x16xf32>
    %52 = arith.mulf %44, %51 : vector<1x16xf32>
    %cst_31 = arith.constant -0.284496725 : f32
    %53 = vector.broadcast %cst_31 : f32 to vector<1x16xf32>
    %54 = arith.addf %53, %52 : vector<1x16xf32>
    %55 = arith.mulf %44, %54 : vector<1x16xf32>
    %cst_32 = arith.constant 0.254829586 : f32
    %56 = vector.broadcast %cst_32 : f32 to vector<1x16xf32>
    %57 = arith.addf %56, %55 : vector<1x16xf32>
    %58 = arith.mulf %44, %57 : vector<1x16xf32>
    %cst_33 = arith.constant 0.000000e+00 : f32
    %59 = vector.broadcast %cst_33 : f32 to vector<1x16xf32>
    %60 = arith.subf %59, %38 : vector<1x16xf32>
    %61 = arith.mulf %60, %38 : vector<1x16xf32>
    %62 = math.exp %61 : vector<1x16xf32>
    %63 = arith.mulf %58, %62 : vector<1x16xf32>
    %cst_34 = arith.constant 1.000000e+00 : f32
    %64 = vector.broadcast %cst_34 : f32 to vector<1x16xf32>
    %65 = arith.subf %64, %63 : vector<1x16xf32>
    %cst_35 = arith.constant 0.000000e+00 : f32
    %66 = vector.broadcast %cst_35 : f32 to vector<1x16xf32>
    %67 = arith.cmpf oge, %37, %66 : vector<1x16xf32>
    %cst_36 = arith.constant 0.000000e+00 : f32
    %68 = vector.broadcast %cst_36 : f32 to vector<1x16xf32>
    %69 = arith.subf %68, %65 : vector<1x16xf32>
    %70 = arith.select %67, %65, %69 : vector<1x16xi1>, vector<1x16xf32>
    %cst_37 = arith.constant 1.000000e+00 : f32
    %71 = vector.broadcast %cst_37 : f32 to vector<1x16xf32>
    %72 = arith.addf %71, %70 : vector<1x16xf32>
    %73 = arith.mulf %35, %72 : vector<1x16xf32>
    %c0_38 = arith.constant 0 : index
    %c0_39 = arith.constant 0 : index
    %74 = vector.load %arg9[%c0_38, %c0_39] : memref<16x32xf32, #tpu.memory_space<vmem>>, vector<16x32xf32>
    %cst_40 = arith.constant dense<0.000000e+00> : vector<1x32xf32>
    %75 = tpu.matmul %73, %74, %cst_40 {dimension_numbers = #tpu.dot_dimension_numbers<[1], [0], [0], [1], [0, 0, 1, 1], [], []>} : vector<1x16xf32>, vector<16x32xf32>, vector<1x32xf32> -> vector<1x32xf32>
    %c0_41 = arith.constant 0 : index
    %c0_42 = arith.constant 0 : index
    %76 = vector.load %arg10[%c0_41, %c0_42] : memref<1x32xf32, #tpu.memory_space<vmem>>, vector<1x32xf32>
    %77 = arith.addf %75, %76 : vector<1x32xf32>
    %78 = vector.broadcast %77 : vector<1x32xf32> to vector<8x32xf32>
    %79 = arith.addf %25, %78 : vector<8x32xf32>
    %c0_43 = arith.constant 0 : index
    %c0_44 = arith.constant 0 : index
    %80 = vector.load %arg11[%c0_43, %c0_44] : memref<32x96xf32, #tpu.memory_space<vmem>>, vector<32x96xf32>
    %cst_45 = arith.constant dense<0.000000e+00> : vector<8x96xf32>
    %81 = tpu.matmul %79, %80, %cst_45 {dimension_numbers = #tpu.dot_dimension_numbers<[1], [0], [0], [1], [0, 0, 1, 1], [], []>} : vector<8x32xf32>, vector<32x96xf32>, vector<8x96xf32> -> vector<8x96xf32>
    %c0_46 = arith.constant 0 : index
    %c0_47 = arith.constant 0 : index
    %82 = vector.load %arg12[%c0_46, %c0_47] : memref<1x96xf32, #tpu.memory_space<vmem>>, vector<1x96xf32>
    %83 = vector.broadcast %82 : vector<1x96xf32> to vector<8x96xf32>
    %84 = arith.addf %81, %83 : vector<8x96xf32>
    %c0_48 = arith.constant 0 : index
    %c0_49 = arith.constant 0 : index
    %85 = vector.load %arg13[%c0_48, %c0_49] : memref<32x32xf32, #tpu.memory_space<vmem>>, vector<32x32xf32>
    %86 = vector.extract_strided_slice %84 {offsets = [0, 0], sizes = [8, 8], strides = [1, 1]} : vector<8x96xf32> to vector<8x8xf32>
    %87 = vector.extract_strided_slice %84 {offsets = [0, 32], sizes = [8, 8], strides = [1, 1]} : vector<8x96xf32> to vector<8x8xf32>
    %88 = vector.extract_strided_slice %84 {offsets = [0, 64], sizes = [8, 8], strides = [1, 1]} : vector<8x96xf32> to vector<8x8xf32>
    %cst_50 = arith.constant dense<0.000000e+00> : vector<8x8xf32>
    %89 = tpu.matmul %86, %87, %cst_50 {dimension_numbers = #tpu.dot_dimension_numbers<[1], [1], [0], [0], [0, 0, 1, 0], [], []>} : vector<8x8xf32>, vector<8x8xf32>, vector<8x8xf32> -> vector<8x8xf32>
    %cst_51 = arith.constant 0.353553385 : f32
    %90 = vector.broadcast %cst_51 : f32 to vector<8x8xf32>
    %91 = arith.mulf %89, %90 : vector<8x8xf32>
    %92 = vector.broadcast %3 : vector<1x8xf32> to vector<8x8xf32>
    %93 = arith.addf %91, %92 : vector<8x8xf32>
    %cst_52 = arith.constant dense<0xFF800000> : vector<8xf32>
    %94 = vector.multi_reduction <maximumf>, %93, %cst_52 [1] : vector<8x8xf32> to vector<8xf32>
    %95 = vector.shape_cast %94 : vector<8xf32> to vector<8x1xf32>
    %96 = vector.broadcast %95 : vector<8x1xf32> to vector<8x8xf32>
    %97 = arith.subf %93, %96 : vector<8x8xf32>
    %98 = math.exp %97 : vector<8x8xf32>
    %cst_53 = arith.constant dense<0.000000e+00> : vector<8xf32>
    %99 = vector.multi_reduction <add>, %98, %cst_53 [1] : vector<8x8xf32> to vector<8xf32>
    %100 = vector.shape_cast %99 : vector<8xf32> to vector<8x1xf32>
    %101 = tpu.reciprocal %100 {approx = true} : vector<8x1xf32> -> vector<8x1xf32>
    %102 = vector.broadcast %101 : vector<8x1xf32> to vector<8x8xf32>
    %103 = arith.mulf %98, %102 : vector<8x8xf32>
    %cst_54 = arith.constant dense<0.000000e+00> : vector<8x8xf32>
    %104 = tpu.matmul %103, %88, %cst_54 {dimension_numbers = #tpu.dot_dimension_numbers<[1], [0], [0], [1], [0, 0, 1, 1], [], []>} : vector<8x8xf32>, vector<8x8xf32>, vector<8x8xf32> -> vector<8x8xf32>
    %105 = vector.extract_strided_slice %85 {offsets = [0, 0], sizes = [8, 32], strides = [1, 1]} : vector<32x32xf32> to vector<8x32xf32>
    %cst_55 = arith.constant dense<0.000000e+00> : vector<8x32xf32>
    %106 = tpu.matmul %104, %105, %cst_55 {dimension_numbers = #tpu.dot_dimension_numbers<[1], [0], [0], [1], [0, 0, 1, 1], [], []>} : vector<8x8xf32>, vector<8x32xf32>, vector<8x32xf32> -> vector<8x32xf32>
    %107 = vector.extract_strided_slice %84 {offsets = [0, 8], sizes = [8, 8], strides = [1, 1]} : vector<8x96xf32> to vector<8x8xf32>
    %108 = vector.extract_strided_slice %84 {offsets = [0, 40], sizes = [8, 8], strides = [1, 1]} : vector<8x96xf32> to vector<8x8xf32>
    %109 = vector.extract_strided_slice %84 {offsets = [0, 72], sizes = [8, 8], strides = [1, 1]} : vector<8x96xf32> to vector<8x8xf32>
    %cst_56 = arith.constant dense<0.000000e+00> : vector<8x8xf32>
    %110 = tpu.matmul %107, %108, %cst_56 {dimension_numbers = #tpu.dot_dimension_numbers<[1], [1], [0], [0], [0, 0, 1, 0], [], []>} : vector<8x8xf32>, vector<8x8xf32>, vector<8x8xf32> -> vector<8x8xf32>
    %cst_57 = arith.constant 0.353553385 : f32
    %111 = vector.broadcast %cst_57 : f32 to vector<8x8xf32>
    %112 = arith.mulf %110, %111 : vector<8x8xf32>
    %113 = vector.broadcast %3 : vector<1x8xf32> to vector<8x8xf32>
    %114 = arith.addf %112, %113 : vector<8x8xf32>
    %cst_58 = arith.constant dense<0xFF800000> : vector<8xf32>
    %115 = vector.multi_reduction <maximumf>, %114, %cst_58 [1] : vector<8x8xf32> to vector<8xf32>
    %116 = vector.shape_cast %115 : vector<8xf32> to vector<8x1xf32>
    %117 = vector.broadcast %116 : vector<8x1xf32> to vector<8x8xf32>
    %118 = arith.subf %114, %117 : vector<8x8xf32>
    %119 = math.exp %118 : vector<8x8xf32>
    %cst_59 = arith.constant dense<0.000000e+00> : vector<8xf32>
    %120 = vector.multi_reduction <add>, %119, %cst_59 [1] : vector<8x8xf32> to vector<8xf32>
    %121 = vector.shape_cast %120 : vector<8xf32> to vector<8x1xf32>
    %122 = tpu.reciprocal %121 {approx = true} : vector<8x1xf32> -> vector<8x1xf32>
    %123 = vector.broadcast %122 : vector<8x1xf32> to vector<8x8xf32>
    %124 = arith.mulf %119, %123 : vector<8x8xf32>
    %cst_60 = arith.constant dense<0.000000e+00> : vector<8x8xf32>
    %125 = tpu.matmul %124, %109, %cst_60 {dimension_numbers = #tpu.dot_dimension_numbers<[1], [0], [0], [1], [0, 0, 1, 1], [], []>} : vector<8x8xf32>, vector<8x8xf32>, vector<8x8xf32> -> vector<8x8xf32>
    %126 = vector.extract_strided_slice %85 {offsets = [8, 0], sizes = [8, 32], strides = [1, 1]} : vector<32x32xf32> to vector<8x32xf32>
    %cst_61 = arith.constant dense<0.000000e+00> : vector<8x32xf32>
    %127 = tpu.matmul %125, %126, %cst_61 {dimension_numbers = #tpu.dot_dimension_numbers<[1], [0], [0], [1], [0, 0, 1, 1], [], []>} : vector<8x8xf32>, vector<8x32xf32>, vector<8x32xf32> -> vector<8x32xf32>
    %128 = arith.addf %106, %127 : vector<8x32xf32>
    %129 = vector.extract_strided_slice %84 {offsets = [0, 16], sizes = [8, 8], strides = [1, 1]} : vector<8x96xf32> to vector<8x8xf32>
    %130 = vector.extract_strided_slice %84 {offsets = [0, 48], sizes = [8, 8], strides = [1, 1]} : vector<8x96xf32> to vector<8x8xf32>
    %131 = vector.extract_strided_slice %84 {offsets = [0, 80], sizes = [8, 8], strides = [1, 1]} : vector<8x96xf32> to vector<8x8xf32>
    %cst_62 = arith.constant dense<0.000000e+00> : vector<8x8xf32>
    %132 = tpu.matmul %129, %130, %cst_62 {dimension_numbers = #tpu.dot_dimension_numbers<[1], [1], [0], [0], [0, 0, 1, 0], [], []>} : vector<8x8xf32>, vector<8x8xf32>, vector<8x8xf32> -> vector<8x8xf32>
    %cst_63 = arith.constant 0.353553385 : f32
    %133 = vector.broadcast %cst_63 : f32 to vector<8x8xf32>
    %134 = arith.mulf %132, %133 : vector<8x8xf32>
    %135 = vector.broadcast %3 : vector<1x8xf32> to vector<8x8xf32>
    %136 = arith.addf %134, %135 : vector<8x8xf32>
    %cst_64 = arith.constant dense<0xFF800000> : vector<8xf32>
    %137 = vector.multi_reduction <maximumf>, %136, %cst_64 [1] : vector<8x8xf32> to vector<8xf32>
    %138 = vector.shape_cast %137 : vector<8xf32> to vector<8x1xf32>
    %139 = vector.broadcast %138 : vector<8x1xf32> to vector<8x8xf32>
    %140 = arith.subf %136, %139 : vector<8x8xf32>
    %141 = math.exp %140 : vector<8x8xf32>
    %cst_65 = arith.constant dense<0.000000e+00> : vector<8xf32>
    %142 = vector.multi_reduction <add>, %141, %cst_65 [1] : vector<8x8xf32> to vector<8xf32>
    %143 = vector.shape_cast %142 : vector<8xf32> to vector<8x1xf32>
    %144 = tpu.reciprocal %143 {approx = true} : vector<8x1xf32> -> vector<8x1xf32>
    %145 = vector.broadcast %144 : vector<8x1xf32> to vector<8x8xf32>
    %146 = arith.mulf %141, %145 : vector<8x8xf32>
    %cst_66 = arith.constant dense<0.000000e+00> : vector<8x8xf32>
    %147 = tpu.matmul %146, %131, %cst_66 {dimension_numbers = #tpu.dot_dimension_numbers<[1], [0], [0], [1], [0, 0, 1, 1], [], []>} : vector<8x8xf32>, vector<8x8xf32>, vector<8x8xf32> -> vector<8x8xf32>
    %148 = vector.extract_strided_slice %85 {offsets = [16, 0], sizes = [8, 32], strides = [1, 1]} : vector<32x32xf32> to vector<8x32xf32>
    %cst_67 = arith.constant dense<0.000000e+00> : vector<8x32xf32>
    %149 = tpu.matmul %147, %148, %cst_67 {dimension_numbers = #tpu.dot_dimension_numbers<[1], [0], [0], [1], [0, 0, 1, 1], [], []>} : vector<8x8xf32>, vector<8x32xf32>, vector<8x32xf32> -> vector<8x32xf32>
    %150 = arith.addf %128, %149 : vector<8x32xf32>
    %151 = vector.extract_strided_slice %84 {offsets = [0, 24], sizes = [8, 8], strides = [1, 1]} : vector<8x96xf32> to vector<8x8xf32>
    %152 = vector.extract_strided_slice %84 {offsets = [0, 56], sizes = [8, 8], strides = [1, 1]} : vector<8x96xf32> to vector<8x8xf32>
    %153 = vector.extract_strided_slice %84 {offsets = [0, 88], sizes = [8, 8], strides = [1, 1]} : vector<8x96xf32> to vector<8x8xf32>
    %cst_68 = arith.constant dense<0.000000e+00> : vector<8x8xf32>
    %154 = tpu.matmul %151, %152, %cst_68 {dimension_numbers = #tpu.dot_dimension_numbers<[1], [1], [0], [0], [0, 0, 1, 0], [], []>} : vector<8x8xf32>, vector<8x8xf32>, vector<8x8xf32> -> vector<8x8xf32>
    %cst_69 = arith.constant 0.353553385 : f32
    %155 = vector.broadcast %cst_69 : f32 to vector<8x8xf32>
    %156 = arith.mulf %154, %155 : vector<8x8xf32>
    %157 = vector.broadcast %3 : vector<1x8xf32> to vector<8x8xf32>
    %158 = arith.addf %156, %157 : vector<8x8xf32>
    %cst_70 = arith.constant dense<0xFF800000> : vector<8xf32>
    %159 = vector.multi_reduction <maximumf>, %158, %cst_70 [1] : vector<8x8xf32> to vector<8xf32>
    %160 = vector.shape_cast %159 : vector<8xf32> to vector<8x1xf32>
    %161 = vector.broadcast %160 : vector<8x1xf32> to vector<8x8xf32>
    %162 = arith.subf %158, %161 : vector<8x8xf32>
    %163 = math.exp %162 : vector<8x8xf32>
    %cst_71 = arith.constant dense<0.000000e+00> : vector<8xf32>
    %164 = vector.multi_reduction <add>, %163, %cst_71 [1] : vector<8x8xf32> to vector<8xf32>
    %165 = vector.shape_cast %164 : vector<8xf32> to vector<8x1xf32>
    %166 = tpu.reciprocal %165 {approx = true} : vector<8x1xf32> -> vector<8x1xf32>
    %167 = vector.broadcast %166 : vector<8x1xf32> to vector<8x8xf32>
    %168 = arith.mulf %163, %167 : vector<8x8xf32>
    %cst_72 = arith.constant dense<0.000000e+00> : vector<8x8xf32>
    %169 = tpu.matmul %168, %153, %cst_72 {dimension_numbers = #tpu.dot_dimension_numbers<[1], [0], [0], [1], [0, 0, 1, 1], [], []>} : vector<8x8xf32>, vector<8x8xf32>, vector<8x8xf32> -> vector<8x8xf32>
    %170 = vector.extract_strided_slice %85 {offsets = [24, 0], sizes = [8, 32], strides = [1, 1]} : vector<32x32xf32> to vector<8x32xf32>
    %cst_73 = arith.constant dense<0.000000e+00> : vector<8x32xf32>
    %171 = tpu.matmul %169, %170, %cst_73 {dimension_numbers = #tpu.dot_dimension_numbers<[1], [0], [0], [1], [0, 0, 1, 1], [], []>} : vector<8x8xf32>, vector<8x32xf32>, vector<8x32xf32> -> vector<8x32xf32>
    %172 = arith.addf %150, %171 : vector<8x32xf32>
    %c0_74 = arith.constant 0 : index
    %c0_75 = arith.constant 0 : index
    %173 = vector.load %arg14[%c0_74, %c0_75] : memref<1x32xf32, #tpu.memory_space<vmem>>, vector<1x32xf32>
    %174 = vector.broadcast %173 : vector<1x32xf32> to vector<8x32xf32>
    %175 = arith.addf %172, %174 : vector<8x32xf32>
    %176 = arith.addf %175, %79 : vector<8x32xf32>
    %c0_76 = arith.constant 0 : index
    %c0_77 = arith.constant 0 : index
    %177 = vector.load %arg15[%c0_76, %c0_77] : memref<1x32xf32, #tpu.memory_space<vmem>>, vector<1x32xf32>
    %c0_78 = arith.constant 0 : index
    %c0_79 = arith.constant 0 : index
    %178 = vector.load %arg16[%c0_78, %c0_79] : memref<1x32xf32, #tpu.memory_space<vmem>>, vector<1x32xf32>
    %cst_80 = arith.constant dense<0.000000e+00> : vector<8xf32>
    %179 = vector.multi_reduction <add>, %176, %cst_80 [1] : vector<8x32xf32> to vector<8xf32>
    %180 = vector.shape_cast %179 : vector<8xf32> to vector<8x1xf32>
    %cst_81 = arith.constant 3.200000e+01 : f32
    %181 = vector.broadcast %cst_81 : f32 to vector<8x1xf32>
    %182 = arith.divf %180, %181 : vector<8x1xf32>
    %183 = vector.broadcast %182 : vector<8x1xf32> to vector<8x32xf32>
    %184 = arith.subf %176, %183 : vector<8x32xf32>
    %185 = arith.mulf %184, %184 : vector<8x32xf32>
    %cst_82 = arith.constant dense<0.000000e+00> : vector<8xf32>
    %186 = vector.multi_reduction <add>, %185, %cst_82 [1] : vector<8x32xf32> to vector<8xf32>
    %187 = vector.shape_cast %186 : vector<8xf32> to vector<8x1xf32>
    %cst_83 = arith.constant 3.200000e+01 : f32
    %188 = vector.broadcast %cst_83 : f32 to vector<8x1xf32>
    %189 = arith.divf %187, %188 : vector<8x1xf32>
    %cst_84 = arith.constant 9.99999996E-13 : f32
    %190 = vector.broadcast %cst_84 : f32 to vector<8x1xf32>
    %191 = arith.addf %189, %190 : vector<8x1xf32>
    %192 = math.rsqrt %191 : vector<8x1xf32>
    %193 = vector.broadcast %192 : vector<8x1xf32> to vector<8x32xf32>
    %194 = arith.mulf %184, %193 : vector<8x32xf32>
    %195 = vector.broadcast %177 : vector<1x32xf32> to vector<8x32xf32>
    %196 = arith.mulf %194, %195 : vector<8x32xf32>
    %197 = vector.broadcast %178 : vector<1x32xf32> to vector<8x32xf32>
    %198 = arith.addf %196, %197 : vector<8x32xf32>
    %c0_85 = arith.constant 0 : index
    %c0_86 = arith.constant 0 : index
    %199 = vector.load %arg17[%c0_85, %c0_86] : memref<32x64xf32, #tpu.memory_space<vmem>>, vector<32x64xf32>
    %cst_87 = arith.constant dense<0.000000e+00> : vector<8x64xf32>
    %200 = tpu.matmul %198, %199, %cst_87 {dimension_numbers = #tpu.dot_dimension_numbers<[1], [0], [0], [1], [0, 0, 1, 1], [], []>} : vector<8x32xf32>, vector<32x64xf32>, vector<8x64xf32> -> vector<8x64xf32>
    %c0_88 = arith.constant 0 : index
    %c0_89 = arith.constant 0 : index
    %201 = vector.load %arg18[%c0_88, %c0_89] : memref<1x64xf32, #tpu.memory_space<vmem>>, vector<1x64xf32>
    %202 = vector.broadcast %201 : vector<1x64xf32> to vector<8x64xf32>
    %203 = arith.addf %200, %202 : vector<8x64xf32>
    %cst_90 = arith.constant 5.000000e-01 : f32
    %204 = vector.broadcast %cst_90 : f32 to vector<8x64xf32>
    %205 = arith.mulf %204, %203 : vector<8x64xf32>
    %cst_91 = arith.constant 0.707106769 : f32
    %206 = vector.broadcast %cst_91 : f32 to vector<8x64xf32>
    %207 = arith.mulf %203, %206 : vector<8x64xf32>
    %208 = math.absf %207 : vector<8x64xf32>
    %cst_92 = arith.constant 0.327591091 : f32
    %209 = vector.broadcast %cst_92 : f32 to vector<8x64xf32>
    %210 = arith.mulf %209, %208 : vector<8x64xf32>
    %cst_93 = arith.constant 1.000000e+00 : f32
    %211 = vector.broadcast %cst_93 : f32 to vector<8x64xf32>
    %212 = arith.addf %211, %210 : vector<8x64xf32>
    %cst_94 = arith.constant 1.000000e+00 : f32
    %213 = vector.broadcast %cst_94 : f32 to vector<8x64xf32>
    %214 = arith.divf %213, %212 : vector<8x64xf32>
    %cst_95 = arith.constant 1.06140542 : f32
    %215 = vector.broadcast %cst_95 : f32 to vector<8x64xf32>
    %216 = arith.mulf %214, %215 : vector<8x64xf32>
    %cst_96 = arith.constant -1.45315206 : f32
    %217 = vector.broadcast %cst_96 : f32 to vector<8x64xf32>
    %218 = arith.addf %217, %216 : vector<8x64xf32>
    %219 = arith.mulf %214, %218 : vector<8x64xf32>
    %cst_97 = arith.constant 1.42141378 : f32
    %220 = vector.broadcast %cst_97 : f32 to vector<8x64xf32>
    %221 = arith.addf %220, %219 : vector<8x64xf32>
    %222 = arith.mulf %214, %221 : vector<8x64xf32>
    %cst_98 = arith.constant -0.284496725 : f32
    %223 = vector.broadcast %cst_98 : f32 to vector<8x64xf32>
    %224 = arith.addf %223, %222 : vector<8x64xf32>
    %225 = arith.mulf %214, %224 : vector<8x64xf32>
    %cst_99 = arith.constant 0.254829586 : f32
    %226 = vector.broadcast %cst_99 : f32 to vector<8x64xf32>
    %227 = arith.addf %226, %225 : vector<8x64xf32>
    %228 = arith.mulf %214, %227 : vector<8x64xf32>
    %cst_100 = arith.constant 0.000000e+00 : f32
    %229 = vector.broadcast %cst_100 : f32 to vector<8x64xf32>
    %230 = arith.subf %229, %208 : vector<8x64xf32>
    %231 = arith.mulf %230, %208 : vector<8x64xf32>
    %232 = math.exp %231 : vector<8x64xf32>
    %233 = arith.mulf %228, %232 : vector<8x64xf32>
    %cst_101 = arith.constant 1.000000e+00 : f32
    %234 = vector.broadcast %cst_101 : f32 to vector<8x64xf32>
    %235 = arith.subf %234, %233 : vector<8x64xf32>
    %cst_102 = arith.constant 0.000000e+00 : f32
    %236 = vector.broadcast %cst_102 : f32 to vector<8x64xf32>
    %237 = arith.cmpf oge, %207, %236 : vector<8x64xf32>
    %cst_103 = arith.constant 0.000000e+00 : f32
    %238 = vector.broadcast %cst_103 : f32 to vector<8x64xf32>
    %239 = arith.subf %238, %235 : vector<8x64xf32>
    %240 = arith.select %237, %235, %239 : vector<8x64xi1>, vector<8x64xf32>
    %cst_104 = arith.constant 1.000000e+00 : f32
    %241 = vector.broadcast %cst_104 : f32 to vector<8x64xf32>
    %242 = arith.addf %241, %240 : vector<8x64xf32>
    %243 = arith.mulf %205, %242 : vector<8x64xf32>
    %c0_105 = arith.constant 0 : index
    %c0_106 = arith.constant 0 : index
    %244 = vector.load %arg19[%c0_105, %c0_106] : memref<64x32xf32, #tpu.memory_space<vmem>>, vector<64x32xf32>
    %cst_107 = arith.constant dense<0.000000e+00> : vector<8x32xf32>
    %245 = tpu.matmul %243, %244, %cst_107 {dimension_numbers = #tpu.dot_dimension_numbers<[1], [0], [0], [1], [0, 0, 1, 1], [], []>} : vector<8x64xf32>, vector<64x32xf32>, vector<8x32xf32> -> vector<8x32xf32>
    %c0_108 = arith.constant 0 : index
    %c0_109 = arith.constant 0 : index
    %246 = vector.load %arg20[%c0_108, %c0_109] : memref<1x32xf32, #tpu.memory_space<vmem>>, vector<1x32xf32>
    %247 = vector.broadcast %246 : vector<1x32xf32> to vector<8x32xf32>
    %248 = arith.addf %245, %247 : vector<8x32xf32>
    %249 = arith.addf %248, %198 : vector<8x32xf32>
    %c0_110 = arith.constant 0 : index
    %c0_111 = arith.constant 0 : index
    %250 = vector.load %arg21[%c0_110, %c0_111] : memref<1x32xf32, #tpu.memory_space<vmem>>, vector<1x32xf32>
    %c0_112 = arith.constant 0 : index
    %c0_113 = arith.constant 0 : index
    %251 = vector.load %arg22[%c0_112, %c0_113] : memref<1x32xf32, #tpu.memory_space<vmem>>, vector<1x32xf32>
    %cst_114 = arith.constant dense<0.000000e+00> : vector<8xf32>
    %252 = vector.multi_reduction <add>, %249, %cst_114 [1] : vector<8x32xf32> to vector<8xf32>
    %253 = vector.shape_cast %252 : vector<8xf32> to vector<8x1xf32>
    %cst_115 = arith.constant 3.200000e+01 : f32
    %254 = vector.broadcast %cst_115 : f32 to vector<8x1xf32>
    %255 = arith.divf %253, %254 : vector<8x1xf32>
    %256 = vector.broadcast %255 : vector<8x1xf32> to vector<8x32xf32>
    %257 = arith.subf %249, %256 : vector<8x32xf32>
    %258 = arith.mulf %257, %257 : vector<8x32xf32>
    %cst_116 = arith.constant dense<0.000000e+00> : vector<8xf32>
    %259 = vector.multi_reduction <add>, %258, %cst_116 [1] : vector<8x32xf32> to vector<8xf32>
    %260 = vector.shape_cast %259 : vector<8xf32> to vector<8x1xf32>
    %cst_117 = arith.constant 3.200000e+01 : f32
    %261 = vector.broadcast %cst_117 : f32 to vector<8x1xf32>
    %262 = arith.divf %260, %261 : vector<8x1xf32>
    %cst_118 = arith.constant 9.99999996E-13 : f32
    %263 = vector.broadcast %cst_118 : f32 to vector<8x1xf32>
    %264 = arith.addf %262, %263 : vector<8x1xf32>
    %265 = math.rsqrt %264 : vector<8x1xf32>
    %266 = vector.broadcast %265 : vector<8x1xf32> to vector<8x32xf32>
    %267 = arith.mulf %257, %266 : vector<8x32xf32>
    %268 = vector.broadcast %250 : vector<1x32xf32> to vector<8x32xf32>
    %269 = arith.mulf %267, %268 : vector<8x32xf32>
    %270 = vector.broadcast %251 : vector<1x32xf32> to vector<8x32xf32>
    %271 = arith.addf %269, %270 : vector<8x32xf32>
    %c0_119 = arith.constant 0 : index
    %c0_120 = arith.constant 0 : index
    %272 = vector.load %arg23[%c0_119, %c0_120] : memref<2x8xf32, #tpu.memory_space<vmem>>, vector<2x8xf32>
    %273 = vector.extract_strided_slice %272 {offsets = [0, 0], sizes = [1, 8], strides = [1, 1]} : vector<2x8xf32> to vector<1x8xf32>
    %cst_121 = arith.constant dense<0.000000e+00> : vector<1x32xf32>
    %274 = tpu.matmul %273, %25, %cst_121 {dimension_numbers = #tpu.dot_dimension_numbers<[1], [0], [0], [1], [0, 0, 1, 1], [], []>} : vector<1x8xf32>, vector<8x32xf32>, vector<1x32xf32> -> vector<1x32xf32>
    %275 = vector.extract_strided_slice %272 {offsets = [1, 0], sizes = [1, 8], strides = [1, 1]} : vector<2x8xf32> to vector<1x8xf32>
    %cst_122 = arith.constant dense<0.000000e+00> : vector<1x32xf32>
    %276 = tpu.matmul %275, %271, %cst_122 {dimension_numbers = #tpu.dot_dimension_numbers<[1], [0], [0], [1], [0, 0, 1, 1], [], []>} : vector<1x8xf32>, vector<8x32xf32>, vector<1x32xf32> -> vector<1x32xf32>
    %277 = arith.addf %274, %276 : vector<1x32xf32>
    %c0_123 = arith.constant 0 : index
    %c0_124 = arith.constant 0 : index
    %278 = vector.load %arg24[%c0_123, %c0_124] : memref<1x32xf32, #tpu.memory_space<vmem>>, vector<1x32xf32>
    %279 = arith.addf %277, %278 : vector<1x32xf32>
    %c0_125 = arith.constant 0 : index
    %c0_126 = arith.constant 0 : index
    %280 = vector.load %arg25[%c0_125, %c0_126] : memref<32x16xf32, #tpu.memory_space<vmem>>, vector<32x16xf32>
    %cst_127 = arith.constant dense<0.000000e+00> : vector<1x16xf32>
    %281 = tpu.matmul %279, %280, %cst_127 {dimension_numbers = #tpu.dot_dimension_numbers<[1], [0], [0], [1], [0, 0, 1, 1], [], []>} : vector<1x32xf32>, vector<32x16xf32>, vector<1x16xf32> -> vector<1x16xf32>
    %c0_128 = arith.constant 0 : index
    %c0_129 = arith.constant 0 : index
    %282 = vector.load %arg26[%c0_128, %c0_129] : memref<1x16xf32, #tpu.memory_space<vmem>>, vector<1x16xf32>
    %283 = arith.addf %281, %282 : vector<1x16xf32>
    %cst_130 = arith.constant 5.000000e-01 : f32
    %284 = vector.broadcast %cst_130 : f32 to vector<1x16xf32>
    %285 = arith.mulf %284, %283 : vector<1x16xf32>
    %cst_131 = arith.constant 0.707106769 : f32
    %286 = vector.broadcast %cst_131 : f32 to vector<1x16xf32>
    %287 = arith.mulf %283, %286 : vector<1x16xf32>
    %288 = math.absf %287 : vector<1x16xf32>
    %cst_132 = arith.constant 0.327591091 : f32
    %289 = vector.broadcast %cst_132 : f32 to vector<1x16xf32>
    %290 = arith.mulf %289, %288 : vector<1x16xf32>
    %cst_133 = arith.constant 1.000000e+00 : f32
    %291 = vector.broadcast %cst_133 : f32 to vector<1x16xf32>
    %292 = arith.addf %291, %290 : vector<1x16xf32>
    %cst_134 = arith.constant 1.000000e+00 : f32
    %293 = vector.broadcast %cst_134 : f32 to vector<1x16xf32>
    %294 = arith.divf %293, %292 : vector<1x16xf32>
    %cst_135 = arith.constant 1.06140542 : f32
    %295 = vector.broadcast %cst_135 : f32 to vector<1x16xf32>
    %296 = arith.mulf %294, %295 : vector<1x16xf32>
    %cst_136 = arith.constant -1.45315206 : f32
    %297 = vector.broadcast %cst_136 : f32 to vector<1x16xf32>
    %298 = arith.addf %297, %296 : vector<1x16xf32>
    %299 = arith.mulf %294, %298 : vector<1x16xf32>
    %cst_137 = arith.constant 1.42141378 : f32
    %300 = vector.broadcast %cst_137 : f32 to vector<1x16xf32>
    %301 = arith.addf %300, %299 : vector<1x16xf32>
    %302 = arith.mulf %294, %301 : vector<1x16xf32>
    %cst_138 = arith.constant -0.284496725 : f32
    %303 = vector.broadcast %cst_138 : f32 to vector<1x16xf32>
    %304 = arith.addf %303, %302 : vector<1x16xf32>
    %305 = arith.mulf %294, %304 : vector<1x16xf32>
    %cst_139 = arith.constant 0.254829586 : f32
    %306 = vector.broadcast %cst_139 : f32 to vector<1x16xf32>
    %307 = arith.addf %306, %305 : vector<1x16xf32>
    %308 = arith.mulf %294, %307 : vector<1x16xf32>
    %cst_140 = arith.constant 0.000000e+00 : f32
    %309 = vector.broadcast %cst_140 : f32 to vector<1x16xf32>
    %310 = arith.subf %309, %288 : vector<1x16xf32>
    %311 = arith.mulf %310, %288 : vector<1x16xf32>
    %312 = math.exp %311 : vector<1x16xf32>
    %313 = arith.mulf %308, %312 : vector<1x16xf32>
    %cst_141 = arith.constant 1.000000e+00 : f32
    %314 = vector.broadcast %cst_141 : f32 to vector<1x16xf32>
    %315 = arith.subf %314, %313 : vector<1x16xf32>
    %cst_142 = arith.constant 0.000000e+00 : f32
    %316 = vector.broadcast %cst_142 : f32 to vector<1x16xf32>
    %317 = arith.cmpf oge, %287, %316 : vector<1x16xf32>
    %cst_143 = arith.constant 0.000000e+00 : f32
    %318 = vector.broadcast %cst_143 : f32 to vector<1x16xf32>
    %319 = arith.subf %318, %315 : vector<1x16xf32>
    %320 = arith.select %317, %315, %319 : vector<1x16xi1>, vector<1x16xf32>
    %cst_144 = arith.constant 1.000000e+00 : f32
    %321 = vector.broadcast %cst_144 : f32 to vector<1x16xf32>
    %322 = arith.addf %321, %320 : vector<1x16xf32>
    %323 = arith.mulf %285, %322 : vector<1x16xf32>
    %c0_145 = arith.constant 0 : index
    %c0_146 = arith.constant 0 : index
    %324 = vector.load %arg27[%c0_145, %c0_146] : memref<16x32xf32, #tpu.memory_space<vmem>>, vector<16x32xf32>
    %cst_147 = arith.constant dense<0.000000e+00> : vector<1x32xf32>
    %325 = tpu.matmul %323, %324, %cst_147 {dimension_numbers = #tpu.dot_dimension_numbers<[1], [0], [0], [1], [0, 0, 1, 1], [], []>} : vector<1x16xf32>, vector<16x32xf32>, vector<1x32xf32> -> vector<1x32xf32>
    %c0_148 = arith.constant 0 : index
    %c0_149 = arith.constant 0 : index
    %326 = vector.load %arg28[%c0_148, %c0_149] : memref<1x32xf32, #tpu.memory_space<vmem>>, vector<1x32xf32>
    %327 = arith.addf %325, %326 : vector<1x32xf32>
    %328 = vector.broadcast %327 : vector<1x32xf32> to vector<8x32xf32>
    %329 = arith.addf %271, %328 : vector<8x32xf32>
    %c0_150 = arith.constant 0 : index
    %c0_151 = arith.constant 0 : index
    %330 = vector.load %arg29[%c0_150, %c0_151] : memref<32x96xf32, #tpu.memory_space<vmem>>, vector<32x96xf32>
    %cst_152 = arith.constant dense<0.000000e+00> : vector<8x96xf32>
    %331 = tpu.matmul %329, %330, %cst_152 {dimension_numbers = #tpu.dot_dimension_numbers<[1], [0], [0], [1], [0, 0, 1, 1], [], []>} : vector<8x32xf32>, vector<32x96xf32>, vector<8x96xf32> -> vector<8x96xf32>
    %c0_153 = arith.constant 0 : index
    %c0_154 = arith.constant 0 : index
    %332 = vector.load %arg30[%c0_153, %c0_154] : memref<1x96xf32, #tpu.memory_space<vmem>>, vector<1x96xf32>
    %333 = vector.broadcast %332 : vector<1x96xf32> to vector<8x96xf32>
    %334 = arith.addf %331, %333 : vector<8x96xf32>
    %c0_155 = arith.constant 0 : index
    %c0_156 = arith.constant 0 : index
    %335 = vector.load %arg31[%c0_155, %c0_156] : memref<32x32xf32, #tpu.memory_space<vmem>>, vector<32x32xf32>
    %336 = vector.extract_strided_slice %334 {offsets = [0, 0], sizes = [8, 8], strides = [1, 1]} : vector<8x96xf32> to vector<8x8xf32>
    %337 = vector.extract_strided_slice %334 {offsets = [0, 32], sizes = [8, 8], strides = [1, 1]} : vector<8x96xf32> to vector<8x8xf32>
    %338 = vector.extract_strided_slice %334 {offsets = [0, 64], sizes = [8, 8], strides = [1, 1]} : vector<8x96xf32> to vector<8x8xf32>
    %cst_157 = arith.constant dense<0.000000e+00> : vector<8x8xf32>
    %339 = tpu.matmul %336, %337, %cst_157 {dimension_numbers = #tpu.dot_dimension_numbers<[1], [1], [0], [0], [0, 0, 1, 0], [], []>} : vector<8x8xf32>, vector<8x8xf32>, vector<8x8xf32> -> vector<8x8xf32>
    %cst_158 = arith.constant 0.353553385 : f32
    %340 = vector.broadcast %cst_158 : f32 to vector<8x8xf32>
    %341 = arith.mulf %339, %340 : vector<8x8xf32>
    %342 = vector.broadcast %3 : vector<1x8xf32> to vector<8x8xf32>
    %343 = arith.addf %341, %342 : vector<8x8xf32>
    %cst_159 = arith.constant dense<0xFF800000> : vector<8xf32>
    %344 = vector.multi_reduction <maximumf>, %343, %cst_159 [1] : vector<8x8xf32> to vector<8xf32>
    %345 = vector.shape_cast %344 : vector<8xf32> to vector<8x1xf32>
    %346 = vector.broadcast %345 : vector<8x1xf32> to vector<8x8xf32>
    %347 = arith.subf %343, %346 : vector<8x8xf32>
    %348 = math.exp %347 : vector<8x8xf32>
    %cst_160 = arith.constant dense<0.000000e+00> : vector<8xf32>
    %349 = vector.multi_reduction <add>, %348, %cst_160 [1] : vector<8x8xf32> to vector<8xf32>
    %350 = vector.shape_cast %349 : vector<8xf32> to vector<8x1xf32>
    %351 = tpu.reciprocal %350 {approx = true} : vector<8x1xf32> -> vector<8x1xf32>
    %352 = vector.broadcast %351 : vector<8x1xf32> to vector<8x8xf32>
    %353 = arith.mulf %348, %352 : vector<8x8xf32>
    %cst_161 = arith.constant dense<0.000000e+00> : vector<8x8xf32>
    %354 = tpu.matmul %353, %338, %cst_161 {dimension_numbers = #tpu.dot_dimension_numbers<[1], [0], [0], [1], [0, 0, 1, 1], [], []>} : vector<8x8xf32>, vector<8x8xf32>, vector<8x8xf32> -> vector<8x8xf32>
    %355 = vector.extract_strided_slice %335 {offsets = [0, 0], sizes = [8, 32], strides = [1, 1]} : vector<32x32xf32> to vector<8x32xf32>
    %cst_162 = arith.constant dense<0.000000e+00> : vector<8x32xf32>
    %356 = tpu.matmul %354, %355, %cst_162 {dimension_numbers = #tpu.dot_dimension_numbers<[1], [0], [0], [1], [0, 0, 1, 1], [], []>} : vector<8x8xf32>, vector<8x32xf32>, vector<8x32xf32> -> vector<8x32xf32>
    %357 = vector.extract_strided_slice %334 {offsets = [0, 8], sizes = [8, 8], strides = [1, 1]} : vector<8x96xf32> to vector<8x8xf32>
    %358 = vector.extract_strided_slice %334 {offsets = [0, 40], sizes = [8, 8], strides = [1, 1]} : vector<8x96xf32> to vector<8x8xf32>
    %359 = vector.extract_strided_slice %334 {offsets = [0, 72], sizes = [8, 8], strides = [1, 1]} : vector<8x96xf32> to vector<8x8xf32>
    %cst_163 = arith.constant dense<0.000000e+00> : vector<8x8xf32>
    %360 = tpu.matmul %357, %358, %cst_163 {dimension_numbers = #tpu.dot_dimension_numbers<[1], [1], [0], [0], [0, 0, 1, 0], [], []>} : vector<8x8xf32>, vector<8x8xf32>, vector<8x8xf32> -> vector<8x8xf32>
    %cst_164 = arith.constant 0.353553385 : f32
    %361 = vector.broadcast %cst_164 : f32 to vector<8x8xf32>
    %362 = arith.mulf %360, %361 : vector<8x8xf32>
    %363 = vector.broadcast %3 : vector<1x8xf32> to vector<8x8xf32>
    %364 = arith.addf %362, %363 : vector<8x8xf32>
    %cst_165 = arith.constant dense<0xFF800000> : vector<8xf32>
    %365 = vector.multi_reduction <maximumf>, %364, %cst_165 [1] : vector<8x8xf32> to vector<8xf32>
    %366 = vector.shape_cast %365 : vector<8xf32> to vector<8x1xf32>
    %367 = vector.broadcast %366 : vector<8x1xf32> to vector<8x8xf32>
    %368 = arith.subf %364, %367 : vector<8x8xf32>
    %369 = math.exp %368 : vector<8x8xf32>
    %cst_166 = arith.constant dense<0.000000e+00> : vector<8xf32>
    %370 = vector.multi_reduction <add>, %369, %cst_166 [1] : vector<8x8xf32> to vector<8xf32>
    %371 = vector.shape_cast %370 : vector<8xf32> to vector<8x1xf32>
    %372 = tpu.reciprocal %371 {approx = true} : vector<8x1xf32> -> vector<8x1xf32>
    %373 = vector.broadcast %372 : vector<8x1xf32> to vector<8x8xf32>
    %374 = arith.mulf %369, %373 : vector<8x8xf32>
    %cst_167 = arith.constant dense<0.000000e+00> : vector<8x8xf32>
    %375 = tpu.matmul %374, %359, %cst_167 {dimension_numbers = #tpu.dot_dimension_numbers<[1], [0], [0], [1], [0, 0, 1, 1], [], []>} : vector<8x8xf32>, vector<8x8xf32>, vector<8x8xf32> -> vector<8x8xf32>
    %376 = vector.extract_strided_slice %335 {offsets = [8, 0], sizes = [8, 32], strides = [1, 1]} : vector<32x32xf32> to vector<8x32xf32>
    %cst_168 = arith.constant dense<0.000000e+00> : vector<8x32xf32>
    %377 = tpu.matmul %375, %376, %cst_168 {dimension_numbers = #tpu.dot_dimension_numbers<[1], [0], [0], [1], [0, 0, 1, 1], [], []>} : vector<8x8xf32>, vector<8x32xf32>, vector<8x32xf32> -> vector<8x32xf32>
    %378 = arith.addf %356, %377 : vector<8x32xf32>
    %379 = vector.extract_strided_slice %334 {offsets = [0, 16], sizes = [8, 8], strides = [1, 1]} : vector<8x96xf32> to vector<8x8xf32>
    %380 = vector.extract_strided_slice %334 {offsets = [0, 48], sizes = [8, 8], strides = [1, 1]} : vector<8x96xf32> to vector<8x8xf32>
    %381 = vector.extract_strided_slice %334 {offsets = [0, 80], sizes = [8, 8], strides = [1, 1]} : vector<8x96xf32> to vector<8x8xf32>
    %cst_169 = arith.constant dense<0.000000e+00> : vector<8x8xf32>
    %382 = tpu.matmul %379, %380, %cst_169 {dimension_numbers = #tpu.dot_dimension_numbers<[1], [1], [0], [0], [0, 0, 1, 0], [], []>} : vector<8x8xf32>, vector<8x8xf32>, vector<8x8xf32> -> vector<8x8xf32>
    %cst_170 = arith.constant 0.353553385 : f32
    %383 = vector.broadcast %cst_170 : f32 to vector<8x8xf32>
    %384 = arith.mulf %382, %383 : vector<8x8xf32>
    %385 = vector.broadcast %3 : vector<1x8xf32> to vector<8x8xf32>
    %386 = arith.addf %384, %385 : vector<8x8xf32>
    %cst_171 = arith.constant dense<0xFF800000> : vector<8xf32>
    %387 = vector.multi_reduction <maximumf>, %386, %cst_171 [1] : vector<8x8xf32> to vector<8xf32>
    %388 = vector.shape_cast %387 : vector<8xf32> to vector<8x1xf32>
    %389 = vector.broadcast %388 : vector<8x1xf32> to vector<8x8xf32>
    %390 = arith.subf %386, %389 : vector<8x8xf32>
    %391 = math.exp %390 : vector<8x8xf32>
    %cst_172 = arith.constant dense<0.000000e+00> : vector<8xf32>
    %392 = vector.multi_reduction <add>, %391, %cst_172 [1] : vector<8x8xf32> to vector<8xf32>
    %393 = vector.shape_cast %392 : vector<8xf32> to vector<8x1xf32>
    %394 = tpu.reciprocal %393 {approx = true} : vector<8x1xf32> -> vector<8x1xf32>
    %395 = vector.broadcast %394 : vector<8x1xf32> to vector<8x8xf32>
    %396 = arith.mulf %391, %395 : vector<8x8xf32>
    %cst_173 = arith.constant dense<0.000000e+00> : vector<8x8xf32>
    %397 = tpu.matmul %396, %381, %cst_173 {dimension_numbers = #tpu.dot_dimension_numbers<[1], [0], [0], [1], [0, 0, 1, 1], [], []>} : vector<8x8xf32>, vector<8x8xf32>, vector<8x8xf32> -> vector<8x8xf32>
    %398 = vector.extract_strided_slice %335 {offsets = [16, 0], sizes = [8, 32], strides = [1, 1]} : vector<32x32xf32> to vector<8x32xf32>
    %cst_174 = arith.constant dense<0.000000e+00> : vector<8x32xf32>
    %399 = tpu.matmul %397, %398, %cst_174 {dimension_numbers = #tpu.dot_dimension_numbers<[1], [0], [0], [1], [0, 0, 1, 1], [], []>} : vector<8x8xf32>, vector<8x32xf32>, vector<8x32xf32> -> vector<8x32xf32>
    %400 = arith.addf %378, %399 : vector<8x32xf32>
    %401 = vector.extract_strided_slice %334 {offsets = [0, 24], sizes = [8, 8], strides = [1, 1]} : vector<8x96xf32> to vector<8x8xf32>
    %402 = vector.extract_strided_slice %334 {offsets = [0, 56], sizes = [8, 8], strides = [1, 1]} : vector<8x96xf32> to vector<8x8xf32>
    %403 = vector.extract_strided_slice %334 {offsets = [0, 88], sizes = [8, 8], strides = [1, 1]} : vector<8x96xf32> to vector<8x8xf32>
    %cst_175 = arith.constant dense<0.000000e+00> : vector<8x8xf32>
    %404 = tpu.matmul %401, %402, %cst_175 {dimension_numbers = #tpu.dot_dimension_numbers<[1], [1], [0], [0], [0, 0, 1, 0], [], []>} : vector<8x8xf32>, vector<8x8xf32>, vector<8x8xf32> -> vector<8x8xf32>
    %cst_176 = arith.constant 0.353553385 : f32
    %405 = vector.broadcast %cst_176 : f32 to vector<8x8xf32>
    %406 = arith.mulf %404, %405 : vector<8x8xf32>
    %407 = vector.broadcast %3 : vector<1x8xf32> to vector<8x8xf32>
    %408 = arith.addf %406, %407 : vector<8x8xf32>
    %cst_177 = arith.constant dense<0xFF800000> : vector<8xf32>
    %409 = vector.multi_reduction <maximumf>, %408, %cst_177 [1] : vector<8x8xf32> to vector<8xf32>
    %410 = vector.shape_cast %409 : vector<8xf32> to vector<8x1xf32>
    %411 = vector.broadcast %410 : vector<8x1xf32> to vector<8x8xf32>
    %412 = arith.subf %408, %411 : vector<8x8xf32>
    %413 = math.exp %412 : vector<8x8xf32>
    %cst_178 = arith.constant dense<0.000000e+00> : vector<8xf32>
    %414 = vector.multi_reduction <add>, %413, %cst_178 [1] : vector<8x8xf32> to vector<8xf32>
    %415 = vector.shape_cast %414 : vector<8xf32> to vector<8x1xf32>
    %416 = tpu.reciprocal %415 {approx = true} : vector<8x1xf32> -> vector<8x1xf32>
    %417 = vector.broadcast %416 : vector<8x1xf32> to vector<8x8xf32>
    %418 = arith.mulf %413, %417 : vector<8x8xf32>
    %cst_179 = arith.constant dense<0.000000e+00> : vector<8x8xf32>
    %419 = tpu.matmul %418, %403, %cst_179 {dimension_numbers = #tpu.dot_dimension_numbers<[1], [0], [0], [1], [0, 0, 1, 1], [], []>} : vector<8x8xf32>, vector<8x8xf32>, vector<8x8xf32> -> vector<8x8xf32>
    %420 = vector.extract_strided_slice %335 {offsets = [24, 0], sizes = [8, 32], strides = [1, 1]} : vector<32x32xf32> to vector<8x32xf32>
    %cst_180 = arith.constant dense<0.000000e+00> : vector<8x32xf32>
    %421 = tpu.matmul %419, %420, %cst_180 {dimension_numbers = #tpu.dot_dimension_numbers<[1], [0], [0], [1], [0, 0, 1, 1], [], []>} : vector<8x8xf32>, vector<8x32xf32>, vector<8x32xf32> -> vector<8x32xf32>
    %422 = arith.addf %400, %421 : vector<8x32xf32>
    %c0_181 = arith.constant 0 : index
    %c0_182 = arith.constant 0 : index
    %423 = vector.load %arg32[%c0_181, %c0_182] : memref<1x32xf32, #tpu.memory_space<vmem>>, vector<1x32xf32>
    %424 = vector.broadcast %423 : vector<1x32xf32> to vector<8x32xf32>
    %425 = arith.addf %422, %424 : vector<8x32xf32>
    %426 = arith.addf %425, %329 : vector<8x32xf32>
    %c0_183 = arith.constant 0 : index
    %c0_184 = arith.constant 0 : index
    %427 = vector.load %arg33[%c0_183, %c0_184] : memref<1x32xf32, #tpu.memory_space<vmem>>, vector<1x32xf32>
    %c0_185 = arith.constant 0 : index
    %c0_186 = arith.constant 0 : index
    %428 = vector.load %arg34[%c0_185, %c0_186] : memref<1x32xf32, #tpu.memory_space<vmem>>, vector<1x32xf32>
    %cst_187 = arith.constant dense<0.000000e+00> : vector<8xf32>
    %429 = vector.multi_reduction <add>, %426, %cst_187 [1] : vector<8x32xf32> to vector<8xf32>
    %430 = vector.shape_cast %429 : vector<8xf32> to vector<8x1xf32>
    %cst_188 = arith.constant 3.200000e+01 : f32
    %431 = vector.broadcast %cst_188 : f32 to vector<8x1xf32>
    %432 = arith.divf %430, %431 : vector<8x1xf32>
    %433 = vector.broadcast %432 : vector<8x1xf32> to vector<8x32xf32>
    %434 = arith.subf %426, %433 : vector<8x32xf32>
    %435 = arith.mulf %434, %434 : vector<8x32xf32>
    %cst_189 = arith.constant dense<0.000000e+00> : vector<8xf32>
    %436 = vector.multi_reduction <add>, %435, %cst_189 [1] : vector<8x32xf32> to vector<8xf32>
    %437 = vector.shape_cast %436 : vector<8xf32> to vector<8x1xf32>
    %cst_190 = arith.constant 3.200000e+01 : f32
    %438 = vector.broadcast %cst_190 : f32 to vector<8x1xf32>
    %439 = arith.divf %437, %438 : vector<8x1xf32>
    %cst_191 = arith.constant 9.99999996E-13 : f32
    %440 = vector.broadcast %cst_191 : f32 to vector<8x1xf32>
    %441 = arith.addf %439, %440 : vector<8x1xf32>
    %442 = math.rsqrt %441 : vector<8x1xf32>
    %443 = vector.broadcast %442 : vector<8x1xf32> to vector<8x32xf32>
    %444 = arith.mulf %434, %443 : vector<8x32xf32>
    %445 = vector.broadcast %427 : vector<1x32xf32> to vector<8x32xf32>
    %446 = arith.mulf %444, %445 : vector<8x32xf32>
    %447 = vector.broadcast %428 : vector<1x32xf32> to vector<8x32xf32>
    %448 = arith.addf %446, %447 : vector<8x32xf32>
    %c0_192 = arith.constant 0 : index
    %c0_193 = arith.constant 0 : index
    %449 = vector.load %arg35[%c0_192, %c0_193] : memref<32x64xf32, #tpu.memory_space<vmem>>, vector<32x64xf32>
    %cst_194 = arith.constant dense<0.000000e+00> : vector<8x64xf32>
    %450 = tpu.matmul %448, %449, %cst_194 {dimension_numbers = #tpu.dot_dimension_numbers<[1], [0], [0], [1], [0, 0, 1, 1], [], []>} : vector<8x32xf32>, vector<32x64xf32>, vector<8x64xf32> -> vector<8x64xf32>
    %c0_195 = arith.constant 0 : index
    %c0_196 = arith.constant 0 : index
    %451 = vector.load %arg36[%c0_195, %c0_196] : memref<1x64xf32, #tpu.memory_space<vmem>>, vector<1x64xf32>
    %452 = vector.broadcast %451 : vector<1x64xf32> to vector<8x64xf32>
    %453 = arith.addf %450, %452 : vector<8x64xf32>
    %cst_197 = arith.constant 5.000000e-01 : f32
    %454 = vector.broadcast %cst_197 : f32 to vector<8x64xf32>
    %455 = arith.mulf %454, %453 : vector<8x64xf32>
    %cst_198 = arith.constant 0.707106769 : f32
    %456 = vector.broadcast %cst_198 : f32 to vector<8x64xf32>
    %457 = arith.mulf %453, %456 : vector<8x64xf32>
    %458 = math.absf %457 : vector<8x64xf32>
    %cst_199 = arith.constant 0.327591091 : f32
    %459 = vector.broadcast %cst_199 : f32 to vector<8x64xf32>
    %460 = arith.mulf %459, %458 : vector<8x64xf32>
    %cst_200 = arith.constant 1.000000e+00 : f32
    %461 = vector.broadcast %cst_200 : f32 to vector<8x64xf32>
    %462 = arith.addf %461, %460 : vector<8x64xf32>
    %cst_201 = arith.constant 1.000000e+00 : f32
    %463 = vector.broadcast %cst_201 : f32 to vector<8x64xf32>
    %464 = arith.divf %463, %462 : vector<8x64xf32>
    %cst_202 = arith.constant 1.06140542 : f32
    %465 = vector.broadcast %cst_202 : f32 to vector<8x64xf32>
    %466 = arith.mulf %464, %465 : vector<8x64xf32>
    %cst_203 = arith.constant -1.45315206 : f32
    %467 = vector.broadcast %cst_203 : f32 to vector<8x64xf32>
    %468 = arith.addf %467, %466 : vector<8x64xf32>
    %469 = arith.mulf %464, %468 : vector<8x64xf32>
    %cst_204 = arith.constant 1.42141378 : f32
    %470 = vector.broadcast %cst_204 : f32 to vector<8x64xf32>
    %471 = arith.addf %470, %469 : vector<8x64xf32>
    %472 = arith.mulf %464, %471 : vector<8x64xf32>
    %cst_205 = arith.constant -0.284496725 : f32
    %473 = vector.broadcast %cst_205 : f32 to vector<8x64xf32>
    %474 = arith.addf %473, %472 : vector<8x64xf32>
    %475 = arith.mulf %464, %474 : vector<8x64xf32>
    %cst_206 = arith.constant 0.254829586 : f32
    %476 = vector.broadcast %cst_206 : f32 to vector<8x64xf32>
    %477 = arith.addf %476, %475 : vector<8x64xf32>
    %478 = arith.mulf %464, %477 : vector<8x64xf32>
    %cst_207 = arith.constant 0.000000e+00 : f32
    %479 = vector.broadcast %cst_207 : f32 to vector<8x64xf32>
    %480 = arith.subf %479, %458 : vector<8x64xf32>
    %481 = arith.mulf %480, %458 : vector<8x64xf32>
    %482 = math.exp %481 : vector<8x64xf32>
    %483 = arith.mulf %478, %482 : vector<8x64xf32>
    %cst_208 = arith.constant 1.000000e+00 : f32
    %484 = vector.broadcast %cst_208 : f32 to vector<8x64xf32>
    %485 = arith.subf %484, %483 : vector<8x64xf32>
    %cst_209 = arith.constant 0.000000e+00 : f32
    %486 = vector.broadcast %cst_209 : f32 to vector<8x64xf32>
    %487 = arith.cmpf oge, %457, %486 : vector<8x64xf32>
    %cst_210 = arith.constant 0.000000e+00 : f32
    %488 = vector.broadcast %cst_210 : f32 to vector<8x64xf32>
    %489 = arith.subf %488, %485 : vector<8x64xf32>
    %490 = arith.select %487, %485, %489 : vector<8x64xi1>, vector<8x64xf32>
    %cst_211 = arith.constant 1.000000e+00 : f32
    %491 = vector.broadcast %cst_211 : f32 to vector<8x64xf32>
    %492 = arith.addf %491, %490 : vector<8x64xf32>
    %493 = arith.mulf %455, %492 : vector<8x64xf32>
    %c0_212 = arith.constant 0 : index
    %c0_213 = arith.constant 0 : index
    %494 = vector.load %arg37[%c0_212, %c0_213] : memref<64x32xf32, #tpu.memory_space<vmem>>, vector<64x32xf32>
    %cst_214 = arith.constant dense<0.000000e+00> : vector<8x32xf32>
    %495 = tpu.matmul %493, %494, %cst_214 {dimension_numbers = #tpu.dot_dimension_numbers<[1], [0], [0], [1], [0, 0, 1, 1], [], []>} : vector<8x64xf32>, vector<64x32xf32>, vector<8x32xf32> -> vector<8x32xf32>
    %c0_215 = arith.constant 0 : index
    %c0_216 = arith.constant 0 : index
    %496 = vector.load %arg38[%c0_215, %c0_216] : memref<1x32xf32, #tpu.memory_space<vmem>>, vector<1x32xf32>
    %497 = vector.broadcast %496 : vector<1x32xf32> to vector<8x32xf32>
    %498 = arith.addf %495, %497 : vector<8x32xf32>
    %499 = arith.addf %498, %448 : vector<8x32xf32>
    %c0_217 = arith.constant 0 : index
    %c0_218 = arith.constant 0 : index
    %500 = vector.load %arg39[%c0_217, %c0_218] : memref<1x32xf32, #tpu.memory_space<vmem>>, vector<1x32xf32>
    %c0_219 = arith.constant 0 : index
    %c0_220 = arith.constant 0 : index
    %501 = vector.load %arg40[%c0_219, %c0_220] : memref<1x32xf32, #tpu.memory_space<vmem>>, vector<1x32xf32>
    %cst_221 = arith.constant dense<0.000000e+00> : vector<8xf32>
    %502 = vector.multi_reduction <add>, %499, %cst_221 [1] : vector<8x32xf32> to vector<8xf32>
    %503 = vector.shape_cast %502 : vector<8xf32> to vector<8x1xf32>
    %cst_222 = arith.constant 3.200000e+01 : f32
    %504 = vector.broadcast %cst_222 : f32 to vector<8x1xf32>
    %505 = arith.divf %503, %504 : vector<8x1xf32>
    %506 = vector.broadcast %505 : vector<8x1xf32> to vector<8x32xf32>
    %507 = arith.subf %499, %506 : vector<8x32xf32>
    %508 = arith.mulf %507, %507 : vector<8x32xf32>
    %cst_223 = arith.constant dense<0.000000e+00> : vector<8xf32>
    %509 = vector.multi_reduction <add>, %508, %cst_223 [1] : vector<8x32xf32> to vector<8xf32>
    %510 = vector.shape_cast %509 : vector<8xf32> to vector<8x1xf32>
    %cst_224 = arith.constant 3.200000e+01 : f32
    %511 = vector.broadcast %cst_224 : f32 to vector<8x1xf32>
    %512 = arith.divf %510, %511 : vector<8x1xf32>
    %cst_225 = arith.constant 9.99999996E-13 : f32
    %513 = vector.broadcast %cst_225 : f32 to vector<8x1xf32>
    %514 = arith.addf %512, %513 : vector<8x1xf32>
    %515 = math.rsqrt %514 : vector<8x1xf32>
    %516 = vector.broadcast %515 : vector<8x1xf32> to vector<8x32xf32>
    %517 = arith.mulf %507, %516 : vector<8x32xf32>
    %518 = vector.broadcast %500 : vector<1x32xf32> to vector<8x32xf32>
    %519 = arith.mulf %517, %518 : vector<8x32xf32>
    %520 = vector.broadcast %501 : vector<1x32xf32> to vector<8x32xf32>
    %521 = arith.addf %519, %520 : vector<8x32xf32>
    %c0_226 = arith.constant 0 : index
    %c0_227 = arith.constant 0 : index
    %522 = vector.load %arg41[%c0_226, %c0_227] : memref<2x8xf32, #tpu.memory_space<vmem>>, vector<2x8xf32>
    %523 = vector.extract_strided_slice %522 {offsets = [0, 0], sizes = [1, 8], strides = [1, 1]} : vector<2x8xf32> to vector<1x8xf32>
    %cst_228 = arith.constant dense<0.000000e+00> : vector<1x32xf32>
    %524 = tpu.matmul %523, %271, %cst_228 {dimension_numbers = #tpu.dot_dimension_numbers<[1], [0], [0], [1], [0, 0, 1, 1], [], []>} : vector<1x8xf32>, vector<8x32xf32>, vector<1x32xf32> -> vector<1x32xf32>
    %525 = vector.extract_strided_slice %522 {offsets = [1, 0], sizes = [1, 8], strides = [1, 1]} : vector<2x8xf32> to vector<1x8xf32>
    %cst_229 = arith.constant dense<0.000000e+00> : vector<1x32xf32>
    %526 = tpu.matmul %525, %521, %cst_229 {dimension_numbers = #tpu.dot_dimension_numbers<[1], [0], [0], [1], [0, 0, 1, 1], [], []>} : vector<1x8xf32>, vector<8x32xf32>, vector<1x32xf32> -> vector<1x32xf32>
    %527 = arith.addf %524, %526 : vector<1x32xf32>
    %c0_230 = arith.constant 0 : index
    %c0_231 = arith.constant 0 : index
    %528 = vector.load %arg42[%c0_230, %c0_231] : memref<1x32xf32, #tpu.memory_space<vmem>>, vector<1x32xf32>
    %529 = arith.addf %527, %528 : vector<1x32xf32>
    %c0_232 = arith.constant 0 : index
    %c0_233 = arith.constant 0 : index
    %530 = vector.load %arg43[%c0_232, %c0_233] : memref<32x16xf32, #tpu.memory_space<vmem>>, vector<32x16xf32>
    %cst_234 = arith.constant dense<0.000000e+00> : vector<1x16xf32>
    %531 = tpu.matmul %529, %530, %cst_234 {dimension_numbers = #tpu.dot_dimension_numbers<[1], [0], [0], [1], [0, 0, 1, 1], [], []>} : vector<1x32xf32>, vector<32x16xf32>, vector<1x16xf32> -> vector<1x16xf32>
    %c0_235 = arith.constant 0 : index
    %c0_236 = arith.constant 0 : index
    %532 = vector.load %arg44[%c0_235, %c0_236] : memref<1x16xf32, #tpu.memory_space<vmem>>, vector<1x16xf32>
    %533 = arith.addf %531, %532 : vector<1x16xf32>
    %cst_237 = arith.constant 5.000000e-01 : f32
    %534 = vector.broadcast %cst_237 : f32 to vector<1x16xf32>
    %535 = arith.mulf %534, %533 : vector<1x16xf32>
    %cst_238 = arith.constant 0.707106769 : f32
    %536 = vector.broadcast %cst_238 : f32 to vector<1x16xf32>
    %537 = arith.mulf %533, %536 : vector<1x16xf32>
    %538 = math.absf %537 : vector<1x16xf32>
    %cst_239 = arith.constant 0.327591091 : f32
    %539 = vector.broadcast %cst_239 : f32 to vector<1x16xf32>
    %540 = arith.mulf %539, %538 : vector<1x16xf32>
    %cst_240 = arith.constant 1.000000e+00 : f32
    %541 = vector.broadcast %cst_240 : f32 to vector<1x16xf32>
    %542 = arith.addf %541, %540 : vector<1x16xf32>
    %cst_241 = arith.constant 1.000000e+00 : f32
    %543 = vector.broadcast %cst_241 : f32 to vector<1x16xf32>
    %544 = arith.divf %543, %542 : vector<1x16xf32>
    %cst_242 = arith.constant 1.06140542 : f32
    %545 = vector.broadcast %cst_242 : f32 to vector<1x16xf32>
    %546 = arith.mulf %544, %545 : vector<1x16xf32>
    %cst_243 = arith.constant -1.45315206 : f32
    %547 = vector.broadcast %cst_243 : f32 to vector<1x16xf32>
    %548 = arith.addf %547, %546 : vector<1x16xf32>
    %549 = arith.mulf %544, %548 : vector<1x16xf32>
    %cst_244 = arith.constant 1.42141378 : f32
    %550 = vector.broadcast %cst_244 : f32 to vector<1x16xf32>
    %551 = arith.addf %550, %549 : vector<1x16xf32>
    %552 = arith.mulf %544, %551 : vector<1x16xf32>
    %cst_245 = arith.constant -0.284496725 : f32
    %553 = vector.broadcast %cst_245 : f32 to vector<1x16xf32>
    %554 = arith.addf %553, %552 : vector<1x16xf32>
    %555 = arith.mulf %544, %554 : vector<1x16xf32>
    %cst_246 = arith.constant 0.254829586 : f32
    %556 = vector.broadcast %cst_246 : f32 to vector<1x16xf32>
    %557 = arith.addf %556, %555 : vector<1x16xf32>
    %558 = arith.mulf %544, %557 : vector<1x16xf32>
    %cst_247 = arith.constant 0.000000e+00 : f32
    %559 = vector.broadcast %cst_247 : f32 to vector<1x16xf32>
    %560 = arith.subf %559, %538 : vector<1x16xf32>
    %561 = arith.mulf %560, %538 : vector<1x16xf32>
    %562 = math.exp %561 : vector<1x16xf32>
    %563 = arith.mulf %558, %562 : vector<1x16xf32>
    %cst_248 = arith.constant 1.000000e+00 : f32
    %564 = vector.broadcast %cst_248 : f32 to vector<1x16xf32>
    %565 = arith.subf %564, %563 : vector<1x16xf32>
    %cst_249 = arith.constant 0.000000e+00 : f32
    %566 = vector.broadcast %cst_249 : f32 to vector<1x16xf32>
    %567 = arith.cmpf oge, %537, %566 : vector<1x16xf32>
    %cst_250 = arith.constant 0.000000e+00 : f32
    %568 = vector.broadcast %cst_250 : f32 to vector<1x16xf32>
    %569 = arith.subf %568, %565 : vector<1x16xf32>
    %570 = arith.select %567, %565, %569 : vector<1x16xi1>, vector<1x16xf32>
    %cst_251 = arith.constant 1.000000e+00 : f32
    %571 = vector.broadcast %cst_251 : f32 to vector<1x16xf32>
    %572 = arith.addf %571, %570 : vector<1x16xf32>
    %573 = arith.mulf %535, %572 : vector<1x16xf32>
    %c0_252 = arith.constant 0 : index
    %c0_253 = arith.constant 0 : index
    %574 = vector.load %arg45[%c0_252, %c0_253] : memref<16x32xf32, #tpu.memory_space<vmem>>, vector<16x32xf32>
    %cst_254 = arith.constant dense<0.000000e+00> : vector<1x32xf32>
    %575 = tpu.matmul %573, %574, %cst_254 {dimension_numbers = #tpu.dot_dimension_numbers<[1], [0], [0], [1], [0, 0, 1, 1], [], []>} : vector<1x16xf32>, vector<16x32xf32>, vector<1x32xf32> -> vector<1x32xf32>
    %c0_255 = arith.constant 0 : index
    %c0_256 = arith.constant 0 : index
    %576 = vector.load %arg46[%c0_255, %c0_256] : memref<1x32xf32, #tpu.memory_space<vmem>>, vector<1x32xf32>
    %577 = arith.addf %575, %576 : vector<1x32xf32>
    %578 = vector.broadcast %577 : vector<1x32xf32> to vector<8x32xf32>
    %579 = arith.addf %521, %578 : vector<8x32xf32>
    %c0_257 = arith.constant 0 : index
    %c0_258 = arith.constant 0 : index
    %580 = vector.load %arg47[%c0_257, %c0_258] : memref<32x96xf32, #tpu.memory_space<vmem>>, vector<32x96xf32>
    %cst_259 = arith.constant dense<0.000000e+00> : vector<8x96xf32>
    %581 = tpu.matmul %579, %580, %cst_259 {dimension_numbers = #tpu.dot_dimension_numbers<[1], [0], [0], [1], [0, 0, 1, 1], [], []>} : vector<8x32xf32>, vector<32x96xf32>, vector<8x96xf32> -> vector<8x96xf32>
    %c0_260 = arith.constant 0 : index
    %c0_261 = arith.constant 0 : index
    %582 = vector.load %arg48[%c0_260, %c0_261] : memref<1x96xf32, #tpu.memory_space<vmem>>, vector<1x96xf32>
    %583 = vector.broadcast %582 : vector<1x96xf32> to vector<8x96xf32>
    %584 = arith.addf %581, %583 : vector<8x96xf32>
    %c0_262 = arith.constant 0 : index
    %c0_263 = arith.constant 0 : index
    %585 = vector.load %arg49[%c0_262, %c0_263] : memref<32x32xf32, #tpu.memory_space<vmem>>, vector<32x32xf32>
    %586 = vector.extract_strided_slice %584 {offsets = [0, 0], sizes = [8, 8], strides = [1, 1]} : vector<8x96xf32> to vector<8x8xf32>
    %587 = vector.extract_strided_slice %584 {offsets = [0, 32], sizes = [8, 8], strides = [1, 1]} : vector<8x96xf32> to vector<8x8xf32>
    %588 = vector.extract_strided_slice %584 {offsets = [0, 64], sizes = [8, 8], strides = [1, 1]} : vector<8x96xf32> to vector<8x8xf32>
    %cst_264 = arith.constant dense<0.000000e+00> : vector<8x8xf32>
    %589 = tpu.matmul %586, %587, %cst_264 {dimension_numbers = #tpu.dot_dimension_numbers<[1], [1], [0], [0], [0, 0, 1, 0], [], []>} : vector<8x8xf32>, vector<8x8xf32>, vector<8x8xf32> -> vector<8x8xf32>
    %cst_265 = arith.constant 0.353553385 : f32
    %590 = vector.broadcast %cst_265 : f32 to vector<8x8xf32>
    %591 = arith.mulf %589, %590 : vector<8x8xf32>
    %592 = vector.broadcast %3 : vector<1x8xf32> to vector<8x8xf32>
    %593 = arith.addf %591, %592 : vector<8x8xf32>
    %cst_266 = arith.constant dense<0xFF800000> : vector<8xf32>
    %594 = vector.multi_reduction <maximumf>, %593, %cst_266 [1] : vector<8x8xf32> to vector<8xf32>
    %595 = vector.shape_cast %594 : vector<8xf32> to vector<8x1xf32>
    %596 = vector.broadcast %595 : vector<8x1xf32> to vector<8x8xf32>
    %597 = arith.subf %593, %596 : vector<8x8xf32>
    %598 = math.exp %597 : vector<8x8xf32>
    %cst_267 = arith.constant dense<0.000000e+00> : vector<8xf32>
    %599 = vector.multi_reduction <add>, %598, %cst_267 [1] : vector<8x8xf32> to vector<8xf32>
    %600 = vector.shape_cast %599 : vector<8xf32> to vector<8x1xf32>
    %601 = tpu.reciprocal %600 {approx = true} : vector<8x1xf32> -> vector<8x1xf32>
    %602 = vector.broadcast %601 : vector<8x1xf32> to vector<8x8xf32>
    %603 = arith.mulf %598, %602 : vector<8x8xf32>
    %cst_268 = arith.constant dense<0.000000e+00> : vector<8x8xf32>
    %604 = tpu.matmul %603, %588, %cst_268 {dimension_numbers = #tpu.dot_dimension_numbers<[1], [0], [0], [1], [0, 0, 1, 1], [], []>} : vector<8x8xf32>, vector<8x8xf32>, vector<8x8xf32> -> vector<8x8xf32>
    %605 = vector.extract_strided_slice %585 {offsets = [0, 0], sizes = [8, 32], strides = [1, 1]} : vector<32x32xf32> to vector<8x32xf32>
    %cst_269 = arith.constant dense<0.000000e+00> : vector<8x32xf32>
    %606 = tpu.matmul %604, %605, %cst_269 {dimension_numbers = #tpu.dot_dimension_numbers<[1], [0], [0], [1], [0, 0, 1, 1], [], []>} : vector<8x8xf32>, vector<8x32xf32>, vector<8x32xf32> -> vector<8x32xf32>
    %607 = vector.extract_strided_slice %584 {offsets = [0, 8], sizes = [8, 8], strides = [1, 1]} : vector<8x96xf32> to vector<8x8xf32>
    %608 = vector.extract_strided_slice %584 {offsets = [0, 40], sizes = [8, 8], strides = [1, 1]} : vector<8x96xf32> to vector<8x8xf32>
    %609 = vector.extract_strided_slice %584 {offsets = [0, 72], sizes = [8, 8], strides = [1, 1]} : vector<8x96xf32> to vector<8x8xf32>
    %cst_270 = arith.constant dense<0.000000e+00> : vector<8x8xf32>
    %610 = tpu.matmul %607, %608, %cst_270 {dimension_numbers = #tpu.dot_dimension_numbers<[1], [1], [0], [0], [0, 0, 1, 0], [], []>} : vector<8x8xf32>, vector<8x8xf32>, vector<8x8xf32> -> vector<8x8xf32>
    %cst_271 = arith.constant 0.353553385 : f32
    %611 = vector.broadcast %cst_271 : f32 to vector<8x8xf32>
    %612 = arith.mulf %610, %611 : vector<8x8xf32>
    %613 = vector.broadcast %3 : vector<1x8xf32> to vector<8x8xf32>
    %614 = arith.addf %612, %613 : vector<8x8xf32>
    %cst_272 = arith.constant dense<0xFF800000> : vector<8xf32>
    %615 = vector.multi_reduction <maximumf>, %614, %cst_272 [1] : vector<8x8xf32> to vector<8xf32>
    %616 = vector.shape_cast %615 : vector<8xf32> to vector<8x1xf32>
    %617 = vector.broadcast %616 : vector<8x1xf32> to vector<8x8xf32>
    %618 = arith.subf %614, %617 : vector<8x8xf32>
    %619 = math.exp %618 : vector<8x8xf32>
    %cst_273 = arith.constant dense<0.000000e+00> : vector<8xf32>
    %620 = vector.multi_reduction <add>, %619, %cst_273 [1] : vector<8x8xf32> to vector<8xf32>
    %621 = vector.shape_cast %620 : vector<8xf32> to vector<8x1xf32>
    %622 = tpu.reciprocal %621 {approx = true} : vector<8x1xf32> -> vector<8x1xf32>
    %623 = vector.broadcast %622 : vector<8x1xf32> to vector<8x8xf32>
    %624 = arith.mulf %619, %623 : vector<8x8xf32>
    %cst_274 = arith.constant dense<0.000000e+00> : vector<8x8xf32>
    %625 = tpu.matmul %624, %609, %cst_274 {dimension_numbers = #tpu.dot_dimension_numbers<[1], [0], [0], [1], [0, 0, 1, 1], [], []>} : vector<8x8xf32>, vector<8x8xf32>, vector<8x8xf32> -> vector<8x8xf32>
    %626 = vector.extract_strided_slice %585 {offsets = [8, 0], sizes = [8, 32], strides = [1, 1]} : vector<32x32xf32> to vector<8x32xf32>
    %cst_275 = arith.constant dense<0.000000e+00> : vector<8x32xf32>
    %627 = tpu.matmul %625, %626, %cst_275 {dimension_numbers = #tpu.dot_dimension_numbers<[1], [0], [0], [1], [0, 0, 1, 1], [], []>} : vector<8x8xf32>, vector<8x32xf32>, vector<8x32xf32> -> vector<8x32xf32>
    %628 = arith.addf %606, %627 : vector<8x32xf32>
    %629 = vector.extract_strided_slice %584 {offsets = [0, 16], sizes = [8, 8], strides = [1, 1]} : vector<8x96xf32> to vector<8x8xf32>
    %630 = vector.extract_strided_slice %584 {offsets = [0, 48], sizes = [8, 8], strides = [1, 1]} : vector<8x96xf32> to vector<8x8xf32>
    %631 = vector.extract_strided_slice %584 {offsets = [0, 80], sizes = [8, 8], strides = [1, 1]} : vector<8x96xf32> to vector<8x8xf32>
    %cst_276 = arith.constant dense<0.000000e+00> : vector<8x8xf32>
    %632 = tpu.matmul %629, %630, %cst_276 {dimension_numbers = #tpu.dot_dimension_numbers<[1], [1], [0], [0], [0, 0, 1, 0], [], []>} : vector<8x8xf32>, vector<8x8xf32>, vector<8x8xf32> -> vector<8x8xf32>
    %cst_277 = arith.constant 0.353553385 : f32
    %633 = vector.broadcast %cst_277 : f32 to vector<8x8xf32>
    %634 = arith.mulf %632, %633 : vector<8x8xf32>
    %635 = vector.broadcast %3 : vector<1x8xf32> to vector<8x8xf32>
    %636 = arith.addf %634, %635 : vector<8x8xf32>
    %cst_278 = arith.constant dense<0xFF800000> : vector<8xf32>
    %637 = vector.multi_reduction <maximumf>, %636, %cst_278 [1] : vector<8x8xf32> to vector<8xf32>
    %638 = vector.shape_cast %637 : vector<8xf32> to vector<8x1xf32>
    %639 = vector.broadcast %638 : vector<8x1xf32> to vector<8x8xf32>
    %640 = arith.subf %636, %639 : vector<8x8xf32>
    %641 = math.exp %640 : vector<8x8xf32>
    %cst_279 = arith.constant dense<0.000000e+00> : vector<8xf32>
    %642 = vector.multi_reduction <add>, %641, %cst_279 [1] : vector<8x8xf32> to vector<8xf32>
    %643 = vector.shape_cast %642 : vector<8xf32> to vector<8x1xf32>
    %644 = tpu.reciprocal %643 {approx = true} : vector<8x1xf32> -> vector<8x1xf32>
    %645 = vector.broadcast %644 : vector<8x1xf32> to vector<8x8xf32>
    %646 = arith.mulf %641, %645 : vector<8x8xf32>
    %cst_280 = arith.constant dense<0.000000e+00> : vector<8x8xf32>
    %647 = tpu.matmul %646, %631, %cst_280 {dimension_numbers = #tpu.dot_dimension_numbers<[1], [0], [0], [1], [0, 0, 1, 1], [], []>} : vector<8x8xf32>, vector<8x8xf32>, vector<8x8xf32> -> vector<8x8xf32>
    %648 = vector.extract_strided_slice %585 {offsets = [16, 0], sizes = [8, 32], strides = [1, 1]} : vector<32x32xf32> to vector<8x32xf32>
    %cst_281 = arith.constant dense<0.000000e+00> : vector<8x32xf32>
    %649 = tpu.matmul %647, %648, %cst_281 {dimension_numbers = #tpu.dot_dimension_numbers<[1], [0], [0], [1], [0, 0, 1, 1], [], []>} : vector<8x8xf32>, vector<8x32xf32>, vector<8x32xf32> -> vector<8x32xf32>
    %650 = arith.addf %628, %649 : vector<8x32xf32>
    %651 = vector.extract_strided_slice %584 {offsets = [0, 24], sizes = [8, 8], strides = [1, 1]} : vector<8x96xf32> to vector<8x8xf32>
    %652 = vector.extract_strided_slice %584 {offsets = [0, 56], sizes = [8, 8], strides = [1, 1]} : vector<8x96xf32> to vector<8x8xf32>
    %653 = vector.extract_strided_slice %584 {offsets = [0, 88], sizes = [8, 8], strides = [1, 1]} : vector<8x96xf32> to vector<8x8xf32>
    %cst_282 = arith.constant dense<0.000000e+00> : vector<8x8xf32>
    %654 = tpu.matmul %651, %652, %cst_282 {dimension_numbers = #tpu.dot_dimension_numbers<[1], [1], [0], [0], [0, 0, 1, 0], [], []>} : vector<8x8xf32>, vector<8x8xf32>, vector<8x8xf32> -> vector<8x8xf32>
    %cst_283 = arith.constant 0.353553385 : f32
    %655 = vector.broadcast %cst_283 : f32 to vector<8x8xf32>
    %656 = arith.mulf %654, %655 : vector<8x8xf32>
    %657 = vector.broadcast %3 : vector<1x8xf32> to vector<8x8xf32>
    %658 = arith.addf %656, %657 : vector<8x8xf32>
    %cst_284 = arith.constant dense<0xFF800000> : vector<8xf32>
    %659 = vector.multi_reduction <maximumf>, %658, %cst_284 [1] : vector<8x8xf32> to vector<8xf32>
    %660 = vector.shape_cast %659 : vector<8xf32> to vector<8x1xf32>
    %661 = vector.broadcast %660 : vector<8x1xf32> to vector<8x8xf32>
    %662 = arith.subf %658, %661 : vector<8x8xf32>
    %663 = math.exp %662 : vector<8x8xf32>
    %cst_285 = arith.constant dense<0.000000e+00> : vector<8xf32>
    %664 = vector.multi_reduction <add>, %663, %cst_285 [1] : vector<8x8xf32> to vector<8xf32>
    %665 = vector.shape_cast %664 : vector<8xf32> to vector<8x1xf32>
    %666 = tpu.reciprocal %665 {approx = true} : vector<8x1xf32> -> vector<8x1xf32>
    %667 = vector.broadcast %666 : vector<8x1xf32> to vector<8x8xf32>
    %668 = arith.mulf %663, %667 : vector<8x8xf32>
    %cst_286 = arith.constant dense<0.000000e+00> : vector<8x8xf32>
    %669 = tpu.matmul %668, %653, %cst_286 {dimension_numbers = #tpu.dot_dimension_numbers<[1], [0], [0], [1], [0, 0, 1, 1], [], []>} : vector<8x8xf32>, vector<8x8xf32>, vector<8x8xf32> -> vector<8x8xf32>
    %670 = vector.extract_strided_slice %585 {offsets = [24, 0], sizes = [8, 32], strides = [1, 1]} : vector<32x32xf32> to vector<8x32xf32>
    %cst_287 = arith.constant dense<0.000000e+00> : vector<8x32xf32>
    %671 = tpu.matmul %669, %670, %cst_287 {dimension_numbers = #tpu.dot_dimension_numbers<[1], [0], [0], [1], [0, 0, 1, 1], [], []>} : vector<8x8xf32>, vector<8x32xf32>, vector<8x32xf32> -> vector<8x32xf32>
    %672 = arith.addf %650, %671 : vector<8x32xf32>
    %c0_288 = arith.constant 0 : index
    %c0_289 = arith.constant 0 : index
    %673 = vector.load %arg50[%c0_288, %c0_289] : memref<1x32xf32, #tpu.memory_space<vmem>>, vector<1x32xf32>
    %674 = vector.broadcast %673 : vector<1x32xf32> to vector<8x32xf32>
    %675 = arith.addf %672, %674 : vector<8x32xf32>
    %676 = arith.addf %675, %579 : vector<8x32xf32>
    %c0_290 = arith.constant 0 : index
    %c0_291 = arith.constant 0 : index
    %677 = vector.load %arg51[%c0_290, %c0_291] : memref<1x32xf32, #tpu.memory_space<vmem>>, vector<1x32xf32>
    %c0_292 = arith.constant 0 : index
    %c0_293 = arith.constant 0 : index
    %678 = vector.load %arg52[%c0_292, %c0_293] : memref<1x32xf32, #tpu.memory_space<vmem>>, vector<1x32xf32>
    %cst_294 = arith.constant dense<0.000000e+00> : vector<8xf32>
    %679 = vector.multi_reduction <add>, %676, %cst_294 [1] : vector<8x32xf32> to vector<8xf32>
    %680 = vector.shape_cast %679 : vector<8xf32> to vector<8x1xf32>
    %cst_295 = arith.constant 3.200000e+01 : f32
    %681 = vector.broadcast %cst_295 : f32 to vector<8x1xf32>
    %682 = arith.divf %680, %681 : vector<8x1xf32>
    %683 = vector.broadcast %682 : vector<8x1xf32> to vector<8x32xf32>
    %684 = arith.subf %676, %683 : vector<8x32xf32>
    %685 = arith.mulf %684, %684 : vector<8x32xf32>
    %cst_296 = arith.constant dense<0.000000e+00> : vector<8xf32>
    %686 = vector.multi_reduction <add>, %685, %cst_296 [1] : vector<8x32xf32> to vector<8xf32>
    %687 = vector.shape_cast %686 : vector<8xf32> to vector<8x1xf32>
    %cst_297 = arith.constant 3.200000e+01 : f32
    %688 = vector.broadcast %cst_297 : f32 to vector<8x1xf32>
    %689 = arith.divf %687, %688 : vector<8x1xf32>
    %cst_298 = arith.constant 9.99999996E-13 : f32
    %690 = vector.broadcast %cst_298 : f32 to vector<8x1xf32>
    %691 = arith.addf %689, %690 : vector<8x1xf32>
    %692 = math.rsqrt %691 : vector<8x1xf32>
    %693 = vector.broadcast %692 : vector<8x1xf32> to vector<8x32xf32>
    %694 = arith.mulf %684, %693 : vector<8x32xf32>
    %695 = vector.broadcast %677 : vector<1x32xf32> to vector<8x32xf32>
    %696 = arith.mulf %694, %695 : vector<8x32xf32>
    %697 = vector.broadcast %678 : vector<1x32xf32> to vector<8x32xf32>
    %698 = arith.addf %696, %697 : vector<8x32xf32>
    %c0_299 = arith.constant 0 : index
    %c0_300 = arith.constant 0 : index
    %699 = vector.load %arg53[%c0_299, %c0_300] : memref<32x64xf32, #tpu.memory_space<vmem>>, vector<32x64xf32>
    %cst_301 = arith.constant dense<0.000000e+00> : vector<8x64xf32>
    %700 = tpu.matmul %698, %699, %cst_301 {dimension_numbers = #tpu.dot_dimension_numbers<[1], [0], [0], [1], [0, 0, 1, 1], [], []>} : vector<8x32xf32>, vector<32x64xf32>, vector<8x64xf32> -> vector<8x64xf32>
    %c0_302 = arith.constant 0 : index
    %c0_303 = arith.constant 0 : index
    %701 = vector.load %arg54[%c0_302, %c0_303] : memref<1x64xf32, #tpu.memory_space<vmem>>, vector<1x64xf32>
    %702 = vector.broadcast %701 : vector<1x64xf32> to vector<8x64xf32>
    %703 = arith.addf %700, %702 : vector<8x64xf32>
    %cst_304 = arith.constant 5.000000e-01 : f32
    %704 = vector.broadcast %cst_304 : f32 to vector<8x64xf32>
    %705 = arith.mulf %704, %703 : vector<8x64xf32>
    %cst_305 = arith.constant 0.707106769 : f32
    %706 = vector.broadcast %cst_305 : f32 to vector<8x64xf32>
    %707 = arith.mulf %703, %706 : vector<8x64xf32>
    %708 = math.absf %707 : vector<8x64xf32>
    %cst_306 = arith.constant 0.327591091 : f32
    %709 = vector.broadcast %cst_306 : f32 to vector<8x64xf32>
    %710 = arith.mulf %709, %708 : vector<8x64xf32>
    %cst_307 = arith.constant 1.000000e+00 : f32
    %711 = vector.broadcast %cst_307 : f32 to vector<8x64xf32>
    %712 = arith.addf %711, %710 : vector<8x64xf32>
    %cst_308 = arith.constant 1.000000e+00 : f32
    %713 = vector.broadcast %cst_308 : f32 to vector<8x64xf32>
    %714 = arith.divf %713, %712 : vector<8x64xf32>
    %cst_309 = arith.constant 1.06140542 : f32
    %715 = vector.broadcast %cst_309 : f32 to vector<8x64xf32>
    %716 = arith.mulf %714, %715 : vector<8x64xf32>
    %cst_310 = arith.constant -1.45315206 : f32
    %717 = vector.broadcast %cst_310 : f32 to vector<8x64xf32>
    %718 = arith.addf %717, %716 : vector<8x64xf32>
    %719 = arith.mulf %714, %718 : vector<8x64xf32>
    %cst_311 = arith.constant 1.42141378 : f32
    %720 = vector.broadcast %cst_311 : f32 to vector<8x64xf32>
    %721 = arith.addf %720, %719 : vector<8x64xf32>
    %722 = arith.mulf %714, %721 : vector<8x64xf32>
    %cst_312 = arith.constant -0.284496725 : f32
    %723 = vector.broadcast %cst_312 : f32 to vector<8x64xf32>
    %724 = arith.addf %723, %722 : vector<8x64xf32>
    %725 = arith.mulf %714, %724 : vector<8x64xf32>
    %cst_313 = arith.constant 0.254829586 : f32
    %726 = vector.broadcast %cst_313 : f32 to vector<8x64xf32>
    %727 = arith.addf %726, %725 : vector<8x64xf32>
    %728 = arith.mulf %714, %727 : vector<8x64xf32>
    %cst_314 = arith.constant 0.000000e+00 : f32
    %729 = vector.broadcast %cst_314 : f32 to vector<8x64xf32>
    %730 = arith.subf %729, %708 : vector<8x64xf32>
    %731 = arith.mulf %730, %708 : vector<8x64xf32>
    %732 = math.exp %731 : vector<8x64xf32>
    %733 = arith.mulf %728, %732 : vector<8x64xf32>
    %cst_315 = arith.constant 1.000000e+00 : f32
    %734 = vector.broadcast %cst_315 : f32 to vector<8x64xf32>
    %735 = arith.subf %734, %733 : vector<8x64xf32>
    %cst_316 = arith.constant 0.000000e+00 : f32
    %736 = vector.broadcast %cst_316 : f32 to vector<8x64xf32>
    %737 = arith.cmpf oge, %707, %736 : vector<8x64xf32>
    %cst_317 = arith.constant 0.000000e+00 : f32
    %738 = vector.broadcast %cst_317 : f32 to vector<8x64xf32>
    %739 = arith.subf %738, %735 : vector<8x64xf32>
    %740 = arith.select %737, %735, %739 : vector<8x64xi1>, vector<8x64xf32>
    %cst_318 = arith.constant 1.000000e+00 : f32
    %741 = vector.broadcast %cst_318 : f32 to vector<8x64xf32>
    %742 = arith.addf %741, %740 : vector<8x64xf32>
    %743 = arith.mulf %705, %742 : vector<8x64xf32>
    %c0_319 = arith.constant 0 : index
    %c0_320 = arith.constant 0 : index
    %744 = vector.load %arg55[%c0_319, %c0_320] : memref<64x32xf32, #tpu.memory_space<vmem>>, vector<64x32xf32>
    %cst_321 = arith.constant dense<0.000000e+00> : vector<8x32xf32>
    %745 = tpu.matmul %743, %744, %cst_321 {dimension_numbers = #tpu.dot_dimension_numbers<[1], [0], [0], [1], [0, 0, 1, 1], [], []>} : vector<8x64xf32>, vector<64x32xf32>, vector<8x32xf32> -> vector<8x32xf32>
    %c0_322 = arith.constant 0 : index
    %c0_323 = arith.constant 0 : index
    %746 = vector.load %arg56[%c0_322, %c0_323] : memref<1x32xf32, #tpu.memory_space<vmem>>, vector<1x32xf32>
    %747 = vector.broadcast %746 : vector<1x32xf32> to vector<8x32xf32>
    %748 = arith.addf %745, %747 : vector<8x32xf32>
    %749 = arith.addf %748, %698 : vector<8x32xf32>
    %c0_324 = arith.constant 0 : index
    %c0_325 = arith.constant 0 : index
    %750 = vector.load %arg57[%c0_324, %c0_325] : memref<1x32xf32, #tpu.memory_space<vmem>>, vector<1x32xf32>
    %c0_326 = arith.constant 0 : index
    %c0_327 = arith.constant 0 : index
    %751 = vector.load %arg58[%c0_326, %c0_327] : memref<1x32xf32, #tpu.memory_space<vmem>>, vector<1x32xf32>
    %cst_328 = arith.constant dense<0.000000e+00> : vector<8xf32>
    %752 = vector.multi_reduction <add>, %749, %cst_328 [1] : vector<8x32xf32> to vector<8xf32>
    %753 = vector.shape_cast %752 : vector<8xf32> to vector<8x1xf32>
    %cst_329 = arith.constant 3.200000e+01 : f32
    %754 = vector.broadcast %cst_329 : f32 to vector<8x1xf32>
    %755 = arith.divf %753, %754 : vector<8x1xf32>
    %756 = vector.broadcast %755 : vector<8x1xf32> to vector<8x32xf32>
    %757 = arith.subf %749, %756 : vector<8x32xf32>
    %758 = arith.mulf %757, %757 : vector<8x32xf32>
    %cst_330 = arith.constant dense<0.000000e+00> : vector<8xf32>
    %759 = vector.multi_reduction <add>, %758, %cst_330 [1] : vector<8x32xf32> to vector<8xf32>
    %760 = vector.shape_cast %759 : vector<8xf32> to vector<8x1xf32>
    %cst_331 = arith.constant 3.200000e+01 : f32
    %761 = vector.broadcast %cst_331 : f32 to vector<8x1xf32>
    %762 = arith.divf %760, %761 : vector<8x1xf32>
    %cst_332 = arith.constant 9.99999996E-13 : f32
    %763 = vector.broadcast %cst_332 : f32 to vector<8x1xf32>
    %764 = arith.addf %762, %763 : vector<8x1xf32>
    %765 = math.rsqrt %764 : vector<8x1xf32>
    %766 = vector.broadcast %765 : vector<8x1xf32> to vector<8x32xf32>
    %767 = arith.mulf %757, %766 : vector<8x32xf32>
    %768 = vector.broadcast %750 : vector<1x32xf32> to vector<8x32xf32>
    %769 = arith.mulf %767, %768 : vector<8x32xf32>
    %770 = vector.broadcast %751 : vector<1x32xf32> to vector<8x32xf32>
    %771 = arith.addf %769, %770 : vector<8x32xf32>
    %772 = vector.extract_strided_slice %771 {offsets = [0, 0], sizes = [1, 32], strides = [1, 1]} : vector<8x32xf32> to vector<1x32xf32>
    %c0_333 = arith.constant 0 : index
    %c0_334 = arith.constant 0 : index
    %c0_335 = arith.constant 0 : index
    %773 = vector.load %arg59[%c0_333, %c0_334, %c0_335] : memref<1x1x32xf32, #tpu.memory_space<vmem>>, vector<1x1x32xf32>
    %774 = vector.shape_cast %773 : vector<1x1x32xf32> to vector<1x32xf32>
    %775 = vector.shape_cast %772 : vector<1x32xf32> to vector<1x1x32xf32>
    tpu.vector_store %arg59[%c0_333, %c0_334, %c0_335], %775 {strides = array<i32>} : memref<1x1x32xf32, #tpu.memory_space<vmem>>, vector<1x1x32xf32>,
    return
  }
  func.func @transform_0(%arg0: i32) -> (i32, i32, i32) {
    %c0_i32 = arith.constant 0 : i32
    %c0_i32_0 = arith.constant 0 : i32
    %c0_i32_1 = arith.constant 0 : i32
    return %arg0, %c0_i32, %c0_i32_0 : i32, i32, i32
  }
  func.func @transform_1(%arg0: i32) -> (i32, i32, i32) {
    %c0_i32 = arith.constant 0 : i32
    %c0_i32_0 = arith.constant 0 : i32
    %c0_i32_1 = arith.constant 0 : i32
    return %arg0, %c0_i32, %c0_i32_0 : i32, i32, i32
  }
  func.func @transform_2(%arg0: i32) -> (i32, i32) {
    %c0_i32 = arith.constant 0 : i32
    %c0_i32_0 = arith.constant 0 : i32
    %c0_i32_1 = arith.constant 0 : i32
    return %c0_i32, %c0_i32_0 : i32, i32
  }
  func.func @transform_3(%arg0: i32) -> (i32, i32) {
    %c0_i32 = arith.constant 0 : i32
    %c0_i32_0 = arith.constant 0 : i32
    %c0_i32_1 = arith.constant 0 : i32
    return %c0_i32, %c0_i32_0 : i32, i32
  }
  func.func @transform_4(%arg0: i32) -> (i32, i32) {
    %c0_i32 = arith.constant 0 : i32
    %c0_i32_0 = arith.constant 0 : i32
    %c0_i32_1 = arith.constant 0 : i32
    return %c0_i32, %c0_i32_0 : i32, i32
  }
  func.func @transform_5(%arg0: i32) -> (i32, i32) {
    %c0_i32 = arith.constant 0 : i32
    %c0_i32_0 = arith.constant 0 : i32
    %c0_i32_1 = arith.constant 0 : i32
    return %c0_i32, %c0_i32_0 : i32, i32
  }
  func.func @transform_6(%arg0: i32) -> (i32, i32) {
    %c0_i32 = arith.constant 0 : i32
    %c0_i32_0 = arith.constant 0 : i32
    %c0_i32_1 = arith.constant 0 : i32
    return %c0_i32, %c0_i32_0 : i32, i32
  }
  func.func @transform_7(%arg0: i32) -> (i32, i32) {
    %c0_i32 = arith.constant 0 : i32
    %c0_i32_0 = arith.constant 0 : i32
    %c0_i32_1 = arith.constant 0 : i32
    return %c0_i32, %c0_i32_0 : i32, i32
  }
  func.func @transform_8(%arg0: i32) -> (i32, i32) {
    %c0_i32 = arith.constant 0 : i32
    %c0_i32_0 = arith.constant 0 : i32
    %c0_i32_1 = arith.constant 0 : i32
    return %c0_i32, %c0_i32_0 : i32, i32
  }
  func.func @transform_9(%arg0: i32) -> (i32, i32) {
    %c0_i32 = arith.constant 0 : i32
    %c0_i32_0 = arith.constant 0 : i32
    %c0_i32_1 = arith.constant 0 : i32
    return %c0_i32, %c0_i32_0 : i32, i32
  }
  func.func @transform_10(%arg0: i32) -> (i32, i32) {
    %c0_i32 = arith.constant 0 : i32
    %c0_i32_0 = arith.constant 0 : i32
    %c0_i32_1 = arith.constant 0 : i32
    return %c0_i32, %c0_i32_0 : i32, i32
  }
  func.func @transform_11(%arg0: i32) -> (i32, i32) {
    %c0_i32 = arith.constant 0 : i32
    %c0_i32_0 = arith.constant 0 : i32
    %c0_i32_1 = arith.constant 0 : i32
    return %c0_i32, %c0_i32_0 : i32, i32
  }
  func.func @transform_12(%arg0: i32) -> (i32, i32) {
    %c0_i32 = arith.constant 0 : i32
    %c0_i32_0 = arith.constant 0 : i32
    %c0_i32_1 = arith.constant 0 : i32
    return %c0_i32, %c0_i32_0 : i32, i32
  }
  func.func @transform_13(%arg0: i32) -> (i32, i32) {
    %c0_i32 = arith.constant 0 : i32
    %c0_i32_0 = arith.constant 0 : i32
    %c0_i32_1 = arith.constant 0 : i32
    return %c0_i32, %c0_i32_0 : i32, i32
  }
  func.func @transform_14(%arg0: i32) -> (i32, i32) {
    %c0_i32 = arith.constant 0 : i32
    %c0_i32_0 = arith.constant 0 : i32
    %c0_i32_1 = arith.constant 0 : i32
    return %c0_i32, %c0_i32_0 : i32, i32
  }
  func.func @transform_15(%arg0: i32) -> (i32, i32) {
    %c0_i32 = arith.constant 0 : i32
    %c0_i32_0 = arith.constant 0 : i32
    %c0_i32_1 = arith.constant 0 : i32
    return %c0_i32, %c0_i32_0 : i32, i32
  }
  func.func @transform_16(%arg0: i32) -> (i32, i32) {
    %c0_i32 = arith.constant 0 : i32
    %c0_i32_0 = arith.constant 0 : i32
    %c0_i32_1 = arith.constant 0 : i32
    return %c0_i32, %c0_i32_0 : i32, i32
  }
  func.func @transform_17(%arg0: i32) -> (i32, i32) {
    %c0_i32 = arith.constant 0 : i32
    %c0_i32_0 = arith.constant 0 : i32
    %c0_i32_1 = arith.constant 0 : i32
    return %c0_i32, %c0_i32_0 : i32, i32
  }
  func.func @transform_18(%arg0: i32) -> (i32, i32) {
    %c0_i32 = arith.constant 0 : i32
    %c0_i32_0 = arith.constant 0 : i32
    %c0_i32_1 = arith.constant 0 : i32
    return %c0_i32, %c0_i32_0 : i32, i32
  }
  func.func @transform_19(%arg0: i32) -> (i32, i32) {
    %c0_i32 = arith.constant 0 : i32
    %c0_i32_0 = arith.constant 0 : i32
    %c0_i32_1 = arith.constant 0 : i32
    return %c0_i32, %c0_i32_0 : i32, i32
  }
  func.func @transform_20(%arg0: i32) -> (i32, i32) {
    %c0_i32 = arith.constant 0 : i32
    %c0_i32_0 = arith.constant 0 : i32
    %c0_i32_1 = arith.constant 0 : i32
    return %c0_i32, %c0_i32_0 : i32, i32
  }
  func.func @transform_21(%arg0: i32) -> (i32, i32) {
    %c0_i32 = arith.constant 0 : i32
    %c0_i32_0 = arith.constant 0 : i32
    %c0_i32_1 = arith.constant 0 : i32
    return %c0_i32, %c0_i32_0 : i32, i32
  }
  func.func @transform_22(%arg0: i32) -> (i32, i32) {
    %c0_i32 = arith.constant 0 : i32
    %c0_i32_0 = arith.constant 0 : i32
    %c0_i32_1 = arith.constant 0 : i32
    return %c0_i32, %c0_i32_0 : i32, i32
  }
  func.func @transform_23(%arg0: i32) -> (i32, i32) {
    %c0_i32 = arith.constant 0 : i32
    %c0_i32_0 = arith.constant 0 : i32
    %c0_i32_1 = arith.constant 0 : i32
    return %c0_i32, %c0_i32_0 : i32, i32
  }
  func.func @transform_24(%arg0: i32) -> (i32, i32) {
    %c0_i32 = arith.constant 0 : i32
    %c0_i32_0 = arith.constant 0 : i32
    %c0_i32_1 = arith.constant 0 : i32
    return %c0_i32, %c0_i32_0 : i32, i32
  }
  func.func @transform_25(%arg0: i32) -> (i32, i32) {
    %c0_i32 = arith.constant 0 : i32
    %c0_i32_0 = arith.constant 0 : i32
    %c0_i32_1 = arith.constant 0 : i32
    return %c0_i32, %c0_i32_0 : i32, i32
  }
  func.func @transform_26(%arg0: i32) -> (i32, i32) {
    %c0_i32 = arith.constant 0 : i32
    %c0_i32_0 = arith.constant 0 : i32
    %c0_i32_1 = arith.constant 0 : i32
    return %c0_i32, %c0_i32_0 : i32, i32
  }
  func.func @transform_27(%arg0: i32) -> (i32, i32) {
    %c0_i32 = arith.constant 0 : i32
    %c0_i32_0 = arith.constant 0 : i32
    %c0_i32_1 = arith.constant 0 : i32
    return %c0_i32, %c0_i32_0 : i32, i32
  }
  func.func @transform_28(%arg0: i32) -> (i32, i32) {
    %c0_i32 = arith.constant 0 : i32
    %c0_i32_0 = arith.constant 0 : i32
    %c0_i32_1 = arith.constant 0 : i32
    return %c0_i32, %c0_i32_0 : i32, i32
  }
  func.func @transform_29(%arg0: i32) -> (i32, i32) {
    %c0_i32 = arith.constant 0 : i32
    %c0_i32_0 = arith.constant 0 : i32
    %c0_i32_1 = arith.constant 0 : i32
    return %c0_i32, %c0_i32_0 : i32, i32
  }
  func.func @transform_30(%arg0: i32) -> (i32, i32) {
    %c0_i32 = arith.constant 0 : i32
    %c0_i32_0 = arith.constant 0 : i32
    %c0_i32_1 = arith.constant 0 : i32
    return %c0_i32, %c0_i32_0 : i32, i32
  }
  func.func @transform_31(%arg0: i32) -> (i32, i32) {
    %c0_i32 = arith.constant 0 : i32
    %c0_i32_0 = arith.constant 0 : i32
    %c0_i32_1 = arith.constant 0 : i32
    return %c0_i32, %c0_i32_0 : i32, i32
  }
  func.func @transform_32(%arg0: i32) -> (i32, i32) {
    %c0_i32 = arith.constant 0 : i32
    %c0_i32_0 = arith.constant 0 : i32
    %c0_i32_1 = arith.constant 0 : i32
    return %c0_i32, %c0_i32_0 : i32, i32
  }
  func.func @transform_33(%arg0: i32) -> (i32, i32) {
    %c0_i32 = arith.constant 0 : i32
    %c0_i32_0 = arith.constant 0 : i32
    %c0_i32_1 = arith.constant 0 : i32
    return %c0_i32, %c0_i32_0 : i32, i32
  }
  func.func @transform_34(%arg0: i32) -> (i32, i32) {
    %c0_i32 = arith.constant 0 : i32
    %c0_i32_0 = arith.constant 0 : i32
    %c0_i32_1 = arith.constant 0 : i32
    return %c0_i32, %c0_i32_0 : i32, i32
  }
  func.func @transform_35(%arg0: i32) -> (i32, i32) {
    %c0_i32 = arith.constant 0 : i32
    %c0_i32_0 = arith.constant 0 : i32
    %c0_i32_1 = arith.constant 0 : i32
    return %c0_i32, %c0_i32_0 : i32, i32
  }
  func.func @transform_36(%arg0: i32) -> (i32, i32) {
    %c0_i32 = arith.constant 0 : i32
    %c0_i32_0 = arith.constant 0 : i32
    %c0_i32_1 = arith.constant 0 : i32
    return %c0_i32, %c0_i32_0 : i32, i32
  }
  func.func @transform_37(%arg0: i32) -> (i32, i32) {
    %c0_i32 = arith.constant 0 : i32
    %c0_i32_0 = arith.constant 0 : i32
    %c0_i32_1 = arith.constant 0 : i32
    return %c0_i32, %c0_i32_0 : i32, i32
  }
  func.func @transform_38(%arg0: i32) -> (i32, i32) {
    %c0_i32 = arith.constant 0 : i32
    %c0_i32_0 = arith.constant 0 : i32
    %c0_i32_1 = arith.constant 0 : i32
    return %c0_i32, %c0_i32_0 : i32, i32
  }
  func.func @transform_39(%arg0: i32) -> (i32, i32) {
    %c0_i32 = arith.constant 0 : i32
    %c0_i32_0 = arith.constant 0 : i32
    %c0_i32_1 = arith.constant 0 : i32
    return %c0_i32, %c0_i32_0 : i32, i32
  }
  func.func @transform_40(%arg0: i32) -> (i32, i32) {
    %c0_i32 = arith.constant 0 : i32
    %c0_i32_0 = arith.constant 0 : i32
    %c0_i32_1 = arith.constant 0 : i32
    return %c0_i32, %c0_i32_0 : i32, i32
  }
  func.func @transform_41(%arg0: i32) -> (i32, i32) {
    %c0_i32 = arith.constant 0 : i32
    %c0_i32_0 = arith.constant 0 : i32
    %c0_i32_1 = arith.constant 0 : i32
    return %c0_i32, %c0_i32_0 : i32, i32
  }
  func.func @transform_42(%arg0: i32) -> (i32, i32) {
    %c0_i32 = arith.constant 0 : i32
    %c0_i32_0 = arith.constant 0 : i32
    %c0_i32_1 = arith.constant 0 : i32
    return %c0_i32, %c0_i32_0 : i32, i32
  }
  func.func @transform_43(%arg0: i32) -> (i32, i32) {
    %c0_i32 = arith.constant 0 : i32
    %c0_i32_0 = arith.constant 0 : i32
    %c0_i32_1 = arith.constant 0 : i32
    return %c0_i32, %c0_i32_0 : i32, i32
  }
  func.func @transform_44(%arg0: i32) -> (i32, i32) {
    %c0_i32 = arith.constant 0 : i32
    %c0_i32_0 = arith.constant 0 : i32
    %c0_i32_1 = arith.constant 0 : i32
    return %c0_i32, %c0_i32_0 : i32, i32
  }
  func.func @transform_45(%arg0: i32) -> (i32, i32) {
    %c0_i32 = arith.constant 0 : i32
    %c0_i32_0 = arith.constant 0 : i32
    %c0_i32_1 = arith.constant 0 : i32
    return %c0_i32, %c0_i32_0 : i32, i32
  }
  func.func @transform_46(%arg0: i32) -> (i32, i32) {
    %c0_i32 = arith.constant 0 : i32
    %c0_i32_0 = arith.constant 0 : i32
    %c0_i32_1 = arith.constant 0 : i32
    return %c0_i32, %c0_i32_0 : i32, i32
  }
  func.func @transform_47(%arg0: i32) -> (i32, i32) {
    %c0_i32 = arith.constant 0 : i32
    %c0_i32_0 = arith.constant 0 : i32
    %c0_i32_1 = arith.constant 0 : i32
    return %c0_i32, %c0_i32_0 : i32, i32
  }
  func.func @transform_48(%arg0: i32) -> (i32, i32) {
    %c0_i32 = arith.constant 0 : i32
    %c0_i32_0 = arith.constant 0 : i32
    %c0_i32_1 = arith.constant 0 : i32
    return %c0_i32, %c0_i32_0 : i32, i32
  }
  func.func @transform_49(%arg0: i32) -> (i32, i32) {
    %c0_i32 = arith.constant 0 : i32
    %c0_i32_0 = arith.constant 0 : i32
    %c0_i32_1 = arith.constant 0 : i32
    return %c0_i32, %c0_i32_0 : i32, i32
  }
  func.func @transform_50(%arg0: i32) -> (i32, i32) {
    %c0_i32 = arith.constant 0 : i32
    %c0_i32_0 = arith.constant 0 : i32
    %c0_i32_1 = arith.constant 0 : i32
    return %c0_i32, %c0_i32_0 : i32, i32
  }
  func.func @transform_51(%arg0: i32) -> (i32, i32) {
    %c0_i32 = arith.constant 0 : i32
    %c0_i32_0 = arith.constant 0 : i32
    %c0_i32_1 = arith.constant 0 : i32
    return %c0_i32, %c0_i32_0 : i32, i32
  }
  func.func @transform_52(%arg0: i32) -> (i32, i32) {
    %c0_i32 = arith.constant 0 : i32
    %c0_i32_0 = arith.constant 0 : i32
    %c0_i32_1 = arith.constant 0 : i32
    return %c0_i32, %c0_i32_0 : i32, i32
  }
  func.func @transform_53(%arg0: i32) -> (i32, i32) {
    %c0_i32 = arith.constant 0 : i32
    %c0_i32_0 = arith.constant 0 : i32
    %c0_i32_1 = arith.constant 0 : i32
    return %c0_i32, %c0_i32_0 : i32, i32
  }
  func.func @transform_54(%arg0: i32) -> (i32, i32) {
    %c0_i32 = arith.constant 0 : i32
    %c0_i32_0 = arith.constant 0 : i32
    %c0_i32_1 = arith.constant 0 : i32
    return %c0_i32, %c0_i32_0 : i32, i32
  }
  func.func @transform_55(%arg0: i32) -> (i32, i32) {
    %c0_i32 = arith.constant 0 : i32
    %c0_i32_0 = arith.constant 0 : i32
    %c0_i32_1 = arith.constant 0 : i32
    return %c0_i32, %c0_i32_0 : i32, i32
  }
  func.func @transform_56(%arg0: i32) -> (i32, i32) {
    %c0_i32 = arith.constant 0 : i32
    %c0_i32_0 = arith.constant 0 : i32
    %c0_i32_1 = arith.constant 0 : i32
    return %c0_i32, %c0_i32_0 : i32, i32
  }
  func.func @transform_57(%arg0: i32) -> (i32, i32) {
    %c0_i32 = arith.constant 0 : i32
    %c0_i32_0 = arith.constant 0 : i32
    %c0_i32_1 = arith.constant 0 : i32
    return %c0_i32, %c0_i32_0 : i32, i32
  }
  func.func @transform_58(%arg0: i32) -> (i32, i32, i32) {
    %c0_i32 = arith.constant 0 : i32
    %c0_i32_0 = arith.constant 0 : i32
    %c0_i32_1 = arith.constant 0 : i32
    return %arg0, %c0_i32, %c0_i32_0 : i32, i32, i32
  }
}

</mosaic_0001>

<llo_original>
// kernel: model_forward.1
$region0: #{model_forward.1}
  #allocation0 [shape = 'u32[]', space=smem, size = 0x4, offset = 0x4, fixed_abs, tag = 'smem constant byte address 0x4 - core index']
  #allocation1 [shape = 'u32[144,128]{1,0:T(1,128)}', space=vmem, size = 0x12000, scoped, tag = 'internal scratch']
  %s0 = inlined_call_operand.smem [shape: u32[59], index: -1, kind: input, shape index: {}]
  %s1 = sld [smem:[%s0]]
  %s2 = scalar_lea.smem %s0, 1
  %s3 = sld [smem:[%s2]]
  %s4 = scalar_lea.smem %s0, 2
  %s5 = sld [smem:[%s4]]
  %s6 = scalar_lea.smem %s0, 3
  %s7 = sld [smem:[%s6]]
  %s8 = scalar_lea.smem %s0, 4
  %s9 = sld [smem:[%s8]]
  %s10 = scalar_lea.smem %s0, 5
  %s11 = sld [smem:[%s10]]
  %s12 = scalar_lea.smem %s0, 6
  %s13 = sld [smem:[%s12]]
  %s14 = scalar_lea.smem %s0, 7
  %s15 = sld [smem:[%s14]]
  %s16 = scalar_lea.smem %s0, 8
  %s17 = sld [smem:[%s16]]
  %s18 = scalar_lea.smem %s0, 9
  %s19 = sld [smem:[%s18]]
  %s20 = scalar_lea.smem %s0, 10
  %s21 = sld [smem:[%s20]]
  %s22 = scalar_lea.smem %s0, 11
  %s23 = sld [smem:[%s22]]
  %s24 = scalar_lea.smem %s0, 12
  %s25 = sld [smem:[%s24]]
  %s26 = scalar_lea.smem %s0, 13
  %s27 = sld [smem:[%s26]]
  %s28 = scalar_lea.smem %s0, 14
  %s29 = sld [smem:[%s28]]
  %s30 = scalar_lea.smem %s0, 15
  %s31 = sld [smem:[%s30]]
  %s32 = scalar_lea.smem %s0, 16
  %s33 = sld [smem:[%s32]]
  %s34 = scalar_lea.smem %s0, 17
  %s35 = sld [smem:[%s34]]
  %s36 = scalar_lea.smem %s0, 18
  %s37 = sld [smem:[%s36]]
  %s38 = scalar_lea.smem %s0, 19
  %s39 = sld [smem:[%s38]]
  %s40 = scalar_lea.smem %s0, 20
  %s41 = sld [smem:[%s40]]
  %s42 = scalar_lea.smem %s0, 21
  %s43 = sld [smem:[%s42]]
  %s44 = scalar_lea.smem %s0, 22
  %s45 = sld [smem:[%s44]]
  %s46 = scalar_lea.smem %s0, 23
  %s47 = sld [smem:[%s46]]
  %s48 = scalar_lea.smem %s0, 24
  %s49 = sld [smem:[%s48]]
  %s50 = scalar_lea.smem %s0, 25
  %s51 = sld [smem:[%s50]]
  %s52 = scalar_lea.smem %s0, 26
  %s53 = sld [smem:[%s52]]
  %s54 = scalar_lea.smem %s0, 27
  %s55 = sld [smem:[%s54]]
  %s56 = scalar_lea.smem %s0, 28
  %s57 = sld [smem:[%s56]]
  %s58 = scalar_lea.smem %s0, 29
  %s59 = sld [smem:[%s58]]
  %s60 = scalar_lea.smem %s0, 30
  %s61 = sld [smem:[%s60]]
  %s62 = scalar_lea.smem %s0, 31
  %s63 = sld [smem:[%s62]]
  %s64 = scalar_lea.smem %s0, 32
  %s65 = sld [smem:[%s64]]
  %s66 = scalar_lea.smem %s0, 33
  %s67 = sld [smem:[%s66]]
  %s68 = scalar_lea.smem %s0, 34
  %s69 = sld [smem:[%s68]]
  %s70 = scalar_lea.smem %s0, 35
  %s71 = sld [smem:[%s70]]
  %s72 = scalar_lea.smem %s0, 36
  %s73 = sld [smem:[%s72]]
  %s74 = scalar_lea.smem %s0, 37
  %s75 = sld [smem:[%s74]]
  %s76 = scalar_lea.smem %s0, 38
  %s77 = sld [smem:[%s76]]
  %s78 = scalar_lea.smem %s0, 39
  %s79 = sld [smem:[%s78]]
  %s80 = scalar_lea.smem %s0, 40
  %s81 = sld [smem:[%s80]]
  %s82 = scalar_lea.smem %s0, 41
  %s83 = sld [smem:[%s82]]
  %s84 = scalar_lea.smem %s0, 42
  %s85 = sld [smem:[%s84]]
  %s86 = scalar_lea.smem %s0, 43
  %s87 = sld [smem:[%s86]]
  %s88 = scalar_lea.smem %s0, 44
  %s89 = sld [smem:[%s88]]
  %s90 = scalar_lea.smem %s0, 45
  %s91 = sld [smem:[%s90]]
  %s92 = scalar_lea.smem %s0, 46
  %s93 = sld [smem:[%s92]]
  %s94 = scalar_lea.smem %s0, 47
  %s95 = sld [smem:[%s94]]
  %s96 = scalar_lea.smem %s0, 48
  %s97 = sld [smem:[%s96]]
  %s98 = scalar_lea.smem %s0, 49
  %s99 = sld [smem:[%s98]]
  %s100 = scalar_lea.smem %s0, 50
  %s101 = sld [smem:[%s100]]
  %s102 = scalar_lea.smem %s0, 51
  %s103 = sld [smem:[%s102]]
  %s104 = scalar_lea.smem %s0, 52
  %s105 = sld [smem:[%s104]]
  %s106 = scalar_lea.smem %s0, 53
  %s107 = sld [smem:[%s106]]
  %s108 = scalar_lea.smem %s0, 54
  %s109 = sld [smem:[%s108]]
  %s110 = scalar_lea.smem %s0, 55
  %s111 = sld [smem:[%s110]]
  %s112 = scalar_lea.smem %s0, 56
  %s113 = sld [smem:[%s112]]
  %s114 = scalar_lea.smem %s0, 57
  %s115 = sld [smem:[%s114]]
  %s116 = scalar_lea.smem %s0, 58
  %s117 = sld [smem:[%s116]]
  %s118 = sld [smem:[#allocation0]]
  $region333: #{model_forward.1} parent=0
    _
  %s120 = ssub.s32 1, %s118
  %s121 = scalar_select 0, %s120, %s118
  $region1: #{model_forward.1} parent=0
    #allocation2 [shape = 'u8[512]{0}', space=vmem, size = 0x400, scoped, tag = 'input window, operand 32, single buffered']
    #allocation3 [shape = 's32[2]{0}', space=sflag, size = 0x8, scoped, tag = 'scoped memory for model_forward.1']
    #allocation4 [shape = 'u8[512]{0}', space=vmem, size = 0x400, scoped, tag = 'input window, operand 33, single buffered']
    #allocation5 [shape = 's32[1]{0}', space=sflag, size = 0x4, scoped, tag = 'scoped memory for model_forward.1']
    #allocation6 [shape = 'u8[512]{0}', space=vmem, size = 0x400, scoped, tag = 'input window, operand 35, single buffered']
    #allocation7 [shape = 'u8[512]{0}', space=vmem, size = 0x400, scoped, tag = 'input window, operand 37, single buffered']
    #allocation8 [shape = 's32[1]{0}', space=sflag, size = 0x4, scoped, tag = 'scoped memory for model_forward.1']
    #allocation9 [shape = 'u8[512]{0}', space=vmem, size = 0x400, scoped, tag = 'input window, operand 38, single buffered']
    #allocation10 [shape = 'u8[512]{0}', space=vmem, size = 0x400, scoped, tag = 'input window, operand 39, single buffered']
    #allocation11 [shape = 's32[1]{0}', space=sflag, size = 0x4, scoped, tag = 'scoped memory for model_forward.1']
    #allocation12 [shape = 'u8[512]{0}', space=vmem, size = 0x400, scoped, tag = 'input window, operand 41, single buffered']
    #allocation13 [shape = 'u8[512]{0}', space=vmem, size = 0x400, scoped, tag = 'input window, operand 43, single buffered']
    #allocation14 [shape = 's32[1]{0}', space=sflag, size = 0x4, scoped, tag = 'scoped memory for model_forward.1']
    #allocation15 [shape = 'u8[512]{0}', space=vmem, size = 0x400, scoped, tag = 'input window, operand 45, single buffered']
    #allocation16 [shape = 'u8[512]{0}', space=vmem, size = 0x400, scoped, tag = 'input window, operand 47, single buffered']
    #allocation17 [shape = 's32[1]{0}', space=sflag, size = 0x4, scoped, tag = 'scoped memory for model_forward.1']
    #allocation18 [shape = 'u8[512]{0}', space=vmem, size = 0x400, scoped, tag = 'input window, operand 49, single buffered']
    #allocation19 [shape = 'u8[512]{0}', space=vmem, size = 0x400, scoped, tag = 'input window, operand 50, single buffered']
    #allocation20 [shape = 's32[1]{0}', space=sflag, size = 0x4, scoped, tag = 'scoped memory for model_forward.1']
    #allocation21 [shape = 'u8[512]{0}', space=vmem, size = 0x400, scoped, tag = 'input window, operand 51, single buffered']
    #allocation22 [shape = 'u8[512]{0}', space=vmem, size = 0x400, scoped, tag = 'input window, operand 53, single buffered']
    #allocation23 [shape = 's32[1]{0}', space=sflag, size = 0x4, scoped, tag = 'scoped memory for model_forward.1']
    #allocation24 [shape = 'u8[512]{0}', space=vmem, size = 0x400, scoped, tag = 'input window, operand 55, single buffered']
    #allocation25 [shape = 'u8[512]{0}', space=vmem, size = 0x400, scoped, tag = 'input window, operand 56, single buffered']
    #allocation26 [shape = 's32[1]{0}', space=sflag, size = 0x4, scoped, tag = 'scoped memory for model_forward.1']
    #allocation27 [shape = 'u8[512]{0}', space=vmem, size = 0x400, scoped, tag = 'input window, operand 57, single buffered']
    %122 = vsyncpa [#allocation3], 0
    %123 = vsyncpa [#allocation5], 0
    %124 = vsyncpa [#allocation8], 0
    %125 = vsyncpa [#allocation11], 0
    %126 = vsyncpa [#allocation14], 0
    %127 = vsyncpa [#allocation17], 0
    %128 = vsyncpa [#allocation20], 0
    %129 = vsyncpa [#allocation23], 0
    %130 = vsyncpa [#allocation26], 0
    loop: start=0, step=1, limit=4
    $region2: #{model_forward.1} parent=1 // loop_pre_header
      _
    $region3: #{model_forward.1} parent=1 // loop_header
      %s132 = sphi 0, %s136
      %p133 = scmp.ge.s32.totalorder %s132, 4
      %s142 = sphi 0, %s144
      %s145 = sphi 0, %s142
      %s146 = sphi 0, %s145
      %s162 = sphi 0, %s146
      %s168 = sphi 0, %s170
      %s171 = sphi 0, %s168
      %s172 = sphi 0, %s171
      %s188 = sphi 0, %s172
      %s192 = sphi 0, %s192
      %s194 = sphi 0, %s192
      %s195 = sphi 0, %s194
      %s209 = sphi 0, %s195
      %s213 = sphi 0, %s213
      %s215 = sphi 0, %s213
      %s216 = sphi 0, %s215
      %s230 = sphi 0, %s216
      %s234 = sphi 0, %s234
      %s236 = sphi 0, %s234
      %s237 = sphi 0, %s236
      %s251 = sphi 0, %s237
      %s255 = sphi 0, %s255
      %s257 = sphi 0, %s255
      %s258 = sphi 0, %s257
      %s272 = sphi 0, %s258
      %s276 = sphi 0, %s276
      %s278 = sphi 0, %s276
      %s279 = sphi 0, %s278
      %s293 = sphi 0, %s279
      %s297 = sphi 0, %s297
      %s299 = sphi 0, %s297
      %s300 = sphi 0, %s299
      %s314 = sphi 0, %s300
      %s318 = sphi 0, %s318
      %s320 = sphi 0, %s318
      %s321 = sphi 0, %s320
      %s335 = sphi 0, %s321
      %s339 = sphi 0, %s339
      %s341 = sphi 0, %s339
      %s342 = sphi 0, %s341
      %s356 = sphi 0, %s342
      %s360 = sphi 0, %s360
      %s362 = sphi 0, %s360
      %s363 = sphi 0, %s362
      %s377 = sphi 0, %s363
      %s381 = sphi 0, %s381
      %s383 = sphi 0, %s381
      %s384 = sphi 0, %s383
      %s398 = sphi 0, %s384
      %s402 = sphi 0, %s402
      %s404 = sphi 0, %s402
      %s405 = sphi 0, %s404
      %s419 = sphi 0, %s405
      %s423 = sphi 0, %s423
      %s425 = sphi 0, %s423
      %s426 = sphi 0, %s425
      %s440 = sphi 0, %s426
      %s444 = sphi 0, %s444
      %s446 = sphi 0, %s444
      %s447 = sphi 0, %s446
      %s461 = sphi 0, %s447
      %s465 = sphi 0, %s465
      %s467 = sphi 0, %s465
      %s468 = sphi 0, %s467
      %s482 = sphi 0, %s468
      %s486 = sphi 0, %s486
      %s488 = sphi 0, %s486
      %s489 = sphi 0, %s488
      %s503 = sphi 0, %s489
      %s507 = sphi 0, %s507
      %s509 = sphi 0, %s507
      %s510 = sphi 0, %s509
      %s524 = sphi 0, %s510
      %s528 = sphi 0, %s528
      %s530 = sphi 0, %s528
      %s531 = sphi 0, %s530
      %s545 = sphi 0, %s531
      %s549 = sphi 0, %s549
      %s551 = sphi 0, %s549
      %s552 = sphi 0, %s551
      %s566 = sphi 0, %s552
      %s570 = sphi 0, %s570
      %s572 = sphi 0, %s570
      %s573 = sphi 0, %s572
      %s587 = sphi 0, %s573
      %s591 = sphi 0, %s591
      %s593 = sphi 0, %s591
      %s594 = sphi 0, %s593
      %s608 = sphi 0, %s594
      %s612 = sphi 0, %s612
      %s614 = sphi 0, %s612
      %s615 = sphi 0, %s614
      %s629 = sphi 0, %s615
      %s633 = sphi 0, %s633
      %s635 = sphi 0, %s633
      %s636 = sphi 0, %s635
      %s650 = sphi 0, %s636
      %s654 = sphi 0, %s654
      %s656 = sphi 0, %s654
      %s657 = sphi 0, %s656
      %s671 = sphi 0, %s657
      %s675 = sphi 0, %s675
      %s677 = sphi 0, %s675
      %s678 = sphi 0, %s677
      %s692 = sphi 0, %s678
      %s696 = sphi 0, %s696
      %s698 = sphi 0, %s696
      %s699 = sphi 0, %s698
      %s713 = sphi 0, %s699
      %s717 = sphi 0, %s717
      %s719 = sphi 0, %s717
      %s720 = sphi 0, %s719
      %s734 = sphi 0, %s720
      %s738 = sphi 0, %s738
      %s740 = sphi 0, %s738
      %s741 = sphi 0, %s740
      %s755 = sphi 0, %s741
      %s759 = sphi 0, %s759
      %s761 = sphi 0, %s759
      %s762 = sphi 0, %s761
      %s776 = sphi 0, %s762
      %s780 = sphi 0, %s780
      %s782 = sphi 0, %s780
      %s783 = sphi 0, %s782
      %s797 = sphi 0, %s783
      %s801 = sphi 0, %s801
      %s803 = sphi 0, %s801
      %s804 = sphi 0, %s803
      %s818 = sphi 0, %s804
      %s822 = sphi 0, %s822
      %s824 = sphi 0, %s822
      %s825 = sphi 0, %s824
      %s839 = sphi 0, %s825
      %s843 = sphi 0, %s843
      %s845 = sphi 0, %s843
      %s846 = sphi 0, %s845
      %s860 = sphi 0, %s846
      %s864 = sphi 0, %s864
      %s866 = sphi 0, %s864
      %s867 = sphi 0, %s866
      %s881 = sphi 0, %s867
      %s885 = sphi 0, %s885
      %s887 = sphi 0, %s885
      %s888 = sphi 0, %s887
      %s902 = sphi 0, %s888
      %s906 = sphi 0, %s906
      %s908 = sphi 0, %s906
      %s909 = sphi 0, %s908
      %s923 = sphi 0, %s909
      %s927 = sphi 0, %s927
      %s929 = sphi 0, %s927
      %s930 = sphi 0, %s929
      %s944 = sphi 0, %s930
      %s948 = sphi 0, %s948
      %s950 = sphi 0, %s948
      %s951 = sphi 0, %s950
      %s965 = sphi 0, %s951
      %s969 = sphi 0, %s969
      %s971 = sphi 0, %s969
      %s972 = sphi 0, %s971
      %s986 = sphi 0, %s972
      %s990 = sphi 0, %s990
      %s992 = sphi 0, %s990
      %s993 = sphi 0, %s992
      %s1007 = sphi 0, %s993
      %s1011 = sphi 0, %s1011
      %s1013 = sphi 0, %s1011
      %s1014 = sphi 0, %s1013
      %s1028 = sphi 0, %s1014
      %s1032 = sphi 0, %s1032
      %s1034 = sphi 0, %s1032
      %s1035 = sphi 0, %s1034
      %s1049 = sphi 0, %s1035
      %s1053 = sphi 0, %s1053
      %s1055 = sphi 0, %s1053
      %s1056 = sphi 0, %s1055
      %s1070 = sphi 0, %s1056
      %s1074 = sphi 0, %s1074
      %s1076 = sphi 0, %s1074
      %s1077 = sphi 0, %s1076
      %s1091 = sphi 0, %s1077
      %s1095 = sphi 0, %s1095
      %s1097 = sphi 0, %s1095
      %s1098 = sphi 0, %s1097
      %s1112 = sphi 0, %s1098
      %s1116 = sphi 0, %s1116
      %s1118 = sphi 0, %s1116
      %s1119 = sphi 0, %s1118
      %s1133 = sphi 0, %s1119
      %s1137 = sphi 0, %s1137
      %s1139 = sphi 0, %s1137
      %s1140 = sphi 0, %s1139
      %s1154 = sphi 0, %s1140
      %s1158 = sphi 0, %s1158
      %s1160 = sphi 0, %s1158
      %s1161 = sphi 0, %s1160
      %s1175 = sphi 0, %s1161
      %s1179 = sphi 0, %s1179
      %s1181 = sphi 0, %s1179
      %s1182 = sphi 0, %s1181
      %s1196 = sphi 0, %s1182
      %s1200 = sphi 0, %s1200
      %s1202 = sphi 0, %s1200
      %s1203 = sphi 0, %s1202
      %s1217 = sphi 0, %s1203
      %s1221 = sphi 0, %s1221
      %s1223 = sphi 0, %s1221
      %s1224 = sphi 0, %s1223
      %s1238 = sphi 0, %s1224
      %s1242 = sphi 0, %s1242
      %s1244 = sphi 0, %s1242
      %s1245 = sphi 0, %s1244
      %s1259 = sphi 0, %s1245
      %s1263 = sphi 0, %s1263
      %s1265 = sphi 0, %s1263
      %s1266 = sphi 0, %s1265
      %s1280 = sphi 0, %s1266
      %s1284 = sphi 0, %s1284
      %s1286 = sphi 0, %s1284
      %s1287 = sphi 0, %s1286
      %s1301 = sphi 0, %s1287
      %s1305 = sphi 0, %s1305
      %s1307 = sphi 0, %s1305
      %s1308 = sphi 0, %s1307
      %s1322 = sphi 0, %s1308
      %s1326 = sphi 0, %s1326
      %s1328 = sphi 0, %s1326
      %s1329 = sphi 0, %s1328
      %s1343 = sphi 0, %s1329
      %s1347 = sphi 0, %s1347
      %s1349 = sphi 0, %s1347
      %s1350 = sphi 0, %s1349
      %s1364 = sphi 0, %s1350
      %s1370 = sphi 0, %s1372
      %s1373 = sphi 0, %s1370
      %s1374 = sphi 0, %s1373
      %s1390 = sphi 0, %s1374
    $region4: #{model_forward.1} parent=1 // loop_header_branch
      %135 = sbr.rel (%p133) target = $region8
    $region5: #{model_forward.1} parent=1 // loop_body
      %s137 = ssub.s32 %s132, 1
      %s138 = ssub.s32 %s132, 2
      %s139 = sadd.s32 %s132, 1
      %s140 = ssub.s32 %s132, %s139
      %p141 = scmp.eq.s32.totalorder %s140, 0
      %s143 = sadd.s32 %s142, 1
      %s144 = scalar_select %p141, %s142, %s143
      %p147 = pneg %p141
      %p148 = scmp.eq.s32.totalorder %s132, 1
      %p149 = por %p147, %p148
      %p150 = scmp.ne.s32.totalorder %s142, %s145
      %p151 = scmp.eq.s32.totalorder %s132, 0
      %p152 = por %p150, %p151
      %p153 = scmp.ne.s32.totalorder %s142, %s145
      %p154 = scmp.eq.s32.totalorder %s137, 1
      %p155 = por %p153, %p154
      %p156 = scmp.ne.s32.totalorder %s145, %s146
      %p157 = scmp.eq.s32.totalorder %s137, 0
      %p158 = por %p156, %p157
      %p159 = scmp.ne.s32.totalorder %s145, %s146
      %p160 = scmp.eq.s32.totalorder %s138, 1
      %p161 = por %p159, %p160
      %p163 = scmp.ne.s32.totalorder %s146, %s162
      %p164 = scmp.eq.s32.totalorder %s138, 0
      %p165 = por %p163, %p164
      %s166 = ssub.s32 %s132, %s139
      %p167 = scmp.eq.s32.totalorder %s166, 0
      %s169 = sadd.s32 %s168, 1
      %s170 = scalar_select %p167, %s168, %s169
      %p173 = pneg %p167
      %p174 = scmp.eq.s32.totalorder %s132, 1
      %p175 = por %p173, %p174
      %p176 = scmp.ne.s32.totalorder %s168, %s171
      %p177 = scmp.eq.s32.totalorder %s132, 0
      %p178 = por %p176, %p177
      %p179 = scmp.ne.s32.totalorder %s168, %s171
      %p180 = scmp.eq.s32.totalorder %s137, 1
      %p181 = por %p179, %p180
      %p182 = scmp.ne.s32.totalorder %s171, %s172
      %p183 = scmp.eq.s32.totalorder %s137, 0
      %p184 = por %p182, %p183
      %p185 = scmp.ne.s32.totalorder %s171, %s172
      %p186 = scmp.eq.s32.totalorder %s138, 1
      %p187 = por %p185, %p186
      %p189 = scmp.ne.s32.totalorder %s172, %s188
      %p190 = scmp.eq.s32.totalorder %s138, 0
      %p191 = por %p189, %p190
      %s193 = sadd.s32 %s192, 1
      %p196 = scmp.eq.s32.totalorder %s132, 1
      %p197 = scmp.ne.s32.totalorder %s192, %s194
      %p198 = scmp.eq.s32.totalorder %s132, 0
      %p199 = por %p197, %p198
      %p200 = scmp.ne.s32.totalorder %s192, %s194
      %p201 = scmp.eq.s32.totalorder %s137, 1
      %p202 = por %p200, %p201
      %p203 = scmp.ne.s32.totalorder %s194, %s195
      %p204 = scmp.eq.s32.totalorder %s137, 0
      %p205 = por %p203, %p204
      %p206 = scmp.ne.s32.totalorder %s194, %s195
      %p207 = scmp.eq.s32.totalorder %s138, 1
      %p208 = por %p206, %p207
      %p210 = scmp.ne.s32.totalorder %s195, %s209
      %p211 = scmp.eq.s32.totalorder %s138, 0
      %p212 = por %p210, %p211
      %s214 = sadd.s32 %s213, 1
      %p217 = scmp.eq.s32.totalorder %s132, 1
      %p218 = scmp.ne.s32.totalorder %s213, %s215
      %p219 = scmp.eq.s32.totalorder %s132, 0
      %p220 = por %p218, %p219
      %p221 = scmp.ne.s32.totalorder %s213, %s215
      %p222 = scmp.eq.s32.totalorder %s137, 1
      %p223 = por %p221, %p222
      %p224 = scmp.ne.s32.totalorder %s215, %s216
      %p225 = scmp.eq.s32.totalorder %s137, 0
      %p226 = por %p224, %p225
      %p227 = scmp.ne.s32.totalorder %s215, %s216
      %p228 = scmp.eq.s32.totalorder %s138, 1
      %p229 = por %p227, %p228
      %p231 = scmp.ne.s32.totalorder %s216, %s230
      %p232 = scmp.eq.s32.totalorder %s138, 0
      %p233 = por %p231, %p232
      %s235 = sadd.s32 %s234, 1
      %p238 = scmp.eq.s32.totalorder %s132, 1
      %p239 = scmp.ne.s32.totalorder %s234, %s236
      %p240 = scmp.eq.s32.totalorder %s132, 0
      %p241 = por %p239, %p240
      %p242 = scmp.ne.s32.totalorder %s234, %s236
      %p243 = scmp.eq.s32.totalorder %s137, 1
      %p244 = por %p242, %p243
      %p245 = scmp.ne.s32.totalorder %s236, %s237
      %p246 = scmp.eq.s32.totalorder %s137, 0
      %p247 = por %p245, %p246
      %p248 = scmp.ne.s32.totalorder %s236, %s237
      %p249 = scmp.eq.s32.totalorder %s138, 1
      %p250 = por %p248, %p249
      %p252 = scmp.ne.s32.totalorder %s237, %s251
      %p253 = scmp.eq.s32.totalorder %s138, 0
      %p254 = por %p252, %p253
      %s256 = sadd.s32 %s255, 1
      %p259 = scmp.eq.s32.totalorder %s132, 1
      %p260 = scmp.ne.s32.totalorder %s255, %s257
      %p261 = scmp.eq.s32.totalorder %s132, 0
      %p262 = por %p260, %p261
      %p263 = scmp.ne.s32.totalorder %s255, %s257
      %p264 = scmp.eq.s32.totalorder %s137, 1
      %p265 = por %p263, %p264
      %p266 = scmp.ne.s32.totalorder %s257, %s258
      %p267 = scmp.eq.s32.totalorder %s137, 0
      %p268 = por %p266, %p267
      %p269 = scmp.ne.s32.totalorder %s257, %s258
      %p270 = scmp.eq.s32.totalorder %s138, 1
      %p271 = por %p269, %p270
      %p273 = scmp.ne.s32.totalorder %s258, %s272
      %p274 = scmp.eq.s32.totalorder %s138, 0
      %p275 = por %p273, %p274
      %s277 = sadd.s32 %s276, 1
      %p280 = scmp.eq.s32.totalorder %s132, 1
      %p281 = scmp.ne.s32.totalorder %s276, %s278
      %p282 = scmp.eq.s32.totalorder %s132, 0
      %p283 = por %p281, %p282
      %p284 = scmp.ne.s32.totalorder %s276, %s278
      %p285 = scmp.eq.s32.totalorder %s137, 1
      %p286 = por %p284, %p285
      %p287 = scmp.ne.s32.totalorder %s278, %s279
      %p288 = scmp.eq.s32.totalorder %s137, 0
      %p289 = por %p287, %p288
      %p290 = scmp.ne.s32.totalorder %s278, %s279
      %p291 = scmp.eq.s32.totalorder %s138, 1
      %p292 = por %p290, %p291
      %p294 = scmp.ne.s32.totalorder %s279, %s293
      %p295 = scmp.eq.s32.totalorder %s138, 0
      %p296 = por %p294, %p295
      %s298 = sadd.s32 %s297, 1
      %p301 = scmp.eq.s32.totalorder %s132, 1
      %p302 = scmp.ne.s32.totalorder %s297, %s299
      %p303 = scmp.eq.s32.totalorder %s132, 0
      %p304 = por %p302, %p303
      %p305 = scmp.ne.s32.totalorder %s297, %s299
      %p306 = scmp.eq.s32.totalorder %s137, 1
      %p307 = por %p305, %p306
      %p308 = scmp.ne.s32.totalorder %s299, %s300
      %p309 = scmp.eq.s32.totalorder %s137, 0
      %p310 = por %p308, %p309
      %p311 = scmp.ne.s32.totalorder %s299, %s300
      %p312 = scmp.eq.s32.totalorder %s138, 1
      %p313 = por %p311, %p312
      %p315 = scmp.ne.s32.totalorder %s300, %s314
      %p316 = scmp.eq.s32.totalorder %s138, 0
      %p317 = por %p315, %p316
      %s319 = sadd.s32 %s318, 1
      %p322 = scmp.eq.s32.totalorder %s132, 1
      %p323 = scmp.ne.s32.totalorder %s318, %s320
      %p324 = scmp.eq.s32.totalorder %s132, 0
      %p325 = por %p323, %p324
      %p326 = scmp.ne.s32.totalorder %s318, %s320
      %p327 = scmp.eq.s32.totalorder %s137, 1
      %p328 = por %p326, %p327
      %p329 = scmp.ne.s32.totalorder %s320, %s321
      %p330 = scmp.eq.s32.totalorder %s137, 0
      %p331 = por %p329, %p330
      %p332 = scmp.ne.s32.totalorder %s320, %s321
      %p333 = scmp.eq.s32.totalorder %s138, 1
      %p334 = por %p332, %p333
      %p336 = scmp.ne.s32.totalorder %s321, %s335
      %p337 = scmp.eq.s32.totalorder %s138, 0
      %p338 = por %p336, %p337
      %s340 = sadd.s32 %s339, 1
      %p343 = scmp.eq.s32.totalorder %s132, 1
      %p344 = scmp.ne.s32.totalorder %s339, %s341
      %p345 = scmp.eq.s32.totalorder %s132, 0
      %p346 = por %p344, %p345
      %p347 = scmp.ne.s32.totalorder %s339, %s341
      %p348 = scmp.eq.s32.totalorder %s137, 1
      %p349 = por %p347, %p348
      %p350 = scmp.ne.s32.totalorder %s341, %s342
      %p351 = scmp.eq.s32.totalorder %s137, 0
      %p352 = por %p350, %p351
      %p353 = scmp.ne.s32.totalorder %s341, %s342
      %p354 = scmp.eq.s32.totalorder %s138, 1
      %p355 = por %p353, %p354
      %p357 = scmp.ne.s32.totalorder %s342, %s356
      %p358 = scmp.eq.s32.totalorder %s138, 0
      %p359 = por %p357, %p358
      %s361 = sadd.s32 %s360, 1
      %p364 = scmp.eq.s32.totalorder %s132, 1
      %p365 = scmp.ne.s32.totalorder %s360, %s362
      %p366 = scmp.eq.s32.totalorder %s132, 0
      %p367 = por %p365, %p366
      %p368 = scmp.ne.s32.totalorder %s360, %s362
      %p369 = scmp.eq.s32.totalorder %s137, 1
      %p370 = por %p368, %p369
      %p371 = scmp.ne.s32.totalorder %s362, %s363
      %p372 = scmp.eq.s32.totalorder %s137, 0
      %p373 = por %p371, %p372
      %p374 = scmp.ne.s32.totalorder %s362, %s363
      %p375 = scmp.eq.s32.totalorder %s138, 1
      %p376 = por %p374, %p375
      %p378 = scmp.ne.s32.totalorder %s363, %s377
      %p379 = scmp.eq.s32.totalorder %s138, 0
      %p380 = por %p378, %p379
      %s382 = sadd.s32 %s381, 1
      %p385 = scmp.eq.s32.totalorder %s132, 1
      %p386 = scmp.ne.s32.totalorder %s381, %s383
      %p387 = scmp.eq.s32.totalorder %s132, 0
      %p388 = por %p386, %p387
      %p389 = scmp.ne.s32.totalorder %s381, %s383
      %p390 = scmp.eq.s32.totalorder %s137, 1
      %p391 = por %p389, %p390
      %p392 = scmp.ne.s32.totalorder %s383, %s384
      %p393 = scmp.eq.s32.totalorder %s137, 0
      %p394 = por %p392, %p393
      %p395 = scmp.ne.s32.totalorder %s383, %s384
      %p396 = scmp.eq.s32.totalorder %s138, 1
      %p397 = por %p395, %p396
      %p399 = scmp.ne.s32.totalorder %s384, %s398
      %p400 = scmp.eq.s32.totalorder %s138, 0
      %p401 = por %p399, %p400
      %s403 = sadd.s32 %s402, 1
      %p406 = scmp.eq.s32.totalorder %s132, 1
      %p407 = scmp.ne.s32.totalorder %s402, %s404
      %p408 = scmp.eq.s32.totalorder %s132, 0
      %p409 = por %p407, %p408
      %p410 = scmp.ne.s32.totalorder %s402, %s404
      %p411 = scmp.eq.s32.totalorder %s137, 1
      %p412 = por %p410, %p411
      %p413 = scmp.ne.s32.totalorder %s404, %s405
      %p414 = scmp.eq.s32.totalorder %s137, 0
      %p415 = por %p413, %p414
      %p416 = scmp.ne.s32.totalorder %s404, %s405
      %p417 = scmp.eq.s32.totalorder %s138, 1
      %p418 = por %p416, %p417
      %p420 = scmp.ne.s32.totalorder %s405, %s419
      %p421 = scmp.eq.s32.totalorder %s138, 0
      %p422 = por %p420, %p421
      %s424 = sadd.s32 %s423, 1
      %p427 = scmp.eq.s32.totalorder %s132, 1
      %p428 = scmp.ne.s32.totalorder %s423, %s425
      %p429 = scmp.eq.s32.totalorder %s132, 0
      %p430 = por %p428, %p429
      %p431 = scmp.ne.s32.totalorder %s423, %s425
      %p432 = scmp.eq.s32.totalorder %s137, 1
      %p433 = por %p431, %p432
      %p434 = scmp.ne.s32.totalorder %s425, %s426
      %p435 = scmp.eq.s32.totalorder %s137, 0
      %p436 = por %p434, %p435
      %p437 = scmp.ne.s32.totalorder %s425, %s426
      %p438 = scmp.eq.s32.totalorder %s138, 1
      %p439 = por %p437, %p438
      %p441 = scmp.ne.s32.totalorder %s426, %s440
      %p442 = scmp.eq.s32.totalorder %s138, 0
      %p443 = por %p441, %p442
      %s445 = sadd.s32 %s444, 1
      %p448 = scmp.eq.s32.totalorder %s132, 1
      %p449 = scmp.ne.s32.totalorder %s444, %s446
      %p450 = scmp.eq.s32.totalorder %s132, 0
      %p451 = por %p449, %p450
      %p452 = scmp.ne.s32.totalorder %s444, %s446
      %p453 = scmp.eq.s32.totalorder %s137, 1
      %p454 = por %p452, %p453
      %p455 = scmp.ne.s32.totalorder %s446, %s447
      %p456 = scmp.eq.s32.totalorder %s137, 0
      %p457 = por %p455, %p456
      %p458 = scmp.ne.s32.totalorder %s446, %s447
      %p459 = scmp.eq.s32.totalorder %s138, 1
      %p460 = por %p458, %p459
      %p462 = scmp.ne.s32.totalorder %s447, %s461
      %p463 = scmp.eq.s32.totalorder %s138, 0
      %p464 = por %p462, %p463
      %s466 = sadd.s32 %s465, 1
      %p469 = scmp.eq.s32.totalorder %s132, 1
      %p470 = scmp.ne.s32.totalorder %s465, %s467
      %p471 = scmp.eq.s32.totalorder %s132, 0
      %p472 = por %p470, %p471
      %p473 = scmp.ne.s32.totalorder %s465, %s467
      %p474 = scmp.eq.s32.totalorder %s137, 1
      %p475 = por %p473, %p474
      %p476 = scmp.ne.s32.totalorder %s467, %s468
      %p477 = scmp.eq.s32.totalorder %s137, 0
      %p478 = por %p476, %p477
      %p479 = scmp.ne.s32.totalorder %s467, %s468
      %p480 = scmp.eq.s32.totalorder %s138, 1
      %p481 = por %p479, %p480
      %p483 = scmp.ne.s32.totalorder %s468, %s482
      %p484 = scmp.eq.s32.totalorder %s138, 0
      %p485 = por %p483, %p484
      %s487 = sadd.s32 %s486, 1
      %p490 = scmp.eq.s32.totalorder %s132, 1
      %p491 = scmp.ne.s32.totalorder %s486, %s488
      %p492 = scmp.eq.s32.totalorder %s132, 0
      %p493 = por %p491, %p492
      %p494 = scmp.ne.s32.totalorder %s486, %s488
      %p495 = scmp.eq.s32.totalorder %s137, 1
      %p496 = por %p494, %p495
      %p497 = scmp.ne.s32.totalorder %s488, %s489
      %p498 = scmp.eq.s32.totalorder %s137, 0
      %p499 = por %p497, %p498
      %p500 = scmp.ne.s32.totalorder %s488, %s489
      %p501 = scmp.eq.s32.totalorder %s138, 1
      %p502 = por %p500, %p501
      %p504 = scmp.ne.s32.totalorder %s489, %s503
      %p505 = scmp.eq.s32.totalorder %s138, 0
      %p506 = por %p504, %p505
      %s508 = sadd.s32 %s507, 1
      %p511 = scmp.eq.s32.totalorder %s132, 1
      %p512 = scmp.ne.s32.totalorder %s507, %s509
      %p513 = scmp.eq.s32.totalorder %s132, 0
      %p514 = por %p512, %p513
      %p515 = scmp.ne.s32.totalorder %s507, %s509
      %p516 = scmp.eq.s32.totalorder %s137, 1
      %p517 = por %p515, %p516
      %p518 = scmp.ne.s32.totalorder %s509, %s510
      %p519 = scmp.eq.s32.totalorder %s137, 0
      %p520 = por %p518, %p519
      %p521 = scmp.ne.s32.totalorder %s509, %s510
      %p522 = scmp.eq.s32.totalorder %s138, 1
      %p523 = por %p521, %p522
      %p525 = scmp.ne.s32.totalorder %s510, %s524
      %p526 = scmp.eq.s32.totalorder %s138, 0
      %p527 = por %p525, %p526
      %s529 = sadd.s32 %s528, 1
      %p532 = scmp.eq.s32.totalorder %s132, 1
      %p533 = scmp.ne.s32.totalorder %s528, %s530
      %p534 = scmp.eq.s32.totalorder %s132, 0
      %p535 = por %p533, %p534
      %p536 = scmp.ne.s32.totalorder %s528, %s530
      %p537 = scmp.eq.s32.totalorder %s137, 1
      %p538 = por %p536, %p537
      %p539 = scmp.ne.s32.totalorder %s530, %s531
      %p540 = scmp.eq.s32.totalorder %s137, 0
      %p541 = por %p539, %p540
      %p542 = scmp.ne.s32.totalorder %s530, %s531
      %p543 = scmp.eq.s32.totalorder %s138, 1
      %p544 = por %p542, %p543
      %p546 = scmp.ne.s32.totalorder %s531, %s545
      %p547 = scmp.eq.s32.totalorder %s138, 0
      %p548 = por %p546, %p547
      %s550 = sadd.s32 %s549, 1
      %p553 = scmp.eq.s32.totalorder %s132, 1
      %p554 = scmp.ne.s32.totalorder %s549, %s551
      %p555 = scmp.eq.s32.totalorder %s132, 0
      %p556 = por %p554, %p555
      %p557 = scmp.ne.s32.totalorder %s549, %s551
      %p558 = scmp.eq.s32.totalorder %s137, 1
      %p559 = por %p557, %p558
      %p560 = scmp.ne.s32.totalorder %s551, %s552
      %p561 = scmp.eq.s32.totalorder %s137, 0
      %p562 = por %p560, %p561
      %p563 = scmp.ne.s32.totalorder %s551, %s552
      %p564 = scmp.eq.s32.totalorder %s138, 1
      %p565 = por %p563, %p564
      %p567 = scmp.ne.s32.totalorder %s552, %s566
      %p568 = scmp.eq.s32.totalorder %s138, 0
      %p569 = por %p567, %p568
      %s571 = sadd.s32 %s570, 1
      %p574 = scmp.eq.s32.totalorder %s132, 1
      %p575 = scmp.ne.s32.totalorder %s570, %s572
      %p576 = scmp.eq.s32.totalorder %s132, 0
      %p577 = por %p575, %p576
      %p578 = scmp.ne.s32.totalorder %s570, %s572
      %p579 = scmp.eq.s32.totalorder %s137, 1
      %p580 = por %p578, %p579
      %p581 = scmp.ne.s32.totalorder %s572, %s573
      %p582 = scmp.eq.s32.totalorder %s137, 0
      %p583 = por %p581, %p582
      %p584 = scmp.ne.s32.totalorder %s572, %s573
      %p585 = scmp.eq.s32.totalorder %s138, 1
      %p586 = por %p584, %p585
      %p588 = scmp.ne.s32.totalorder %s573, %s587
      %p589 = scmp.eq.s32.totalorder %s138, 0
      %p590 = por %p588, %p589
      %s592 = sadd.s32 %s591, 1
      %p595 = scmp.eq.s32.totalorder %s132, 1
      %p596 = scmp.ne.s32.totalorder %s591, %s593
      %p597 = scmp.eq.s32.totalorder %s132, 0
      %p598 = por %p596, %p597
      %p599 = scmp.ne.s32.totalorder %s591, %s593
      %p600 = scmp.eq.s32.totalorder %s137, 1
      %p601 = por %p599, %p600
      %p602 = scmp.ne.s32.totalorder %s593, %s594
      %p603 = scmp.eq.s32.totalorder %s137, 0
      %p604 = por %p602, %p603
      %p605 = scmp.ne.s32.totalorder %s593, %s594
      %p606 = scmp.eq.s32.totalorder %s138, 1
      %p607 = por %p605, %p606
      %p609 = scmp.ne.s32.totalorder %s594, %s608
      %p610 = scmp.eq.s32.totalorder %s138, 0
      %p611 = por %p609, %p610
      %s613 = sadd.s32 %s612, 1
      %p616 = scmp.eq.s32.totalorder %s132, 1
      %p617 = scmp.ne.s32.totalorder %s612, %s614
      %p618 = scmp.eq.s32.totalorder %s132, 0
      %p619 = por %p617, %p618
      %p620 = scmp.ne.s32.totalorder %s612, %s614
      %p621 = scmp.eq.s32.totalorder %s137, 1
      %p622 = por %p620, %p621
      %p623 = scmp.ne.s32.totalorder %s614, %s615
      %p624 = scmp.eq.s32.totalorder %s137, 0
      %p625 = por %p623, %p624
      %p626 = scmp.ne.s32.totalorder %s614, %s615
      %p627 = scmp.eq.s32.totalorder %s138, 1
      %p628 = por %p626, %p627
      %p630 = scmp.ne.s32.totalorder %s615, %s629
      %p631 = scmp.eq.s32.totalorder %s138, 0
      %p632 = por %p630, %p631
      %s634 = sadd.s32 %s633, 1
      %p637 = scmp.eq.s32.totalorder %s132, 1
      %p638 = scmp.ne.s32.totalorder %s633, %s635
      %p639 = scmp.eq.s32.totalorder %s132, 0
      %p640 = por %p638, %p639
      %p641 = scmp.ne.s32.totalorder %s633, %s635
      %p642 = scmp.eq.s32.totalorder %s137, 1
      %p643 = por %p641, %p642
      %p644 = scmp.ne.s32.totalorder %s635, %s636
      %p645 = scmp.eq.s32.totalorder %s137, 0
      %p646 = por %p644, %p645
      %p647 = scmp.ne.s32.totalorder %s635, %s636
      %p648 = scmp.eq.s32.totalorder %s138, 1
      %p649 = por %p647, %p648
      %p651 = scmp.ne.s32.totalorder %s636, %s650
      %p652 = scmp.eq.s32.totalorder %s138, 0
      %p653 = por %p651, %p652
      %s655 = sadd.s32 %s654, 1
      %p658 = scmp.eq.s32.totalorder %s132, 1
      %p659 = scmp.ne.s32.totalorder %s654, %s656
      %p660 = scmp.eq.s32.totalorder %s132, 0
      %p661 = por %p659, %p660
      %p662 = scmp.ne.s32.totalorder %s654, %s656
      %p663 = scmp.eq.s32.totalorder %s137, 1
      %p664 = por %p662, %p663
      %p665 = scmp.ne.s32.totalorder %s656, %s657
      %p666 = scmp.eq.s32.totalorder %s137, 0
      %p667 = por %p665, %p666
      %p668 = scmp.ne.s32.totalorder %s656, %s657
      %p669 = scmp.eq.s32.totalorder %s138, 1
      %p670 = por %p668, %p669
      %p672 = scmp.ne.s32.totalorder %s657, %s671
      %p673 = scmp.eq.s32.totalorder %s138, 0
      %p674 = por %p672, %p673
      %s676 = sadd.s32 %s675, 1
      %p679 = scmp.eq.s32.totalorder %s132, 1
      %p680 = scmp.ne.s32.totalorder %s675, %s677
      %p681 = scmp.eq.s32.totalorder %s132, 0
      %p682 = por %p680, %p681
      %p683 = scmp.ne.s32.totalorder %s675, %s677
      %p684 = scmp.eq.s32.totalorder %s137, 1
      %p685 = por %p683, %p684
      %p686 = scmp.ne.s32.totalorder %s677, %s678
      %p687 = scmp.eq.s32.totalorder %s137, 0
      %p688 = por %p686, %p687
      %p689 = scmp.ne.s32.totalorder %s677, %s678
      %p690 = scmp.eq.s32.totalorder %s138, 1
      %p691 = por %p689, %p690
      %p693 = scmp.ne.s32.totalorder %s678, %s692
      %p694 = scmp.eq.s32.totalorder %s138, 0
      %p695 = por %p693, %p694
      %s697 = sadd.s32 %s696, 1
      %p700 = scmp.eq.s32.totalorder %s132, 1
      %p701 = scmp.ne.s32.totalorder %s696, %s698
      %p702 = scmp.eq.s32.totalorder %s132, 0
      %p703 = por %p701, %p702
      %p704 = scmp.ne.s32.totalorder %s696, %s698
      %p705 = scmp.eq.s32.totalorder %s137, 1
      %p706 = por %p704, %p705
      %p707 = scmp.ne.s32.totalorder %s698, %s699
      %p708 = scmp.eq.s32.totalorder %s137, 0
      %p709 = por %p707, %p708
      %p710 = scmp.ne.s32.totalorder %s698, %s699
      %p711 = scmp.eq.s32.totalorder %s138, 1
      %p712 = por %p710, %p711
      %p714 = scmp.ne.s32.totalorder %s699, %s713
      %p715 = scmp.eq.s32.totalorder %s138, 0
      %p716 = por %p714, %p715
      %s718 = sadd.s32 %s717, 1
      %p721 = scmp.eq.s32.totalorder %s132, 1
      %p722 = scmp.ne.s32.totalorder %s717, %s719
      %p723 = scmp.eq.s32.totalorder %s132, 0
      %p724 = por %p722, %p723
      %p725 = scmp.ne.s32.totalorder %s717, %s719
      %p726 = scmp.eq.s32.totalorder %s137, 1
      %p727 = por %p725, %p726
      %p728 = scmp.ne.s32.totalorder %s719, %s720
      %p729 = scmp.eq.s32.totalorder %s137, 0
      %p730 = por %p728, %p729
      %p731 = scmp.ne.s32.totalorder %s719, %s720
      %p732 = scmp.eq.s32.totalorder %s138, 1
      %p733 = por %p731, %p732
      %p735 = scmp.ne.s32.totalorder %s720, %s734
      %p736 = scmp.eq.s32.totalorder %s138, 0
      %p737 = por %p735, %p736
      %s739 = sadd.s32 %s738, 1
      %p742 = scmp.eq.s32.totalorder %s132, 1
      %p743 = scmp.ne.s32.totalorder %s738, %s740
      %p744 = scmp.eq.s32.totalorder %s132, 0
      %p745 = por %p743, %p744
      %p746 = scmp.ne.s32.totalorder %s738, %s740
      %p747 = scmp.eq.s32.totalorder %s137, 1
      %p748 = por %p746, %p747
      %p749 = scmp.ne.s32.totalorder %s740, %s741
      %p750 = scmp.eq.s32.totalorder %s137, 0
      %p751 = por %p749, %p750
      %p752 = scmp.ne.s32.totalorder %s740, %s741
      %p753 = scmp.eq.s32.totalorder %s138, 1
      %p754 = por %p752, %p753
      %p756 = scmp.ne.s32.totalorder %s741, %s755
      %p757 = scmp.eq.s32.totalorder %s138, 0
      %p758 = por %p756, %p757
      %s760 = sadd.s32 %s759, 1
      %p763 = scmp.eq.s32.totalorder %s132, 1
      %p764 = scmp.ne.s32.totalorder %s759, %s761
      %p765 = scmp.eq.s32.totalorder %s132, 0
      %p766 = por %p764, %p765
      %p767 = scmp.ne.s32.totalorder %s759, %s761
      %p768 = scmp.eq.s32.totalorder %s137, 1
      %p769 = por %p767, %p768
      %p770 = scmp.ne.s32.totalorder %s761, %s762
      %p771 = scmp.eq.s32.totalorder %s137, 0
      %p772 = por %p770, %p771
      %p773 = scmp.ne.s32.totalorder %s761, %s762
      %p774 = scmp.eq.s32.totalorder %s138, 1
      %p775 = por %p773, %p774
      %p777 = scmp.ne.s32.totalorder %s762, %s776
      %p778 = scmp.eq.s32.totalorder %s138, 0
      %p779 = por %p777, %p778
      %s781 = sadd.s32 %s780, 1
      %p784 = scmp.eq.s32.totalorder %s132, 1
      %p785 = scmp.ne.s32.totalorder %s780, %s782
      %p786 = scmp.eq.s32.totalorder %s132, 0
      %p787 = por %p785, %p786
      %p788 = scmp.ne.s32.totalorder %s780, %s782
      %p789 = scmp.eq.s32.totalorder %s137, 1
      %p790 = por %p788, %p789
      %p791 = scmp.ne.s32.totalorder %s782, %s783
      %p792 = scmp.eq.s32.totalorder %s137, 0
      %p793 = por %p791, %p792
      %p794 = scmp.ne.s32.totalorder %s782, %s783
      %p795 = scmp.eq.s32.totalorder %s138, 1
      %p796 = por %p794, %p795
      %p798 = scmp.ne.s32.totalorder %s783, %s797
      %p799 = scmp.eq.s32.totalorder %s138, 0
      %p800 = por %p798, %p799
      %s802 = sadd.s32 %s801, 1
      %p805 = scmp.eq.s32.totalorder %s132, 1
      %p806 = scmp.ne.s32.totalorder %s801, %s803
      %p807 = scmp.eq.s32.totalorder %s132, 0
      %p808 = por %p806, %p807
      %p809 = scmp.ne.s32.totalorder %s801, %s803
      %p810 = scmp.eq.s32.totalorder %s137, 1
      %p811 = por %p809, %p810
      %p812 = scmp.ne.s32.totalorder %s803, %s804
      %p813 = scmp.eq.s32.totalorder %s137, 0
      %p814 = por %p812, %p813
      %p815 = scmp.ne.s32.totalorder %s803, %s804
      %p816 = scmp.eq.s32.totalorder %s138, 1
      %p817 = por %p815, %p816
      %p819 = scmp.ne.s32.totalorder %s804, %s818
      %p820 = scmp.eq.s32.totalorder %s138, 0
      %p821 = por %p819, %p820
      %s823 = sadd.s32 %s822, 1
      %p826 = scmp.eq.s32.totalorder %s132, 1
      %p827 = scmp.ne.s32.totalorder %s822, %s824
      %p828 = scmp.eq.s32.totalorder %s132, 0
      %p829 = por %p827, %p828
      %p830 = scmp.ne.s32.totalorder %s822, %s824
      %p831 = scmp.eq.s32.totalorder %s137, 1
      %p832 = por %p830, %p831
      %p833 = scmp.ne.s32.totalorder %s824, %s825
      %p834 = scmp.eq.s32.totalorder %s137, 0
      %p835 = por %p833, %p834
      %p836 = scmp.ne.s32.totalorder %s824, %s825
      %p837 = scmp.eq.s32.totalorder %s138, 1
      %p838 = por %p836, %p837
      %p840 = scmp.ne.s32.totalorder %s825, %s839
      %p841 = scmp.eq.s32.totalorder %s138, 0
      %p842 = por %p840, %p841
      %s844 = sadd.s32 %s843, 1
      %p847 = scmp.eq.s32.totalorder %s132, 1
      %p848 = scmp.ne.s32.totalorder %s843, %s845
      %p849 = scmp.eq.s32.totalorder %s132, 0
      %p850 = por %p848, %p849
      %p851 = scmp.ne.s32.totalorder %s843, %s845
      %p852 = scmp.eq.s32.totalorder %s137, 1
      %p853 = por %p851, %p852
      %p854 = scmp.ne.s32.totalorder %s845, %s846
      %p855 = scmp.eq.s32.totalorder %s137, 0
      %p856 = por %p854, %p855
      %p857 = scmp.ne.s32.totalorder %s845, %s846
      %p858 = scmp.eq.s32.totalorder %s138, 1
      %p859 = por %p857, %p858
      %p861 = scmp.ne.s32.totalorder %s846, %s860
      %p862 = scmp.eq.s32.totalorder %s138, 0
      %p863 = por %p861, %p862
      %s865 = sadd.s32 %s864, 1
      %p868 = scmp.eq.s32.totalorder %s132, 1
      %p869 = scmp.ne.s32.totalorder %s864, %s866
      %p870 = scmp.eq.s32.totalorder %s132, 0
      %p871 = por %p869, %p870
      %p872 = scmp.ne.s32.totalorder %s864, %s866
      %p873 = scmp.eq.s32.totalorder %s137, 1
      %p874 = por %p872, %p873
      %p875 = scmp.ne.s32.totalorder %s866, %s867
      %p876 = scmp.eq.s32.totalorder %s137, 0
      %p877 = por %p875, %p876
      %p878 = scmp.ne.s32.totalorder %s866, %s867
      %p879 = scmp.eq.s32.totalorder %s138, 1
      %p880 = por %p878, %p879
      %p882 = scmp.ne.s32.totalorder %s867, %s881
      %p883 = scmp.eq.s32.totalorder %s138, 0
      %p884 = por %p882, %p883
      %s886 = sadd.s32 %s885, 1
      %p889 = scmp.eq.s32.totalorder %s132, 1
      %p890 = scmp.ne.s32.totalorder %s885, %s887
      %p891 = scmp.eq.s32.totalorder %s132, 0
      %p892 = por %p890, %p891
      %p893 = scmp.ne.s32.totalorder %s885, %s887
      %p894 = scmp.eq.s32.totalorder %s137, 1
      %p895 = por %p893, %p894
      %p896 = scmp.ne.s32.totalorder %s887, %s888
      %p897 = scmp.eq.s32.totalorder %s137, 0
      %p898 = por %p896, %p897
      %p899 = scmp.ne.s32.totalorder %s887, %s888
      %p900 = scmp.eq.s32.totalorder %s138, 1
      %p901 = por %p899, %p900
      %p903 = scmp.ne.s32.totalorder %s888, %s902
      %p904 = scmp.eq.s32.totalorder %s138, 0
      %p905 = por %p903, %p904
      %s907 = sadd.s32 %s906, 1
      %p910 = scmp.eq.s32.totalorder %s132, 1
      %p911 = scmp.ne.s32.totalorder %s906, %s908
      %p912 = scmp.eq.s32.totalorder %s132, 0
      %p913 = por %p911, %p912
      %p914 = scmp.ne.s32.totalorder %s906, %s908
      %p915 = scmp.eq.s32.totalorder %s137, 1
      %p916 = por %p914, %p915
      %p917 = scmp.ne.s32.totalorder %s908, %s909
      %p918 = scmp.eq.s32.totalorder %s137, 0
      %p919 = por %p917, %p918
      %p920 = scmp.ne.s32.totalorder %s908, %s909
      %p921 = scmp.eq.s32.totalorder %s138, 1
      %p922 = por %p920, %p921
      %p924 = scmp.ne.s32.totalorder %s909, %s923
      %p925 = scmp.eq.s32.totalorder %s138, 0
      %p926 = por %p924, %p925
      %s928 = sadd.s32 %s927, 1
      %p931 = scmp.eq.s32.totalorder %s132, 1
      %p932 = scmp.ne.s32.totalorder %s927, %s929
      %p933 = scmp.eq.s32.totalorder %s132, 0
      %p934 = por %p932, %p933
      %p935 = scmp.ne.s32.totalorder %s927, %s929
      %p936 = scmp.eq.s32.totalorder %s137, 1
      %p937 = por %p935, %p936
      %p938 = scmp.ne.s32.totalorder %s929, %s930
      %p939 = scmp.eq.s32.totalorder %s137, 0
      %p940 = por %p938, %p939
      %p941 = scmp.ne.s32.totalorder %s929, %s930
      %p942 = scmp.eq.s32.totalorder %s138, 1
      %p943 = por %p941, %p942
      %p945 = scmp.ne.s32.totalorder %s930, %s944
      %p946 = scmp.eq.s32.totalorder %s138, 0
      %p947 = por %p945, %p946
      %s949 = sadd.s32 %s948, 1
      %p952 = scmp.eq.s32.totalorder %s132, 1
      %p953 = scmp.ne.s32.totalorder %s948, %s950
      %p954 = scmp.eq.s32.totalorder %s132, 0
      %p955 = por %p953, %p954
      %p956 = scmp.ne.s32.totalorder %s948, %s950
      %p957 = scmp.eq.s32.totalorder %s137, 1
      %p958 = por %p956, %p957
      %p959 = scmp.ne.s32.totalorder %s950, %s951
      %p960 = scmp.eq.s32.totalorder %s137, 0
      %p961 = por %p959, %p960
      %p962 = scmp.ne.s32.totalorder %s950, %s951
      %p963 = scmp.eq.s32.totalorder %s138, 1
      %p964 = por %p962, %p963
      %p966 = scmp.ne.s32.totalorder %s951, %s965
      %p967 = scmp.eq.s32.totalorder %s138, 0
      %p968 = por %p966, %p967
      %s970 = sadd.s32 %s969, 1
      %p973 = scmp.eq.s32.totalorder %s132, 1
      %p974 = scmp.ne.s32.totalorder %s969, %s971
      %p975 = scmp.eq.s32.totalorder %s132, 0
      %p976 = por %p974, %p975
      %p977 = scmp.ne.s32.totalorder %s969, %s971
      %p978 = scmp.eq.s32.totalorder %s137, 1
      %p979 = por %p977, %p978
      %p980 = scmp.ne.s32.totalorder %s971, %s972
      %p981 = scmp.eq.s32.totalorder %s137, 0
      %p982 = por %p980, %p981
      %p983 = scmp.ne.s32.totalorder %s971, %s972
      %p984 = scmp.eq.s32.totalorder %s138, 1
      %p985 = por %p983, %p984
      %p987 = scmp.ne.s32.totalorder %s972, %s986
      %p988 = scmp.eq.s32.totalorder %s138, 0
      %p989 = por %p987, %p988
      %s991 = sadd.s32 %s990, 1
      %p994 = scmp.eq.s32.totalorder %s132, 1
      %p995 = scmp.ne.s32.totalorder %s990, %s992
      %p996 = scmp.eq.s32.totalorder %s132, 0
      %p997 = por %p995, %p996
      %p998 = scmp.ne.s32.totalorder %s990, %s992
      %p999 = scmp.eq.s32.totalorder %s137, 1
      %p1000 = por %p998, %p999
      %p1001 = scmp.ne.s32.totalorder %s992, %s993
      %p1002 = scmp.eq.s32.totalorder %s137, 0
      %p1003 = por %p1001, %p1002
      %p1004 = scmp.ne.s32.totalorder %s992, %s993
      %p1005 = scmp.eq.s32.totalorder %s138, 1
      %p1006 = por %p1004, %p1005
      %p1008 = scmp.ne.s32.totalorder %s993, %s1007
      %p1009 = scmp.eq.s32.totalorder %s138, 0
      %p1010 = por %p1008, %p1009
      %s1012 = sadd.s32 %s1011, 1
      %p1015 = scmp.eq.s32.totalorder %s132, 1
      %p1016 = scmp.ne.s32.totalorder %s1011, %s1013
      %p1017 = scmp.eq.s32.totalorder %s132, 0
      %p1018 = por %p1016, %p1017
      %p1019 = scmp.ne.s32.totalorder %s1011, %s1013
      %p1020 = scmp.eq.s32.totalorder %s137, 1
      %p1021 = por %p1019, %p1020
      %p1022 = scmp.ne.s32.totalorder %s1013, %s1014
      %p1023 = scmp.eq.s32.totalorder %s137, 0
      %p1024 = por %p1022, %p1023
      %p1025 = scmp.ne.s32.totalorder %s1013, %s1014
      %p1026 = scmp.eq.s32.totalorder %s138, 1
      %p1027 = por %p1025, %p1026
      %p1029 = scmp.ne.s32.totalorder %s1014, %s1028
      %p1030 = scmp.eq.s32.totalorder %s138, 0
      %p1031 = por %p1029, %p1030
      %s1033 = sadd.s32 %s1032, 1
      %p1036 = scmp.eq.s32.totalorder %s132, 1
      %p1037 = scmp.ne.s32.totalorder %s1032, %s1034
      %p1038 = scmp.eq.s32.totalorder %s132, 0
      %p1039 = por %p1037, %p1038
      %p1040 = scmp.ne.s32.totalorder %s1032, %s1034
      %p1041 = scmp.eq.s32.totalorder %s137, 1
      %p1042 = por %p1040, %p1041
      %p1043 = scmp.ne.s32.totalorder %s1034, %s1035
      %p1044 = scmp.eq.s32.totalorder %s137, 0
      %p1045 = por %p1043, %p1044
      %p1046 = scmp.ne.s32.totalorder %s1034, %s1035
      %p1047 = scmp.eq.s32.totalorder %s138, 1
      %p1048 = por %p1046, %p1047
      %p1050 = scmp.ne.s32.totalorder %s1035, %s1049
      %p1051 = scmp.eq.s32.totalorder %s138, 0
      %p1052 = por %p1050, %p1051
      %s1054 = sadd.s32 %s1053, 1
      %p1057 = scmp.eq.s32.totalorder %s132, 1
      %p1058 = scmp.ne.s32.totalorder %s1053, %s1055
      %p1059 = scmp.eq.s32.totalorder %s132, 0
      %p1060 = por %p1058, %p1059
      %p1061 = scmp.ne.s32.totalorder %s1053, %s1055
      %p1062 = scmp.eq.s32.totalorder %s137, 1
      %p1063 = por %p1061, %p1062
      %p1064 = scmp.ne.s32.totalorder %s1055, %s1056
      %p1065 = scmp.eq.s32.totalorder %s137, 0
      %p1066 = por %p1064, %p1065
      %p1067 = scmp.ne.s32.totalorder %s1055, %s1056
      %p1068 = scmp.eq.s32.totalorder %s138, 1
      %p1069 = por %p1067, %p1068
      %p1071 = scmp.ne.s32.totalorder %s1056, %s1070
      %p1072 = scmp.eq.s32.totalorder %s138, 0
      %p1073 = por %p1071, %p1072
      %s1075 = sadd.s32 %s1074, 1
      %p1078 = scmp.eq.s32.totalorder %s132, 1
      %p1079 = scmp.ne.s32.totalorder %s1074, %s1076
      %p1080 = scmp.eq.s32.totalorder %s132, 0
      %p1081 = por %p1079, %p1080
      %p1082 = scmp.ne.s32.totalorder %s1074, %s1076
      %p1083 = scmp.eq.s32.totalorder %s137, 1
      %p1084 = por %p1082, %p1083
      %p1085 = scmp.ne.s32.totalorder %s1076, %s1077
      %p1086 = scmp.eq.s32.totalorder %s137, 0
      %p1087 = por %p1085, %p1086
      %p1088 = scmp.ne.s32.totalorder %s1076, %s1077
      %p1089 = scmp.eq.s32.totalorder %s138, 1
      %p1090 = por %p1088, %p1089
      %p1092 = scmp.ne.s32.totalorder %s1077, %s1091
      %p1093 = scmp.eq.s32.totalorder %s138, 0
      %p1094 = por %p1092, %p1093
      %s1096 = sadd.s32 %s1095, 1
      %p1099 = scmp.eq.s32.totalorder %s132, 1
      %p1100 = scmp.ne.s32.totalorder %s1095, %s1097
      %p1101 = scmp.eq.s32.totalorder %s132, 0
      %p1102 = por %p1100, %p1101
      %p1103 = scmp.ne.s32.totalorder %s1095, %s1097
      %p1104 = scmp.eq.s32.totalorder %s137, 1
      %p1105 = por %p1103, %p1104
      %p1106 = scmp.ne.s32.totalorder %s1097, %s1098
      %p1107 = scmp.eq.s32.totalorder %s137, 0
      %p1108 = por %p1106, %p1107
      %p1109 = scmp.ne.s32.totalorder %s1097, %s1098
      %p1110 = scmp.eq.s32.totalorder %s138, 1
      %p1111 = por %p1109, %p1110
      %p1113 = scmp.ne.s32.totalorder %s1098, %s1112
      %p1114 = scmp.eq.s32.totalorder %s138, 0
      %p1115 = por %p1113, %p1114
      %s1117 = sadd.s32 %s1116, 1
      %p1120 = scmp.eq.s32.totalorder %s132, 1
      %p1121 = scmp.ne.s32.totalorder %s1116, %s1118
      %p1122 = scmp.eq.s32.totalorder %s132, 0
      %p1123 = por %p1121, %p1122
      %p1124 = scmp.ne.s32.totalorder %s1116, %s1118
      %p1125 = scmp.eq.s32.totalorder %s137, 1
      %p1126 = por %p1124, %p1125
      %p1127 = scmp.ne.s32.totalorder %s1118, %s1119
      %p1128 = scmp.eq.s32.totalorder %s137, 0
      %p1129 = por %p1127, %p1128
      %p1130 = scmp.ne.s32.totalorder %s1118, %s1119
      %p1131 = scmp.eq.s32.totalorder %s138, 1
      %p1132 = por %p1130, %p1131
      %p1134 = scmp.ne.s32.totalorder %s1119, %s1133
      %p1135 = scmp.eq.s32.totalorder %s138, 0
      %p1136 = por %p1134, %p1135
      %s1138 = sadd.s32 %s1137, 1
      %p1141 = scmp.eq.s32.totalorder %s132, 1
      %p1142 = scmp.ne.s32.totalorder %s1137, %s1139
      %p1143 = scmp.eq.s32.totalorder %s132, 0
      %p1144 = por %p1142, %p1143
      %p1145 = scmp.ne.s32.totalorder %s1137, %s1139
      %p1146 = scmp.eq.s32.totalorder %s137, 1
      %p1147 = por %p1145, %p1146
      %p1148 = scmp.ne.s32.totalorder %s1139, %s1140
      %p1149 = scmp.eq.s32.totalorder %s137, 0
      %p1150 = por %p1148, %p1149
      %p1151 = scmp.ne.s32.totalorder %s1139, %s1140
      %p1152 = scmp.eq.s32.totalorder %s138, 1
      %p1153 = por %p1151, %p1152
      %p1155 = scmp.ne.s32.totalorder %s1140, %s1154
      %p1156 = scmp.eq.s32.totalorder %s138, 0
      %p1157 = por %p1155, %p1156
      %s1159 = sadd.s32 %s1158, 1
      %p1162 = scmp.eq.s32.totalorder %s132, 1
      %p1163 = scmp.ne.s32.totalorder %s1158, %s1160
      %p1164 = scmp.eq.s32.totalorder %s132, 0
      %p1165 = por %p1163, %p1164
      %p1166 = scmp.ne.s32.totalorder %s1158, %s1160
      %p1167 = scmp.eq.s32.totalorder %s137, 1
      %p1168 = por %p1166, %p1167
      %p1169 = scmp.ne.s32.totalorder %s1160, %s1161
      %p1170 = scmp.eq.s32.totalorder %s137, 0
      %p1171 = por %p1169, %p1170
      %p1172 = scmp.ne.s32.totalorder %s1160, %s1161
      %p1173 = scmp.eq.s32.totalorder %s138, 1
      %p1174 = por %p1172, %p1173
      %p1176 = scmp.ne.s32.totalorder %s1161, %s1175
      %p1177 = scmp.eq.s32.totalorder %s138, 0
      %p1178 = por %p1176, %p1177
      %s1180 = sadd.s32 %s1179, 1
      %p1183 = scmp.eq.s32.totalorder %s132, 1
      %p1184 = scmp.ne.s32.totalorder %s1179, %s1181
      %p1185 = scmp.eq.s32.totalorder %s132, 0
      %p1186 = por %p1184, %p1185
      %p1187 = scmp.ne.s32.totalorder %s1179, %s1181
      %p1188 = scmp.eq.s32.totalorder %s137, 1
      %p1189 = por %p1187, %p1188
      %p1190 = scmp.ne.s32.totalorder %s1181, %s1182
      %p1191 = scmp.eq.s32.totalorder %s137, 0
      %p1192 = por %p1190, %p1191
      %p1193 = scmp.ne.s32.totalorder %s1181, %s1182
      %p1194 = scmp.eq.s32.totalorder %s138, 1
      %p1195 = por %p1193, %p1194
      %p1197 = scmp.ne.s32.totalorder %s1182, %s1196
      %p1198 = scmp.eq.s32.totalorder %s138, 0
      %p1199 = por %p1197, %p1198
      %s1201 = sadd.s32 %s1200, 1
      %p1204 = scmp.eq.s32.totalorder %s132, 1
      %p1205 = scmp.ne.s32.totalorder %s1200, %s1202
      %p1206 = scmp.eq.s32.totalorder %s132, 0
      %p1207 = por %p1205, %p1206
      %p1208 = scmp.ne.s32.totalorder %s1200, %s1202
      %p1209 = scmp.eq.s32.totalorder %s137, 1
      %p1210 = por %p1208, %p1209
      %p1211 = scmp.ne.s32.totalorder %s1202, %s1203
      %p1212 = scmp.eq.s32.totalorder %s137, 0
      %p1213 = por %p1211, %p1212
      %p1214 = scmp.ne.s32.totalorder %s1202, %s1203
      %p1215 = scmp.eq.s32.totalorder %s138, 1
      %p1216 = por %p1214, %p1215
      %p1218 = scmp.ne.s32.totalorder %s1203, %s1217
      %p1219 = scmp.eq.s32.totalorder %s138, 0
      %p1220 = por %p1218, %p1219
      %s1222 = sadd.s32 %s1221, 1
      %p1225 = scmp.eq.s32.totalorder %s132, 1
      %p1226 = scmp.ne.s32.totalorder %s1221, %s1223
      %p1227 = scmp.eq.s32.totalorder %s132, 0
      %p1228 = por %p1226, %p1227
      %p1229 = scmp.ne.s32.totalorder %s1221, %s1223
      %p1230 = scmp.eq.s32.totalorder %s137, 1
      %p1231 = por %p1229, %p1230
      %p1232 = scmp.ne.s32.totalorder %s1223, %s1224
      %p1233 = scmp.eq.s32.totalorder %s137, 0
      %p1234 = por %p1232, %p1233
      %p1235 = scmp.ne.s32.totalorder %s1223, %s1224
      %p1236 = scmp.eq.s32.totalorder %s138, 1
      %p1237 = por %p1235, %p1236
      %p1239 = scmp.ne.s32.totalorder %s1224, %s1238
      %p1240 = scmp.eq.s32.totalorder %s138, 0
      %p1241 = por %p1239, %p1240
      %s1243 = sadd.s32 %s1242, 1
      %p1246 = scmp.eq.s32.totalorder %s132, 1
      %p1247 = scmp.ne.s32.totalorder %s1242, %s1244
      %p1248 = scmp.eq.s32.totalorder %s132, 0
      %p1249 = por %p1247, %p1248
      %p1250 = scmp.ne.s32.totalorder %s1242, %s1244
      %p1251 = scmp.eq.s32.totalorder %s137, 1
      %p1252 = por %p1250, %p1251
      %p1253 = scmp.ne.s32.totalorder %s1244, %s1245
      %p1254 = scmp.eq.s32.totalorder %s137, 0
      %p1255 = por %p1253, %p1254
      %p1256 = scmp.ne.s32.totalorder %s1244, %s1245
      %p1257 = scmp.eq.s32.totalorder %s138, 1
      %p1258 = por %p1256, %p1257
      %p1260 = scmp.ne.s32.totalorder %s1245, %s1259
      %p1261 = scmp.eq.s32.totalorder %s138, 0
      %p1262 = por %p1260, %p1261
      %s1264 = sadd.s32 %s1263, 1
      %p1267 = scmp.eq.s32.totalorder %s132, 1
      %p1268 = scmp.ne.s32.totalorder %s1263, %s1265
      %p1269 = scmp.eq.s32.totalorder %s132, 0
      %p1270 = por %p1268, %p1269
      %p1271 = scmp.ne.s32.totalorder %s1263, %s1265
      %p1272 = scmp.eq.s32.totalorder %s137, 1
      %p1273 = por %p1271, %p1272
      %p1274 = scmp.ne.s32.totalorder %s1265, %s1266
      %p1275 = scmp.eq.s32.totalorder %s137, 0
      %p1276 = por %p1274, %p1275
      %p1277 = scmp.ne.s32.totalorder %s1265, %s1266
      %p1278 = scmp.eq.s32.totalorder %s138, 1
      %p1279 = por %p1277, %p1278
      %p1281 = scmp.ne.s32.totalorder %s1266, %s1280
      %p1282 = scmp.eq.s32.totalorder %s138, 0
      %p1283 = por %p1281, %p1282
      %s1285 = sadd.s32 %s1284, 1
      %p1288 = scmp.eq.s32.totalorder %s132, 1
      %p1289 = scmp.ne.s32.totalorder %s1284, %s1286
      %p1290 = scmp.eq.s32.totalorder %s132, 0
      %p1291 = por %p1289, %p1290
      %p1292 = scmp.ne.s32.totalorder %s1284, %s1286
      %p1293 = scmp.eq.s32.totalorder %s137, 1
      %p1294 = por %p1292, %p1293
      %p1295 = scmp.ne.s32.totalorder %s1286, %s1287
      %p1296 = scmp.eq.s32.totalorder %s137, 0
      %p1297 = por %p1295, %p1296
      %p1298 = scmp.ne.s32.totalorder %s1286, %s1287
      %p1299 = scmp.eq.s32.totalorder %s138, 1
      %p1300 = por %p1298, %p1299
      %p1302 = scmp.ne.s32.totalorder %s1287, %s1301
      %p1303 = scmp.eq.s32.totalorder %s138, 0
      %p1304 = por %p1302, %p1303
      %s1306 = sadd.s32 %s1305, 1
      %p1309 = scmp.eq.s32.totalorder %s132, 1
      %p1310 = scmp.ne.s32.totalorder %s1305, %s1307
      %p1311 = scmp.eq.s32.totalorder %s132, 0
      %p1312 = por %p1310, %p1311
      %p1313 = scmp.ne.s32.totalorder %s1305, %s1307
      %p1314 = scmp.eq.s32.totalorder %s137, 1
      %p1315 = por %p1313, %p1314
      %p1316 = scmp.ne.s32.totalorder %s1307, %s1308
      %p1317 = scmp.eq.s32.totalorder %s137, 0
      %p1318 = por %p1316, %p1317
      %p1319 = scmp.ne.s32.totalorder %s1307, %s1308
      %p1320 = scmp.eq.s32.totalorder %s138, 1
      %p1321 = por %p1319, %p1320
      %p1323 = scmp.ne.s32.totalorder %s1308, %s1322
      %p1324 = scmp.eq.s32.totalorder %s138, 0
      %p1325 = por %p1323, %p1324
      %s1327 = sadd.s32 %s1326, 1
      %p1330 = scmp.eq.s32.totalorder %s132, 1
      %p1331 = scmp.ne.s32.totalorder %s1326, %s1328
      %p1332 = scmp.eq.s32.totalorder %s132, 0
      %p1333 = por %p1331, %p1332
      %p1334 = scmp.ne.s32.totalorder %s1326, %s1328
      %p1335 = scmp.eq.s32.totalorder %s137, 1
      %p1336 = por %p1334, %p1335
      %p1337 = scmp.ne.s32.totalorder %s1328, %s1329
      %p1338 = scmp.eq.s32.totalorder %s137, 0
      %p1339 = por %p1337, %p1338
      %p1340 = scmp.ne.s32.totalorder %s1328, %s1329
      %p1341 = scmp.eq.s32.totalorder %s138, 1
      %p1342 = por %p1340, %p1341
      %p1344 = scmp.ne.s32.totalorder %s1329, %s1343
      %p1345 = scmp.eq.s32.totalorder %s138, 0
      %p1346 = por %p1344, %p1345
      %s1348 = sadd.s32 %s1347, 1
      %p1351 = scmp.eq.s32.totalorder %s132, 1
      %p1352 = scmp.ne.s32.totalorder %s1347, %s1349
      %p1353 = scmp.eq.s32.totalorder %s132, 0
      %p1354 = por %p1352, %p1353
      %p1355 = scmp.ne.s32.totalorder %s1347, %s1349
      %p1356 = scmp.eq.s32.totalorder %s137, 1
      %p1357 = por %p1355, %p1356
      %p1358 = scmp.ne.s32.totalorder %s1349, %s1350
      %p1359 = scmp.eq.s32.totalorder %s137, 0
      %p1360 = por %p1358, %p1359
      %p1361 = scmp.ne.s32.totalorder %s1349, %s1350
      %p1362 = scmp.eq.s32.totalorder %s138, 1
      %p1363 = por %p1361, %p1362
      %p1365 = scmp.ne.s32.totalorder %s1350, %s1364
      %p1366 = scmp.eq.s32.totalorder %s138, 0
      %p1367 = por %p1365, %p1366
      %s1368 = ssub.s32 %s132, %s139
      %p1369 = scmp.eq.s32.totalorder %s1368, 0
      %s1371 = sadd.s32 %s1370, 1
      %s1372 = scalar_select %p1369, %s1370, %s1371
      %p1375 = pneg %p1369
      %p1376 = scmp.eq.s32.totalorder %s132, 1
      %p1377 = por %p1375, %p1376
      %p1378 = scmp.ne.s32.totalorder %s1370, %s1373
      %p1379 = scmp.eq.s32.totalorder %s132, 0
      %p1380 = por %p1378, %p1379
      %p1381 = scmp.ne.s32.totalorder %s1370, %s1373
      %p1382 = scmp.eq.s32.totalorder %s137, 1
      %p1383 = por %p1381, %p1382
      %p1384 = scmp.ne.s32.totalorder %s1373, %s1374
      %p1385 = scmp.eq.s32.totalorder %s137, 0
      %p1386 = por %p1384, %p1385
      %p1387 = scmp.ne.s32.totalorder %s1373, %s1374
      %p1388 = scmp.eq.s32.totalorder %s138, 1
      %p1389 = por %p1387, %p1388
      %p1391 = scmp.ne.s32.totalorder %s1374, %s1390
      %p1392 = scmp.eq.s32.totalorder %s138, 0
      %p1393 = por %p1391, %p1392
      %p1394 = scmp.le.s32.totalorder 1, %s132
      %p1395 = scmp.lt.s32.totalorder %s132, 3
      %p1396 = pnand %p1394, %p1395
      %p1397 = pneg %p1396
      // Predicated region
      $region9: #{model_forward.1} parent=5 // pred_check
        _
      $region10: #{model_forward.1} parent=5 // pred_check_branch
        %1399 = sbr.rel (%p1396) target = $region12
      $region11: #{model_forward.1} parent=5 // pred_region
        %s1400 = ssub.s32 %s132, 1
        // Predicated region
        $region13: #{model_forward.1} parent=11 // pred_check
          %p1401 = pneg %p205
        $region14: #{model_forward.1} parent=11 // pred_check_branch
          %1403 = sbr.rel (%p1401) target = $region16
        $region15: #{model_forward.1} parent=11 // pred_region
          _
        $region16: #{model_forward.1} parent=11 // pred_fallthru
          _
        // Predicated region
        $region17: #{model_forward.1} parent=11 // pred_check
          %p1404 = pneg %p226
        $region18: #{model_forward.1} parent=11 // pred_check_branch
          %1406 = sbr.rel (%p1404) target = $region20
        $region19: #{model_forward.1} parent=11 // pred_region
          _
        $region20: #{model_forward.1} parent=11 // pred_fallthru
          _
        // Predicated region
        $region21: #{model_forward.1} parent=11 // pred_check
          %p1407 = pneg %p247
        $region22: #{model_forward.1} parent=11 // pred_check_branch
          %1409 = sbr.rel (%p1407) target = $region24
        $region23: #{model_forward.1} parent=11 // pred_region
          _
        $region24: #{model_forward.1} parent=11 // pred_fallthru
          _
        // Predicated region
        $region25: #{model_forward.1} parent=11 // pred_check
          %p1410 = pneg %p268
        $region26: #{model_forward.1} parent=11 // pred_check_branch
          %1412 = sbr.rel (%p1410) target = $region28
        $region27: #{model_forward.1} parent=11 // pred_region
          _
        $region28: #{model_forward.1} parent=11 // pred_fallthru
          _
        // Predicated region
        $region29: #{model_forward.1} parent=11 // pred_check
          %p1413 = pneg %p289
        $region30: #{model_forward.1} parent=11 // pred_check_branch
          %1415 = sbr.rel (%p1413) target = $region32
        $region31: #{model_forward.1} parent=11 // pred_region
          _
        $region32: #{model_forward.1} parent=11 // pred_fallthru
          _
        // Predicated region
        $region33: #{model_forward.1} parent=11 // pred_check
          %p1416 = pneg %p310
        $region34: #{model_forward.1} parent=11 // pred_check_branch
          %1418 = sbr.rel (%p1416) target = $region36
        $region35: #{model_forward.1} parent=11 // pred_region
          _
        $region36: #{model_forward.1} parent=11 // pred_fallthru
          _
        // Predicated region
        $region37: #{model_forward.1} parent=11 // pred_check
          %p1419 = pneg %p331
        $region38: #{model_forward.1} parent=11 // pred_check_branch
          %1421 = sbr.rel (%p1419) target = $region40
        $region39: #{model_forward.1} parent=11 // pred_region
          _
        $region40: #{model_forward.1} parent=11 // pred_fallthru
          _
        // Predicated region
        $region41: #{model_forward.1} parent=11 // pred_check
          %p1422 = pneg %p352
        $region42: #{model_forward.1} parent=11 // pred_check_branch
          %1424 = sbr.rel (%p1422) target = $region44
        $region43: #{model_forward.1} parent=11 // pred_region
          _
        $region44: #{model_forward.1} parent=11 // pred_fallthru
          _
        // Predicated region
        $region45: #{model_forward.1} parent=11 // pred_check
          %p1425 = pneg %p373
        $region46: #{model_forward.1} parent=11 // pred_check_branch
          %1427 = sbr.rel (%p1425) target = $region48
        $region47: #{model_forward.1} parent=11 // pred_region
          _
        $region48: #{model_forward.1} parent=11 // pred_fallthru
          _
        // Predicated region
        $region49: #{model_forward.1} parent=11 // pred_check
          %p1428 = pneg %p394
        $region50: #{model_forward.1} parent=11 // pred_check_branch
          %1430 = sbr.rel (%p1428) target = $region52
        $region51: #{model_forward.1} parent=11 // pred_region
          _
        $region52: #{model_forward.1} parent=11 // pred_fallthru
          _
        // Predicated region
        $region53: #{model_forward.1} parent=11 // pred_check
          %p1431 = pneg %p415
        $region54: #{model_forward.1} parent=11 // pred_check_branch
          %1433 = sbr.rel (%p1431) target = $region56
        $region55: #{model_forward.1} parent=11 // pred_region
          _
        $region56: #{model_forward.1} parent=11 // pred_fallthru
          _
        // Predicated region
        $region57: #{model_forward.1} parent=11 // pred_check
          %p1434 = pneg %p436
        $region58: #{model_forward.1} parent=11 // pred_check_branch
          %1436 = sbr.rel (%p1434) target = $region60
        $region59: #{model_forward.1} parent=11 // pred_region
          _
        $region60: #{model_forward.1} parent=11 // pred_fallthru
          _
        // Predicated region
        $region61: #{model_forward.1} parent=11 // pred_check
          %p1437 = pneg %p457
        $region62: #{model_forward.1} parent=11 // pred_check_branch
          %1439 = sbr.rel (%p1437) target = $region64
        $region63: #{model_forward.1} parent=11 // pred_region
          _
        $region64: #{model_forward.1} parent=11 // pred_fallthru
          _
        // Predicated region
        $region65: #{model_forward.1} parent=11 // pred_check
          %p1440 = pneg %p478
        $region66: #{model_forward.1} parent=11 // pred_check_branch
          %1442 = sbr.rel (%p1440) target = $region68
        $region67: #{model_forward.1} parent=11 // pred_region
          _
        $region68: #{model_forward.1} parent=11 // pred_fallthru
          _
        // Predicated region
        $region69: #{model_forward.1} parent=11 // pred_check
          %p1443 = pneg %p499
        $region70: #{model_forward.1} parent=11 // pred_check_branch
          %1445 = sbr.rel (%p1443) target = $region72
        $region71: #{model_forward.1} parent=11 // pred_region
          _
        $region72: #{model_forward.1} parent=11 // pred_fallthru
          _
        // Predicated region
        $region73: #{model_forward.1} parent=11 // pred_check
          %p1446 = pneg %p520
        $region74: #{model_forward.1} parent=11 // pred_check_branch
          %1448 = sbr.rel (%p1446) target = $region76
        $region75: #{model_forward.1} parent=11 // pred_region
          _
        $region76: #{model_forward.1} parent=11 // pred_fallthru
          _
        // Predicated region
        $region77: #{model_forward.1} parent=11 // pred_check
          %p1449 = pneg %p541
        $region78: #{model_forward.1} parent=11 // pred_check_branch
          %1451 = sbr.rel (%p1449) target = $region80
        $region79: #{model_forward.1} parent=11 // pred_region
          _
        $region80: #{model_forward.1} parent=11 // pred_fallthru
          _
        // Predicated region
        $region81: #{model_forward.1} parent=11 // pred_check
          %p1452 = pneg %p562
        $region82: #{model_forward.1} parent=11 // pred_check_branch
          %1454 = sbr.rel (%p1452) target = $region84
        $region83: #{model_forward.1} parent=11 // pred_region
          _
        $region84: #{model_forward.1} parent=11 // pred_fallthru
          _
        // Predicated region
        $region85: #{model_forward.1} parent=11 // pred_check
          %p1455 = pneg %p583
        $region86: #{model_forward.1} parent=11 // pred_check_branch
          %1457 = sbr.rel (%p1455) target = $region88
        $region87: #{model_forward.1} parent=11 // pred_region
          _
        $region88: #{model_forward.1} parent=11 // pred_fallthru
          _
        // Predicated region
        $region89: #{model_forward.1} parent=11 // pred_check
          %p1458 = pneg %p604
        $region90: #{model_forward.1} parent=11 // pred_check_branch
          %1460 = sbr.rel (%p1458) target = $region92
        $region91: #{model_forward.1} parent=11 // pred_region
          _
        $region92: #{model_forward.1} parent=11 // pred_fallthru
          _
        // Predicated region
        $region93: #{model_forward.1} parent=11 // pred_check
          %p1461 = pneg %p625
        $region94: #{model_forward.1} parent=11 // pred_check_branch
          %1463 = sbr.rel (%p1461) target = $region96
        $region95: #{model_forward.1} parent=11 // pred_region
          _
        $region96: #{model_forward.1} parent=11 // pred_fallthru
          _
        // Predicated region
        $region97: #{model_forward.1} parent=11 // pred_check
          %p1464 = pneg %p646
        $region98: #{model_forward.1} parent=11 // pred_check_branch
          %1466 = sbr.rel (%p1464) target = $region100
        $region99: #{model_forward.1} parent=11 // pred_region
          _
        $region100: #{model_forward.1} parent=11 // pred_fallthru
          _
        // Predicated region
        $region101: #{model_forward.1} parent=11 // pred_check
          %p1467 = pneg %p667
        $region102: #{model_forward.1} parent=11 // pred_check_branch
          %1469 = sbr.rel (%p1467) target = $region104
        $region103: #{model_forward.1} parent=11 // pred_region
          _
        $region104: #{model_forward.1} parent=11 // pred_fallthru
          _
        // Predicated region
        $region105: #{model_forward.1} parent=11 // pred_check
          %p1470 = pneg %p688
        $region106: #{model_forward.1} parent=11 // pred_check_branch
          %1472 = sbr.rel (%p1470) target = $region108
        $region107: #{model_forward.1} parent=11 // pred_region
          _
        $region108: #{model_forward.1} parent=11 // pred_fallthru
          _
        // Predicated region
        $region109: #{model_forward.1} parent=11 // pred_check
          %p1473 = pneg %p709
        $region110: #{model_forward.1} parent=11 // pred_check_branch
          %1475 = sbr.rel (%p1473) target = $region112
        $region111: #{model_forward.1} parent=11 // pred_region
          _
        $region112: #{model_forward.1} parent=11 // pred_fallthru
          _
        // Predicated region
        $region113: #{model_forward.1} parent=11 // pred_check
          %p1476 = pneg %p730
        $region114: #{model_forward.1} parent=11 // pred_check_branch
          %1478 = sbr.rel (%p1476) target = $region116
        $region115: #{model_forward.1} parent=11 // pred_region
          _
        $region116: #{model_forward.1} parent=11 // pred_fallthru
          _
        // Predicated region
        $region117: #{model_forward.1} parent=11 // pred_check
          %p1479 = pneg %p751
        $region118: #{model_forward.1} parent=11 // pred_check_branch
          %1481 = sbr.rel (%p1479) target = $region120
        $region119: #{model_forward.1} parent=11 // pred_region
          _
        $region120: #{model_forward.1} parent=11 // pred_fallthru
          _
        // Predicated region
        $region121: #{model_forward.1} parent=11 // pred_check
          %p1482 = pneg %p772
        $region122: #{model_forward.1} parent=11 // pred_check_branch
          %1484 = sbr.rel (%p1482) target = $region124
        $region123: #{model_forward.1} parent=11 // pred_region
          _
        $region124: #{model_forward.1} parent=11 // pred_fallthru
          _
        // Predicated region
        $region125: #{model_forward.1} parent=11 // pred_check
          %p1485 = pneg %p793
        $region126: #{model_forward.1} parent=11 // pred_check_branch
          %1487 = sbr.rel (%p1485) target = $region128
        $region127: #{model_forward.1} parent=11 // pred_region
          _
        $region128: #{model_forward.1} parent=11 // pred_fallthru
          _
        // Predicated region
        $region129: #{model_forward.1} parent=11 // pred_check
          %p1488 = pneg %p814
        $region130: #{model_forward.1} parent=11 // pred_check_branch
          %1490 = sbr.rel (%p1488) target = $region132
        $region131: #{model_forward.1} parent=11 // pred_region
          _
        $region132: #{model_forward.1} parent=11 // pred_fallthru
          _
        // Predicated region
        $region133: #{model_forward.1} parent=11 // pred_check
          %p1491 = pneg %p835
        $region134: #{model_forward.1} parent=11 // pred_check_branch
          %1493 = sbr.rel (%p1491) target = $region136
        $region135: #{model_forward.1} parent=11 // pred_region
          %s1495 = ssub.s32 16, 16
          %1496 = vsyncadd [#allocation3], %s1495
          %s1498 = sshll.u32 [#allocation2], 4
          %s1499 = int_to_ptr.vmem [resolvable:$true] %s1498
          %1501 = dma.hbm_to_vmem [thread:$0]  %s65, 16, %s1499, [#allocation3]
        $region136: #{model_forward.1} parent=11 // pred_fallthru
          _
        // Predicated region
        $region137: #{model_forward.1} parent=11 // pred_check
          %p1502 = pneg %p856
        $region138: #{model_forward.1} parent=11 // pred_check_branch
          %1504 = sbr.rel (%p1502) target = $region140
        $region139: #{model_forward.1} parent=11 // pred_region
          %s1506 = ssub.s32 16, 16
          %1507 = vsyncadd [#allocation5], %s1506
          %s1509 = sshll.u32 [#allocation4], 4
          %s1510 = int_to_ptr.vmem [resolvable:$true] %s1509
          %1512 = dma.hbm_to_vmem [thread:$0]  %s67, 16, %s1510, [#allocation5]
        $region140: #{model_forward.1} parent=11 // pred_fallthru
          _
        // Predicated region
        $region141: #{model_forward.1} parent=11 // pred_check
          %p1513 = pneg %p877
        $region142: #{model_forward.1} parent=11 // pred_check_branch
          %1515 = sbr.rel (%p1513) target = $region144
        $region143: #{model_forward.1} parent=11 // pred_region
          _
        $region144: #{model_forward.1} parent=11 // pred_fallthru
          _
        // Predicated region
        $region145: #{model_forward.1} parent=11 // pred_check
          %p1516 = pneg %p898
        $region146: #{model_forward.1} parent=11 // pred_check_branch
          %1518 = sbr.rel (%p1516) target = $region148
        $region147: #{model_forward.1} parent=11 // pred_region
          %s1520 = ssub.s32 16, 16
          %1521 = vsyncadd [#allocation5], %s1520
          %s1523 = sshll.u32 [#allocation6], 4
          %s1524 = int_to_ptr.vmem [resolvable:$true] %s1523
          %1526 = dma.hbm_to_vmem [thread:$0]  %s71, 16, %s1524, [#allocation5]
        $region148: #{model_forward.1} parent=11 // pred_fallthru
          _
        // Predicated region
        $region149: #{model_forward.1} parent=11 // pred_check
          %p1527 = pneg %p919
        $region150: #{model_forward.1} parent=11 // pred_check_branch
          %1529 = sbr.rel (%p1527) target = $region152
        $region151: #{model_forward.1} parent=11 // pred_region
          _
        $region152: #{model_forward.1} parent=11 // pred_fallthru
          _
        // Predicated region
        $region153: #{model_forward.1} parent=11 // pred_check
          %p1530 = pneg %p940
        $region154: #{model_forward.1} parent=11 // pred_check_branch
          %1532 = sbr.rel (%p1530) target = $region156
        $region155: #{model_forward.1} parent=11 // pred_region
          %s1534 = ssub.s32 16, 16
          %1535 = vsyncadd [#allocation8], %s1534
          %s1537 = sshll.u32 [#allocation7], 4
          %s1538 = int_to_ptr.vmem [resolvable:$true] %s1537
          %1540 = dma.hbm_to_vmem [thread:$0]  %s75, 16, %s1538, [#allocation8]
        $region156: #{model_forward.1} parent=11 // pred_fallthru
          _
        // Predicated region
        $region157: #{model_forward.1} parent=11 // pred_check
          %p1541 = pneg %p961
        $region158: #{model_forward.1} parent=11 // pred_check_branch
          %1543 = sbr.rel (%p1541) target = $region160
        $region159: #{model_forward.1} parent=11 // pred_region
          %s1545 = ssub.s32 16, 16
          %1546 = vsyncadd [#allocation8], %s1545
          %s1548 = sshll.u32 [#allocation9], 4
          %s1549 = int_to_ptr.vmem [resolvable:$true] %s1548
          %1551 = dma.hbm_to_vmem [thread:$0]  %s77, 16, %s1549, [#allocation8]
        $region160: #{model_forward.1} parent=11 // pred_fallthru
          _
        // Predicated region
        $region161: #{model_forward.1} parent=11 // pred_check
          %p1552 = pneg %p982
        $region162: #{model_forward.1} parent=11 // pred_check_branch
          %1554 = sbr.rel (%p1552) target = $region164
        $region163: #{model_forward.1} parent=11 // pred_region
          %s1556 = ssub.s32 16, 16
          %1557 = vsyncadd [#allocation11], %s1556
          %s1559 = sshll.u32 [#allocation10], 4
          %s1560 = int_to_ptr.vmem [resolvable:$true] %s1559
          %1562 = dma.hbm_to_vmem [thread:$0]  %s79, 16, %s1560, [#allocation11]
        $region164: #{model_forward.1} parent=11 // pred_fallthru
          _
        // Predicated region
        $region165: #{model_forward.1} parent=11 // pred_check
          %p1563 = pneg %p1003
        $region166: #{model_forward.1} parent=11 // pred_check_branch
          %1565 = sbr.rel (%p1563) target = $region168
        $region167: #{model_forward.1} parent=11 // pred_region
          _
        $region168: #{model_forward.1} parent=11 // pred_fallthru
          _
        // Predicated region
        $region169: #{model_forward.1} parent=11 // pred_check
          %p1566 = pneg %p1024
        $region170: #{model_forward.1} parent=11 // pred_check_branch
          %1568 = sbr.rel (%p1566) target = $region172
        $region171: #{model_forward.1} parent=11 // pred_region
          %s1570 = ssub.s32 16, 16
          %1571 = vsyncadd [#allocation11], %s1570
          %s1573 = sshll.u32 [#allocation12], 4
          %s1574 = int_to_ptr.vmem [resolvable:$true] %s1573
          %1576 = dma.hbm_to_vmem [thread:$0]  %s83, 16, %s1574, [#allocation11]
        $region172: #{model_forward.1} parent=11 // pred_fallthru
          _
        // Predicated region
        $region173: #{model_forward.1} parent=11 // pred_check
          %p1577 = pneg %p1045
        $region174: #{model_forward.1} parent=11 // pred_check_branch
          %1579 = sbr.rel (%p1577) target = $region176
        $region175: #{model_forward.1} parent=11 // pred_region
          _
        $region176: #{model_forward.1} parent=11 // pred_fallthru
          _
        // Predicated region
        $region177: #{model_forward.1} parent=11 // pred_check
          %p1580 = pneg %p1066
        $region178: #{model_forward.1} parent=11 // pred_check_branch
          %1582 = sbr.rel (%p1580) target = $region180
        $region179: #{model_forward.1} parent=11 // pred_region
          %s1584 = ssub.s32 16, 16
          %1585 = vsyncadd [#allocation14], %s1584
          %s1587 = sshll.u32 [#allocation13], 4
          %s1588 = int_to_ptr.vmem [resolvable:$true] %s1587
          %1590 = dma.hbm_to_vmem [thread:$0]  %s87, 16, %s1588, [#allocation14]
        $region180: #{model_forward.1} parent=11 // pred_fallthru
          _
        // Predicated region
        $region181: #{model_forward.1} parent=11 // pred_check
          %p1591 = pneg %p1087
        $region182: #{model_forward.1} parent=11 // pred_check_branch
          %1593 = sbr.rel (%p1591) target = $region184
        $region183: #{model_forward.1} parent=11 // pred_region
          _
        $region184: #{model_forward.1} parent=11 // pred_fallthru
          _
        // Predicated region
        $region185: #{model_forward.1} parent=11 // pred_check
          %p1594 = pneg %p1108
        $region186: #{model_forward.1} parent=11 // pred_check_branch
          %1596 = sbr.rel (%p1594) target = $region188
        $region187: #{model_forward.1} parent=11 // pred_region
          %s1598 = ssub.s32 16, 16
          %1599 = vsyncadd [#allocation14], %s1598
          %s1601 = sshll.u32 [#allocation15], 4
          %s1602 = int_to_ptr.vmem [resolvable:$true] %s1601
          %1604 = dma.hbm_to_vmem [thread:$0]  %s91, 16, %s1602, [#allocation14]
        $region188: #{model_forward.1} parent=11 // pred_fallthru
          _
        // Predicated region
        $region189: #{model_forward.1} parent=11 // pred_check
          %p1605 = pneg %p1129
        $region190: #{model_forward.1} parent=11 // pred_check_branch
          %1607 = sbr.rel (%p1605) target = $region192
        $region191: #{model_forward.1} parent=11 // pred_region
          _
        $region192: #{model_forward.1} parent=11 // pred_fallthru
          _
        // Predicated region
        $region193: #{model_forward.1} parent=11 // pred_check
          %p1608 = pneg %p1150
        $region194: #{model_forward.1} parent=11 // pred_check_branch
          %1610 = sbr.rel (%p1608) target = $region196
        $region195: #{model_forward.1} parent=11 // pred_region
          %s1612 = ssub.s32 16, 16
          %1613 = vsyncadd [#allocation17], %s1612
          %s1615 = sshll.u32 [#allocation16], 4
          %s1616 = int_to_ptr.vmem [resolvable:$true] %s1615
          %1618 = dma.hbm_to_vmem [thread:$0]  %s95, 16, %s1616, [#allocation17]
        $region196: #{model_forward.1} parent=11 // pred_fallthru
          _
        // Predicated region
        $region197: #{model_forward.1} parent=11 // pred_check
          %p1619 = pneg %p1171
        $region198: #{model_forward.1} parent=11 // pred_check_branch
          %1621 = sbr.rel (%p1619) target = $region200
        $region199: #{model_forward.1} parent=11 // pred_region
          _
        $region200: #{model_forward.1} parent=11 // pred_fallthru
          _
        // Predicated region
        $region201: #{model_forward.1} parent=11 // pred_check
          %p1622 = pneg %p1192
        $region202: #{model_forward.1} parent=11 // pred_check_branch
          %1624 = sbr.rel (%p1622) target = $region204
        $region203: #{model_forward.1} parent=11 // pred_region
          %s1626 = ssub.s32 16, 16
          %1627 = vsyncadd [#allocation17], %s1626
          %s1629 = sshll.u32 [#allocation18], 4
          %s1630 = int_to_ptr.vmem [resolvable:$true] %s1629
          %1632 = dma.hbm_to_vmem [thread:$0]  %s99, 16, %s1630, [#allocation17]
        $region204: #{model_forward.1} parent=11 // pred_fallthru
          _
        // Predicated region
        $region205: #{model_forward.1} parent=11 // pred_check
          %p1633 = pneg %p1213
        $region206: #{model_forward.1} parent=11 // pred_check_branch
          %1635 = sbr.rel (%p1633) target = $region208
        $region207: #{model_forward.1} parent=11 // pred_region
          %s1637 = ssub.s32 16, 16
          %1638 = vsyncadd [#allocation20], %s1637
          %s1640 = sshll.u32 [#allocation19], 4
          %s1641 = int_to_ptr.vmem [resolvable:$true] %s1640
          %1643 = dma.hbm_to_vmem [thread:$0]  %s101, 16, %s1641, [#allocation20]
        $region208: #{model_forward.1} parent=11 // pred_fallthru
          _
        // Predicated region
        $region209: #{model_forward.1} parent=11 // pred_check
          %p1644 = pneg %p1234
        $region210: #{model_forward.1} parent=11 // pred_check_branch
          %1646 = sbr.rel (%p1644) target = $region212
        $region211: #{model_forward.1} parent=11 // pred_region
          %s1648 = ssub.s32 16, 16
          %1649 = vsyncadd [#allocation20], %s1648
          %s1651 = sshll.u32 [#allocation21], 4
          %s1652 = int_to_ptr.vmem [resolvable:$true] %s1651
          %1654 = dma.hbm_to_vmem [thread:$0]  %s103, 16, %s1652, [#allocation20]
        $region212: #{model_forward.1} parent=11 // pred_fallthru
          _
        // Predicated region
        $region213: #{model_forward.1} parent=11 // pred_check
          %p1655 = pneg %p1255
        $region214: #{model_forward.1} parent=11 // pred_check_branch
          %1657 = sbr.rel (%p1655) target = $region216
        $region215: #{model_forward.1} parent=11 // pred_region
          _
        $region216: #{model_forward.1} parent=11 // pred_fallthru
          _
        // Predicated region
        $region217: #{model_forward.1} parent=11 // pred_check
          %p1658 = pneg %p1276
        $region218: #{model_forward.1} parent=11 // pred_check_branch
          %1660 = sbr.rel (%p1658) target = $region220
        $region219: #{model_forward.1} parent=11 // pred_region
          %s1662 = ssub.s32 16, 16
          %1663 = vsyncadd [#allocation23], %s1662
          %s1665 = sshll.u32 [#allocation22], 4
          %s1666 = int_to_ptr.vmem [resolvable:$true] %s1665
          %1668 = dma.hbm_to_vmem [thread:$0]  %s107, 16, %s1666, [#allocation23]
        $region220: #{model_forward.1} parent=11 // pred_fallthru
          _
        // Predicated region
        $region221: #{model_forward.1} parent=11 // pred_check
          %p1669 = pneg %p1297
        $region222: #{model_forward.1} parent=11 // pred_check_branch
          %1671 = sbr.rel (%p1669) target = $region224
        $region223: #{model_forward.1} parent=11 // pred_region
          _
        $region224: #{model_forward.1} parent=11 // pred_fallthru
          _
        // Predicated region
        $region225: #{model_forward.1} parent=11 // pred_check
          %p1672 = pneg %p1318
        $region226: #{model_forward.1} parent=11 // pred_check_branch
          %1674 = sbr.rel (%p1672) target = $region228
        $region227: #{model_forward.1} parent=11 // pred_region
          %s1676 = ssub.s32 16, 16
          %1677 = vsyncadd [#allocation23], %s1676
          %s1679 = sshll.u32 [#allocation24], 4
          %s1680 = int_to_ptr.vmem [resolvable:$true] %s1679
          %1682 = dma.hbm_to_vmem [thread:$0]  %s111, 16, %s1680, [#allocation23]
        $region228: #{model_forward.1} parent=11 // pred_fallthru
          _
        // Predicated region
        $region229: #{model_forward.1} parent=11 // pred_check
          %p1683 = pneg %p1339
        $region230: #{model_forward.1} parent=11 // pred_check_branch
          %1685 = sbr.rel (%p1683) target = $region232
        $region231: #{model_forward.1} parent=11 // pred_region
          %s1687 = ssub.s32 16, 16
          %1688 = vsyncadd [#allocation26], %s1687
          %s1690 = sshll.u32 [#allocation25], 4
          %s1691 = int_to_ptr.vmem [resolvable:$true] %s1690
          %1693 = dma.hbm_to_vmem [thread:$0]  %s113, 16, %s1691, [#allocation26]
        $region232: #{model_forward.1} parent=11 // pred_fallthru
          _
        // Predicated region
        $region233: #{model_forward.1} parent=11 // pred_check
          %p1694 = pneg %p1360
        $region234: #{model_forward.1} parent=11 // pred_check_branch
          %1696 = sbr.rel (%p1694) target = $region236
        $region235: #{model_forward.1} parent=11 // pred_region
          %s1698 = ssub.s32 16, 16
          %1699 = vsyncadd [#allocation26], %s1698
          %s1701 = sshll.u32 [#allocation27], 4
          %s1702 = int_to_ptr.vmem [resolvable:$true] %s1701
          %1704 = dma.hbm_to_vmem [thread:$0]  %s115, 16, %s1702, [#allocation26]
        $region236: #{model_forward.1} parent=11 // pred_fallthru
          _
      $region12: #{model_forward.1} parent=5 // pred_fallthru
        _
      %p1705 = scmp.lt.s32.totalorder %s132, 2
      // Predicated region
      $region237: #{model_forward.1} parent=5 // pred_check
        %p1706 = pneg %p1705
      $region238: #{model_forward.1} parent=5 // pred_check_branch
        %1708 = sbr.rel (%p1706) target = $region240
      $region239: #{model_forward.1} parent=5 // pred_region
        // Predicated region
        $region241: #{model_forward.1} parent=239 // pred_check
          %p1709 = pneg %p152
        $region242: #{model_forward.1} parent=239 // pred_check_branch
          %1711 = sbr.rel (%p1709) target = $region244
        $region243: #{model_forward.1} parent=239 // pred_region
          %p1712 = scmp.lt.s32.totalorder %s132, 1
          %s1713 = scalar_select %p1712, %s132, 1
          %s1714 = smul.addr %s1713, 8
          %s1715 = scalar_lea.vmem %s1, %s1714
        $region244: #{model_forward.1} parent=239 // pred_fallthru
          _
        // Predicated region
        $region245: #{model_forward.1} parent=239 // pred_check
          %p1716 = pneg %p178
        $region246: #{model_forward.1} parent=239 // pred_check_branch
          %1718 = sbr.rel (%p1716) target = $region248
        $region247: #{model_forward.1} parent=239 // pred_region
          %p1719 = scmp.lt.s32.totalorder %s132, 1
          %s1720 = scalar_select %p1719, %s132, 1
          %s1721 = scalar_lea.vmem %s3, %s1720
        $region248: #{model_forward.1} parent=239 // pred_fallthru
          _
      $region240: #{model_forward.1} parent=5 // pred_fallthru
        _
      %p1722 = scmp.le.s32.totalorder 1, %s132
      %p1723 = scmp.lt.s32.totalorder %s132, 3
      %p1724 = pnand %p1722, %p1723
      %p1725 = pneg %p1724
      // Predicated region
      $region249: #{model_forward.1} parent=5 // pred_check
        _
      $region250: #{model_forward.1} parent=5 // pred_check_branch
        %1727 = sbr.rel (%p1724) target = $region252
      $region251: #{model_forward.1} parent=5 // pred_region
        %s1728 = ssub.s32 %s132, 1
        // Predicated region
        $region253: #{model_forward.1} parent=251 // pred_check
          %p1729 = pneg %p835
        $region254: #{model_forward.1} parent=251 // pred_check_branch
          %1731 = sbr.rel (%p1729) target = $region256
        $region255: #{model_forward.1} parent=251 // pred_region
          %1732 = dma.done [#allocation3], 16
        $region256: #{model_forward.1} parent=251 // pred_fallthru
          _
        // Predicated region
        $region257: #{model_forward.1} parent=251 // pred_check
          %p1733 = pneg %p856
        $region258: #{model_forward.1} parent=251 // pred_check_branch
          %1735 = sbr.rel (%p1733) target = $region260
        $region259: #{model_forward.1} parent=251 // pred_region
          %1736 = dma.done [#allocation5], 16
        $region260: #{model_forward.1} parent=251 // pred_fallthru
          _
        // Predicated region
        $region261: #{model_forward.1} parent=251 // pred_check
          %p1737 = pneg %p898
        $region262: #{model_forward.1} parent=251 // pred_check_branch
          %1739 = sbr.rel (%p1737) target = $region264
        $region263: #{model_forward.1} parent=251 // pred_region
          %1740 = dma.done [#allocation5], 16
        $region264: #{model_forward.1} parent=251 // pred_fallthru
          _
        // Predicated region
        $region265: #{model_forward.1} parent=251 // pred_check
          %p1741 = pneg %p940
        $region266: #{model_forward.1} parent=251 // pred_check_branch
          %1743 = sbr.rel (%p1741) target = $region268
        $region267: #{model_forward.1} parent=251 // pred_region
          %1744 = dma.done [#allocation8], 16
        $region268: #{model_forward.1} parent=251 // pred_fallthru
          _
        // Predicated region
        $region269: #{model_forward.1} parent=251 // pred_check
          %p1745 = pneg %p961
        $region270: #{model_forward.1} parent=251 // pred_check_branch
          %1747 = sbr.rel (%p1745) target = $region272
        $region271: #{model_forward.1} parent=251 // pred_region
          %1748 = dma.done [#allocation8], 16
        $region272: #{model_forward.1} parent=251 // pred_fallthru
          _
        // Predicated region
        $region273: #{model_forward.1} parent=251 // pred_check
          %p1749 = pneg %p982
        $region274: #{model_forward.1} parent=251 // pred_check_branch
          %1751 = sbr.rel (%p1749) target = $region276
        $region275: #{model_forward.1} parent=251 // pred_region
          %1752 = dma.done [#allocation11], 16
        $region276: #{model_forward.1} parent=251 // pred_fallthru
          _
        // Predicated region
        $region277: #{model_forward.1} parent=251 // pred_check
          %p1753 = pneg %p1024
        $region278: #{model_forward.1} parent=251 // pred_check_branch
          %1755 = sbr.rel (%p1753) target = $region280
        $region279: #{model_forward.1} parent=251 // pred_region
          %1756 = dma.done [#allocation11], 16
        $region280: #{model_forward.1} parent=251 // pred_fallthru
          _
        // Predicated region
        $region281: #{model_forward.1} parent=251 // pred_check
          %p1757 = pneg %p1066
        $region282: #{model_forward.1} parent=251 // pred_check_branch
          %1759 = sbr.rel (%p1757) target = $region284
        $region283: #{model_forward.1} parent=251 // pred_region
          %1760 = dma.done [#allocation14], 16
        $region284: #{model_forward.1} parent=251 // pred_fallthru
          _
        // Predicated region
        $region285: #{model_forward.1} parent=251 // pred_check
          %p1761 = pneg %p1108
        $region286: #{model_forward.1} parent=251 // pred_check_branch
          %1763 = sbr.rel (%p1761) target = $region288
        $region287: #{model_forward.1} parent=251 // pred_region
          %1764 = dma.done [#allocation14], 16
        $region288: #{model_forward.1} parent=251 // pred_fallthru
          _
        // Predicated region
        $region289: #{model_forward.1} parent=251 // pred_check
          %p1765 = pneg %p1150
        $region290: #{model_forward.1} parent=251 // pred_check_branch
          %1767 = sbr.rel (%p1765) target = $region292
        $region291: #{model_forward.1} parent=251 // pred_region
          %1768 = dma.done [#allocation17], 16
        $region292: #{model_forward.1} parent=251 // pred_fallthru
          _
        // Predicated region
        $region293: #{model_forward.1} parent=251 // pred_check
          %p1769 = pneg %p1192
        $region294: #{model_forward.1} parent=251 // pred_check_branch
          %1771 = sbr.rel (%p1769) target = $region296
        $region295: #{model_forward.1} parent=251 // pred_region
          %1772 = dma.done [#allocation17], 16
        $region296: #{model_forward.1} parent=251 // pred_fallthru
          _
        // Predicated region
        $region297: #{model_forward.1} parent=251 // pred_check
          %p1773 = pneg %p1213
        $region298: #{model_forward.1} parent=251 // pred_check_branch
          %1775 = sbr.rel (%p1773) target = $region300
        $region299: #{model_forward.1} parent=251 // pred_region
          %1776 = dma.done [#allocation20], 16
        $region300: #{model_forward.1} parent=251 // pred_fallthru
          _
        // Predicated region
        $region301: #{model_forward.1} parent=251 // pred_check
          %p1777 = pneg %p1234
        $region302: #{model_forward.1} parent=251 // pred_check_branch
          %1779 = sbr.rel (%p1777) target = $region304
        $region303: #{model_forward.1} parent=251 // pred_region
          %1780 = dma.done [#allocation20], 16
        $region304: #{model_forward.1} parent=251 // pred_fallthru
          _
        // Predicated region
        $region305: #{model_forward.1} parent=251 // pred_check
          %p1781 = pneg %p1276
        $region306: #{model_forward.1} parent=251 // pred_check_branch
          %1783 = sbr.rel (%p1781) target = $region308
        $region307: #{model_forward.1} parent=251 // pred_region
          %1784 = dma.done [#allocation23], 16
        $region308: #{model_forward.1} parent=251 // pred_fallthru
          _
        // Predicated region
        $region309: #{model_forward.1} parent=251 // pred_check
          %p1785 = pneg %p1318
        $region310: #{model_forward.1} parent=251 // pred_check_branch
          %1787 = sbr.rel (%p1785) target = $region312
        $region311: #{model_forward.1} parent=251 // pred_region
          %1788 = dma.done [#allocation23], 16
        $region312: #{model_forward.1} parent=251 // pred_fallthru
          _
        // Predicated region
        $region313: #{model_forward.1} parent=251 // pred_check
          %p1789 = pneg %p1339
        $region314: #{model_forward.1} parent=251 // pred_check_branch
          %1791 = sbr.rel (%p1789) target = $region316
        $region315: #{model_forward.1} parent=251 // pred_region
          %1792 = dma.done [#allocation26], 16
        $region316: #{model_forward.1} parent=251 // pred_fallthru
          _
        // Predicated region
        $region317: #{model_forward.1} parent=251 // pred_check
          %p1793 = pneg %p1360
        $region318: #{model_forward.1} parent=251 // pred_check_branch
          %1795 = sbr.rel (%p1793) target = $region320
        $region319: #{model_forward.1} parent=251 // pred_region
          %1796 = dma.done [#allocation26], 16
        $region320: #{model_forward.1} parent=251 // pred_fallthru
          _
        %p1797 = scmp.lt.s32.totalorder %s137, 1
        %s1798 = scalar_select %p1797, %s137, 1
        %s1799 = smul.addr %s1798, 8
        %s1800 = scalar_lea.vmem %s1, %s1799
        %p1801 = pneg %p158
        %p1802 = pneg %p155
        %p1803 = scmp.lt.s32.totalorder %s137, 1
        %s1804 = scalar_select %p1803, %s137, 1
        %s1805 = scalar_lea.vmem %s3, %s1804
        %p1806 = pneg %p184
        %p1807 = pneg %p181
        %p1808 = pneg %p205
        %p1809 = pneg %p202
        %p1810 = pneg %p226
        %p1811 = pneg %p223
        %p1812 = pneg %p247
        %p1813 = pneg %p244
        %p1814 = pneg %p268
        %p1815 = pneg %p265
        %p1816 = pneg %p289
        %p1817 = pneg %p286
        %p1818 = pneg %p310
        %p1819 = pneg %p307
        %p1820 = pneg %p331
        %p1821 = pneg %p328
        %p1822 = pneg %p352
        %p1823 = pneg %p349
        %p1824 = pneg %p373
        %p1825 = pneg %p370
        %p1826 = pneg %p394
        %p1827 = pneg %p391
        %p1828 = pneg %p415
        %p1829 = pneg %p412
        %p1830 = pneg %p436
        %p1831 = pneg %p433
        %p1832 = pneg %p457
        %p1833 = pneg %p454
        %p1834 = pneg %p478
        %p1835 = pneg %p475
        %p1836 = pneg %p499
        %p1837 = pneg %p496
        %p1838 = pneg %p520
        %p1839 = pneg %p517
        %p1840 = pneg %p541
        %p1841 = pneg %p538
        %p1842 = pneg %p562
        %p1843 = pneg %p559
        %p1844 = pneg %p583
        %p1845 = pneg %p580
        %p1846 = pneg %p604
        %p1847 = pneg %p601
        %p1848 = pneg %p625
        %p1849 = pneg %p622
        %p1850 = pneg %p646
        %p1851 = pneg %p643
        %p1852 = pneg %p667
        %p1853 = pneg %p664
        %p1854 = pneg %p688
        %p1855 = pneg %p685
        %p1856 = pneg %p709
        %p1857 = pneg %p706
        %p1858 = pneg %p730
        %p1859 = pneg %p727
        %p1860 = pneg %p751
        %p1861 = pneg %p748
        %p1862 = pneg %p772
        %p1863 = pneg %p769
        %p1864 = pneg %p793
        %p1865 = pneg %p790
        %p1866 = pneg %p814
        %p1867 = pneg %p811
        %p1868 = pneg %p835
        %p1869 = pneg %p832
        %p1870 = pneg %p856
        %p1871 = pneg %p853
        %p1872 = pneg %p877
        %p1873 = pneg %p874
        %p1874 = pneg %p898
        %p1875 = pneg %p895
        %p1876 = pneg %p919
        %p1877 = pneg %p916
        %p1878 = pneg %p940
        %p1879 = pneg %p937
        %p1880 = pneg %p961
        %p1881 = pneg %p958
        %p1882 = pneg %p982
        %p1883 = pneg %p979
        %p1884 = pneg %p1003
        %p1885 = pneg %p1000
        %p1886 = pneg %p1024
        %p1887 = pneg %p1021
        %p1888 = pneg %p1045
        %p1889 = pneg %p1042
        %p1890 = pneg %p1066
        %p1891 = pneg %p1063
        %p1892 = pneg %p1087
        %p1893 = pneg %p1084
        %p1894 = pneg %p1108
        %p1895 = pneg %p1105
        %p1896 = pneg %p1129
        %p1897 = pneg %p1126
        %p1898 = pneg %p1150
        %p1899 = pneg %p1147
        %p1900 = pneg %p1171
        %p1901 = pneg %p1168
        %p1902 = pneg %p1192
        %p1903 = pneg %p1189
        %p1904 = pneg %p1213
        %p1905 = pneg %p1210
        %p1906 = pneg %p1234
        %p1907 = pneg %p1231
        %p1908 = pneg %p1255
        %p1909 = pneg %p1252
        %p1910 = pneg %p1276
        %p1911 = pneg %p1273
        %p1912 = pneg %p1297
        %p1913 = pneg %p1294
        %p1914 = pneg %p1318
        %p1915 = pneg %p1315
        %p1916 = pneg %p1339
        %p1917 = pneg %p1336
        %p1918 = pneg %p1360
        %p1919 = pneg %p1357
        %p1920 = pneg %p1386
        %p1921 = pneg %p1383
        %p1922 = scmp.lt.s32.totalorder %s137, 1
        %s1923 = scalar_select %p1922, %s137, 1
        %s1924 = scalar_lea.vmem %s117, %s1923
        %p1925 = scmp.lt.s32.totalorder %s137, 1
        %s1926 = scalar_select %p1925, %s137, 1
        %s1927 = smul.addr %s1926, 8
        %s1928 = scalar_lea.vmem %s1, %s1927
        %p1929 = scmp.lt.s32.totalorder %s137, 1
        %s1930 = scalar_select %p1929, %s137, 1
        %s1931 = scalar_lea.vmem %s3, %s1930
        %p1932 = scmp.lt.s32.totalorder %s137, 1
        %s1933 = scalar_select %p1932, %s137, 1
        %s1934 = scalar_lea.vmem %s117, %s1933
        %v1935 = vld [vmem:[%s5] sm:$0x1]
        %v1936 = vld [vmem:[%s7] sm:$0x1]
        %v1937 = vld [vmem:[%s1931] sm:$0x1]
        %v1938 = vld [vmem:[%s1928] sm:$0xff]
        %vm1939 = vcmask 261120
        %v1940 = vsel %vm1939, %v1938, 0.0
        %1941 = vadd.xlane.f32.xlu0 %v1940
        %v1942 = vpop.xlane.xlu0 %1941
        %v1943 = vrcp.pop 32.0
        %v1944 = vmul.f32 %v1942, %v1943
        %v1945 = vsub.f32 %v1938, %v1944
        %v1946 = vmul.f32 %v1945, %v1945
        %v1947 = vsel %vm1939, %v1946, 0.0
        %1948 = vadd.xlane.f32.xlu0 %v1947
        %v1949 = vpop.xlane.xlu0 %1948
        %v1950 = vmul.f32 %v1949, %v1943
        %v1951 = vadd.f32 %v1950, 1e-12
        %v1952 = vrsqrt.pop %v1951
        %v1953 = vmul.f32 %v1945, %v1952
        %v1955 = vlaneseq
        %v1956 = vshrl.u32 %v1955, 7
        %v1957 = vsub.s32 0, %v1956
        %v1958 = vrot.slane %v1935, %v1957
        %v1960 = vmul.f32 %v1953, %v1958
        %v1962 = vlaneseq
        %v1963 = vshrl.u32 %v1962, 7
        %v1964 = vsub.s32 0, %v1963
        %v1965 = vrot.slane %v1936, %v1964
        %v1967 = vadd.f32 %v1960, %v1965
        %v1968 = vld [vmem:[%s9] sm:$0x1]
        %v1969 = vld [vmem:[%s11] sm:$0x1]
        %vm1970 = vcmask 64512
        %v1972 = vsel %vm1970, %v1968, 0
        %1974 = vmatprep.subr.mxu0 0.0
        %1975 = vmatpush1.msra.mxu0 %v1967
        %1976 = vmatprep.subr.mxu0 0.0
        %1977 = vmatpush1.msra.mxu0 0.0
        %1978 = vmatprep.subr.mxu0 0.0
        %1979 = vmatpush1.msra.mxu0 0.0
        %1980 = vmatprep.subr.mxu0 0.0
        %1981 = vmatpush1.msra.mxu0 0.0
        %1982 = vmatprep.subr.mxu0 0.0
        %1983 = vmatpush1.msra.mxu0 0.0
        %1984 = vmatprep.subr.mxu0 0.0
        %1985 = vmatpush1.msra.mxu0 0.0
        %1986 = vmatprep.subr.mxu0 0.0
        %1987 = vmatpush1.msra.mxu0 0.0
        %1988 = vmatprep.subr.mxu0 0.0
        %1989 = vmatpush1.msra.mxu0 0.0
        %1990 = vmatprep.subr.mxu0 0.0
        %1991 = vmatpush1.msra.mxu0 0.0
        %1992 = vmatprep.subr.mxu0 0.0
        %1993 = vmatpush1.msra.mxu0 0.0
        %1994 = vmatprep.subr.mxu0 0.0
        %1995 = vmatpush1.msra.mxu0 0.0
        %1996 = vmatprep.subr.mxu0 0.0
        %1997 = vmatpush1.msra.mxu0 0.0
        %1998 = vmatprep.subr.mxu0 0.0
        %1999 = vmatpush1.msra.mxu0 0.0
        %2000 = vmatprep.subr.mxu0 0.0
        %2001 = vmatpush1.msra.mxu0 0.0
        %2002 = vmatprep.subr.mxu0 0.0
        %2003 = vmatpush1.msra.mxu0 0.0
        %2004 = vmatprep.subr.mxu0 0.0
        %2005 = vmatpush1.msra.mxu0 0.0
        %2006 = vmatprep.subr.mxu0 0.0
        %2007 = vmatpush1.msra.mxu0 0.0
        %2008 = vmatprep.subr.mxu0 0.0
        %2009 = vmatpush1.msra.mxu0 0.0
        %2010 = vmatprep.subr.mxu0 0.0
        %2011 = vmatpush1.msra.mxu0 0.0
        %2012 = vmatprep.subr.mxu0 0.0
        %2013 = vmatpush1.msra.mxu0 0.0
        %2014 = vmatprep.subr.mxu0 0.0
        %2015 = vmatpush1.msra.mxu0 0.0
        %2016 = vmatprep.subr.mxu0 0.0
        %2017 = vmatpush1.msra.mxu0 0.0
        %2018 = vmatprep.subr.mxu0 0.0
        %2019 = vmatpush1.msra.mxu0 0.0
        %2020 = vmatprep.subr.mxu0 0.0
        %2021 = vmatpush1.msra.mxu0 0.0
        %2022 = vmatprep.subr.mxu0 0.0
        %2023 = vmatpush1.msra.mxu0 0.0
        %2024 = vmatprep.subr.mxu0 0.0
        %2025 = vmatpush1.msra.mxu0 0.0
        %2026 = vmatprep.subr.mxu0 0.0
        %2027 = vmatpush1.msra.mxu0 0.0
        %2028 = vmatprep.subr.mxu0 0.0
        %2029 = vmatpush1.msra.mxu0 0.0
        %2030 = vmatprep.subr.mxu0 0.0
        %2031 = vmatpush1.msra.mxu0 0.0
        %2032 = vmatprep.subr.mxu0 0.0
        %2033 = vmatpush1.msra.mxu0 0.0
        %2034 = vmatprep.subr.mxu0 0.0
        %2035 = vmatpush1.msra.mxu0 0.0
        %2036 = vmatprep.subr.mxu0 0.0
        %2037 = vmatpush1.msra.mxu0 0.0
        %2038 = vmatprep.mubr.f32.mxu0 0.0
        %2039 = vmatmul.mubr.f32.gmra.mrb[0].mxu0 %v1972
        %v2040 = vpop.f32.mrb[0].mxu0
        %v2041 = vadd.f32 %v1969, %v2040
        %v2042 = vpop.f32.mrb[0].mxu0
        %2043 = vdwg.mxu0
        %v2044 = vld [vmem:[%s13] sm:$0xff]
        %v2045 = vld [vmem:[%s13 + $0x8] sm:$0xff]
        %v2046 = vld [vmem:[%s13 + $0x10] sm:$0xff]
        %v2047 = vld [vmem:[%s13 + $0x18] sm:$0xff]
        %v2048 = vld [vmem:[%s15] sm:$0x1]
        %v2050 = vsel %vm1939, %v2041, 0
        %2052 = vmatprep.subr.mxu0 0.0
        %2053 = vmatpush1.msra.mxu0 %v2044
        %2054 = vmatprep.subr.mxu0 0.0
        %2055 = vmatpush1.msra.mxu0 %v2045
        %2056 = vmatprep.subr.mxu0 0.0
        %2057 = vmatpush1.msra.mxu0 %v2046
        %2058 = vmatprep.subr.mxu0 0.0
        %2059 = vmatpush1.msra.mxu0 %v2047
        %2060 = vmatprep.subr.mxu0 0.0
        %2061 = vmatpush1.msra.mxu0 0.0
        %2062 = vmatprep.subr.mxu0 0.0
        %2063 = vmatpush1.msra.mxu0 0.0
        %2064 = vmatprep.subr.mxu0 0.0
        %2065 = vmatpush1.msra.mxu0 0.0
        %2066 = vmatprep.subr.mxu0 0.0
        %2067 = vmatpush1.msra.mxu0 0.0
        %2068 = vmatprep.subr.mxu0 0.0
        %2069 = vmatpush1.msra.mxu0 0.0
        %2070 = vmatprep.subr.mxu0 0.0
        %2071 = vmatpush1.msra.mxu0 0.0
        %2072 = vmatprep.subr.mxu0 0.0
        %2073 = vmatpush1.msra.mxu0 0.0
        %2074 = vmatprep.subr.mxu0 0.0
        %2075 = vmatpush1.msra.mxu0 0.0
        %2076 = vmatprep.subr.mxu0 0.0
        %2077 = vmatpush1.msra.mxu0 0.0
        %2078 = vmatprep.subr.mxu0 0.0
        %2079 = vmatpush1.msra.mxu0 0.0
        %2080 = vmatprep.subr.mxu0 0.0
        %2081 = vmatpush1.msra.mxu0 0.0
        %2082 = vmatprep.subr.mxu0 0.0
        %2083 = vmatpush1.msra.mxu0 0.0
        %2084 = vmatprep.subr.mxu0 0.0
        %2085 = vmatpush1.msra.mxu0 0.0
        %2086 = vmatprep.subr.mxu0 0.0
        %2087 = vmatpush1.msra.mxu0 0.0
        %2088 = vmatprep.subr.mxu0 0.0
        %2089 = vmatpush1.msra.mxu0 0.0
        %2090 = vmatprep.subr.mxu0 0.0
        %2091 = vmatpush1.msra.mxu0 0.0
        %2092 = vmatprep.subr.mxu0 0.0
        %2093 = vmatpush1.msra.mxu0 0.0
        %2094 = vmatprep.subr.mxu0 0.0
        %2095 = vmatpush1.msra.mxu0 0.0
        %2096 = vmatprep.subr.mxu0 0.0
        %2097 = vmatpush1.msra.mxu0 0.0
        %2098 = vmatprep.subr.mxu0 0.0
        %2099 = vmatpush1.msra.mxu0 0.0
        %2100 = vmatprep.subr.mxu0 0.0
        %2101 = vmatpush1.msra.mxu0 0.0
        %2102 = vmatprep.subr.mxu0 0.0
        %2103 = vmatpush1.msra.mxu0 0.0
        %2104 = vmatprep.subr.mxu0 0.0
        %2105 = vmatpush1.msra.mxu0 0.0
        %2106 = vmatprep.subr.mxu0 0.0
        %2107 = vmatpush1.msra.mxu0 0.0
        %2108 = vmatprep.subr.mxu0 0.0
        %2109 = vmatpush1.msra.mxu0 0.0
        %2110 = vmatprep.subr.mxu0 0.0
        %2111 = vmatpush1.msra.mxu0 0.0
        %2112 = vmatprep.subr.mxu0 0.0
        %2113 = vmatpush1.msra.mxu0 0.0
        %2114 = vmatprep.subr.mxu0 0.0
        %2115 = vmatpush1.msra.mxu0 0.0
        %2116 = vmatprep.mubr.f32.mxu0 0.0
        %2117 = vmatmul.mubr.f32.gmra.mrb[0].mxu0 %v2050
        %v2118 = vpop.f32.mrb[0].mxu0
        %v2119 = vadd.f32 %v2048, %v2118
        %v2120 = vpop.f32.mrb[0].mxu0
        %2121 = vdwg.mxu0
        %v2122 = vmul.f32 %v2119, 0.5
        %v2123 = vmul.f32 %v2119, 0.70710677
        %v2124 = vand.u32 2147483647, %v2123
        %v2125 = vmul.f32 %v2124, 0.3275911
        %v2126 = vadd.f32 %v2125, 1.0
        %v2127 = vrcp.pop %v2126
        %v2128 = vmul.f32 1.0, %v2127
        %v2129 = vmul.f32 %v2128, 1.0614054
        %v2130 = vadd.f32 %v2129, -1.4531521
        %v2131 = vmul.f32 %v2128, %v2130
        %v2132 = vadd.f32 %v2131, 1.4214138
        %v2133 = vmul.f32 %v2128, %v2132
        %v2134 = vadd.f32 %v2133, -0.28449672
        %v2135 = vmul.f32 %v2128, %v2134
        %v2136 = vadd.f32 %v2135, 0.2548296
        %v2137 = vmul.f32 %v2128, %v2136
        %v2138 = vsub.f32 0.0, %v2124
        %v2139 = vmul.f32 %v2138, %v2124
        %v2140 = vmul.f32 %v2139, 1.442695
        %v2141 = vpow.pop %v2140
        %v2142 = vmul.f32 %v2137, %v2141
        %v2143 = vsub.f32 1.0, %v2142
        %vm2144 = vcmp.ge.f32.partialorder %v2123, 0.0
        %v2145 = vsub.f32 0.0, %v2143
        %v2146 = vsel %vm2144, %v2143, %v2145
        %v2147 = vadd.f32 %v2146, 1.0
        %v2148 = vmul.f32 %v2122, %v2147
        %v2149 = vld [vmem:[%s17] sm:$0xff]
        %v2150 = vld [vmem:[%s17 + $0x8] sm:$0xff]
        %v2151 = vld [vmem:[%s19] sm:$0x1]
        %vm2152 = vcmask 130048
        %v2154 = vsel %vm2152, %v2148, 0
        %2156 = vmatprep.subr.mxu0 0.0
        %2157 = vmatpush1.msra.mxu0 %v2149
        %2158 = vmatprep.subr.mxu0 0.0
        %2159 = vmatpush1.msra.mxu0 %v2150
        %2160 = vmatprep.subr.mxu0 0.0
        %2161 = vmatpush1.msra.mxu0 0.0
        %2162 = vmatprep.subr.mxu0 0.0
        %2163 = vmatpush1.msra.mxu0 0.0
        %2164 = vmatprep.subr.mxu0 0.0
        %2165 = vmatpush1.msra.mxu0 0.0
        %2166 = vmatprep.subr.mxu0 0.0
        %2167 = vmatpush1.msra.mxu0 0.0
        %2168 = vmatprep.subr.mxu0 0.0
        %2169 = vmatpush1.msra.mxu0 0.0
        %2170 = vmatprep.subr.mxu0 0.0
        %2171 = vmatpush1.msra.mxu0 0.0
        %2172 = vmatprep.subr.mxu0 0.0
        %2173 = vmatpush1.msra.mxu0 0.0
        %2174 = vmatprep.subr.mxu0 0.0
        %2175 = vmatpush1.msra.mxu0 0.0
        %2176 = vmatprep.subr.mxu0 0.0
        %2177 = vmatpush1.msra.mxu0 0.0
        %2178 = vmatprep.subr.mxu0 0.0
        %2179 = vmatpush1.msra.mxu0 0.0
        %2180 = vmatprep.subr.mxu0 0.0
        %2181 = vmatpush1.msra.mxu0 0.0
        %2182 = vmatprep.subr.mxu0 0.0
        %2183 = vmatpush1.msra.mxu0 0.0
        %2184 = vmatprep.subr.mxu0 0.0
        %2185 = vmatpush1.msra.mxu0 0.0
        %2186 = vmatprep.subr.mxu0 0.0
        %2187 = vmatpush1.msra.mxu0 0.0
        %2188 = vmatprep.subr.mxu0 0.0
        %2189 = vmatpush1.msra.mxu0 0.0
        %2190 = vmatprep.subr.mxu0 0.0
        %2191 = vmatpush1.msra.mxu0 0.0
        %2192 = vmatprep.subr.mxu0 0.0
        %2193 = vmatpush1.msra.mxu0 0.0
        %2194 = vmatprep.subr.mxu0 0.0
        %2195 = vmatpush1.msra.mxu0 0.0
        %2196 = vmatprep.subr.mxu0 0.0
        %2197 = vmatpush1.msra.mxu0 0.0
        %2198 = vmatprep.subr.mxu0 0.0
        %2199 = vmatpush1.msra.mxu0 0.0
        %2200 = vmatprep.subr.mxu0 0.0
        %2201 = vmatpush1.msra.mxu0 0.0
        %2202 = vmatprep.subr.mxu0 0.0
        %2203 = vmatpush1.msra.mxu0 0.0
        %2204 = vmatprep.subr.mxu0 0.0
        %2205 = vmatpush1.msra.mxu0 0.0
        %2206 = vmatprep.subr.mxu0 0.0
        %2207 = vmatpush1.msra.mxu0 0.0
        %2208 = vmatprep.subr.mxu0 0.0
        %2209 = vmatpush1.msra.mxu0 0.0
        %2210 = vmatprep.subr.mxu0 0.0
        %2211 = vmatpush1.msra.mxu0 0.0
        %2212 = vmatprep.subr.mxu0 0.0
        %2213 = vmatpush1.msra.mxu0 0.0
        %2214 = vmatprep.subr.mxu0 0.0
        %2215 = vmatpush1.msra.mxu0 0.0
        %2216 = vmatprep.subr.mxu0 0.0
        %2217 = vmatpush1.msra.mxu0 0.0
        %2218 = vmatprep.subr.mxu0 0.0
        %2219 = vmatpush1.msra.mxu0 0.0
        %2220 = vmatprep.mubr.f32.mxu0 0.0
        %2221 = vmatmul.mubr.f32.gmra.mrb[0].mxu0 %v2154
        %v2222 = vpop.f32.mrb[0].mxu0
        %v2223 = vadd.f32 %v2151, %v2222
        %v2224 = vpop.f32.mrb[0].mxu0
        %2225 = vdwg.mxu0
        %v2226 = vlaneseq
        %v2227 = vshrl.u32 %v2226, 7
        %v2228 = vsub.s32 0, %v2227
        %v2229 = vrot.slane %v2223, %v2228
        %v2230 = vadd.f32 %v1967, %v2229
        %v2231 = vld [vmem:[%s21] sm:$0xff]
        %v2232 = vld [vmem:[%s21 + $0x8] sm:$0xff]
        %v2233 = vld [vmem:[%s21 + $0x10] sm:$0xff]
        %v2234 = vld [vmem:[%s21 + $0x18] sm:$0xff]
        %v2235 = vld [vmem:[%s23] sm:$0x1]
        %v2237 = vlaneseq
        %v2238 = vshrl.u32 %v2237, 7
        %v2239 = vsub.s32 0, %v2238
        %v2240 = vrot.slane %v2235, %v2239
        %v2243 = vsel %vm1939, %v2230, 0
        %2245 = vmatprep.subr.mxu0 0.0
        %2246 = vmatpush1.msra.mxu0 %v2231
        %2247 = vmatprep.subr.mxu0 0.0
        %2248 = vmatpush1.msra.mxu0 %v2232
        %2249 = vmatprep.subr.mxu0 0.0
        %2250 = vmatpush1.msra.mxu0 %v2233
        %2251 = vmatprep.subr.mxu0 0.0
        %2252 = vmatpush1.msra.mxu0 %v2234
        %2253 = vmatprep.subr.mxu0 0.0
        %2254 = vmatpush1.msra.mxu0 0.0
        %2255 = vmatprep.subr.mxu0 0.0
        %2256 = vmatpush1.msra.mxu0 0.0
        %2257 = vmatprep.subr.mxu0 0.0
        %2258 = vmatpush1.msra.mxu0 0.0
        %2259 = vmatprep.subr.mxu0 0.0
        %2260 = vmatpush1.msra.mxu0 0.0
        %2261 = vmatprep.subr.mxu0 0.0
        %2262 = vmatpush1.msra.mxu0 0.0
        %2263 = vmatprep.subr.mxu0 0.0
        %2264 = vmatpush1.msra.mxu0 0.0
        %2265 = vmatprep.subr.mxu0 0.0
        %2266 = vmatpush1.msra.mxu0 0.0
        %2267 = vmatprep.subr.mxu0 0.0
        %2268 = vmatpush1.msra.mxu0 0.0
        %2269 = vmatprep.subr.mxu0 0.0
        %2270 = vmatpush1.msra.mxu0 0.0
        %2271 = vmatprep.subr.mxu0 0.0
        %2272 = vmatpush1.msra.mxu0 0.0
        %2273 = vmatprep.subr.mxu0 0.0
        %2274 = vmatpush1.msra.mxu0 0.0
        %2275 = vmatprep.subr.mxu0 0.0
        %2276 = vmatpush1.msra.mxu0 0.0
        %2277 = vmatprep.subr.mxu0 0.0
        %2278 = vmatpush1.msra.mxu0 0.0
        %2279 = vmatprep.subr.mxu0 0.0
        %2280 = vmatpush1.msra.mxu0 0.0
        %2281 = vmatprep.subr.mxu0 0.0
        %2282 = vmatpush1.msra.mxu0 0.0
        %2283 = vmatprep.subr.mxu0 0.0
        %2284 = vmatpush1.msra.mxu0 0.0
        %2285 = vmatprep.subr.mxu0 0.0
        %2286 = vmatpush1.msra.mxu0 0.0
        %2287 = vmatprep.subr.mxu0 0.0
        %2288 = vmatpush1.msra.mxu0 0.0
        %2289 = vmatprep.subr.mxu0 0.0
        %2290 = vmatpush1.msra.mxu0 0.0
        %2291 = vmatprep.subr.mxu0 0.0
        %2292 = vmatpush1.msra.mxu0 0.0
        %2293 = vmatprep.subr.mxu0 0.0
        %2294 = vmatpush1.msra.mxu0 0.0
        %2295 = vmatprep.subr.mxu0 0.0
        %2296 = vmatpush1.msra.mxu0 0.0
        %2297 = vmatprep.subr.mxu0 0.0
        %2298 = vmatpush1.msra.mxu0 0.0
        %2299 = vmatprep.subr.mxu0 0.0
        %2300 = vmatpush1.msra.mxu0 0.0
        %2301 = vmatprep.subr.mxu0 0.0
        %2302 = vmatpush1.msra.mxu0 0.0
        %2303 = vmatprep.subr.mxu0 0.0
        %2304 = vmatpush1.msra.mxu0 0.0
        %2305 = vmatprep.subr.mxu0 0.0
        %2306 = vmatpush1.msra.mxu0 0.0
        %2307 = vmatprep.subr.mxu0 0.0
        %2308 = vmatpush1.msra.mxu0 0.0
        %2309 = vmatprep.mubr.f32.mxu0 0.0
        %2310 = vmatmul.mubr.f32.gmra.mrb[0].mxu0 %v2243
        %v2311 = vpop.f32.mrb[0].mxu0
        %v2312 = vadd.f32 %v2240, %v2311
        %v2313 = vpop.f32.mrb[0].mxu0
        %2314 = vdwg.mxu0
        %v2315 = vld [vmem:[%s25] sm:$0xff]
        %v2316 = vld [vmem:[%s25 + $0x8] sm:$0xff]
        %v2317 = vld [vmem:[%s25 + $0x10] sm:$0xff]
        %v2318 = vld [vmem:[%s25 + $0x18] sm:$0xff]
        %2320 = vrot.lane.b32.xlu0 %v2312, 96
        %v2321 = vpop.permute.xlu0 %2320
        %v2322 = vsel %vm1970, %v2312, 0
        %v2324 = vsel %vm1970, %v2321, 0
        %2326 = vmatprep.subr.mxu0 0.0
        %2327 = vmatpush1.xpose.msra.mxu0 %v2324
        %2328 = vmatprep.subr.mxu0 0.0
        %2329 = vmatpush1.xpose.msra.mxu0 0.0
        %2330 = vmatprep.subr.mxu0 0.0
        %2331 = vmatpush1.xpose.msra.mxu0 0.0
        %2332 = vmatprep.subr.mxu0 0.0
        %2333 = vmatpush1.xpose.msra.mxu0 0.0
        %2334 = vmatprep.subr.mxu0 0.0
        %2335 = vmatpush1.xpose.msra.mxu0 0.0
        %2336 = vmatprep.subr.mxu0 0.0
        %2337 = vmatpush1.xpose.msra.mxu0 0.0
        %2338 = vmatprep.subr.mxu0 0.0
        %2339 = vmatpush1.xpose.msra.mxu0 0.0
        %2340 = vmatprep.subr.mxu0 0.0
        %2341 = vmatpush1.xpose.msra.mxu0 0.0
        %2342 = vmatprep.subr.mxu0 0.0
        %2343 = vmatpush1.xpose.msra.mxu0 0.0
        %2344 = vmatprep.subr.mxu0 0.0
        %2345 = vmatpush1.xpose.msra.mxu0 0.0
        %2346 = vmatprep.subr.mxu0 0.0
        %2347 = vmatpush1.xpose.msra.mxu0 0.0
        %2348 = vmatprep.subr.mxu0 0.0
        %2349 = vmatpush1.xpose.msra.mxu0 0.0
        %2350 = vmatprep.subr.mxu0 0.0
        %2351 = vmatpush1.xpose.msra.mxu0 0.0
        %2352 = vmatprep.subr.mxu0 0.0
        %2353 = vmatpush1.xpose.msra.mxu0 0.0
        %2354 = vmatprep.subr.mxu0 0.0
        %2355 = vmatpush1.xpose.msra.mxu0 0.0
        %2356 = vmatprep.subr.mxu0 0.0
        %2357 = vmatpush1.xpose.msra.mxu0 0.0
        %2358 = vmatprep.subr.mxu0 0.0
        %2359 = vmatpush1.xpose.msra.mxu0 0.0
        %2360 = vmatprep.subr.mxu0 0.0
        %2361 = vmatpush1.xpose.msra.mxu0 0.0
        %2362 = vmatprep.subr.mxu0 0.0
        %2363 = vmatpush1.xpose.msra.mxu0 0.0
        %2364 = vmatprep.subr.mxu0 0.0
        %2365 = vmatpush1.xpose.msra.mxu0 0.0
        %2366 = vmatprep.subr.mxu0 0.0
        %2367 = vmatpush1.xpose.msra.mxu0 0.0
        %2368 = vmatprep.subr.mxu0 0.0
        %2369 = vmatpush1.xpose.msra.mxu0 0.0
        %2370 = vmatprep.subr.mxu0 0.0
        %2371 = vmatpush1.xpose.msra.mxu0 0.0
        %2372 = vmatprep.subr.mxu0 0.0
        %2373 = vmatpush1.xpose.msra.mxu0 0.0
        %2374 = vmatprep.subr.mxu0 0.0
        %2375 = vmatpush1.xpose.msra.mxu0 0.0
        %2376 = vmatprep.subr.mxu0 0.0
        %2377 = vmatpush1.xpose.msra.mxu0 0.0
        %2378 = vmatprep.subr.mxu0 0.0
        %2379 = vmatpush1.xpose.msra.mxu0 0.0
        %2380 = vmatprep.subr.mxu0 0.0
        %2381 = vmatpush1.xpose.msra.mxu0 0.0
        %2382 = vmatprep.subr.mxu0 0.0
        %2383 = vmatpush1.xpose.msra.mxu0 0.0
        %2384 = vmatprep.subr.mxu0 0.0
        %2385 = vmatpush1.xpose.msra.mxu0 0.0
        %2386 = vmatprep.subr.mxu0 0.0
        %2387 = vmatpush1.xpose.msra.mxu0 0.0
        %2388 = vmatprep.subr.mxu0 0.0
        %2389 = vmatpush1.xpose.msra.mxu0 0.0
        %2390 = vmatprep.mubr.f32.mxu0 0.0
        %2391 = vmatmul.mubr.f32.gmra.mrb[0].mxu0 %v2322
        %v2392 = vpop.f32.mrb[0].mxu0
        %v2393 = vadd.f32 0.0, %v2392
        %v2394 = vpop.f32.mrb[0].mxu0
        %2395 = vdwg.mxu0
        %v2396 = vmul.f32 %v2393, 0.35355338
        %v2398 = vlaneseq
        %v2399 = vshrl.u32 %v2398, 7
        %v2400 = vsub.s32 0, %v2399
        %v2401 = vrot.slane %v1937, %v2400
        %v2403 = vadd.f32 %v2396, %v2401
        %v2404 = vsel %vm1970, %v2403, -inf
        %2405 = vmax.xlane.f32.xlu0 %v2404
        %v2406 = vpop.xlane.xlu0 %2405
        %v2407 = vsub.f32 %v2403, %v2406
        %v2408 = vmul.f32 %v2407, 1.442695
        %v2409 = vpow.pop %v2408
        %v2410 = vsel %vm1970, %v2409, 0.0
        %2411 = vadd.xlane.f32.xlu0 %v2410
        %v2412 = vpop.xlane.xlu0 %2411
        %v2413 = vrcp.pop %v2412
        %v2414 = vmul.f32 %v2409, %v2413
        %2415 = vrot.lane.b32.xlu0 %v2312, 64
        %v2416 = vpop.permute.xlu0 %2415
        %v2419 = vsel %vm1970, %v2414, 0
        %2421 = vmatprep.subr.mxu0 0.0
        %2422 = vmatpush1.msra.mxu0 %v2416
        %2423 = vmatprep.subr.mxu0 0.0
        %2424 = vmatpush1.msra.mxu0 0.0
        %2425 = vmatprep.subr.mxu0 0.0
        %2426 = vmatpush1.msra.mxu0 0.0
        %2427 = vmatprep.subr.mxu0 0.0
        %2428 = vmatpush1.msra.mxu0 0.0
        %2429 = vmatprep.subr.mxu0 0.0
        %2430 = vmatpush1.msra.mxu0 0.0
        %2431 = vmatprep.subr.mxu0 0.0
        %2432 = vmatpush1.msra.mxu0 0.0
        %2433 = vmatprep.subr.mxu0 0.0
        %2434 = vmatpush1.msra.mxu0 0.0
        %2435 = vmatprep.subr.mxu0 0.0
        %2436 = vmatpush1.msra.mxu0 0.0
        %2437 = vmatprep.subr.mxu0 0.0
        %2438 = vmatpush1.msra.mxu0 0.0
        %2439 = vmatprep.subr.mxu0 0.0
        %2440 = vmatpush1.msra.mxu0 0.0
        %2441 = vmatprep.subr.mxu0 0.0
        %2442 = vmatpush1.msra.mxu0 0.0
        %2443 = vmatprep.subr.mxu0 0.0
        %2444 = vmatpush1.msra.mxu0 0.0
        %2445 = vmatprep.subr.mxu0 0.0
        %2446 = vmatpush1.msra.mxu0 0.0
        %2447 = vmatprep.subr.mxu0 0.0
        %2448 = vmatpush1.msra.mxu0 0.0
        %2449 = vmatprep.subr.mxu0 0.0
        %2450 = vmatpush1.msra.mxu0 0.0
        %2451 = vmatprep.subr.mxu0 0.0
        %2452 = vmatpush1.msra.mxu0 0.0
        %2453 = vmatprep.subr.mxu0 0.0
        %2454 = vmatpush1.msra.mxu0 0.0
        %2455 = vmatprep.subr.mxu0 0.0
        %2456 = vmatpush1.msra.mxu0 0.0
        %2457 = vmatprep.subr.mxu0 0.0
        %2458 = vmatpush1.msra.mxu0 0.0
        %2459 = vmatprep.subr.mxu0 0.0
        %2460 = vmatpush1.msra.mxu0 0.0
        %2461 = vmatprep.subr.mxu0 0.0
        %2462 = vmatpush1.msra.mxu0 0.0
        %2463 = vmatprep.subr.mxu0 0.0
        %2464 = vmatpush1.msra.mxu0 0.0
        %2465 = vmatprep.subr.mxu0 0.0
        %2466 = vmatpush1.msra.mxu0 0.0
        %2467 = vmatprep.subr.mxu0 0.0
        %2468 = vmatpush1.msra.mxu0 0.0
        %2469 = vmatprep.subr.mxu0 0.0
        %2470 = vmatpush1.msra.mxu0 0.0
        %2471 = vmatprep.subr.mxu0 0.0
        %2472 = vmatpush1.msra.mxu0 0.0
        %2473 = vmatprep.subr.mxu0 0.0
        %2474 = vmatpush1.msra.mxu0 0.0
        %2475 = vmatprep.subr.mxu0 0.0
        %2476 = vmatpush1.msra.mxu0 0.0
        %2477 = vmatprep.subr.mxu0 0.0
        %2478 = vmatpush1.msra.mxu0 0.0
        %2479 = vmatprep.subr.mxu0 0.0
        %2480 = vmatpush1.msra.mxu0 0.0
        %2481 = vmatprep.subr.mxu0 0.0
        %2482 = vmatpush1.msra.mxu0 0.0
        %2483 = vmatprep.subr.mxu0 0.0
        %2484 = vmatpush1.msra.mxu0 0.0
        %2485 = vmatprep.mubr.f32.mxu0 0.0
        %2486 = vmatmul.mubr.f32.gmra.mrb[0].mxu0 %v2419
        %v2487 = vpop.f32.mrb[0].mxu0
        %v2488 = vadd.f32 0.0, %v2487
        %v2489 = vpop.f32.mrb[0].mxu0
        %2490 = vdwg.mxu0
        %2491 = vrot.lane.b32.xlu0 %v2312, 120
        %v2492 = vpop.permute.xlu0 %2491
        %2493 = vrot.lane.b32.xlu0 %v2312, 88
        %v2494 = vpop.permute.xlu0 %2493
        %v2495 = vsel %vm1970, %v2492, 0
        %v2497 = vsel %vm1970, %v2494, 0
        %2499 = vmatprep.subr.mxu0 0.0
        %2500 = vmatpush1.xpose.msra.mxu0 %v2497
        %2501 = vmatprep.subr.mxu0 0.0
        %2502 = vmatpush1.xpose.msra.mxu0 0.0
        %2503 = vmatprep.subr.mxu0 0.0
        %2504 = vmatpush1.xpose.msra.mxu0 0.0
        %2505 = vmatprep.subr.mxu0 0.0
        %2506 = vmatpush1.xpose.msra.mxu0 0.0
        %2507 = vmatprep.subr.mxu0 0.0
        %2508 = vmatpush1.xpose.msra.mxu0 0.0
        %2509 = vmatprep.subr.mxu0 0.0
        %2510 = vmatpush1.xpose.msra.mxu0 0.0
        %2511 = vmatprep.subr.mxu0 0.0
        %2512 = vmatpush1.xpose.msra.mxu0 0.0
        %2513 = vmatprep.subr.mxu0 0.0
        %2514 = vmatpush1.xpose.msra.mxu0 0.0
        %2515 = vmatprep.subr.mxu0 0.0
        %2516 = vmatpush1.xpose.msra.mxu0 0.0
        %2517 = vmatprep.subr.mxu0 0.0
        %2518 = vmatpush1.xpose.msra.mxu0 0.0
        %2519 = vmatprep.subr.mxu0 0.0
        %2520 = vmatpush1.xpose.msra.mxu0 0.0
        %2521 = vmatprep.subr.mxu0 0.0
        %2522 = vmatpush1.xpose.msra.mxu0 0.0
        %2523 = vmatprep.subr.mxu0 0.0
        %2524 = vmatpush1.xpose.msra.mxu0 0.0
        %2525 = vmatprep.subr.mxu0 0.0
        %2526 = vmatpush1.xpose.msra.mxu0 0.0
        %2527 = vmatprep.subr.mxu0 0.0
        %2528 = vmatpush1.xpose.msra.mxu0 0.0
        %2529 = vmatprep.subr.mxu0 0.0
        %2530 = vmatpush1.xpose.msra.mxu0 0.0
        %2531 = vmatprep.subr.mxu0 0.0
        %2532 = vmatpush1.xpose.msra.mxu0 0.0
        %2533 = vmatprep.subr.mxu0 0.0
        %2534 = vmatpush1.xpose.msra.mxu0 0.0
        %2535 = vmatprep.subr.mxu0 0.0
        %2536 = vmatpush1.xpose.msra.mxu0 0.0
        %2537 = vmatprep.subr.mxu0 0.0
        %2538 = vmatpush1.xpose.msra.mxu0 0.0
        %2539 = vmatprep.subr.mxu0 0.0
        %2540 = vmatpush1.xpose.msra.mxu0 0.0
        %2541 = vmatprep.subr.mxu0 0.0
        %2542 = vmatpush1.xpose.msra.mxu0 0.0
        %2543 = vmatprep.subr.mxu0 0.0
        %2544 = vmatpush1.xpose.msra.mxu0 0.0
        %2545 = vmatprep.subr.mxu0 0.0
        %2546 = vmatpush1.xpose.msra.mxu0 0.0
        %2547 = vmatprep.subr.mxu0 0.0
        %2548 = vmatpush1.xpose.msra.mxu0 0.0
        %2549 = vmatprep.subr.mxu0 0.0
        %2550 = vmatpush1.xpose.msra.mxu0 0.0
        %2551 = vmatprep.subr.mxu0 0.0
        %2552 = vmatpush1.xpose.msra.mxu0 0.0
        %2553 = vmatprep.subr.mxu0 0.0
        %2554 = vmatpush1.xpose.msra.mxu0 0.0
        %2555 = vmatprep.subr.mxu0 0.0
        %2556 = vmatpush1.xpose.msra.mxu0 0.0
        %2557 = vmatprep.subr.mxu0 0.0
        %2558 = vmatpush1.xpose.msra.mxu0 0.0
        %2559 = vmatprep.subr.mxu0 0.0
        %2560 = vmatpush1.xpose.msra.mxu0 0.0
        %2561 = vmatprep.subr.mxu0 0.0
        %2562 = vmatpush1.xpose.msra.mxu0 0.0
        %2563 = vmatprep.mubr.f32.mxu0 0.0
        %2564 = vmatmul.mubr.f32.gmra.mrb[0].mxu0 %v2495
        %v2565 = vpop.f32.mrb[0].mxu0
        %v2566 = vadd.f32 0.0, %v2565
        %v2567 = vpop.f32.mrb[0].mxu0
        %2568 = vdwg.mxu0
        %v2569 = vmul.f32 %v2566, 0.35355338
        %v2570 = vadd.f32 %v2569, %v2401
        %v2571 = vsel %vm1970, %v2570, -inf
        %2572 = vmax.xlane.f32.xlu0 %v2571
        %v2573 = vpop.xlane.xlu0 %2572
        %v2574 = vsub.f32 %v2570, %v2573
        %v2575 = vmul.f32 %v2574, 1.442695
        %v2576 = vpow.pop %v2575
        %v2577 = vsel %vm1970, %v2576, 0.0
        %2578 = vadd.xlane.f32.xlu0 %v2577
        %v2579 = vpop.xlane.xlu0 %2578
        %v2580 = vrcp.pop %v2579
        %v2581 = vmul.f32 %v2576, %v2580
        %2582 = vrot.lane.b32.xlu0 %v2312, 56
        %v2583 = vpop.permute.xlu0 %2582
        %v2586 = vsel %vm1970, %v2581, 0
        %2588 = vmatprep.subr.mxu0 0.0
        %2589 = vmatpush1.msra.mxu0 %v2583
        %2590 = vmatprep.subr.mxu0 0.0
        %2591 = vmatpush1.msra.mxu0 0.0
        %2592 = vmatprep.subr.mxu0 0.0
        %2593 = vmatpush1.msra.mxu0 0.0
        %2594 = vmatprep.subr.mxu0 0.0
        %2595 = vmatpush1.msra.mxu0 0.0
        %2596 = vmatprep.subr.mxu0 0.0
        %2597 = vmatpush1.msra.mxu0 0.0
        %2598 = vmatprep.subr.mxu0 0.0
        %2599 = vmatpush1.msra.mxu0 0.0
        %2600 = vmatprep.subr.mxu0 0.0
        %2601 = vmatpush1.msra.mxu0 0.0
        %2602 = vmatprep.subr.mxu0 0.0
        %2603 = vmatpush1.msra.mxu0 0.0
        %2604 = vmatprep.subr.mxu0 0.0
        %2605 = vmatpush1.msra.mxu0 0.0
        %2606 = vmatprep.subr.mxu0 0.0
        %2607 = vmatpush1.msra.mxu0 0.0
        %2608 = vmatprep.subr.mxu0 0.0
        %2609 = vmatpush1.msra.mxu0 0.0
        %2610 = vmatprep.subr.mxu0 0.0
        %2611 = vmatpush1.msra.mxu0 0.0
        %2612 = vmatprep.subr.mxu0 0.0
        %2613 = vmatpush1.msra.mxu0 0.0
        %2614 = vmatprep.subr.mxu0 0.0
        %2615 = vmatpush1.msra.mxu0 0.0
        %2616 = vmatprep.subr.mxu0 0.0
        %2617 = vmatpush1.msra.mxu0 0.0
        %2618 = vmatprep.subr.mxu0 0.0
        %2619 = vmatpush1.msra.mxu0 0.0
        %2620 = vmatprep.subr.mxu0 0.0
        %2621 = vmatpush1.msra.mxu0 0.0
        %2622 = vmatprep.subr.mxu0 0.0
        %2623 = vmatpush1.msra.mxu0 0.0
        %2624 = vmatprep.subr.mxu0 0.0
        %2625 = vmatpush1.msra.mxu0 0.0
        %2626 = vmatprep.subr.mxu0 0.0
        %2627 = vmatpush1.msra.mxu0 0.0
        %2628 = vmatprep.subr.mxu0 0.0
        %2629 = vmatpush1.msra.mxu0 0.0
        %2630 = vmatprep.subr.mxu0 0.0
        %2631 = vmatpush1.msra.mxu0 0.0
        %2632 = vmatprep.subr.mxu0 0.0
        %2633 = vmatpush1.msra.mxu0 0.0
        %2634 = vmatprep.subr.mxu0 0.0
        %2635 = vmatpush1.msra.mxu0 0.0
        %2636 = vmatprep.subr.mxu0 0.0
        %2637 = vmatpush1.msra.mxu0 0.0
        %2638 = vmatprep.subr.mxu0 0.0
        %2639 = vmatpush1.msra.mxu0 0.0
        %2640 = vmatprep.subr.mxu0 0.0
        %2641 = vmatpush1.msra.mxu0 0.0
        %2642 = vmatprep.subr.mxu0 0.0
        %2643 = vmatpush1.msra.mxu0 0.0
        %2644 = vmatprep.subr.mxu0 0.0
        %2645 = vmatpush1.msra.mxu0 0.0
        %2646 = vmatprep.subr.mxu0 0.0
        %2647 = vmatpush1.msra.mxu0 0.0
        %2648 = vmatprep.subr.mxu0 0.0
        %2649 = vmatpush1.msra.mxu0 0.0
        %2650 = vmatprep.subr.mxu0 0.0
        %2651 = vmatpush1.msra.mxu0 0.0
        %2652 = vmatprep.mubr.f32.mxu0 0.0
        %2653 = vmatmul.mubr.f32.gmra.mrb[0].mxu0 %v2586
        %v2654 = vpop.f32.mrb[0].mxu0
        %v2655 = vadd.f32 0.0, %v2654
        %v2656 = vpop.f32.mrb[0].mxu0
        %2657 = vdwg.mxu0
        %v2659 = vsel %vm1970, %v2655, 0
        %2661 = vmatprep.subr.mxu0 0.0
        %2662 = vmatpush1.msra.mxu0 %v2316
        %2663 = vmatprep.subr.mxu0 0.0
        %2664 = vmatpush1.msra.mxu0 0.0
        %2665 = vmatprep.subr.mxu0 0.0
        %2666 = vmatpush1.msra.mxu0 0.0
        %2667 = vmatprep.subr.mxu0 0.0
        %2668 = vmatpush1.msra.mxu0 0.0
        %2669 = vmatprep.subr.mxu0 0.0
        %2670 = vmatpush1.msra.mxu0 0.0
        %2671 = vmatprep.subr.mxu0 0.0
        %2672 = vmatpush1.msra.mxu0 0.0
        %2673 = vmatprep.subr.mxu0 0.0
        %2674 = vmatpush1.msra.mxu0 0.0
        %2675 = vmatprep.subr.mxu0 0.0
        %2676 = vmatpush1.msra.mxu0 0.0
        %2677 = vmatprep.subr.mxu0 0.0
        %2678 = vmatpush1.msra.mxu0 0.0
        %2679 = vmatprep.subr.mxu0 0.0
        %2680 = vmatpush1.msra.mxu0 0.0
        %2681 = vmatprep.subr.mxu0 0.0
        %2682 = vmatpush1.msra.mxu0 0.0
        %2683 = vmatprep.subr.mxu0 0.0
        %2684 = vmatpush1.msra.mxu0 0.0
        %2685 = vmatprep.subr.mxu0 0.0
        %2686 = vmatpush1.msra.mxu0 0.0
        %2687 = vmatprep.subr.mxu0 0.0
        %2688 = vmatpush1.msra.mxu0 0.0
        %2689 = vmatprep.subr.mxu0 0.0
        %2690 = vmatpush1.msra.mxu0 0.0
        %2691 = vmatprep.subr.mxu0 0.0
        %2692 = vmatpush1.msra.mxu0 0.0
        %2693 = vmatprep.subr.mxu0 0.0
        %2694 = vmatpush1.msra.mxu0 0.0
        %2695 = vmatprep.subr.mxu0 0.0
        %2696 = vmatpush1.msra.mxu0 0.0
        %2697 = vmatprep.subr.mxu0 0.0
        %2698 = vmatpush1.msra.mxu0 0.0
        %2699 = vmatprep.subr.mxu0 0.0
        %2700 = vmatpush1.msra.mxu0 0.0
        %2701 = vmatprep.subr.mxu0 0.0
        %2702 = vmatpush1.msra.mxu0 0.0
        %2703 = vmatprep.subr.mxu0 0.0
        %2704 = vmatpush1.msra.mxu0 0.0
        %2705 = vmatprep.subr.mxu0 0.0
        %2706 = vmatpush1.msra.mxu0 0.0
        %2707 = vmatprep.subr.mxu0 0.0
        %2708 = vmatpush1.msra.mxu0 0.0
        %2709 = vmatprep.subr.mxu0 0.0
        %2710 = vmatpush1.msra.mxu0 0.0
        %2711 = vmatprep.subr.mxu0 0.0
        %2712 = vmatpush1.msra.mxu0 0.0
        %2713 = vmatprep.subr.mxu0 0.0
        %2714 = vmatpush1.msra.mxu0 0.0
        %2715 = vmatprep.subr.mxu0 0.0
        %2716 = vmatpush1.msra.mxu0 0.0
        %2717 = vmatprep.subr.mxu0 0.0
        %2718 = vmatpush1.msra.mxu0 0.0
        %2719 = vmatprep.subr.mxu0 0.0
        %2720 = vmatpush1.msra.mxu0 0.0
        %2721 = vmatprep.subr.mxu0 0.0
        %2722 = vmatpush1.msra.mxu0 0.0
        %2723 = vmatprep.subr.mxu0 0.0
        %2724 = vmatpush1.msra.mxu0 0.0
        %2725 = vmatprep.mubr.f32.mxu0 0.0
        %2726 = vmatmul.mubr.f32.gmra.mrb[0].mxu0 %v2659
        %v2727 = vpop.f32.mrb[0].mxu0
        %v2728 = vadd.f32 0.0, %v2727
        %v2729 = vpop.f32.mrb[0].mxu0
        %2730 = vdwg.mxu0
        %v2732 = vsel %vm1970, %v2488, 0
        %2734 = vmatprep.subr.mxu0 0.0
        %2735 = vmatpush1.msra.mxu0 %v2315
        %2736 = vmatprep.subr.mxu0 0.0
        %2737 = vmatpush1.msra.mxu0 0.0
        %2738 = vmatprep.subr.mxu0 0.0
        %2739 = vmatpush1.msra.mxu0 0.0
        %2740 = vmatprep.subr.mxu0 0.0
        %2741 = vmatpush1.msra.mxu0 0.0
        %2742 = vmatprep.subr.mxu0 0.0
        %2743 = vmatpush1.msra.mxu0 0.0
        %2744 = vmatprep.subr.mxu0 0.0
        %2745 = vmatpush1.msra.mxu0 0.0
        %2746 = vmatprep.subr.mxu0 0.0
        %2747 = vmatpush1.msra.mxu0 0.0
        %2748 = vmatprep.subr.mxu0 0.0
        %2749 = vmatpush1.msra.mxu0 0.0
        %2750 = vmatprep.subr.mxu0 0.0
        %2751 = vmatpush1.msra.mxu0 0.0
        %2752 = vmatprep.subr.mxu0 0.0
        %2753 = vmatpush1.msra.mxu0 0.0
        %2754 = vmatprep.subr.mxu0 0.0
        %2755 = vmatpush1.msra.mxu0 0.0
        %2756 = vmatprep.subr.mxu0 0.0
        %2757 = vmatpush1.msra.mxu0 0.0
        %2758 = vmatprep.subr.mxu0 0.0
        %2759 = vmatpush1.msra.mxu0 0.0
        %2760 = vmatprep.subr.mxu0 0.0
        %2761 = vmatpush1.msra.mxu0 0.0
        %2762 = vmatprep.subr.mxu0 0.0
        %2763 = vmatpush1.msra.mxu0 0.0
        %2764 = vmatprep.subr.mxu0 0.0
        %2765 = vmatpush1.msra.mxu0 0.0
        %2766 = vmatprep.subr.mxu0 0.0
        %2767 = vmatpush1.msra.mxu0 0.0
        %2768 = vmatprep.subr.mxu0 0.0
        %2769 = vmatpush1.msra.mxu0 0.0
        %2770 = vmatprep.subr.mxu0 0.0
        %2771 = vmatpush1.msra.mxu0 0.0
        %2772 = vmatprep.subr.mxu0 0.0
        %2773 = vmatpush1.msra.mxu0 0.0
        %2774 = vmatprep.subr.mxu0 0.0
        %2775 = vmatpush1.msra.mxu0 0.0
        %2776 = vmatprep.subr.mxu0 0.0
        %2777 = vmatpush1.msra.mxu0 0.0
        %2778 = vmatprep.subr.mxu0 0.0
        %2779 = vmatpush1.msra.mxu0 0.0
        %2780 = vmatprep.subr.mxu0 0.0
        %2781 = vmatpush1.msra.mxu0 0.0
        %2782 = vmatprep.subr.mxu0 0.0
        %2783 = vmatpush1.msra.mxu0 0.0
        %2784 = vmatprep.subr.mxu0 0.0
        %2785 = vmatpush1.msra.mxu0 0.0
        %2786 = vmatprep.subr.mxu0 0.0
        %2787 = vmatpush1.msra.mxu0 0.0
        %2788 = vmatprep.subr.mxu0 0.0
        %2789 = vmatpush1.msra.mxu0 0.0
        %2790 = vmatprep.subr.mxu0 0.0
        %2791 = vmatpush1.msra.mxu0 0.0
        %2792 = vmatprep.subr.mxu0 0.0
        %2793 = vmatpush1.msra.mxu0 0.0
        %2794 = vmatprep.subr.mxu0 0.0
        %2795 = vmatpush1.msra.mxu0 0.0
        %2796 = vmatprep.subr.mxu0 0.0
        %2797 = vmatpush1.msra.mxu0 0.0
        %2798 = vmatprep.mubr.f32.mxu0 0.0
        %2799 = vmatmul.mubr.f32.gmra.mrb[0].mxu0 %v2732
        %v2800 = vpop.f32.mrb[0].mxu0
        %v2801 = vadd.f32 %v2728, %v2800
        %v2802 = vpop.f32.mrb[0].mxu0
        %2803 = vdwg.mxu0
        %2804 = vrot.lane.b32.xlu0 %v2312, 112
        %v2805 = vpop.permute.xlu0 %2804
        %2806 = vrot.lane.b32.xlu0 %v2312, 80
        %v2807 = vpop.permute.xlu0 %2806
        %v2808 = vsel %vm1970, %v2805, 0
        %v2810 = vsel %vm1970, %v2807, 0
        %2812 = vmatprep.subr.mxu0 0.0
        %2813 = vmatpush1.xpose.msra.mxu0 %v2810
        %2814 = vmatprep.subr.mxu0 0.0
        %2815 = vmatpush1.xpose.msra.mxu0 0.0
        %2816 = vmatprep.subr.mxu0 0.0
        %2817 = vmatpush1.xpose.msra.mxu0 0.0
        %2818 = vmatprep.subr.mxu0 0.0
        %2819 = vmatpush1.xpose.msra.mxu0 0.0
        %2820 = vmatprep.subr.mxu0 0.0
        %2821 = vmatpush1.xpose.msra.mxu0 0.0
        %2822 = vmatprep.subr.mxu0 0.0
        %2823 = vmatpush1.xpose.msra.mxu0 0.0
        %2824 = vmatprep.subr.mxu0 0.0
        %2825 = vmatpush1.xpose.msra.mxu0 0.0
        %2826 = vmatprep.subr.mxu0 0.0
        %2827 = vmatpush1.xpose.msra.mxu0 0.0
        %2828 = vmatprep.subr.mxu0 0.0
        %2829 = vmatpush1.xpose.msra.mxu0 0.0
        %2830 = vmatprep.subr.mxu0 0.0
        %2831 = vmatpush1.xpose.msra.mxu0 0.0
        %2832 = vmatprep.subr.mxu0 0.0
        %2833 = vmatpush1.xpose.msra.mxu0 0.0
        %2834 = vmatprep.subr.mxu0 0.0
        %2835 = vmatpush1.xpose.msra.mxu0 0.0
        %2836 = vmatprep.subr.mxu0 0.0
        %2837 = vmatpush1.xpose.msra.mxu0 0.0
        %2838 = vmatprep.subr.mxu0 0.0
        %2839 = vmatpush1.xpose.msra.mxu0 0.0
        %2840 = vmatprep.subr.mxu0 0.0
        %2841 = vmatpush1.xpose.msra.mxu0 0.0
        %2842 = vmatprep.subr.mxu0 0.0
        %2843 = vmatpush1.xpose.msra.mxu0 0.0
        %2844 = vmatprep.subr.mxu0 0.0
        %2845 = vmatpush1.xpose.msra.mxu0 0.0
        %2846 = vmatprep.subr.mxu0 0.0
        %2847 = vmatpush1.xpose.msra.mxu0 0.0
        %2848 = vmatprep.subr.mxu0 0.0
        %2849 = vmatpush1.xpose.msra.mxu0 0.0
        %2850 = vmatprep.subr.mxu0 0.0
        %2851 = vmatpush1.xpose.msra.mxu0 0.0
        %2852 = vmatprep.subr.mxu0 0.0
        %2853 = vmatpush1.xpose.msra.mxu0 0.0
        %2854 = vmatprep.subr.mxu0 0.0
        %2855 = vmatpush1.xpose.msra.mxu0 0.0
        %2856 = vmatprep.subr.mxu0 0.0
        %2857 = vmatpush1.xpose.msra.mxu0 0.0
        %2858 = vmatprep.subr.mxu0 0.0
        %2859 = vmatpush1.xpose.msra.mxu0 0.0
        %2860 = vmatprep.subr.mxu0 0.0
        %2861 = vmatpush1.xpose.msra.mxu0 0.0
        %2862 = vmatprep.subr.mxu0 0.0
        %2863 = vmatpush1.xpose.msra.mxu0 0.0
        %2864 = vmatprep.subr.mxu0 0.0
        %2865 = vmatpush1.xpose.msra.mxu0 0.0
        %2866 = vmatprep.subr.mxu0 0.0
        %2867 = vmatpush1.xpose.msra.mxu0 0.0
        %2868 = vmatprep.subr.mxu0 0.0
        %2869 = vmatpush1.xpose.msra.mxu0 0.0
        %2870 = vmatprep.subr.mxu0 0.0
        %2871 = vmatpush1.xpose.msra.mxu0 0.0
        %2872 = vmatprep.subr.mxu0 0.0
        %2873 = vmatpush1.xpose.msra.mxu0 0.0
        %2874 = vmatprep.subr.mxu0 0.0
        %2875 = vmatpush1.xpose.msra.mxu0 0.0
        %2876 = vmatprep.mubr.f32.mxu0 0.0
        %2877 = vmatmul.mubr.f32.gmra.mrb[0].mxu0 %v2808
        %v2878 = vpop.f32.mrb[0].mxu0
        %v2879 = vadd.f32 0.0, %v2878
        %v2880 = vpop.f32.mrb[0].mxu0
        %2881 = vdwg.mxu0
        %v2882 = vmul.f32 %v2879, 0.35355338
        %v2883 = vadd.f32 %v2882, %v2401
        %v2884 = vsel %vm1970, %v2883, -inf
        %2885 = vmax.xlane.f32.xlu0 %v2884
        %v2886 = vpop.xlane.xlu0 %2885
        %v2887 = vsub.f32 %v2883, %v2886
        %v2888 = vmul.f32 %v2887, 1.442695
        %v2889 = vpow.pop %v2888
        %v2890 = vsel %vm1970, %v2889, 0.0
        %2891 = vadd.xlane.f32.xlu0 %v2890
        %v2892 = vpop.xlane.xlu0 %2891
        %v2893 = vrcp.pop %v2892
        %v2894 = vmul.f32 %v2889, %v2893
        %2895 = vrot.lane.b32.xlu0 %v2312, 48
        %v2896 = vpop.permute.xlu0 %2895
        %v2899 = vsel %vm1970, %v2894, 0
        %2901 = vmatprep.subr.mxu0 0.0
        %2902 = vmatpush1.msra.mxu0 %v2896
        %2903 = vmatprep.subr.mxu0 0.0
        %2904 = vmatpush1.msra.mxu0 0.0
        %2905 = vmatprep.subr.mxu0 0.0
        %2906 = vmatpush1.msra.mxu0 0.0
        %2907 = vmatprep.subr.mxu0 0.0
        %2908 = vmatpush1.msra.mxu0 0.0
        %2909 = vmatprep.subr.mxu0 0.0
        %2910 = vmatpush1.msra.mxu0 0.0
        %2911 = vmatprep.subr.mxu0 0.0
        %2912 = vmatpush1.msra.mxu0 0.0
        %2913 = vmatprep.subr.mxu0 0.0
        %2914 = vmatpush1.msra.mxu0 0.0
        %2915 = vmatprep.subr.mxu0 0.0
        %2916 = vmatpush1.msra.mxu0 0.0
        %2917 = vmatprep.subr.mxu0 0.0
        %2918 = vmatpush1.msra.mxu0 0.0
        %2919 = vmatprep.subr.mxu0 0.0
        %2920 = vmatpush1.msra.mxu0 0.0
        %2921 = vmatprep.subr.mxu0 0.0
        %2922 = vmatpush1.msra.mxu0 0.0
        %2923 = vmatprep.subr.mxu0 0.0
        %2924 = vmatpush1.msra.mxu0 0.0
        %2925 = vmatprep.subr.mxu0 0.0
        %2926 = vmatpush1.msra.mxu0 0.0
        %2927 = vmatprep.subr.mxu0 0.0
        %2928 = vmatpush1.msra.mxu0 0.0
        %2929 = vmatprep.subr.mxu0 0.0
        %2930 = vmatpush1.msra.mxu0 0.0
        %2931 = vmatprep.subr.mxu0 0.0
        %2932 = vmatpush1.msra.mxu0 0.0
        %2933 = vmatprep.subr.mxu0 0.0
        %2934 = vmatpush1.msra.mxu0 0.0
        %2935 = vmatprep.subr.mxu0 0.0
        %2936 = vmatpush1.msra.mxu0 0.0
        %2937 = vmatprep.subr.mxu0 0.0
        %2938 = vmatpush1.msra.mxu0 0.0
        %2939 = vmatprep.subr.mxu0 0.0
        %2940 = vmatpush1.msra.mxu0 0.0
        %2941 = vmatprep.subr.mxu0 0.0
        %2942 = vmatpush1.msra.mxu0 0.0
        %2943 = vmatprep.subr.mxu0 0.0
        %2944 = vmatpush1.msra.mxu0 0.0
        %2945 = vmatprep.subr.mxu0 0.0
        %2946 = vmatpush1.msra.mxu0 0.0
        %2947 = vmatprep.subr.mxu0 0.0
        %2948 = vmatpush1.msra.mxu0 0.0
        %2949 = vmatprep.subr.mxu0 0.0
        %2950 = vmatpush1.msra.mxu0 0.0
        %2951 = vmatprep.subr.mxu0 0.0
        %2952 = vmatpush1.msra.mxu0 0.0
        %2953 = vmatprep.subr.mxu0 0.0
        %2954 = vmatpush1.msra.mxu0 0.0
        %2955 = vmatprep.subr.mxu0 0.0
        %2956 = vmatpush1.msra.mxu0 0.0
        %2957 = vmatprep.subr.mxu0 0.0
        %2958 = vmatpush1.msra.mxu0 0.0
        %2959 = vmatprep.subr.mxu0 0.0
        %2960 = vmatpush1.msra.mxu0 0.0
        %2961 = vmatprep.subr.mxu0 0.0
        %2962 = vmatpush1.msra.mxu0 0.0
        %2963 = vmatprep.subr.mxu0 0.0
        %2964 = vmatpush1.msra.mxu0 0.0
        %2965 = vmatprep.mubr.f32.mxu0 0.0
        %2966 = vmatmul.mubr.f32.gmra.mrb[0].mxu0 %v2899
        %v2967 = vpop.f32.mrb[0].mxu0
        %v2968 = vadd.f32 0.0, %v2967
        %v2969 = vpop.f32.mrb[0].mxu0
        %2970 = vdwg.mxu0
        %v2972 = vsel %vm1970, %v2968, 0
        %2974 = vmatprep.subr.mxu0 0.0
        %2975 = vmatpush1.msra.mxu0 %v2317
        %2976 = vmatprep.subr.mxu0 0.0
        %2977 = vmatpush1.msra.mxu0 0.0
        %2978 = vmatprep.subr.mxu0 0.0
        %2979 = vmatpush1.msra.mxu0 0.0
        %2980 = vmatprep.subr.mxu0 0.0
        %2981 = vmatpush1.msra.mxu0 0.0
        %2982 = vmatprep.subr.mxu0 0.0
        %2983 = vmatpush1.msra.mxu0 0.0
        %2984 = vmatprep.subr.mxu0 0.0
        %2985 = vmatpush1.msra.mxu0 0.0
        %2986 = vmatprep.subr.mxu0 0.0
        %2987 = vmatpush1.msra.mxu0 0.0
        %2988 = vmatprep.subr.mxu0 0.0
        %2989 = vmatpush1.msra.mxu0 0.0
        %2990 = vmatprep.subr.mxu0 0.0
        %2991 = vmatpush1.msra.mxu0 0.0
        %2992 = vmatprep.subr.mxu0 0.0
        %2993 = vmatpush1.msra.mxu0 0.0
        %2994 = vmatprep.subr.mxu0 0.0
        %2995 = vmatpush1.msra.mxu0 0.0
        %2996 = vmatprep.subr.mxu0 0.0
        %2997 = vmatpush1.msra.mxu0 0.0
        %2998 = vmatprep.subr.mxu0 0.0
        %2999 = vmatpush1.msra.mxu0 0.0
        %3000 = vmatprep.subr.mxu0 0.0
        %3001 = vmatpush1.msra.mxu0 0.0
        %3002 = vmatprep.subr.mxu0 0.0
        %3003 = vmatpush1.msra.mxu0 0.0
        %3004 = vmatprep.subr.mxu0 0.0
        %3005 = vmatpush1.msra.mxu0 0.0
        %3006 = vmatprep.subr.mxu0 0.0
        %3007 = vmatpush1.msra.mxu0 0.0
        %3008 = vmatprep.subr.mxu0 0.0
        %3009 = vmatpush1.msra.mxu0 0.0
        %3010 = vmatprep.subr.mxu0 0.0
        %3011 = vmatpush1.msra.mxu0 0.0
        %3012 = vmatprep.subr.mxu0 0.0
        %3013 = vmatpush1.msra.mxu0 0.0
        %3014 = vmatprep.subr.mxu0 0.0
        %3015 = vmatpush1.msra.mxu0 0.0
        %3016 = vmatprep.subr.mxu0 0.0
        %3017 = vmatpush1.msra.mxu0 0.0
        %3018 = vmatprep.subr.mxu0 0.0
        %3019 = vmatpush1.msra.mxu0 0.0
        %3020 = vmatprep.subr.mxu0 0.0
        %3021 = vmatpush1.msra.mxu0 0.0
        %3022 = vmatprep.subr.mxu0 0.0
        %3023 = vmatpush1.msra.mxu0 0.0
        %3024 = vmatprep.subr.mxu0 0.0
        %3025 = vmatpush1.msra.mxu0 0.0
        %3026 = vmatprep.subr.mxu0 0.0
        %3027 = vmatpush1.msra.mxu0 0.0
        %3028 = vmatprep.subr.mxu0 0.0
        %3029 = vmatpush1.msra.mxu0 0.0
        %3030 = vmatprep.subr.mxu0 0.0
        %3031 = vmatpush1.msra.mxu0 0.0
        %3032 = vmatprep.subr.mxu0 0.0
        %3033 = vmatpush1.msra.mxu0 0.0
        %3034 = vmatprep.subr.mxu0 0.0
        %3035 = vmatpush1.msra.mxu0 0.0
        %3036 = vmatprep.subr.mxu0 0.0
        %3037 = vmatpush1.msra.mxu0 0.0
        %3038 = vmatprep.mubr.f32.mxu0 0.0
        %3039 = vmatmul.mubr.f32.gmra.mrb[0].mxu0 %v2972
        %v3040 = vpop.f32.mrb[0].mxu0
        %v3041 = vadd.f32 0.0, %v3040
        %v3042 = vpop.f32.mrb[0].mxu0
        %3043 = vdwg.mxu0
        %v3044 = vadd.f32 %v2801, %v3041
        %3045 = vrot.lane.b32.xlu0 %v2312, 104
        %v3046 = vpop.permute.xlu0 %3045
        %3047 = vrot.lane.b32.xlu0 %v2312, 72
        %v3048 = vpop.permute.xlu0 %3047
        %v3049 = vsel %vm1970, %v3046, 0
        %v3051 = vsel %vm1970, %v3048, 0
        %3053 = vmatprep.subr.mxu0 0.0
        %3054 = vmatpush1.xpose.msra.mxu0 %v3051
        %3055 = vmatprep.subr.mxu0 0.0
        %3056 = vmatpush1.xpose.msra.mxu0 0.0
        %3057 = vmatprep.subr.mxu0 0.0
        %3058 = vmatpush1.xpose.msra.mxu0 0.0
        %3059 = vmatprep.subr.mxu0 0.0
        %3060 = vmatpush1.xpose.msra.mxu0 0.0
        %3061 = vmatprep.subr.mxu0 0.0
        %3062 = vmatpush1.xpose.msra.mxu0 0.0
        %3063 = vmatprep.subr.mxu0 0.0
        %3064 = vmatpush1.xpose.msra.mxu0 0.0
        %3065 = vmatprep.subr.mxu0 0.0
        %3066 = vmatpush1.xpose.msra.mxu0 0.0
        %3067 = vmatprep.subr.mxu0 0.0
        %3068 = vmatpush1.xpose.msra.mxu0 0.0
        %3069 = vmatprep.subr.mxu0 0.0
        %3070 = vmatpush1.xpose.msra.mxu0 0.0
        %3071 = vmatprep.subr.mxu0 0.0
        %3072 = vmatpush1.xpose.msra.mxu0 0.0
        %3073 = vmatprep.subr.mxu0 0.0
        %3074 = vmatpush1.xpose.msra.mxu0 0.0
        %3075 = vmatprep.subr.mxu0 0.0
        %3076 = vmatpush1.xpose.msra.mxu0 0.0
        %3077 = vmatprep.subr.mxu0 0.0
        %3078 = vmatpush1.xpose.msra.mxu0 0.0
        %3079 = vmatprep.subr.mxu0 0.0
        %3080 = vmatpush1.xpose.msra.mxu0 0.0
        %3081 = vmatprep.subr.mxu0 0.0
        %3082 = vmatpush1.xpose.msra.mxu0 0.0
        %3083 = vmatprep.subr.mxu0 0.0
        %3084 = vmatpush1.xpose.msra.mxu0 0.0
        %3085 = vmatprep.subr.mxu0 0.0
        %3086 = vmatpush1.xpose.msra.mxu0 0.0
        %3087 = vmatprep.subr.mxu0 0.0
        %3088 = vmatpush1.xpose.msra.mxu0 0.0
        %3089 = vmatprep.subr.mxu0 0.0
        %3090 = vmatpush1.xpose.msra.mxu0 0.0
        %3091 = vmatprep.subr.mxu0 0.0
        %3092 = vmatpush1.xpose.msra.mxu0 0.0
        %3093 = vmatprep.subr.mxu0 0.0
        %3094 = vmatpush1.xpose.msra.mxu0 0.0
        %3095 = vmatprep.subr.mxu0 0.0
        %3096 = vmatpush1.xpose.msra.mxu0 0.0
        %3097 = vmatprep.subr.mxu0 0.0
        %3098 = vmatpush1.xpose.msra.mxu0 0.0
        %3099 = vmatprep.subr.mxu0 0.0
        %3100 = vmatpush1.xpose.msra.mxu0 0.0
        %3101 = vmatprep.subr.mxu0 0.0
        %3102 = vmatpush1.xpose.msra.mxu0 0.0
        %3103 = vmatprep.subr.mxu0 0.0
        %3104 = vmatpush1.xpose.msra.mxu0 0.0
        %3105 = vmatprep.subr.mxu0 0.0
        %3106 = vmatpush1.xpose.msra.mxu0 0.0
        %3107 = vmatprep.subr.mxu0 0.0
        %3108 = vmatpush1.xpose.msra.mxu0 0.0
        %3109 = vmatprep.subr.mxu0 0.0
        %3110 = vmatpush1.xpose.msra.mxu0 0.0
        %3111 = vmatprep.subr.mxu0 0.0
        %3112 = vmatpush1.xpose.msra.mxu0 0.0
        %3113 = vmatprep.subr.mxu0 0.0
        %3114 = vmatpush1.xpose.msra.mxu0 0.0
        %3115 = vmatprep.subr.mxu0 0.0
        %3116 = vmatpush1.xpose.msra.mxu0 0.0
        %3117 = vmatprep.mubr.f32.mxu0 0.0
        %3118 = vmatmul.mubr.f32.gmra.mrb[0].mxu0 %v3049
        %v3119 = vpop.f32.mrb[0].mxu0
        %v3120 = vadd.f32 0.0, %v3119
        %v3121 = vpop.f32.mrb[0].mxu0
        %3122 = vdwg.mxu0
        %v3123 = vmul.f32 %v3120, 0.35355338
        %v3124 = vadd.f32 %v3123, %v2401
        %v3125 = vsel %vm1970, %v3124, -inf
        %3126 = vmax.xlane.f32.xlu0 %v3125
        %v3127 = vpop.xlane.xlu0 %3126
        %v3128 = vsub.f32 %v3124, %v3127
        %v3129 = vmul.f32 %v3128, 1.442695
        %v3130 = vpow.pop %v3129
        %v3131 = vsel %vm1970, %v3130, 0.0
        %3132 = vadd.xlane.f32.xlu0 %v3131
        %v3133 = vpop.xlane.xlu0 %3132
        %v3134 = vrcp.pop %v3133
        %v3135 = vmul.f32 %v3130, %v3134
        %3136 = vrot.lane.b32.xlu0 %v2312, 40
        %v3137 = vpop.permute.xlu0 %3136
        %v3140 = vsel %vm1970, %v3135, 0
        %3142 = vmatprep.subr.mxu0 0.0
        %3143 = vmatpush1.msra.mxu0 %v3137
        %3144 = vmatprep.subr.mxu0 0.0
        %3145 = vmatpush1.msra.mxu0 0.0
        %3146 = vmatprep.subr.mxu0 0.0
        %3147 = vmatpush1.msra.mxu0 0.0
        %3148 = vmatprep.subr.mxu0 0.0
        %3149 = vmatpush1.msra.mxu0 0.0
        %3150 = vmatprep.subr.mxu0 0.0
        %3151 = vmatpush1.msra.mxu0 0.0
        %3152 = vmatprep.subr.mxu0 0.0
        %3153 = vmatpush1.msra.mxu0 0.0
        %3154 = vmatprep.subr.mxu0 0.0
        %3155 = vmatpush1.msra.mxu0 0.0
        %3156 = vmatprep.subr.mxu0 0.0
        %3157 = vmatpush1.msra.mxu0 0.0
        %3158 = vmatprep.subr.mxu0 0.0
        %3159 = vmatpush1.msra.mxu0 0.0
        %3160 = vmatprep.subr.mxu0 0.0
        %3161 = vmatpush1.msra.mxu0 0.0
        %3162 = vmatprep.subr.mxu0 0.0
        %3163 = vmatpush1.msra.mxu0 0.0
        %3164 = vmatprep.subr.mxu0 0.0
        %3165 = vmatpush1.msra.mxu0 0.0
        %3166 = vmatprep.subr.mxu0 0.0
        %3167 = vmatpush1.msra.mxu0 0.0
        %3168 = vmatprep.subr.mxu0 0.0
        %3169 = vmatpush1.msra.mxu0 0.0
        %3170 = vmatprep.subr.mxu0 0.0
        %3171 = vmatpush1.msra.mxu0 0.0
        %3172 = vmatprep.subr.mxu0 0.0
        %3173 = vmatpush1.msra.mxu0 0.0
        %3174 = vmatprep.subr.mxu0 0.0
        %3175 = vmatpush1.msra.mxu0 0.0
        %3176 = vmatprep.subr.mxu0 0.0
        %3177 = vmatpush1.msra.mxu0 0.0
        %3178 = vmatprep.subr.mxu0 0.0
        %3179 = vmatpush1.msra.mxu0 0.0
        %3180 = vmatprep.subr.mxu0 0.0
        %3181 = vmatpush1.msra.mxu0 0.0
        %3182 = vmatprep.subr.mxu0 0.0
        %3183 = vmatpush1.msra.mxu0 0.0
        %3184 = vmatprep.subr.mxu0 0.0
        %3185 = vmatpush1.msra.mxu0 0.0
        %3186 = vmatprep.subr.mxu0 0.0
        %3187 = vmatpush1.msra.mxu0 0.0
        %3188 = vmatprep.subr.mxu0 0.0
        %3189 = vmatpush1.msra.mxu0 0.0
        %3190 = vmatprep.subr.mxu0 0.0
        %3191 = vmatpush1.msra.mxu0 0.0
        %3192 = vmatprep.subr.mxu0 0.0
        %3193 = vmatpush1.msra.mxu0 0.0
        %3194 = vmatprep.subr.mxu0 0.0
        %3195 = vmatpush1.msra.mxu0 0.0
        %3196 = vmatprep.subr.mxu0 0.0
        %3197 = vmatpush1.msra.mxu0 0.0
        %3198 = vmatprep.subr.mxu0 0.0
        %3199 = vmatpush1.msra.mxu0 0.0
        %3200 = vmatprep.subr.mxu0 0.0
        %3201 = vmatpush1.msra.mxu0 0.0
        %3202 = vmatprep.subr.mxu0 0.0
        %3203 = vmatpush1.msra.mxu0 0.0
        %3204 = vmatprep.subr.mxu0 0.0
        %3205 = vmatpush1.msra.mxu0 0.0
        %3206 = vmatprep.mubr.f32.mxu0 0.0
        %3207 = vmatmul.mubr.f32.gmra.mrb[0].mxu0 %v3140
        %v3208 = vpop.f32.mrb[0].mxu0
        %v3209 = vadd.f32 0.0, %v3208
        %v3210 = vpop.f32.mrb[0].mxu0
        %3211 = vdwg.mxu0
        %v3213 = vsel %vm1970, %v3209, 0
        %3215 = vmatprep.subr.mxu0 0.0
        %3216 = vmatpush1.msra.mxu0 %v2318
        %3217 = vmatprep.subr.mxu0 0.0
        %3218 = vmatpush1.msra.mxu0 0.0
        %3219 = vmatprep.subr.mxu0 0.0
        %3220 = vmatpush1.msra.mxu0 0.0
        %3221 = vmatprep.subr.mxu0 0.0
        %3222 = vmatpush1.msra.mxu0 0.0
        %3223 = vmatprep.subr.mxu0 0.0
        %3224 = vmatpush1.msra.mxu0 0.0
        %3225 = vmatprep.subr.mxu0 0.0
        %3226 = vmatpush1.msra.mxu0 0.0
        %3227 = vmatprep.subr.mxu0 0.0
        %3228 = vmatpush1.msra.mxu0 0.0
        %3229 = vmatprep.subr.mxu0 0.0
        %3230 = vmatpush1.msra.mxu0 0.0
        %3231 = vmatprep.subr.mxu0 0.0
        %3232 = vmatpush1.msra.mxu0 0.0
        %3233 = vmatprep.subr.mxu0 0.0
        %3234 = vmatpush1.msra.mxu0 0.0
        %3235 = vmatprep.subr.mxu0 0.0
        %3236 = vmatpush1.msra.mxu0 0.0
        %3237 = vmatprep.subr.mxu0 0.0
        %3238 = vmatpush1.msra.mxu0 0.0
        %3239 = vmatprep.subr.mxu0 0.0
        %3240 = vmatpush1.msra.mxu0 0.0
        %3241 = vmatprep.subr.mxu0 0.0
        %3242 = vmatpush1.msra.mxu0 0.0
        %3243 = vmatprep.subr.mxu0 0.0
        %3244 = vmatpush1.msra.mxu0 0.0
        %3245 = vmatprep.subr.mxu0 0.0
        %3246 = vmatpush1.msra.mxu0 0.0
        %3247 = vmatprep.subr.mxu0 0.0
        %3248 = vmatpush1.msra.mxu0 0.0
        %3249 = vmatprep.subr.mxu0 0.0
        %3250 = vmatpush1.msra.mxu0 0.0
        %3251 = vmatprep.subr.mxu0 0.0
        %3252 = vmatpush1.msra.mxu0 0.0
        %3253 = vmatprep.subr.mxu0 0.0
        %3254 = vmatpush1.msra.mxu0 0.0
        %3255 = vmatprep.subr.mxu0 0.0
        %3256 = vmatpush1.msra.mxu0 0.0
        %3257 = vmatprep.subr.mxu0 0.0
        %3258 = vmatpush1.msra.mxu0 0.0
        %3259 = vmatprep.subr.mxu0 0.0
        %3260 = vmatpush1.msra.mxu0 0.0
        %3261 = vmatprep.subr.mxu0 0.0
        %3262 = vmatpush1.msra.mxu0 0.0
        %3263 = vmatprep.subr.mxu0 0.0
        %3264 = vmatpush1.msra.mxu0 0.0
        %3265 = vmatprep.subr.mxu0 0.0
        %3266 = vmatpush1.msra.mxu0 0.0
        %3267 = vmatprep.subr.mxu0 0.0
        %3268 = vmatpush1.msra.mxu0 0.0
        %3269 = vmatprep.subr.mxu0 0.0
        %3270 = vmatpush1.msra.mxu0 0.0
        %3271 = vmatprep.subr.mxu0 0.0
        %3272 = vmatpush1.msra.mxu0 0.0
        %3273 = vmatprep.subr.mxu0 0.0
        %3274 = vmatpush1.msra.mxu0 0.0
        %3275 = vmatprep.subr.mxu0 0.0
        %3276 = vmatpush1.msra.mxu0 0.0
        %3277 = vmatprep.subr.mxu0 0.0
        %3278 = vmatpush1.msra.mxu0 0.0
        %3279 = vmatprep.mubr.f32.mxu0 0.0
        %3280 = vmatmul.mubr.f32.gmra.mrb[0].mxu0 %v3213
        %v3281 = vpop.f32.mrb[0].mxu0
        %v3282 = vadd.f32 0.0, %v3281
        %v3283 = vpop.f32.mrb[0].mxu0
        %3284 = vdwg.mxu0
        %v3285 = vadd.f32 %v3044, %v3282
        %v3286 = vld [vmem:[%s27] sm:$0x1]
        %v3288 = vlaneseq
        %v3289 = vshrl.u32 %v3288, 7
        %v3290 = vsub.s32 0, %v3289
        %v3291 = vrot.slane %v3286, %v3290
        %v3293 = vadd.f32 %v3285, %v3291
        %v3294 = vadd.f32 %v3293, %v2230
        %v3295 = vld [vmem:[%s29] sm:$0x1]
        %v3296 = vld [vmem:[%s31] sm:$0x1]
        %v3297 = vsel %vm1939, %v3294, 0.0
        %3298 = vadd.xlane.f32.xlu0 %v3297
        %v3299 = vpop.xlane.xlu0 %3298
        %v3300 = vmul.f32 %v3299, %v1943
        %v3301 = vsub.f32 %v3294, %v3300
        %v3302 = vmul.f32 %v3301, %v3301
        %v3303 = vsel %vm1939, %v3302, 0.0
        %3304 = vadd.xlane.f32.xlu0 %v3303
        %v3305 = vpop.xlane.xlu0 %3304
        %v3306 = vmul.f32 %v3305, %v1943
        %v3307 = vadd.f32 %v3306, 1e-12
        %v3308 = vrsqrt.pop %v3307
        %v3309 = vmul.f32 %v3301, %v3308
        %v3311 = vlaneseq
        %v3312 = vshrl.u32 %v3311, 7
        %v3313 = vsub.s32 0, %v3312
        %v3314 = vrot.slane %v3295, %v3313
        %v3316 = vmul.f32 %v3309, %v3314
        %v3318 = vlaneseq
        %v3319 = vshrl.u32 %v3318, 7
        %v3320 = vsub.s32 0, %v3319
        %v3321 = vrot.slane %v3296, %v3320
        %v3323 = vadd.f32 %v3316, %v3321
        %v3324 = vld [vmem:[%s33] sm:$0xff]
        %v3325 = vld [vmem:[%s33 + $0x8] sm:$0xff]
        %v3326 = vld [vmem:[%s33 + $0x10] sm:$0xff]
        %v3327 = vld [vmem:[%s33 + $0x18] sm:$0xff]
        %v3328 = vld [vmem:[%s35] sm:$0x1]
        %v3330 = vlaneseq
        %v3331 = vshrl.u32 %v3330, 7
        %v3332 = vsub.s32 0, %v3331
        %v3333 = vrot.slane %v3328, %v3332
        %v3336 = vsel %vm1939, %v3323, 0
        %3338 = vmatprep.subr.mxu0 0.0
        %3339 = vmatpush1.msra.mxu0 %v3324
        %3340 = vmatprep.subr.mxu0 0.0
        %3341 = vmatpush1.msra.mxu0 %v3325
        %3342 = vmatprep.subr.mxu0 0.0
        %3343 = vmatpush1.msra.mxu0 %v3326
        %3344 = vmatprep.subr.mxu0 0.0
        %3345 = vmatpush1.msra.mxu0 %v3327
        %3346 = vmatprep.subr.mxu0 0.0
        %3347 = vmatpush1.msra.mxu0 0.0
        %3348 = vmatprep.subr.mxu0 0.0
        %3349 = vmatpush1.msra.mxu0 0.0
        %3350 = vmatprep.subr.mxu0 0.0
        %3351 = vmatpush1.msra.mxu0 0.0
        %3352 = vmatprep.subr.mxu0 0.0
        %3353 = vmatpush1.msra.mxu0 0.0
        %3354 = vmatprep.subr.mxu0 0.0
        %3355 = vmatpush1.msra.mxu0 0.0
        %3356 = vmatprep.subr.mxu0 0.0
        %3357 = vmatpush1.msra.mxu0 0.0
        %3358 = vmatprep.subr.mxu0 0.0
        %3359 = vmatpush1.msra.mxu0 0.0
        %3360 = vmatprep.subr.mxu0 0.0
        %3361 = vmatpush1.msra.mxu0 0.0
        %3362 = vmatprep.subr.mxu0 0.0
        %3363 = vmatpush1.msra.mxu0 0.0
        %3364 = vmatprep.subr.mxu0 0.0
        %3365 = vmatpush1.msra.mxu0 0.0
        %3366 = vmatprep.subr.mxu0 0.0
        %3367 = vmatpush1.msra.mxu0 0.0
        %3368 = vmatprep.subr.mxu0 0.0
        %3369 = vmatpush1.msra.mxu0 0.0
        %3370 = vmatprep.subr.mxu0 0.0
        %3371 = vmatpush1.msra.mxu0 0.0
        %3372 = vmatprep.subr.mxu0 0.0
        %3373 = vmatpush1.msra.mxu0 0.0
        %3374 = vmatprep.subr.mxu0 0.0
        %3375 = vmatpush1.msra.mxu0 0.0
        %3376 = vmatprep.subr.mxu0 0.0
        %3377 = vmatpush1.msra.mxu0 0.0
        %3378 = vmatprep.subr.mxu0 0.0
        %3379 = vmatpush1.msra.mxu0 0.0
        %3380 = vmatprep.subr.mxu0 0.0
        %3381 = vmatpush1.msra.mxu0 0.0
        %3382 = vmatprep.subr.mxu0 0.0
        %3383 = vmatpush1.msra.mxu0 0.0
        %3384 = vmatprep.subr.mxu0 0.0
        %3385 = vmatpush1.msra.mxu0 0.0
        %3386 = vmatprep.subr.mxu0 0.0
        %3387 = vmatpush1.msra.mxu0 0.0
        %3388 = vmatprep.subr.mxu0 0.0
        %3389 = vmatpush1.msra.mxu0 0.0
        %3390 = vmatprep.subr.mxu0 0.0
        %3391 = vmatpush1.msra.mxu0 0.0
        %3392 = vmatprep.subr.mxu0 0.0
        %3393 = vmatpush1.msra.mxu0 0.0
        %3394 = vmatprep.subr.mxu0 0.0
        %3395 = vmatpush1.msra.mxu0 0.0
        %3396 = vmatprep.subr.mxu0 0.0
        %3397 = vmatpush1.msra.mxu0 0.0
        %3398 = vmatprep.subr.mxu0 0.0
        %3399 = vmatpush1.msra.mxu0 0.0
        %3400 = vmatprep.subr.mxu0 0.0
        %3401 = vmatpush1.msra.mxu0 0.0
        %3402 = vmatprep.mubr.f32.mxu0 0.0
        %3403 = vmatmul.mubr.f32.gmra.mrb[0].mxu0 %v3336
        %v3404 = vpop.f32.mrb[0].mxu0
        %v3405 = vadd.f32 %v3333, %v3404
        %v3406 = vpop.f32.mrb[0].mxu0
        %3407 = vdwg.mxu0
        %v3408 = vmul.f32 %v3405, 0.5
        %v3409 = vmul.f32 %v3405, 0.70710677
        %v3410 = vand.u32 2147483647, %v3409
        %v3411 = vmul.f32 %v3410, 0.3275911
        %v3412 = vadd.f32 %v3411, 1.0
        %v3413 = vrcp.pop %v3412
        %v3414 = vmul.f32 1.0, %v3413
        %v3415 = vmul.f32 %v3414, 1.0614054
        %v3416 = vadd.f32 %v3415, -1.4531521
        %v3417 = vmul.f32 %v3414, %v3416
        %v3418 = vadd.f32 %v3417, 1.4214138
        %v3419 = vmul.f32 %v3414, %v3418
        %v3420 = vadd.f32 %v3419, -0.28449672
        %v3421 = vmul.f32 %v3414, %v3420
        %v3422 = vadd.f32 %v3421, 0.2548296
        %v3423 = vmul.f32 %v3414, %v3422
        %v3424 = vsub.f32 0.0, %v3410
        %v3425 = vmul.f32 %v3424, %v3410
        %v3426 = vmul.f32 %v3425, 1.442695
        %v3427 = vpow.pop %v3426
        %v3428 = vmul.f32 %v3423, %v3427
        %v3429 = vsub.f32 1.0, %v3428
        %vm3430 = vcmp.ge.f32.partialorder %v3409, 0.0
        %v3431 = vsub.f32 0.0, %v3429
        %v3432 = vsel %vm3430, %v3429, %v3431
        %v3433 = vadd.f32 %v3432, 1.0
        %v3434 = vmul.f32 %v3408, %v3433
        %v3435 = vld [vmem:[%s37] sm:$0xff]
        %v3436 = vld [vmem:[%s37 + $0x8] sm:$0xff]
        %v3437 = vld [vmem:[%s37 + $0x10] sm:$0xff]
        %v3438 = vld [vmem:[%s37 + $0x18] sm:$0xff]
        %v3439 = vld [vmem:[%s37 + $0x20] sm:$0xff]
        %v3440 = vld [vmem:[%s37 + $0x28] sm:$0xff]
        %v3441 = vld [vmem:[%s37 + $0x30] sm:$0xff]
        %v3442 = vld [vmem:[%s37 + $0x38] sm:$0xff]
        %v3443 = vld [vmem:[%s39] sm:$0x1]
        %v3445 = vlaneseq
        %v3446 = vshrl.u32 %v3445, 7
        %v3447 = vsub.s32 0, %v3446
        %v3448 = vrot.slane %v3443, %v3447
        %vm3450 = vcmask 523264
        %v3452 = vsel %vm3450, %v3434, 0
        %3454 = vmatprep.subr.mxu0 0.0
        %3455 = vmatpush1.msra.mxu0 %v3435
        %3456 = vmatprep.subr.mxu0 0.0
        %3457 = vmatpush1.msra.mxu0 %v3436
        %3458 = vmatprep.subr.mxu0 0.0
        %3459 = vmatpush1.msra.mxu0 %v3437
        %3460 = vmatprep.subr.mxu0 0.0
        %3461 = vmatpush1.msra.mxu0 %v3438
        %3462 = vmatprep.subr.mxu0 0.0
        %3463 = vmatpush1.msra.mxu0 %v3439
        %3464 = vmatprep.subr.mxu0 0.0
        %3465 = vmatpush1.msra.mxu0 %v3440
        %3466 = vmatprep.subr.mxu0 0.0
        %3467 = vmatpush1.msra.mxu0 %v3441
        %3468 = vmatprep.subr.mxu0 0.0
        %3469 = vmatpush1.msra.mxu0 %v3442
        %3470 = vmatprep.subr.mxu0 0.0
        %3471 = vmatpush1.msra.mxu0 0.0
        %3472 = vmatprep.subr.mxu0 0.0
        %3473 = vmatpush1.msra.mxu0 0.0
        %3474 = vmatprep.subr.mxu0 0.0
        %3475 = vmatpush1.msra.mxu0 0.0
        %3476 = vmatprep.subr.mxu0 0.0
        %3477 = vmatpush1.msra.mxu0 0.0
        %3478 = vmatprep.subr.mxu0 0.0
        %3479 = vmatpush1.msra.mxu0 0.0
        %3480 = vmatprep.subr.mxu0 0.0
        %3481 = vmatpush1.msra.mxu0 0.0
        %3482 = vmatprep.subr.mxu0 0.0
        %3483 = vmatpush1.msra.mxu0 0.0
        %3484 = vmatprep.subr.mxu0 0.0
        %3485 = vmatpush1.msra.mxu0 0.0
        %3486 = vmatprep.subr.mxu0 0.0
        %3487 = vmatpush1.msra.mxu0 0.0
        %3488 = vmatprep.subr.mxu0 0.0
        %3489 = vmatpush1.msra.mxu0 0.0
        %3490 = vmatprep.subr.mxu0 0.0
        %3491 = vmatpush1.msra.mxu0 0.0
        %3492 = vmatprep.subr.mxu0 0.0
        %3493 = vmatpush1.msra.mxu0 0.0
        %3494 = vmatprep.subr.mxu0 0.0
        %3495 = vmatpush1.msra.mxu0 0.0
        %3496 = vmatprep.subr.mxu0 0.0
        %3497 = vmatpush1.msra.mxu0 0.0
        %3498 = vmatprep.subr.mxu0 0.0
        %3499 = vmatpush1.msra.mxu0 0.0
        %3500 = vmatprep.subr.mxu0 0.0
        %3501 = vmatpush1.msra.mxu0 0.0
        %3502 = vmatprep.subr.mxu0 0.0
        %3503 = vmatpush1.msra.mxu0 0.0
        %3504 = vmatprep.subr.mxu0 0.0
        %3505 = vmatpush1.msra.mxu0 0.0
        %3506 = vmatprep.subr.mxu0 0.0
        %3507 = vmatpush1.msra.mxu0 0.0
        %3508 = vmatprep.subr.mxu0 0.0
        %3509 = vmatpush1.msra.mxu0 0.0
        %3510 = vmatprep.subr.mxu0 0.0
        %3511 = vmatpush1.msra.mxu0 0.0
        %3512 = vmatprep.subr.mxu0 0.0
        %3513 = vmatpush1.msra.mxu0 0.0
        %3514 = vmatprep.subr.mxu0 0.0
        %3515 = vmatpush1.msra.mxu0 0.0
        %3516 = vmatprep.subr.mxu0 0.0
        %3517 = vmatpush1.msra.mxu0 0.0
        %3518 = vmatprep.mubr.f32.mxu0 0.0
        %3519 = vmatmul.mubr.f32.gmra.mrb[0].mxu0 %v3452
        %v3520 = vpop.f32.mrb[0].mxu0
        %v3521 = vadd.f32 %v3448, %v3520
        %v3522 = vpop.f32.mrb[0].mxu0
        %3523 = vdwg.mxu0
        %v3524 = vadd.f32 %v3521, %v3323
        %v3525 = vld [vmem:[%s41] sm:$0x1]
        %v3526 = vld [vmem:[%s43] sm:$0x1]
        %v3527 = vsel %vm1939, %v3524, 0.0
        %3528 = vadd.xlane.f32.xlu0 %v3527
        %v3529 = vpop.xlane.xlu0 %3528
        %v3530 = vmul.f32 %v3529, %v1943
        %v3531 = vsub.f32 %v3524, %v3530
        %v3532 = vmul.f32 %v3531, %v3531
        %v3533 = vsel %vm1939, %v3532, 0.0
        %3534 = vadd.xlane.f32.xlu0 %v3533
        %v3535 = vpop.xlane.xlu0 %3534
        %v3536 = vmul.f32 %v3535, %v1943
        %v3537 = vadd.f32 %v3536, 1e-12
        %v3538 = vrsqrt.pop %v3537
        %v3539 = vmul.f32 %v3531, %v3538
        %v3541 = vlaneseq
        %v3542 = vshrl.u32 %v3541, 7
        %v3543 = vsub.s32 0, %v3542
        %v3544 = vrot.slane %v3525, %v3543
        %v3546 = vmul.f32 %v3539, %v3544
        %v3548 = vlaneseq
        %v3549 = vshrl.u32 %v3548, 7
        %v3550 = vsub.s32 0, %v3549
        %v3551 = vrot.slane %v3526, %v3550
        %v3553 = vadd.f32 %v3546, %v3551
        %v3554 = vld [vmem:[%s45] sm:$0x3]
        %v3556 = vrot.slane %v3554, 1
        %v3557 = vsel %vm1970, %v3556, 0
        %3559 = vmatprep.subr.mxu0 0.0
        %3560 = vmatpush1.msra.mxu0 %v3553
        %3561 = vmatprep.subr.mxu0 0.0
        %3562 = vmatpush1.msra.mxu0 0.0
        %3563 = vmatprep.subr.mxu0 0.0
        %3564 = vmatpush1.msra.mxu0 0.0
        %3565 = vmatprep.subr.mxu0 0.0
        %3566 = vmatpush1.msra.mxu0 0.0
        %3567 = vmatprep.subr.mxu0 0.0
        %3568 = vmatpush1.msra.mxu0 0.0
        %3569 = vmatprep.subr.mxu0 0.0
        %3570 = vmatpush1.msra.mxu0 0.0
        %3571 = vmatprep.subr.mxu0 0.0
        %3572 = vmatpush1.msra.mxu0 0.0
        %3573 = vmatprep.subr.mxu0 0.0
        %3574 = vmatpush1.msra.mxu0 0.0
        %3575 = vmatprep.subr.mxu0 0.0
        %3576 = vmatpush1.msra.mxu0 0.0
        %3577 = vmatprep.subr.mxu0 0.0
        %3578 = vmatpush1.msra.mxu0 0.0
        %3579 = vmatprep.subr.mxu0 0.0
        %3580 = vmatpush1.msra.mxu0 0.0
        %3581 = vmatprep.subr.mxu0 0.0
        %3582 = vmatpush1.msra.mxu0 0.0
        %3583 = vmatprep.subr.mxu0 0.0
        %3584 = vmatpush1.msra.mxu0 0.0
        %3585 = vmatprep.subr.mxu0 0.0
        %3586 = vmatpush1.msra.mxu0 0.0
        %3587 = vmatprep.subr.mxu0 0.0
        %3588 = vmatpush1.msra.mxu0 0.0
        %3589 = vmatprep.subr.mxu0 0.0
        %3590 = vmatpush1.msra.mxu0 0.0
        %3591 = vmatprep.subr.mxu0 0.0
        %3592 = vmatpush1.msra.mxu0 0.0
        %3593 = vmatprep.subr.mxu0 0.0
        %3594 = vmatpush1.msra.mxu0 0.0
        %3595 = vmatprep.subr.mxu0 0.0
        %3596 = vmatpush1.msra.mxu0 0.0
        %3597 = vmatprep.subr.mxu0 0.0
        %3598 = vmatpush1.msra.mxu0 0.0
        %3599 = vmatprep.subr.mxu0 0.0
        %3600 = vmatpush1.msra.mxu0 0.0
        %3601 = vmatprep.subr.mxu0 0.0
        %3602 = vmatpush1.msra.mxu0 0.0
        %3603 = vmatprep.subr.mxu0 0.0
        %3604 = vmatpush1.msra.mxu0 0.0
        %3605 = vmatprep.subr.mxu0 0.0
        %3606 = vmatpush1.msra.mxu0 0.0
        %3607 = vmatprep.subr.mxu0 0.0
        %3608 = vmatpush1.msra.mxu0 0.0
        %3609 = vmatprep.subr.mxu0 0.0
        %3610 = vmatpush1.msra.mxu0 0.0
        %3611 = vmatprep.subr.mxu0 0.0
        %3612 = vmatpush1.msra.mxu0 0.0
        %3613 = vmatprep.subr.mxu0 0.0
        %3614 = vmatpush1.msra.mxu0 0.0
        %3615 = vmatprep.subr.mxu0 0.0
        %3616 = vmatpush1.msra.mxu0 0.0
        %3617 = vmatprep.subr.mxu0 0.0
        %3618 = vmatpush1.msra.mxu0 0.0
        %3619 = vmatprep.subr.mxu0 0.0
        %3620 = vmatpush1.msra.mxu0 0.0
        %3621 = vmatprep.subr.mxu0 0.0
        %3622 = vmatpush1.msra.mxu0 0.0
        %3623 = vmatprep.mubr.f32.mxu0 0.0
        %3624 = vmatmul.mubr.f32.gmra.mrb[0].mxu0 %v3557
        %v3625 = vpop.f32.mrb[0].mxu0
        %v3626 = vadd.f32 0.0, %v3625
        %v3627 = vpop.f32.mrb[0].mxu0
        %3628 = vdwg.mxu0
        %v3629 = vsel %vm1970, %v3554, 0
        %3631 = vmatprep.subr.mxu0 0.0
        %3632 = vmatpush1.msra.mxu0 %v1967
        %3633 = vmatprep.subr.mxu0 0.0
        %3634 = vmatpush1.msra.mxu0 0.0
        %3635 = vmatprep.subr.mxu0 0.0
        %3636 = vmatpush1.msra.mxu0 0.0
        %3637 = vmatprep.subr.mxu0 0.0
        %3638 = vmatpush1.msra.mxu0 0.0
        %3639 = vmatprep.subr.mxu0 0.0
        %3640 = vmatpush1.msra.mxu0 0.0
        %3641 = vmatprep.subr.mxu0 0.0
        %3642 = vmatpush1.msra.mxu0 0.0
        %3643 = vmatprep.subr.mxu0 0.0
        %3644 = vmatpush1.msra.mxu0 0.0
        %3645 = vmatprep.subr.mxu0 0.0
        %3646 = vmatpush1.msra.mxu0 0.0
        %3647 = vmatprep.subr.mxu0 0.0
        %3648 = vmatpush1.msra.mxu0 0.0
        %3649 = vmatprep.subr.mxu0 0.0
        %3650 = vmatpush1.msra.mxu0 0.0
        %3651 = vmatprep.subr.mxu0 0.0
        %3652 = vmatpush1.msra.mxu0 0.0
        %3653 = vmatprep.subr.mxu0 0.0
        %3654 = vmatpush1.msra.mxu0 0.0
        %3655 = vmatprep.subr.mxu0 0.0
        %3656 = vmatpush1.msra.mxu0 0.0
        %3657 = vmatprep.subr.mxu0 0.0
        %3658 = vmatpush1.msra.mxu0 0.0
        %3659 = vmatprep.subr.mxu0 0.0
        %3660 = vmatpush1.msra.mxu0 0.0
        %3661 = vmatprep.subr.mxu0 0.0
        %3662 = vmatpush1.msra.mxu0 0.0
        %3663 = vmatprep.subr.mxu0 0.0
        %3664 = vmatpush1.msra.mxu0 0.0
        %3665 = vmatprep.subr.mxu0 0.0
        %3666 = vmatpush1.msra.mxu0 0.0
        %3667 = vmatprep.subr.mxu0 0.0
        %3668 = vmatpush1.msra.mxu0 0.0
        %3669 = vmatprep.subr.mxu0 0.0
        %3670 = vmatpush1.msra.mxu0 0.0
        %3671 = vmatprep.subr.mxu0 0.0
        %3672 = vmatpush1.msra.mxu0 0.0
        %3673 = vmatprep.subr.mxu0 0.0
        %3674 = vmatpush1.msra.mxu0 0.0
        %3675 = vmatprep.subr.mxu0 0.0
        %3676 = vmatpush1.msra.mxu0 0.0
        %3677 = vmatprep.subr.mxu0 0.0
        %3678 = vmatpush1.msra.mxu0 0.0
        %3679 = vmatprep.subr.mxu0 0.0
        %3680 = vmatpush1.msra.mxu0 0.0
        %3681 = vmatprep.subr.mxu0 0.0
        %3682 = vmatpush1.msra.mxu0 0.0
        %3683 = vmatprep.subr.mxu0 0.0
        %3684 = vmatpush1.msra.mxu0 0.0
        %3685 = vmatprep.subr.mxu0 0.0
        %3686 = vmatpush1.msra.mxu0 0.0
        %3687 = vmatprep.subr.mxu0 0.0
        %3688 = vmatpush1.msra.mxu0 0.0
        %3689 = vmatprep.subr.mxu0 0.0
        %3690 = vmatpush1.msra.mxu0 0.0
        %3691 = vmatprep.subr.mxu0 0.0
        %3692 = vmatpush1.msra.mxu0 0.0
        %3693 = vmatprep.subr.mxu0 0.0
        %3694 = vmatpush1.msra.mxu0 0.0
        %3695 = vmatprep.mubr.f32.mxu0 0.0
        %3696 = vmatmul.mubr.f32.gmra.mrb[0].mxu0 %v3629
        %v3697 = vpop.f32.mrb[0].mxu0
        %v3698 = vadd.f32 %v3626, %v3697
        %v3699 = vpop.f32.mrb[0].mxu0
        %3700 = vdwg.mxu0
        %v3701 = vld [vmem:[%s47] sm:$0x1]
        %v3702 = vadd.f32 %v3698, %v3701
        %v3703 = vld [vmem:[%s49] sm:$0xff]
        %v3704 = vld [vmem:[%s49 + $0x8] sm:$0xff]
        %v3705 = vld [vmem:[%s49 + $0x10] sm:$0xff]
        %v3706 = vld [vmem:[%s49 + $0x18] sm:$0xff]
        %v3707 = vld [vmem:[%s51] sm:$0x1]
        %v3709 = vsel %vm1939, %v3702, 0
        %3711 = vmatprep.subr.mxu0 0.0
        %3712 = vmatpush1.msra.mxu0 %v3703
        %3713 = vmatprep.subr.mxu0 0.0
        %3714 = vmatpush1.msra.mxu0 %v3704
        %3715 = vmatprep.subr.mxu0 0.0
        %3716 = vmatpush1.msra.mxu0 %v3705
        %3717 = vmatprep.subr.mxu0 0.0
        %3718 = vmatpush1.msra.mxu0 %v3706
        %3719 = vmatprep.subr.mxu0 0.0
        %3720 = vmatpush1.msra.mxu0 0.0
        %3721 = vmatprep.subr.mxu0 0.0
        %3722 = vmatpush1.msra.mxu0 0.0
        %3723 = vmatprep.subr.mxu0 0.0
        %3724 = vmatpush1.msra.mxu0 0.0
        %3725 = vmatprep.subr.mxu0 0.0
        %3726 = vmatpush1.msra.mxu0 0.0
        %3727 = vmatprep.subr.mxu0 0.0
        %3728 = vmatpush1.msra.mxu0 0.0
        %3729 = vmatprep.subr.mxu0 0.0
        %3730 = vmatpush1.msra.mxu0 0.0
        %3731 = vmatprep.subr.mxu0 0.0
        %3732 = vmatpush1.msra.mxu0 0.0
        %3733 = vmatprep.subr.mxu0 0.0
        %3734 = vmatpush1.msra.mxu0 0.0
        %3735 = vmatprep.subr.mxu0 0.0
        %3736 = vmatpush1.msra.mxu0 0.0
        %3737 = vmatprep.subr.mxu0 0.0
        %3738 = vmatpush1.msra.mxu0 0.0
        %3739 = vmatprep.subr.mxu0 0.0
        %3740 = vmatpush1.msra.mxu0 0.0
        %3741 = vmatprep.subr.mxu0 0.0
        %3742 = vmatpush1.msra.mxu0 0.0
        %3743 = vmatprep.subr.mxu0 0.0
        %3744 = vmatpush1.msra.mxu0 0.0
        %3745 = vmatprep.subr.mxu0 0.0
        %3746 = vmatpush1.msra.mxu0 0.0
        %3747 = vmatprep.subr.mxu0 0.0
        %3748 = vmatpush1.msra.mxu0 0.0
        %3749 = vmatprep.subr.mxu0 0.0
        %3750 = vmatpush1.msra.mxu0 0.0
        %3751 = vmatprep.subr.mxu0 0.0
        %3752 = vmatpush1.msra.mxu0 0.0
        %3753 = vmatprep.subr.mxu0 0.0
        %3754 = vmatpush1.msra.mxu0 0.0
        %3755 = vmatprep.subr.mxu0 0.0
        %3756 = vmatpush1.msra.mxu0 0.0
        %3757 = vmatprep.subr.mxu0 0.0
        %3758 = vmatpush1.msra.mxu0 0.0
        %3759 = vmatprep.subr.mxu0 0.0
        %3760 = vmatpush1.msra.mxu0 0.0
        %3761 = vmatprep.subr.mxu0 0.0
        %3762 = vmatpush1.msra.mxu0 0.0
        %3763 = vmatprep.subr.mxu0 0.0
        %3764 = vmatpush1.msra.mxu0 0.0
        %3765 = vmatprep.subr.mxu0 0.0
        %3766 = vmatpush1.msra.mxu0 0.0
        %3767 = vmatprep.subr.mxu0 0.0
        %3768 = vmatpush1.msra.mxu0 0.0
        %3769 = vmatprep.subr.mxu0 0.0
        %3770 = vmatpush1.msra.mxu0 0.0
        %3771 = vmatprep.subr.mxu0 0.0
        %3772 = vmatpush1.msra.mxu0 0.0
        %3773 = vmatprep.subr.mxu0 0.0
        %3774 = vmatpush1.msra.mxu0 0.0
        %3775 = vmatprep.mubr.f32.mxu0 0.0
        %3776 = vmatmul.mubr.f32.gmra.mrb[0].mxu0 %v3709
        %v3777 = vpop.f32.mrb[0].mxu0
        %v3778 = vadd.f32 %v3707, %v3777
        %v3779 = vpop.f32.mrb[0].mxu0
        %3780 = vdwg.mxu0
        %v3781 = vmul.f32 %v3778, 0.5
        %v3782 = vmul.f32 %v3778, 0.70710677
        %v3783 = vand.u32 2147483647, %v3782
        %v3784 = vmul.f32 %v3783, 0.3275911
        %v3785 = vadd.f32 %v3784, 1.0
        %v3786 = vrcp.pop %v3785
        %v3787 = vmul.f32 1.0, %v3786
        %v3788 = vmul.f32 %v3787, 1.0614054
        %v3789 = vadd.f32 %v3788, -1.4531521
        %v3790 = vmul.f32 %v3787, %v3789
        %v3791 = vadd.f32 %v3790, 1.4214138
        %v3792 = vmul.f32 %v3787, %v3791
        %v3793 = vadd.f32 %v3792, -0.28449672
        %v3794 = vmul.f32 %v3787, %v3793
        %v3795 = vadd.f32 %v3794, 0.2548296
        %v3796 = vmul.f32 %v3787, %v3795
        %v3797 = vsub.f32 0.0, %v3783
        %v3798 = vmul.f32 %v3797, %v3783
        %v3799 = vmul.f32 %v3798, 1.442695
        %v3800 = vpow.pop %v3799
        %v3801 = vmul.f32 %v3796, %v3800
        %v3802 = vsub.f32 1.0, %v3801
        %vm3803 = vcmp.ge.f32.partialorder %v3782, 0.0
        %v3804 = vsub.f32 0.0, %v3802
        %v3805 = vsel %vm3803, %v3802, %v3804
        %v3806 = vadd.f32 %v3805, 1.0
        %v3807 = vmul.f32 %v3781, %v3806
        %v3808 = vld [vmem:[%s53] sm:$0xff]
        %v3809 = vld [vmem:[%s53 + $0x8] sm:$0xff]
        %v3810 = vld [vmem:[%s55] sm:$0x1]
        %v3812 = vsel %vm2152, %v3807, 0
        %3814 = vmatprep.subr.mxu0 0.0
        %3815 = vmatpush1.msra.mxu0 %v3808
        %3816 = vmatprep.subr.mxu0 0.0
        %3817 = vmatpush1.msra.mxu0 %v3809
        %3818 = vmatprep.subr.mxu0 0.0
        %3819 = vmatpush1.msra.mxu0 0.0
        %3820 = vmatprep.subr.mxu0 0.0
        %3821 = vmatpush1.msra.mxu0 0.0
        %3822 = vmatprep.subr.mxu0 0.0
        %3823 = vmatpush1.msra.mxu0 0.0
        %3824 = vmatprep.subr.mxu0 0.0
        %3825 = vmatpush1.msra.mxu0 0.0
        %3826 = vmatprep.subr.mxu0 0.0
        %3827 = vmatpush1.msra.mxu0 0.0
        %3828 = vmatprep.subr.mxu0 0.0
        %3829 = vmatpush1.msra.mxu0 0.0
        %3830 = vmatprep.subr.mxu0 0.0
        %3831 = vmatpush1.msra.mxu0 0.0
        %3832 = vmatprep.subr.mxu0 0.0
        %3833 = vmatpush1.msra.mxu0 0.0
        %3834 = vmatprep.subr.mxu0 0.0
        %3835 = vmatpush1.msra.mxu0 0.0
        %3836 = vmatprep.subr.mxu0 0.0
        %3837 = vmatpush1.msra.mxu0 0.0
        %3838 = vmatprep.subr.mxu0 0.0
        %3839 = vmatpush1.msra.mxu0 0.0
        %3840 = vmatprep.subr.mxu0 0.0
        %3841 = vmatpush1.msra.mxu0 0.0
        %3842 = vmatprep.subr.mxu0 0.0
        %3843 = vmatpush1.msra.mxu0 0.0
        %3844 = vmatprep.subr.mxu0 0.0
        %3845 = vmatpush1.msra.mxu0 0.0
        %3846 = vmatprep.subr.mxu0 0.0
        %3847 = vmatpush1.msra.mxu0 0.0
        %3848 = vmatprep.subr.mxu0 0.0
        %3849 = vmatpush1.msra.mxu0 0.0
        %3850 = vmatprep.subr.mxu0 0.0
        %3851 = vmatpush1.msra.mxu0 0.0
        %3852 = vmatprep.subr.mxu0 0.0
        %3853 = vmatpush1.msra.mxu0 0.0
        %3854 = vmatprep.subr.mxu0 0.0
        %3855 = vmatpush1.msra.mxu0 0.0
        %3856 = vmatprep.subr.mxu0 0.0
        %3857 = vmatpush1.msra.mxu0 0.0
        %3858 = vmatprep.subr.mxu0 0.0
        %3859 = vmatpush1.msra.mxu0 0.0
        %3860 = vmatprep.subr.mxu0 0.0
        %3861 = vmatpush1.msra.mxu0 0.0
        %3862 = vmatprep.subr.mxu0 0.0
        %3863 = vmatpush1.msra.mxu0 0.0
        %3864 = vmatprep.subr.mxu0 0.0
        %3865 = vmatpush1.msra.mxu0 0.0
        %3866 = vmatprep.subr.mxu0 0.0
        %3867 = vmatpush1.msra.mxu0 0.0
        %3868 = vmatprep.subr.mxu0 0.0
        %3869 = vmatpush1.msra.mxu0 0.0
        %3870 = vmatprep.subr.mxu0 0.0
        %3871 = vmatpush1.msra.mxu0 0.0
        %3872 = vmatprep.subr.mxu0 0.0
        %3873 = vmatpush1.msra.mxu0 0.0
        %3874 = vmatprep.subr.mxu0 0.0
        %3875 = vmatpush1.msra.mxu0 0.0
        %3876 = vmatprep.subr.mxu0 0.0
        %3877 = vmatpush1.msra.mxu0 0.0
        %3878 = vmatprep.mubr.f32.mxu0 0.0
        %3879 = vmatmul.mubr.f32.gmra.mrb[0].mxu0 %v3812
        %v3880 = vpop.f32.mrb[0].mxu0
        %v3881 = vadd.f32 %v3810, %v3880
        %v3882 = vpop.f32.mrb[0].mxu0
        %3883 = vdwg.mxu0
        %v3884 = vlaneseq
        %v3885 = vshrl.u32 %v3884, 7
        %v3886 = vsub.s32 0, %v3885
        %v3887 = vrot.slane %v3881, %v3886
        %v3888 = vadd.f32 %v3553, %v3887
        %v3889 = vld [vmem:[%s57] sm:$0xff]
        %v3890 = vld [vmem:[%s57 + $0x8] sm:$0xff]
        %v3891 = vld [vmem:[%s57 + $0x10] sm:$0xff]
        %v3892 = vld [vmem:[%s57 + $0x18] sm:$0xff]
        %v3893 = vld [vmem:[%s59] sm:$0x1]
        %v3895 = vlaneseq
        %v3896 = vshrl.u32 %v3895, 7
        %v3897 = vsub.s32 0, %v3896
        %v3898 = vrot.slane %v3893, %v3897
        %v3901 = vsel %vm1939, %v3888, 0
        %3903 = vmatprep.subr.mxu0 0.0
        %3904 = vmatpush1.msra.mxu0 %v3889
        %3905 = vmatprep.subr.mxu0 0.0
        %3906 = vmatpush1.msra.mxu0 %v3890
        %3907 = vmatprep.subr.mxu0 0.0
        %3908 = vmatpush1.msra.mxu0 %v3891
        %3909 = vmatprep.subr.mxu0 0.0
        %3910 = vmatpush1.msra.mxu0 %v3892
        %3911 = vmatprep.subr.mxu0 0.0
        %3912 = vmatpush1.msra.mxu0 0.0
        %3913 = vmatprep.subr.mxu0 0.0
        %3914 = vmatpush1.msra.mxu0 0.0
        %3915 = vmatprep.subr.mxu0 0.0
        %3916 = vmatpush1.msra.mxu0 0.0
        %3917 = vmatprep.subr.mxu0 0.0
        %3918 = vmatpush1.msra.mxu0 0.0
        %3919 = vmatprep.subr.mxu0 0.0
        %3920 = vmatpush1.msra.mxu0 0.0
        %3921 = vmatprep.subr.mxu0 0.0
        %3922 = vmatpush1.msra.mxu0 0.0
        %3923 = vmatprep.subr.mxu0 0.0
        %3924 = vmatpush1.msra.mxu0 0.0
        %3925 = vmatprep.subr.mxu0 0.0
        %3926 = vmatpush1.msra.mxu0 0.0
        %3927 = vmatprep.subr.mxu0 0.0
        %3928 = vmatpush1.msra.mxu0 0.0
        %3929 = vmatprep.subr.mxu0 0.0
        %3930 = vmatpush1.msra.mxu0 0.0
        %3931 = vmatprep.subr.mxu0 0.0
        %3932 = vmatpush1.msra.mxu0 0.0
        %3933 = vmatprep.subr.mxu0 0.0
        %3934 = vmatpush1.msra.mxu0 0.0
        %3935 = vmatprep.subr.mxu0 0.0
        %3936 = vmatpush1.msra.mxu0 0.0
        %3937 = vmatprep.subr.mxu0 0.0
        %3938 = vmatpush1.msra.mxu0 0.0
        %3939 = vmatprep.subr.mxu0 0.0
        %3940 = vmatpush1.msra.mxu0 0.0
        %3941 = vmatprep.subr.mxu0 0.0
        %3942 = vmatpush1.msra.mxu0 0.0
        %3943 = vmatprep.subr.mxu0 0.0
        %3944 = vmatpush1.msra.mxu0 0.0
        %3945 = vmatprep.subr.mxu0 0.0
        %3946 = vmatpush1.msra.mxu0 0.0
        %3947 = vmatprep.subr.mxu0 0.0
        %3948 = vmatpush1.msra.mxu0 0.0
        %3949 = vmatprep.subr.mxu0 0.0
        %3950 = vmatpush1.msra.mxu0 0.0
        %3951 = vmatprep.subr.mxu0 0.0
        %3952 = vmatpush1.msra.mxu0 0.0
        %3953 = vmatprep.subr.mxu0 0.0
        %3954 = vmatpush1.msra.mxu0 0.0
        %3955 = vmatprep.subr.mxu0 0.0
        %3956 = vmatpush1.msra.mxu0 0.0
        %3957 = vmatprep.subr.mxu0 0.0
        %3958 = vmatpush1.msra.mxu0 0.0
        %3959 = vmatprep.subr.mxu0 0.0
        %3960 = vmatpush1.msra.mxu0 0.0
        %3961 = vmatprep.subr.mxu0 0.0
        %3962 = vmatpush1.msra.mxu0 0.0
        %3963 = vmatprep.subr.mxu0 0.0
        %3964 = vmatpush1.msra.mxu0 0.0
        %3965 = vmatprep.subr.mxu0 0.0
        %3966 = vmatpush1.msra.mxu0 0.0
        %3967 = vmatprep.mubr.f32.mxu0 0.0
        %3968 = vmatmul.mubr.f32.gmra.mrb[0].mxu0 %v3901
        %v3969 = vpop.f32.mrb[0].mxu0
        %v3970 = vadd.f32 %v3898, %v3969
        %v3971 = vpop.f32.mrb[0].mxu0
        %3972 = vdwg.mxu0
        %v3973 = vld [vmem:[%s61] sm:$0xff]
        %v3974 = vld [vmem:[%s61 + $0x8] sm:$0xff]
        %v3975 = vld [vmem:[%s61 + $0x10] sm:$0xff]
        %v3976 = vld [vmem:[%s61 + $0x18] sm:$0xff]
        %3978 = vrot.lane.b32.xlu0 %v3970, 96
        %v3979 = vpop.permute.xlu0 %3978
        %v3980 = vsel %vm1970, %v3970, 0
        %v3982 = vsel %vm1970, %v3979, 0
        %3984 = vmatprep.subr.mxu0 0.0
        %3985 = vmatpush1.xpose.msra.mxu0 %v3982
        %3986 = vmatprep.subr.mxu0 0.0
        %3987 = vmatpush1.xpose.msra.mxu0 0.0
        %3988 = vmatprep.subr.mxu0 0.0
        %3989 = vmatpush1.xpose.msra.mxu0 0.0
        %3990 = vmatprep.subr.mxu0 0.0
        %3991 = vmatpush1.xpose.msra.mxu0 0.0
        %3992 = vmatprep.subr.mxu0 0.0
        %3993 = vmatpush1.xpose.msra.mxu0 0.0
        %3994 = vmatprep.subr.mxu0 0.0
        %3995 = vmatpush1.xpose.msra.mxu0 0.0
        %3996 = vmatprep.subr.mxu0 0.0
        %3997 = vmatpush1.xpose.msra.mxu0 0.0
        %3998 = vmatprep.subr.mxu0 0.0
        %3999 = vmatpush1.xpose.msra.mxu0 0.0
        %4000 = vmatprep.subr.mxu0 0.0
        %4001 = vmatpush1.xpose.msra.mxu0 0.0
        %4002 = vmatprep.subr.mxu0 0.0
        %4003 = vmatpush1.xpose.msra.mxu0 0.0
        %4004 = vmatprep.subr.mxu0 0.0
        %4005 = vmatpush1.xpose.msra.mxu0 0.0
        %4006 = vmatprep.subr.mxu0 0.0
        %4007 = vmatpush1.xpose.msra.mxu0 0.0
        %4008 = vmatprep.subr.mxu0 0.0
        %4009 = vmatpush1.xpose.msra.mxu0 0.0
        %4010 = vmatprep.subr.mxu0 0.0
        %4011 = vmatpush1.xpose.msra.mxu0 0.0
        %4012 = vmatprep.subr.mxu0 0.0
        %4013 = vmatpush1.xpose.msra.mxu0 0.0
        %4014 = vmatprep.subr.mxu0 0.0
        %4015 = vmatpush1.xpose.msra.mxu0 0.0
        %4016 = vmatprep.subr.mxu0 0.0
        %4017 = vmatpush1.xpose.msra.mxu0 0.0
        %4018 = vmatprep.subr.mxu0 0.0
        %4019 = vmatpush1.xpose.msra.mxu0 0.0
        %4020 = vmatprep.subr.mxu0 0.0
        %4021 = vmatpush1.xpose.msra.mxu0 0.0
        %4022 = vmatprep.subr.mxu0 0.0
        %4023 = vmatpush1.xpose.msra.mxu0 0.0
        %4024 = vmatprep.subr.mxu0 0.0
        %4025 = vmatpush1.xpose.msra.mxu0 0.0
        %4026 = vmatprep.subr.mxu0 0.0
        %4027 = vmatpush1.xpose.msra.mxu0 0.0
        %4028 = vmatprep.subr.mxu0 0.0
        %4029 = vmatpush1.xpose.msra.mxu0 0.0
        %4030 = vmatprep.subr.mxu0 0.0
        %4031 = vmatpush1.xpose.msra.mxu0 0.0
        %4032 = vmatprep.subr.mxu0 0.0
        %4033 = vmatpush1.xpose.msra.mxu0 0.0
        %4034 = vmatprep.subr.mxu0 0.0
        %4035 = vmatpush1.xpose.msra.mxu0 0.0
        %4036 = vmatprep.subr.mxu0 0.0
        %4037 = vmatpush1.xpose.msra.mxu0 0.0
        %4038 = vmatprep.subr.mxu0 0.0
        %4039 = vmatpush1.xpose.msra.mxu0 0.0
        %4040 = vmatprep.subr.mxu0 0.0
        %4041 = vmatpush1.xpose.msra.mxu0 0.0
        %4042 = vmatprep.subr.mxu0 0.0
        %4043 = vmatpush1.xpose.msra.mxu0 0.0
        %4044 = vmatprep.subr.mxu0 0.0
        %4045 = vmatpush1.xpose.msra.mxu0 0.0
        %4046 = vmatprep.subr.mxu0 0.0
        %4047 = vmatpush1.xpose.msra.mxu0 0.0
        %4048 = vmatprep.mubr.f32.mxu0 0.0
        %4049 = vmatmul.mubr.f32.gmra.mrb[0].mxu0 %v3980
        %v4050 = vpop.f32.mrb[0].mxu0
        %v4051 = vadd.f32 0.0, %v4050
        %v4052 = vpop.f32.mrb[0].mxu0
        %4053 = vdwg.mxu0
        %v4054 = vmul.f32 %v4051, 0.35355338
        %v4055 = vadd.f32 %v4054, %v2401
        %v4056 = vsel %vm1970, %v4055, -inf
        %4057 = vmax.xlane.f32.xlu0 %v4056
        %v4058 = vpop.xlane.xlu0 %4057
        %v4059 = vsub.f32 %v4055, %v4058
        %v4060 = vmul.f32 %v4059, 1.442695
        %v4061 = vpow.pop %v4060
        %v4062 = vsel %vm1970, %v4061, 0.0
        %4063 = vadd.xlane.f32.xlu0 %v4062
        %v4064 = vpop.xlane.xlu0 %4063
        %v4065 = vrcp.pop %v4064
        %v4066 = vmul.f32 %v4061, %v4065
        %4067 = vrot.lane.b32.xlu0 %v3970, 64
        %v4068 = vpop.permute.xlu0 %4067
        %v4071 = vsel %vm1970, %v4066, 0
        %4073 = vmatprep.subr.mxu0 0.0
        %4074 = vmatpush1.msra.mxu0 %v4068
        %4075 = vmatprep.subr.mxu0 0.0
        %4076 = vmatpush1.msra.mxu0 0.0
        %4077 = vmatprep.subr.mxu0 0.0
        %4078 = vmatpush1.msra.mxu0 0.0
        %4079 = vmatprep.subr.mxu0 0.0
        %4080 = vmatpush1.msra.mxu0 0.0
        %4081 = vmatprep.subr.mxu0 0.0
        %4082 = vmatpush1.msra.mxu0 0.0
        %4083 = vmatprep.subr.mxu0 0.0
        %4084 = vmatpush1.msra.mxu0 0.0
        %4085 = vmatprep.subr.mxu0 0.0
        %4086 = vmatpush1.msra.mxu0 0.0
        %4087 = vmatprep.subr.mxu0 0.0
        %4088 = vmatpush1.msra.mxu0 0.0
        %4089 = vmatprep.subr.mxu0 0.0
        %4090 = vmatpush1.msra.mxu0 0.0
        %4091 = vmatprep.subr.mxu0 0.0
        %4092 = vmatpush1.msra.mxu0 0.0
        %4093 = vmatprep.subr.mxu0 0.0
        %4094 = vmatpush1.msra.mxu0 0.0
        %4095 = vmatprep.subr.mxu0 0.0
        %4096 = vmatpush1.msra.mxu0 0.0
        %4097 = vmatprep.subr.mxu0 0.0
        %4098 = vmatpush1.msra.mxu0 0.0
        %4099 = vmatprep.subr.mxu0 0.0
        %4100 = vmatpush1.msra.mxu0 0.0
        %4101 = vmatprep.subr.mxu0 0.0
        %4102 = vmatpush1.msra.mxu0 0.0
        %4103 = vmatprep.subr.mxu0 0.0
        %4104 = vmatpush1.msra.mxu0 0.0
        %4105 = vmatprep.subr.mxu0 0.0
        %4106 = vmatpush1.msra.mxu0 0.0
        %4107 = vmatprep.subr.mxu0 0.0
        %4108 = vmatpush1.msra.mxu0 0.0
        %4109 = vmatprep.subr.mxu0 0.0
        %4110 = vmatpush1.msra.mxu0 0.0
        %4111 = vmatprep.subr.mxu0 0.0
        %4112 = vmatpush1.msra.mxu0 0.0
        %4113 = vmatprep.subr.mxu0 0.0
        %4114 = vmatpush1.msra.mxu0 0.0
        %4115 = vmatprep.subr.mxu0 0.0
        %4116 = vmatpush1.msra.mxu0 0.0
        %4117 = vmatprep.subr.mxu0 0.0
        %4118 = vmatpush1.msra.mxu0 0.0
        %4119 = vmatprep.subr.mxu0 0.0
        %4120 = vmatpush1.msra.mxu0 0.0
        %4121 = vmatprep.subr.mxu0 0.0
        %4122 = vmatpush1.msra.mxu0 0.0
        %4123 = vmatprep.subr.mxu0 0.0
        %4124 = vmatpush1.msra.mxu0 0.0
        %4125 = vmatprep.subr.mxu0 0.0
        %4126 = vmatpush1.msra.mxu0 0.0
        %4127 = vmatprep.subr.mxu0 0.0
        %4128 = vmatpush1.msra.mxu0 0.0
        %4129 = vmatprep.subr.mxu0 0.0
        %4130 = vmatpush1.msra.mxu0 0.0
        %4131 = vmatprep.subr.mxu0 0.0
        %4132 = vmatpush1.msra.mxu0 0.0
        %4133 = vmatprep.subr.mxu0 0.0
        %4134 = vmatpush1.msra.mxu0 0.0
        %4135 = vmatprep.subr.mxu0 0.0
        %4136 = vmatpush1.msra.mxu0 0.0
        %4137 = vmatprep.mubr.f32.mxu0 0.0
        %4138 = vmatmul.mubr.f32.gmra.mrb[0].mxu0 %v4071
        %v4139 = vpop.f32.mrb[0].mxu0
        %v4140 = vadd.f32 0.0, %v4139
        %v4141 = vpop.f32.mrb[0].mxu0
        %4142 = vdwg.mxu0
        %4143 = vrot.lane.b32.xlu0 %v3970, 120
        %v4144 = vpop.permute.xlu0 %4143
        %4145 = vrot.lane.b32.xlu0 %v3970, 88
        %v4146 = vpop.permute.xlu0 %4145
        %v4147 = vsel %vm1970, %v4144, 0
        %v4149 = vsel %vm1970, %v4146, 0
        %4151 = vmatprep.subr.mxu0 0.0
        %4152 = vmatpush1.xpose.msra.mxu0 %v4149
        %4153 = vmatprep.subr.mxu0 0.0
        %4154 = vmatpush1.xpose.msra.mxu0 0.0
        %4155 = vmatprep.subr.mxu0 0.0
        %4156 = vmatpush1.xpose.msra.mxu0 0.0
        %4157 = vmatprep.subr.mxu0 0.0
        %4158 = vmatpush1.xpose.msra.mxu0 0.0
        %4159 = vmatprep.subr.mxu0 0.0
        %4160 = vmatpush1.xpose.msra.mxu0 0.0
        %4161 = vmatprep.subr.mxu0 0.0
        %4162 = vmatpush1.xpose.msra.mxu0 0.0
        %4163 = vmatprep.subr.mxu0 0.0
        %4164 = vmatpush1.xpose.msra.mxu0 0.0
        %4165 = vmatprep.subr.mxu0 0.0
        %4166 = vmatpush1.xpose.msra.mxu0 0.0
        %4167 = vmatprep.subr.mxu0 0.0
        %4168 = vmatpush1.xpose.msra.mxu0 0.0
        %4169 = vmatprep.subr.mxu0 0.0
        %4170 = vmatpush1.xpose.msra.mxu0 0.0
        %4171 = vmatprep.subr.mxu0 0.0
        %4172 = vmatpush1.xpose.msra.mxu0 0.0
        %4173 = vmatprep.subr.mxu0 0.0
        %4174 = vmatpush1.xpose.msra.mxu0 0.0
        %4175 = vmatprep.subr.mxu0 0.0
        %4176 = vmatpush1.xpose.msra.mxu0 0.0
        %4177 = vmatprep.subr.mxu0 0.0
        %4178 = vmatpush1.xpose.msra.mxu0 0.0
        %4179 = vmatprep.subr.mxu0 0.0
        %4180 = vmatpush1.xpose.msra.mxu0 0.0
        %4181 = vmatprep.subr.mxu0 0.0
        %4182 = vmatpush1.xpose.msra.mxu0 0.0
        %4183 = vmatprep.subr.mxu0 0.0
        %4184 = vmatpush1.xpose.msra.mxu0 0.0
        %4185 = vmatprep.subr.mxu0 0.0
        %4186 = vmatpush1.xpose.msra.mxu0 0.0
        %4187 = vmatprep.subr.mxu0 0.0
        %4188 = vmatpush1.xpose.msra.mxu0 0.0
        %4189 = vmatprep.subr.mxu0 0.0
        %4190 = vmatpush1.xpose.msra.mxu0 0.0
        %4191 = vmatprep.subr.mxu0 0.0
        %4192 = vmatpush1.xpose.msra.mxu0 0.0
        %4193 = vmatprep.subr.mxu0 0.0
        %4194 = vmatpush1.xpose.msra.mxu0 0.0
        %4195 = vmatprep.subr.mxu0 0.0
        %4196 = vmatpush1.xpose.msra.mxu0 0.0
        %4197 = vmatprep.subr.mxu0 0.0
        %4198 = vmatpush1.xpose.msra.mxu0 0.0
        %4199 = vmatprep.subr.mxu0 0.0
        %4200 = vmatpush1.xpose.msra.mxu0 0.0
        %4201 = vmatprep.subr.mxu0 0.0
        %4202 = vmatpush1.xpose.msra.mxu0 0.0
        %4203 = vmatprep.subr.mxu0 0.0
        %4204 = vmatpush1.xpose.msra.mxu0 0.0
        %4205 = vmatprep.subr.mxu0 0.0
        %4206 = vmatpush1.xpose.msra.mxu0 0.0
        %4207 = vmatprep.subr.mxu0 0.0
        %4208 = vmatpush1.xpose.msra.mxu0 0.0
        %4209 = vmatprep.subr.mxu0 0.0
        %4210 = vmatpush1.xpose.msra.mxu0 0.0
        %4211 = vmatprep.subr.mxu0 0.0
        %4212 = vmatpush1.xpose.msra.mxu0 0.0
        %4213 = vmatprep.subr.mxu0 0.0
        %4214 = vmatpush1.xpose.msra.mxu0 0.0
        %4215 = vmatprep.mubr.f32.mxu0 0.0
        %4216 = vmatmul.mubr.f32.gmra.mrb[0].mxu0 %v4147
        %v4217 = vpop.f32.mrb[0].mxu0
        %v4218 = vadd.f32 0.0, %v4217
        %v4219 = vpop.f32.mrb[0].mxu0
        %4220 = vdwg.mxu0
        %v4221 = vmul.f32 %v4218, 0.35355338
        %v4222 = vadd.f32 %v4221, %v2401
        %v4223 = vsel %vm1970, %v4222, -inf
        %4224 = vmax.xlane.f32.xlu0 %v4223
        %v4225 = vpop.xlane.xlu0 %4224
        %v4226 = vsub.f32 %v4222, %v4225
        %v4227 = vmul.f32 %v4226, 1.442695
        %v4228 = vpow.pop %v4227
        %v4229 = vsel %vm1970, %v4228, 0.0
        %4230 = vadd.xlane.f32.xlu0 %v4229
        %v4231 = vpop.xlane.xlu0 %4230
        %v4232 = vrcp.pop %v4231
        %v4233 = vmul.f32 %v4228, %v4232
        %4234 = vrot.lane.b32.xlu0 %v3970, 56
        %v4235 = vpop.permute.xlu0 %4234
        %v4238 = vsel %vm1970, %v4233, 0
        %4240 = vmatprep.subr.mxu0 0.0
        %4241 = vmatpush1.msra.mxu0 %v4235
        %4242 = vmatprep.subr.mxu0 0.0
        %4243 = vmatpush1.msra.mxu0 0.0
        %4244 = vmatprep.subr.mxu0 0.0
        %4245 = vmatpush1.msra.mxu0 0.0
        %4246 = vmatprep.subr.mxu0 0.0
        %4247 = vmatpush1.msra.mxu0 0.0
        %4248 = vmatprep.subr.mxu0 0.0
        %4249 = vmatpush1.msra.mxu0 0.0
        %4250 = vmatprep.subr.mxu0 0.0
        %4251 = vmatpush1.msra.mxu0 0.0
        %4252 = vmatprep.subr.mxu0 0.0
        %4253 = vmatpush1.msra.mxu0 0.0
        %4254 = vmatprep.subr.mxu0 0.0
        %4255 = vmatpush1.msra.mxu0 0.0
        %4256 = vmatprep.subr.mxu0 0.0
        %4257 = vmatpush1.msra.mxu0 0.0
        %4258 = vmatprep.subr.mxu0 0.0
        %4259 = vmatpush1.msra.mxu0 0.0
        %4260 = vmatprep.subr.mxu0 0.0
        %4261 = vmatpush1.msra.mxu0 0.0
        %4262 = vmatprep.subr.mxu0 0.0
        %4263 = vmatpush1.msra.mxu0 0.0
        %4264 = vmatprep.subr.mxu0 0.0
        %4265 = vmatpush1.msra.mxu0 0.0
        %4266 = vmatprep.subr.mxu0 0.0
        %4267 = vmatpush1.msra.mxu0 0.0
        %4268 = vmatprep.subr.mxu0 0.0
        %4269 = vmatpush1.msra.mxu0 0.0
        %4270 = vmatprep.subr.mxu0 0.0
        %4271 = vmatpush1.msra.mxu0 0.0
        %4272 = vmatprep.subr.mxu0 0.0
        %4273 = vmatpush1.msra.mxu0 0.0
        %4274 = vmatprep.subr.mxu0 0.0
        %4275 = vmatpush1.msra.mxu0 0.0
        %4276 = vmatprep.subr.mxu0 0.0
        %4277 = vmatpush1.msra.mxu0 0.0
        %4278 = vmatprep.subr.mxu0 0.0
        %4279 = vmatpush1.msra.mxu0 0.0
        %4280 = vmatprep.subr.mxu0 0.0
        %4281 = vmatpush1.msra.mxu0 0.0
        %4282 = vmatprep.subr.mxu0 0.0
        %4283 = vmatpush1.msra.mxu0 0.0
        %4284 = vmatprep.subr.mxu0 0.0
        %4285 = vmatpush1.msra.mxu0 0.0
        %4286 = vmatprep.subr.mxu0 0.0
        %4287 = vmatpush1.msra.mxu0 0.0
        %4288 = vmatprep.subr.mxu0 0.0
        %4289 = vmatpush1.msra.mxu0 0.0
        %4290 = vmatprep.subr.mxu0 0.0
        %4291 = vmatpush1.msra.mxu0 0.0
        %4292 = vmatprep.subr.mxu0 0.0
        %4293 = vmatpush1.msra.mxu0 0.0
        %4294 = vmatprep.subr.mxu0 0.0
        %4295 = vmatpush1.msra.mxu0 0.0
        %4296 = vmatprep.subr.mxu0 0.0
        %4297 = vmatpush1.msra.mxu0 0.0
        %4298 = vmatprep.subr.mxu0 0.0
        %4299 = vmatpush1.msra.mxu0 0.0
        %4300 = vmatprep.subr.mxu0 0.0
        %4301 = vmatpush1.msra.mxu0 0.0
        %4302 = vmatprep.subr.mxu0 0.0
        %4303 = vmatpush1.msra.mxu0 0.0
        %4304 = vmatprep.mubr.f32.mxu0 0.0
        %4305 = vmatmul.mubr.f32.gmra.mrb[0].mxu0 %v4238
        %v4306 = vpop.f32.mrb[0].mxu0
        %v4307 = vadd.f32 0.0, %v4306
        %v4308 = vpop.f32.mrb[0].mxu0
        %4309 = vdwg.mxu0
        %v4311 = vsel %vm1970, %v4307, 0
        %4313 = vmatprep.subr.mxu0 0.0
        %4314 = vmatpush1.msra.mxu0 %v3974
        %4315 = vmatprep.subr.mxu0 0.0
        %4316 = vmatpush1.msra.mxu0 0.0
        %4317 = vmatprep.subr.mxu0 0.0
        %4318 = vmatpush1.msra.mxu0 0.0
        %4319 = vmatprep.subr.mxu0 0.0
        %4320 = vmatpush1.msra.mxu0 0.0
        %4321 = vmatprep.subr.mxu0 0.0
        %4322 = vmatpush1.msra.mxu0 0.0
        %4323 = vmatprep.subr.mxu0 0.0
        %4324 = vmatpush1.msra.mxu0 0.0
        %4325 = vmatprep.subr.mxu0 0.0
        %4326 = vmatpush1.msra.mxu0 0.0
        %4327 = vmatprep.subr.mxu0 0.0
        %4328 = vmatpush1.msra.mxu0 0.0
        %4329 = vmatprep.subr.mxu0 0.0
        %4330 = vmatpush1.msra.mxu0 0.0
        %4331 = vmatprep.subr.mxu0 0.0
        %4332 = vmatpush1.msra.mxu0 0.0
        %4333 = vmatprep.subr.mxu0 0.0
        %4334 = vmatpush1.msra.mxu0 0.0
        %4335 = vmatprep.subr.mxu0 0.0
        %4336 = vmatpush1.msra.mxu0 0.0
        %4337 = vmatprep.subr.mxu0 0.0
        %4338 = vmatpush1.msra.mxu0 0.0
        %4339 = vmatprep.subr.mxu0 0.0
        %4340 = vmatpush1.msra.mxu0 0.0
        %4341 = vmatprep.subr.mxu0 0.0
        %4342 = vmatpush1.msra.mxu0 0.0
        %4343 = vmatprep.subr.mxu0 0.0
        %4344 = vmatpush1.msra.mxu0 0.0
        %4345 = vmatprep.subr.mxu0 0.0
        %4346 = vmatpush1.msra.mxu0 0.0
        %4347 = vmatprep.subr.mxu0 0.0
        %4348 = vmatpush1.msra.mxu0 0.0
        %4349 = vmatprep.subr.mxu0 0.0
        %4350 = vmatpush1.msra.mxu0 0.0
        %4351 = vmatprep.subr.mxu0 0.0
        %4352 = vmatpush1.msra.mxu0 0.0
        %4353 = vmatprep.subr.mxu0 0.0
        %4354 = vmatpush1.msra.mxu0 0.0
        %4355 = vmatprep.subr.mxu0 0.0
        %4356 = vmatpush1.msra.mxu0 0.0
        %4357 = vmatprep.subr.mxu0 0.0
        %4358 = vmatpush1.msra.mxu0 0.0
        %4359 = vmatprep.subr.mxu0 0.0
        %4360 = vmatpush1.msra.mxu0 0.0
        %4361 = vmatprep.subr.mxu0 0.0
        %4362 = vmatpush1.msra.mxu0 0.0
        %4363 = vmatprep.subr.mxu0 0.0
        %4364 = vmatpush1.msra.mxu0 0.0
        %4365 = vmatprep.subr.mxu0 0.0
        %4366 = vmatpush1.msra.mxu0 0.0
        %4367 = vmatprep.subr.mxu0 0.0
        %4368 = vmatpush1.msra.mxu0 0.0
        %4369 = vmatprep.subr.mxu0 0.0
        %4370 = vmatpush1.msra.mxu0 0.0
        %4371 = vmatprep.subr.mxu0 0.0
        %4372 = vmatpush1.msra.mxu0 0.0
        %4373 = vmatprep.subr.mxu0 0.0
        %4374 = vmatpush1.msra.mxu0 0.0
        %4375 = vmatprep.subr.mxu0 0.0
        %4376 = vmatpush1.msra.mxu0 0.0
        %4377 = vmatprep.mubr.f32.mxu0 0.0
        %4378 = vmatmul.mubr.f32.gmra.mrb[0].mxu0 %v4311
        %v4379 = vpop.f32.mrb[0].mxu0
        %v4380 = vadd.f32 0.0, %v4379
        %v4381 = vpop.f32.mrb[0].mxu0
        %4382 = vdwg.mxu0
        %v4384 = vsel %vm1970, %v4140, 0
        %4386 = vmatprep.subr.mxu0 0.0
        %4387 = vmatpush1.msra.mxu0 %v3973
        %4388 = vmatprep.subr.mxu0 0.0
        %4389 = vmatpush1.msra.mxu0 0.0
        %4390 = vmatprep.subr.mxu0 0.0
        %4391 = vmatpush1.msra.mxu0 0.0
        %4392 = vmatprep.subr.mxu0 0.0
        %4393 = vmatpush1.msra.mxu0 0.0
        %4394 = vmatprep.subr.mxu0 0.0
        %4395 = vmatpush1.msra.mxu0 0.0
        %4396 = vmatprep.subr.mxu0 0.0
        %4397 = vmatpush1.msra.mxu0 0.0
        %4398 = vmatprep.subr.mxu0 0.0
        %4399 = vmatpush1.msra.mxu0 0.0
        %4400 = vmatprep.subr.mxu0 0.0
        %4401 = vmatpush1.msra.mxu0 0.0
        %4402 = vmatprep.subr.mxu0 0.0
        %4403 = vmatpush1.msra.mxu0 0.0
        %4404 = vmatprep.subr.mxu0 0.0
        %4405 = vmatpush1.msra.mxu0 0.0
        %4406 = vmatprep.subr.mxu0 0.0
        %4407 = vmatpush1.msra.mxu0 0.0
        %4408 = vmatprep.subr.mxu0 0.0
        %4409 = vmatpush1.msra.mxu0 0.0
        %4410 = vmatprep.subr.mxu0 0.0
        %4411 = vmatpush1.msra.mxu0 0.0
        %4412 = vmatprep.subr.mxu0 0.0
        %4413 = vmatpush1.msra.mxu0 0.0
        %4414 = vmatprep.subr.mxu0 0.0
        %4415 = vmatpush1.msra.mxu0 0.0
        %4416 = vmatprep.subr.mxu0 0.0
        %4417 = vmatpush1.msra.mxu0 0.0
        %4418 = vmatprep.subr.mxu0 0.0
        %4419 = vmatpush1.msra.mxu0 0.0
        %4420 = vmatprep.subr.mxu0 0.0
        %4421 = vmatpush1.msra.mxu0 0.0
        %4422 = vmatprep.subr.mxu0 0.0
        %4423 = vmatpush1.msra.mxu0 0.0
        %4424 = vmatprep.subr.mxu0 0.0
        %4425 = vmatpush1.msra.mxu0 0.0
        %4426 = vmatprep.subr.mxu0 0.0
        %4427 = vmatpush1.msra.mxu0 0.0
        %4428 = vmatprep.subr.mxu0 0.0
        %4429 = vmatpush1.msra.mxu0 0.0
        %4430 = vmatprep.subr.mxu0 0.0
        %4431 = vmatpush1.msra.mxu0 0.0
        %4432 = vmatprep.subr.mxu0 0.0
        %4433 = vmatpush1.msra.mxu0 0.0
        %4434 = vmatprep.subr.mxu0 0.0
        %4435 = vmatpush1.msra.mxu0 0.0
        %4436 = vmatprep.subr.mxu0 0.0
        %4437 = vmatpush1.msra.mxu0 0.0
        %4438 = vmatprep.subr.mxu0 0.0
        %4439 = vmatpush1.msra.mxu0 0.0
        %4440 = vmatprep.subr.mxu0 0.0
        %4441 = vmatpush1.msra.mxu0 0.0
        %4442 = vmatprep.subr.mxu0 0.0
        %4443 = vmatpush1.msra.mxu0 0.0
        %4444 = vmatprep.subr.mxu0 0.0
        %4445 = vmatpush1.msra.mxu0 0.0
        %4446 = vmatprep.subr.mxu0 0.0
        %4447 = vmatpush1.msra.mxu0 0.0
        %4448 = vmatprep.subr.mxu0 0.0
        %4449 = vmatpush1.msra.mxu0 0.0
        %4450 = vmatprep.mubr.f32.mxu0 0.0
        %4451 = vmatmul.mubr.f32.gmra.mrb[0].mxu0 %v4384
        %v4452 = vpop.f32.mrb[0].mxu0
        %v4453 = vadd.f32 %v4380, %v4452
        %v4454 = vpop.f32.mrb[0].mxu0
        %4455 = vdwg.mxu0
        %4456 = vrot.lane.b32.xlu0 %v3970, 112
        %v4457 = vpop.permute.xlu0 %4456
        %4458 = vrot.lane.b32.xlu0 %v3970, 80
        %v4459 = vpop.permute.xlu0 %4458
        %v4460 = vsel %vm1970, %v4457, 0
        %v4462 = vsel %vm1970, %v4459, 0
        %4464 = vmatprep.subr.mxu0 0.0
        %4465 = vmatpush1.xpose.msra.mxu0 %v4462
        %4466 = vmatprep.subr.mxu0 0.0
        %4467 = vmatpush1.xpose.msra.mxu0 0.0
        %4468 = vmatprep.subr.mxu0 0.0
        %4469 = vmatpush1.xpose.msra.mxu0 0.0
        %4470 = vmatprep.subr.mxu0 0.0
        %4471 = vmatpush1.xpose.msra.mxu0 0.0
        %4472 = vmatprep.subr.mxu0 0.0
        %4473 = vmatpush1.xpose.msra.mxu0 0.0
        %4474 = vmatprep.subr.mxu0 0.0
        %4475 = vmatpush1.xpose.msra.mxu0 0.0
        %4476 = vmatprep.subr.mxu0 0.0
        %4477 = vmatpush1.xpose.msra.mxu0 0.0
        %4478 = vmatprep.subr.mxu0 0.0
        %4479 = vmatpush1.xpose.msra.mxu0 0.0
        %4480 = vmatprep.subr.mxu0 0.0
        %4481 = vmatpush1.xpose.msra.mxu0 0.0
        %4482 = vmatprep.subr.mxu0 0.0
        %4483 = vmatpush1.xpose.msra.mxu0 0.0
        %4484 = vmatprep.subr.mxu0 0.0
        %4485 = vmatpush1.xpose.msra.mxu0 0.0
        %4486 = vmatprep.subr.mxu0 0.0
        %4487 = vmatpush1.xpose.msra.mxu0 0.0
        %4488 = vmatprep.subr.mxu0 0.0
        %4489 = vmatpush1.xpose.msra.mxu0 0.0
        %4490 = vmatprep.subr.mxu0 0.0
        %4491 = vmatpush1.xpose.msra.mxu0 0.0
        %4492 = vmatprep.subr.mxu0 0.0
        %4493 = vmatpush1.xpose.msra.mxu0 0.0
        %4494 = vmatprep.subr.mxu0 0.0
        %4495 = vmatpush1.xpose.msra.mxu0 0.0
        %4496 = vmatprep.subr.mxu0 0.0
        %4497 = vmatpush1.xpose.msra.mxu0 0.0
        %4498 = vmatprep.subr.mxu0 0.0
        %4499 = vmatpush1.xpose.msra.mxu0 0.0
        %4500 = vmatprep.subr.mxu0 0.0
        %4501 = vmatpush1.xpose.msra.mxu0 0.0
        %4502 = vmatprep.subr.mxu0 0.0
        %4503 = vmatpush1.xpose.msra.mxu0 0.0
        %4504 = vmatprep.subr.mxu0 0.0
        %4505 = vmatpush1.xpose.msra.mxu0 0.0
        %4506 = vmatprep.subr.mxu0 0.0
        %4507 = vmatpush1.xpose.msra.mxu0 0.0
        %4508 = vmatprep.subr.mxu0 0.0
        %4509 = vmatpush1.xpose.msra.mxu0 0.0
        %4510 = vmatprep.subr.mxu0 0.0
        %4511 = vmatpush1.xpose.msra.mxu0 0.0
        %4512 = vmatprep.subr.mxu0 0.0
        %4513 = vmatpush1.xpose.msra.mxu0 0.0
        %4514 = vmatprep.subr.mxu0 0.0
        %4515 = vmatpush1.xpose.msra.mxu0 0.0
        %4516 = vmatprep.subr.mxu0 0.0
        %4517 = vmatpush1.xpose.msra.mxu0 0.0
        %4518 = vmatprep.subr.mxu0 0.0
        %4519 = vmatpush1.xpose.msra.mxu0 0.0
        %4520 = vmatprep.subr.mxu0 0.0
        %4521 = vmatpush1.xpose.msra.mxu0 0.0
        %4522 = vmatprep.subr.mxu0 0.0
        %4523 = vmatpush1.xpose.msra.mxu0 0.0
        %4524 = vmatprep.subr.mxu0 0.0
        %4525 = vmatpush1.xpose.msra.mxu0 0.0
        %4526 = vmatprep.subr.mxu0 0.0
        %4527 = vmatpush1.xpose.msra.mxu0 0.0
        %4528 = vmatprep.mubr.f32.mxu0 0.0
        %4529 = vmatmul.mubr.f32.gmra.mrb[0].mxu0 %v4460
        %v4530 = vpop.f32.mrb[0].mxu0
        %v4531 = vadd.f32 0.0, %v4530
        %v4532 = vpop.f32.mrb[0].mxu0
        %4533 = vdwg.mxu0
        %v4534 = vmul.f32 %v4531, 0.35355338
        %v4535 = vadd.f32 %v4534, %v2401
        %v4536 = vsel %vm1970, %v4535, -inf
        %4537 = vmax.xlane.f32.xlu0 %v4536
        %v4538 = vpop.xlane.xlu0 %4537
        %v4539 = vsub.f32 %v4535, %v4538
        %v4540 = vmul.f32 %v4539, 1.442695
        %v4541 = vpow.pop %v4540
        %v4542 = vsel %vm1970, %v4541, 0.0
        %4543 = vadd.xlane.f32.xlu0 %v4542
        %v4544 = vpop.xlane.xlu0 %4543
        %v4545 = vrcp.pop %v4544
        %v4546 = vmul.f32 %v4541, %v4545
        %4547 = vrot.lane.b32.xlu0 %v3970, 48
        %v4548 = vpop.permute.xlu0 %4547
        %v4551 = vsel %vm1970, %v4546, 0
        %4553 = vmatprep.subr.mxu0 0.0
        %4554 = vmatpush1.msra.mxu0 %v4548
        %4555 = vmatprep.subr.mxu0 0.0
        %4556 = vmatpush1.msra.mxu0 0.0
        %4557 = vmatprep.subr.mxu0 0.0
        %4558 = vmatpush1.msra.mxu0 0.0
        %4559 = vmatprep.subr.mxu0 0.0
        %4560 = vmatpush1.msra.mxu0 0.0
        %4561 = vmatprep.subr.mxu0 0.0
        %4562 = vmatpush1.msra.mxu0 0.0
        %4563 = vmatprep.subr.mxu0 0.0
        %4564 = vmatpush1.msra.mxu0 0.0
        %4565 = vmatprep.subr.mxu0 0.0
        %4566 = vmatpush1.msra.mxu0 0.0
        %4567 = vmatprep.subr.mxu0 0.0
        %4568 = vmatpush1.msra.mxu0 0.0
        %4569 = vmatprep.subr.mxu0 0.0
        %4570 = vmatpush1.msra.mxu0 0.0
        %4571 = vmatprep.subr.mxu0 0.0
        %4572 = vmatpush1.msra.mxu0 0.0
        %4573 = vmatprep.subr.mxu0 0.0
        %4574 = vmatpush1.msra.mxu0 0.0
        %4575 = vmatprep.subr.mxu0 0.0
        %4576 = vmatpush1.msra.mxu0 0.0
        %4577 = vmatprep.subr.mxu0 0.0
        %4578 = vmatpush1.msra.mxu0 0.0
        %4579 = vmatprep.subr.mxu0 0.0
        %4580 = vmatpush1.msra.mxu0 0.0
        %4581 = vmatprep.subr.mxu0 0.0
        %4582 = vmatpush1.msra.mxu0 0.0
        %4583 = vmatprep.subr.mxu0 0.0
        %4584 = vmatpush1.msra.mxu0 0.0
        %4585 = vmatprep.subr.mxu0 0.0
        %4586 = vmatpush1.msra.mxu0 0.0
        %4587 = vmatprep.subr.mxu0 0.0
        %4588 = vmatpush1.msra.mxu0 0.0
        %4589 = vmatprep.subr.mxu0 0.0
        %4590 = vmatpush1.msra.mxu0 0.0
        %4591 = vmatprep.subr.mxu0 0.0
        %4592 = vmatpush1.msra.mxu0 0.0
        %4593 = vmatprep.subr.mxu0 0.0
        %4594 = vmatpush1.msra.mxu0 0.0
        %4595 = vmatprep.subr.mxu0 0.0
        %4596 = vmatpush1.msra.mxu0 0.0
        %4597 = vmatprep.subr.mxu0 0.0
        %4598 = vmatpush1.msra.mxu0 0.0
        %4599 = vmatprep.subr.mxu0 0.0
        %4600 = vmatpush1.msra.mxu0 0.0
        %4601 = vmatprep.subr.mxu0 0.0
        %4602 = vmatpush1.msra.mxu0 0.0
        %4603 = vmatprep.subr.mxu0 0.0
        %4604 = vmatpush1.msra.mxu0 0.0
        %4605 = vmatprep.subr.mxu0 0.0
        %4606 = vmatpush1.msra.mxu0 0.0
        %4607 = vmatprep.subr.mxu0 0.0
        %4608 = vmatpush1.msra.mxu0 0.0
        %4609 = vmatprep.subr.mxu0 0.0
        %4610 = vmatpush1.msra.mxu0 0.0
        %4611 = vmatprep.subr.mxu0 0.0
        %4612 = vmatpush1.msra.mxu0 0.0
        %4613 = vmatprep.subr.mxu0 0.0
        %4614 = vmatpush1.msra.mxu0 0.0
        %4615 = vmatprep.subr.mxu0 0.0
        %4616 = vmatpush1.msra.mxu0 0.0
        %4617 = vmatprep.mubr.f32.mxu0 0.0
        %4618 = vmatmul.mubr.f32.gmra.mrb[0].mxu0 %v4551
        %v4619 = vpop.f32.mrb[0].mxu0
        %v4620 = vadd.f32 0.0, %v4619
        %v4621 = vpop.f32.mrb[0].mxu0
        %4622 = vdwg.mxu0
        %v4624 = vsel %vm1970, %v4620, 0
        %4626 = vmatprep.subr.mxu0 0.0
        %4627 = vmatpush1.msra.mxu0 %v3975
        %4628 = vmatprep.subr.mxu0 0.0
        %4629 = vmatpush1.msra.mxu0 0.0
        %4630 = vmatprep.subr.mxu0 0.0
        %4631 = vmatpush1.msra.mxu0 0.0
        %4632 = vmatprep.subr.mxu0 0.0
        %4633 = vmatpush1.msra.mxu0 0.0
        %4634 = vmatprep.subr.mxu0 0.0
        %4635 = vmatpush1.msra.mxu0 0.0
        %4636 = vmatprep.subr.mxu0 0.0
        %4637 = vmatpush1.msra.mxu0 0.0
        %4638 = vmatprep.subr.mxu0 0.0
        %4639 = vmatpush1.msra.mxu0 0.0
        %4640 = vmatprep.subr.mxu0 0.0
        %4641 = vmatpush1.msra.mxu0 0.0
        %4642 = vmatprep.subr.mxu0 0.0
        %4643 = vmatpush1.msra.mxu0 0.0
        %4644 = vmatprep.subr.mxu0 0.0
        %4645 = vmatpush1.msra.mxu0 0.0
        %4646 = vmatprep.subr.mxu0 0.0
        %4647 = vmatpush1.msra.mxu0 0.0
        %4648 = vmatprep.subr.mxu0 0.0
        %4649 = vmatpush1.msra.mxu0 0.0
        %4650 = vmatprep.subr.mxu0 0.0
        %4651 = vmatpush1.msra.mxu0 0.0
        %4652 = vmatprep.subr.mxu0 0.0
        %4653 = vmatpush1.msra.mxu0 0.0
        %4654 = vmatprep.subr.mxu0 0.0
        %4655 = vmatpush1.msra.mxu0 0.0
        %4656 = vmatprep.subr.mxu0 0.0
        %4657 = vmatpush1.msra.mxu0 0.0
        %4658 = vmatprep.subr.mxu0 0.0
        %4659 = vmatpush1.msra.mxu0 0.0
        %4660 = vmatprep.subr.mxu0 0.0
        %4661 = vmatpush1.msra.mxu0 0.0
        %4662 = vmatprep.subr.mxu0 0.0
        %4663 = vmatpush1.msra.mxu0 0.0
        %4664 = vmatprep.subr.mxu0 0.0
        %4665 = vmatpush1.msra.mxu0 0.0
        %4666 = vmatprep.subr.mxu0 0.0
        %4667 = vmatpush1.msra.mxu0 0.0
        %4668 = vmatprep.subr.mxu0 0.0
        %4669 = vmatpush1.msra.mxu0 0.0
        %4670 = vmatprep.subr.mxu0 0.0
        %4671 = vmatpush1.msra.mxu0 0.0
        %4672 = vmatprep.subr.mxu0 0.0
        %4673 = vmatpush1.msra.mxu0 0.0
        %4674 = vmatprep.subr.mxu0 0.0
        %4675 = vmatpush1.msra.mxu0 0.0
        %4676 = vmatprep.subr.mxu0 0.0
        %4677 = vmatpush1.msra.mxu0 0.0
        %4678 = vmatprep.subr.mxu0 0.0
        %4679 = vmatpush1.msra.mxu0 0.0
        %4680 = vmatprep.subr.mxu0 0.0
        %4681 = vmatpush1.msra.mxu0 0.0
        %4682 = vmatprep.subr.mxu0 0.0
        %4683 = vmatpush1.msra.mxu0 0.0
        %4684 = vmatprep.subr.mxu0 0.0
        %4685 = vmatpush1.msra.mxu0 0.0
        %4686 = vmatprep.subr.mxu0 0.0
        %4687 = vmatpush1.msra.mxu0 0.0
        %4688 = vmatprep.subr.mxu0 0.0
        %4689 = vmatpush1.msra.mxu0 0.0
        %4690 = vmatprep.mubr.f32.mxu0 0.0
        %4691 = vmatmul.mubr.f32.gmra.mrb[0].mxu0 %v4624
        %v4692 = vpop.f32.mrb[0].mxu0
        %v4693 = vadd.f32 0.0, %v4692
        %v4694 = vpop.f32.mrb[0].mxu0
        %4695 = vdwg.mxu0
        %v4696 = vadd.f32 %v4453, %v4693
        %4697 = vrot.lane.b32.xlu0 %v3970, 104
        %v4698 = vpop.permute.xlu0 %4697
        %4699 = vrot.lane.b32.xlu0 %v3970, 72
        %v4700 = vpop.permute.xlu0 %4699
        %v4701 = vsel %vm1970, %v4698, 0
        %v4703 = vsel %vm1970, %v4700, 0
        %4705 = vmatprep.subr.mxu0 0.0
        %4706 = vmatpush1.xpose.msra.mxu0 %v4703
        %4707 = vmatprep.subr.mxu0 0.0
        %4708 = vmatpush1.xpose.msra.mxu0 0.0
        %4709 = vmatprep.subr.mxu0 0.0
        %4710 = vmatpush1.xpose.msra.mxu0 0.0
        %4711 = vmatprep.subr.mxu0 0.0
        %4712 = vmatpush1.xpose.msra.mxu0 0.0
        %4713 = vmatprep.subr.mxu0 0.0
        %4714 = vmatpush1.xpose.msra.mxu0 0.0
        %4715 = vmatprep.subr.mxu0 0.0
        %4716 = vmatpush1.xpose.msra.mxu0 0.0
        %4717 = vmatprep.subr.mxu0 0.0
        %4718 = vmatpush1.xpose.msra.mxu0 0.0
        %4719 = vmatprep.subr.mxu0 0.0
        %4720 = vmatpush1.xpose.msra.mxu0 0.0
        %4721 = vmatprep.subr.mxu0 0.0
        %4722 = vmatpush1.xpose.msra.mxu0 0.0
        %4723 = vmatprep.subr.mxu0 0.0
        %4724 = vmatpush1.xpose.msra.mxu0 0.0
        %4725 = vmatprep.subr.mxu0 0.0
        %4726 = vmatpush1.xpose.msra.mxu0 0.0
        %4727 = vmatprep.subr.mxu0 0.0
        %4728 = vmatpush1.xpose.msra.mxu0 0.0
        %4729 = vmatprep.subr.mxu0 0.0
        %4730 = vmatpush1.xpose.msra.mxu0 0.0
        %4731 = vmatprep.subr.mxu0 0.0
        %4732 = vmatpush1.xpose.msra.mxu0 0.0
        %4733 = vmatprep.subr.mxu0 0.0
        %4734 = vmatpush1.xpose.msra.mxu0 0.0
        %4735 = vmatprep.subr.mxu0 0.0
        %4736 = vmatpush1.xpose.msra.mxu0 0.0
        %4737 = vmatprep.subr.mxu0 0.0
        %4738 = vmatpush1.xpose.msra.mxu0 0.0
        %4739 = vmatprep.subr.mxu0 0.0
        %4740 = vmatpush1.xpose.msra.mxu0 0.0
        %4741 = vmatprep.subr.mxu0 0.0
        %4742 = vmatpush1.xpose.msra.mxu0 0.0
        %4743 = vmatprep.subr.mxu0 0.0
        %4744 = vmatpush1.xpose.msra.mxu0 0.0
        %4745 = vmatprep.subr.mxu0 0.0
        %4746 = vmatpush1.xpose.msra.mxu0 0.0
        %4747 = vmatprep.subr.mxu0 0.0
        %4748 = vmatpush1.xpose.msra.mxu0 0.0
        %4749 = vmatprep.subr.mxu0 0.0
        %4750 = vmatpush1.xpose.msra.mxu0 0.0
        %4751 = vmatprep.subr.mxu0 0.0
        %4752 = vmatpush1.xpose.msra.mxu0 0.0
        %4753 = vmatprep.subr.mxu0 0.0
        %4754 = vmatpush1.xpose.msra.mxu0 0.0
        %4755 = vmatprep.subr.mxu0 0.0
        %4756 = vmatpush1.xpose.msra.mxu0 0.0
        %4757 = vmatprep.subr.mxu0 0.0
        %4758 = vmatpush1.xpose.msra.mxu0 0.0
        %4759 = vmatprep.subr.mxu0 0.0
        %4760 = vmatpush1.xpose.msra.mxu0 0.0
        %4761 = vmatprep.subr.mxu0 0.0
        %4762 = vmatpush1.xpose.msra.mxu0 0.0
        %4763 = vmatprep.subr.mxu0 0.0
        %4764 = vmatpush1.xpose.msra.mxu0 0.0
        %4765 = vmatprep.subr.mxu0 0.0
        %4766 = vmatpush1.xpose.msra.mxu0 0.0
        %4767 = vmatprep.subr.mxu0 0.0
        %4768 = vmatpush1.xpose.msra.mxu0 0.0
        %4769 = vmatprep.mubr.f32.mxu0 0.0
        %4770 = vmatmul.mubr.f32.gmra.mrb[0].mxu0 %v4701
        %v4771 = vpop.f32.mrb[0].mxu0
        %v4772 = vadd.f32 0.0, %v4771
        %v4773 = vpop.f32.mrb[0].mxu0
        %4774 = vdwg.mxu0
        %v4775 = vmul.f32 %v4772, 0.35355338
        %v4776 = vadd.f32 %v4775, %v2401
        %v4777 = vsel %vm1970, %v4776, -inf
        %4778 = vmax.xlane.f32.xlu0 %v4777
        %v4779 = vpop.xlane.xlu0 %4778
        %v4780 = vsub.f32 %v4776, %v4779
        %v4781 = vmul.f32 %v4780, 1.442695
        %v4782 = vpow.pop %v4781
        %v4783 = vsel %vm1970, %v4782, 0.0
        %4784 = vadd.xlane.f32.xlu0 %v4783
        %v4785 = vpop.xlane.xlu0 %4784
        %v4786 = vrcp.pop %v4785
        %v4787 = vmul.f32 %v4782, %v4786
        %4788 = vrot.lane.b32.xlu0 %v3970, 40
        %v4789 = vpop.permute.xlu0 %4788
        %v4792 = vsel %vm1970, %v4787, 0
        %4794 = vmatprep.subr.mxu0 0.0
        %4795 = vmatpush1.msra.mxu0 %v4789
        %4796 = vmatprep.subr.mxu0 0.0
        %4797 = vmatpush1.msra.mxu0 0.0
        %4798 = vmatprep.subr.mxu0 0.0
        %4799 = vmatpush1.msra.mxu0 0.0
        %4800 = vmatprep.subr.mxu0 0.0
        %4801 = vmatpush1.msra.mxu0 0.0
        %4802 = vmatprep.subr.mxu0 0.0
        %4803 = vmatpush1.msra.mxu0 0.0
        %4804 = vmatprep.subr.mxu0 0.0
        %4805 = vmatpush1.msra.mxu0 0.0
        %4806 = vmatprep.subr.mxu0 0.0
        %4807 = vmatpush1.msra.mxu0 0.0
        %4808 = vmatprep.subr.mxu0 0.0
        %4809 = vmatpush1.msra.mxu0 0.0
        %4810 = vmatprep.subr.mxu0 0.0
        %4811 = vmatpush1.msra.mxu0 0.0
        %4812 = vmatprep.subr.mxu0 0.0
        %4813 = vmatpush1.msra.mxu0 0.0
        %4814 = vmatprep.subr.mxu0 0.0
        %4815 = vmatpush1.msra.mxu0 0.0
        %4816 = vmatprep.subr.mxu0 0.0
        %4817 = vmatpush1.msra.mxu0 0.0
        %4818 = vmatprep.subr.mxu0 0.0
        %4819 = vmatpush1.msra.mxu0 0.0
        %4820 = vmatprep.subr.mxu0 0.0
        %4821 = vmatpush1.msra.mxu0 0.0
        %4822 = vmatprep.subr.mxu0 0.0
        %4823 = vmatpush1.msra.mxu0 0.0
        %4824 = vmatprep.subr.mxu0 0.0
        %4825 = vmatpush1.msra.mxu0 0.0
        %4826 = vmatprep.subr.mxu0 0.0
        %4827 = vmatpush1.msra.mxu0 0.0
        %4828 = vmatprep.subr.mxu0 0.0
        %4829 = vmatpush1.msra.mxu0 0.0
        %4830 = vmatprep.subr.mxu0 0.0
        %4831 = vmatpush1.msra.mxu0 0.0
        %4832 = vmatprep.subr.mxu0 0.0
        %4833 = vmatpush1.msra.mxu0 0.0
        %4834 = vmatprep.subr.mxu0 0.0
        %4835 = vmatpush1.msra.mxu0 0.0
        %4836 = vmatprep.subr.mxu0 0.0
        %4837 = vmatpush1.msra.mxu0 0.0
        %4838 = vmatprep.subr.mxu0 0.0
        %4839 = vmatpush1.msra.mxu0 0.0
        %4840 = vmatprep.subr.mxu0 0.0
        %4841 = vmatpush1.msra.mxu0 0.0
        %4842 = vmatprep.subr.mxu0 0.0
        %4843 = vmatpush1.msra.mxu0 0.0
        %4844 = vmatprep.subr.mxu0 0.0
        %4845 = vmatpush1.msra.mxu0 0.0
        %4846 = vmatprep.subr.mxu0 0.0
        %4847 = vmatpush1.msra.mxu0 0.0
        %4848 = vmatprep.subr.mxu0 0.0
        %4849 = vmatpush1.msra.mxu0 0.0
        %4850 = vmatprep.subr.mxu0 0.0
        %4851 = vmatpush1.msra.mxu0 0.0
        %4852 = vmatprep.subr.mxu0 0.0
        %4853 = vmatpush1.msra.mxu0 0.0
        %4854 = vmatprep.subr.mxu0 0.0
        %4855 = vmatpush1.msra.mxu0 0.0
        %4856 = vmatprep.subr.mxu0 0.0
        %4857 = vmatpush1.msra.mxu0 0.0
        %4858 = vmatprep.mubr.f32.mxu0 0.0
        %4859 = vmatmul.mubr.f32.gmra.mrb[0].mxu0 %v4792
        %v4860 = vpop.f32.mrb[0].mxu0
        %v4861 = vadd.f32 0.0, %v4860
        %v4862 = vpop.f32.mrb[0].mxu0
        %4863 = vdwg.mxu0
        %v4865 = vsel %vm1970, %v4861, 0
        %4867 = vmatprep.subr.mxu0 0.0
        %4868 = vmatpush1.msra.mxu0 %v3976
        %4869 = vmatprep.subr.mxu0 0.0
        %4870 = vmatpush1.msra.mxu0 0.0
        %4871 = vmatprep.subr.mxu0 0.0
        %4872 = vmatpush1.msra.mxu0 0.0
        %4873 = vmatprep.subr.mxu0 0.0
        %4874 = vmatpush1.msra.mxu0 0.0
        %4875 = vmatprep.subr.mxu0 0.0
        %4876 = vmatpush1.msra.mxu0 0.0
        %4877 = vmatprep.subr.mxu0 0.0
        %4878 = vmatpush1.msra.mxu0 0.0
        %4879 = vmatprep.subr.mxu0 0.0
        %4880 = vmatpush1.msra.mxu0 0.0
        %4881 = vmatprep.subr.mxu0 0.0
        %4882 = vmatpush1.msra.mxu0 0.0
        %4883 = vmatprep.subr.mxu0 0.0
        %4884 = vmatpush1.msra.mxu0 0.0
        %4885 = vmatprep.subr.mxu0 0.0
        %4886 = vmatpush1.msra.mxu0 0.0
        %4887 = vmatprep.subr.mxu0 0.0
        %4888 = vmatpush1.msra.mxu0 0.0
        %4889 = vmatprep.subr.mxu0 0.0
        %4890 = vmatpush1.msra.mxu0 0.0
        %4891 = vmatprep.subr.mxu0 0.0
        %4892 = vmatpush1.msra.mxu0 0.0
        %4893 = vmatprep.subr.mxu0 0.0
        %4894 = vmatpush1.msra.mxu0 0.0
        %4895 = vmatprep.subr.mxu0 0.0
        %4896 = vmatpush1.msra.mxu0 0.0
        %4897 = vmatprep.subr.mxu0 0.0
        %4898 = vmatpush1.msra.mxu0 0.0
        %4899 = vmatprep.subr.mxu0 0.0
        %4900 = vmatpush1.msra.mxu0 0.0
        %4901 = vmatprep.subr.mxu0 0.0
        %4902 = vmatpush1.msra.mxu0 0.0
        %4903 = vmatprep.subr.mxu0 0.0
        %4904 = vmatpush1.msra.mxu0 0.0
        %4905 = vmatprep.subr.mxu0 0.0
        %4906 = vmatpush1.msra.mxu0 0.0
        %4907 = vmatprep.subr.mxu0 0.0
        %4908 = vmatpush1.msra.mxu0 0.0
        %4909 = vmatprep.subr.mxu0 0.0
        %4910 = vmatpush1.msra.mxu0 0.0
        %4911 = vmatprep.subr.mxu0 0.0
        %4912 = vmatpush1.msra.mxu0 0.0
        %4913 = vmatprep.subr.mxu0 0.0
        %4914 = vmatpush1.msra.mxu0 0.0
        %4915 = vmatprep.subr.mxu0 0.0
        %4916 = vmatpush1.msra.mxu0 0.0
        %4917 = vmatprep.subr.mxu0 0.0
        %4918 = vmatpush1.msra.mxu0 0.0
        %4919 = vmatprep.subr.mxu0 0.0
        %4920 = vmatpush1.msra.mxu0 0.0
        %4921 = vmatprep.subr.mxu0 0.0
        %4922 = vmatpush1.msra.mxu0 0.0
        %4923 = vmatprep.subr.mxu0 0.0
        %4924 = vmatpush1.msra.mxu0 0.0
        %4925 = vmatprep.subr.mxu0 0.0
        %4926 = vmatpush1.msra.mxu0 0.0
        %4927 = vmatprep.subr.mxu0 0.0
        %4928 = vmatpush1.msra.mxu0 0.0
        %4929 = vmatprep.subr.mxu0 0.0
        %4930 = vmatpush1.msra.mxu0 0.0
        %4931 = vmatprep.mubr.f32.mxu0 0.0
        %4932 = vmatmul.mubr.f32.gmra.mrb[0].mxu0 %v4865
        %v4933 = vpop.f32.mrb[0].mxu0
        %v4934 = vadd.f32 0.0, %v4933
        %v4935 = vpop.f32.mrb[0].mxu0
        %4936 = vdwg.mxu0
        %v4937 = vadd.f32 %v4696, %v4934
        %v4938 = vld [vmem:[%s63] sm:$0x1]
        %v4940 = vlaneseq
        %v4941 = vshrl.u32 %v4940, 7
        %v4942 = vsub.s32 0, %v4941
        %v4943 = vrot.slane %v4938, %v4942
        %v4945 = vadd.f32 %v4937, %v4943
        %v4946 = vadd.f32 %v4945, %v3888
        %v4947 = vld [vmem:[#allocation2] sm:$0x1]
        %v4948 = vld [vmem:[#allocation4] sm:$0x1]
        %v4949 = vsel %vm1939, %v4946, 0.0
        %4950 = vadd.xlane.f32.xlu0 %v4949
        %v4951 = vpop.xlane.xlu0 %4950
        %v4952 = vmul.f32 %v4951, %v1943
        %v4953 = vsub.f32 %v4946, %v4952
        %v4954 = vmul.f32 %v4953, %v4953
        %v4955 = vsel %vm1939, %v4954, 0.0
        %4956 = vadd.xlane.f32.xlu0 %v4955
        %v4957 = vpop.xlane.xlu0 %4956
        %v4958 = vmul.f32 %v4957, %v1943
        %v4959 = vadd.f32 %v4958, 1e-12
        %v4960 = vrsqrt.pop %v4959
        %v4961 = vmul.f32 %v4953, %v4960
        %v4963 = vlaneseq
        %v4964 = vshrl.u32 %v4963, 7
        %v4965 = vsub.s32 0, %v4964
        %v4966 = vrot.slane %v4947, %v4965
        %v4968 = vmul.f32 %v4961, %v4966
        %v4970 = vlaneseq
        %v4971 = vshrl.u32 %v4970, 7
        %v4972 = vsub.s32 0, %v4971
        %v4973 = vrot.slane %v4948, %v4972
        %v4975 = vadd.f32 %v4968, %v4973
        %v4976 = vld [vmem:[%s69] sm:$0xff]
        %v4977 = vld [vmem:[%s69 + $0x8] sm:$0xff]
        %v4978 = vld [vmem:[%s69 + $0x10] sm:$0xff]
        %v4979 = vld [vmem:[%s69 + $0x18] sm:$0xff]
        %v4980 = vld [vmem:[#allocation6] sm:$0x1]
        %v4982 = vlaneseq
        %v4983 = vshrl.u32 %v4982, 7
        %v4984 = vsub.s32 0, %v4983
        %v4985 = vrot.slane %v4980, %v4984
        %v4988 = vsel %vm1939, %v4975, 0
        %4990 = vmatprep.subr.mxu0 0.0
        %4991 = vmatpush1.msra.mxu0 %v4976
        %4992 = vmatprep.subr.mxu0 0.0
        %4993 = vmatpush1.msra.mxu0 %v4977
        %4994 = vmatprep.subr.mxu0 0.0
        %4995 = vmatpush1.msra.mxu0 %v4978
        %4996 = vmatprep.subr.mxu0 0.0
        %4997 = vmatpush1.msra.mxu0 %v4979
        %4998 = vmatprep.subr.mxu0 0.0
        %4999 = vmatpush1.msra.mxu0 0.0
        %5000 = vmatprep.subr.mxu0 0.0
        %5001 = vmatpush1.msra.mxu0 0.0
        %5002 = vmatprep.subr.mxu0 0.0
        %5003 = vmatpush1.msra.mxu0 0.0
        %5004 = vmatprep.subr.mxu0 0.0
        %5005 = vmatpush1.msra.mxu0 0.0
        %5006 = vmatprep.subr.mxu0 0.0
        %5007 = vmatpush1.msra.mxu0 0.0
        %5008 = vmatprep.subr.mxu0 0.0
        %5009 = vmatpush1.msra.mxu0 0.0
        %5010 = vmatprep.subr.mxu0 0.0
        %5011 = vmatpush1.msra.mxu0 0.0
        %5012 = vmatprep.subr.mxu0 0.0
        %5013 = vmatpush1.msra.mxu0 0.0
        %5014 = vmatprep.subr.mxu0 0.0
        %5015 = vmatpush1.msra.mxu0 0.0
        %5016 = vmatprep.subr.mxu0 0.0
        %5017 = vmatpush1.msra.mxu0 0.0
        %5018 = vmatprep.subr.mxu0 0.0
        %5019 = vmatpush1.msra.mxu0 0.0
        %5020 = vmatprep.subr.mxu0 0.0
        %5021 = vmatpush1.msra.mxu0 0.0
        %5022 = vmatprep.subr.mxu0 0.0
        %5023 = vmatpush1.msra.mxu0 0.0
        %5024 = vmatprep.subr.mxu0 0.0
        %5025 = vmatpush1.msra.mxu0 0.0
        %5026 = vmatprep.subr.mxu0 0.0
        %5027 = vmatpush1.msra.mxu0 0.0
        %5028 = vmatprep.subr.mxu0 0.0
        %5029 = vmatpush1.msra.mxu0 0.0
        %5030 = vmatprep.subr.mxu0 0.0
        %5031 = vmatpush1.msra.mxu0 0.0
        %5032 = vmatprep.subr.mxu0 0.0
        %5033 = vmatpush1.msra.mxu0 0.0
        %5034 = vmatprep.subr.mxu0 0.0
        %5035 = vmatpush1.msra.mxu0 0.0
        %5036 = vmatprep.subr.mxu0 0.0
        %5037 = vmatpush1.msra.mxu0 0.0
        %5038 = vmatprep.subr.mxu0 0.0
        %5039 = vmatpush1.msra.mxu0 0.0
        %5040 = vmatprep.subr.mxu0 0.0
        %5041 = vmatpush1.msra.mxu0 0.0
        %5042 = vmatprep.subr.mxu0 0.0
        %5043 = vmatpush1.msra.mxu0 0.0
        %5044 = vmatprep.subr.mxu0 0.0
        %5045 = vmatpush1.msra.mxu0 0.0
        %5046 = vmatprep.subr.mxu0 0.0
        %5047 = vmatpush1.msra.mxu0 0.0
        %5048 = vmatprep.subr.mxu0 0.0
        %5049 = vmatpush1.msra.mxu0 0.0
        %5050 = vmatprep.subr.mxu0 0.0
        %5051 = vmatpush1.msra.mxu0 0.0
        %5052 = vmatprep.subr.mxu0 0.0
        %5053 = vmatpush1.msra.mxu0 0.0
        %5054 = vmatprep.mubr.f32.mxu0 0.0
        %5055 = vmatmul.mubr.f32.gmra.mrb[0].mxu0 %v4988
        %v5056 = vpop.f32.mrb[0].mxu0
        %v5057 = vadd.f32 %v4985, %v5056
        %v5058 = vpop.f32.mrb[0].mxu0
        %5059 = vdwg.mxu0
        %v5060 = vmul.f32 %v5057, 0.5
        %v5061 = vmul.f32 %v5057, 0.70710677
        %v5062 = vand.u32 2147483647, %v5061
        %v5063 = vmul.f32 %v5062, 0.3275911
        %v5064 = vadd.f32 %v5063, 1.0
        %v5065 = vrcp.pop %v5064
        %v5066 = vmul.f32 1.0, %v5065
        %v5067 = vmul.f32 %v5066, 1.0614054
        %v5068 = vadd.f32 %v5067, -1.4531521
        %v5069 = vmul.f32 %v5066, %v5068
        %v5070 = vadd.f32 %v5069, 1.4214138
        %v5071 = vmul.f32 %v5066, %v5070
        %v5072 = vadd.f32 %v5071, -0.28449672
        %v5073 = vmul.f32 %v5066, %v5072
        %v5074 = vadd.f32 %v5073, 0.2548296
        %v5075 = vmul.f32 %v5066, %v5074
        %v5076 = vsub.f32 0.0, %v5062
        %v5077 = vmul.f32 %v5076, %v5062
        %v5078 = vmul.f32 %v5077, 1.442695
        %v5079 = vpow.pop %v5078
        %v5080 = vmul.f32 %v5075, %v5079
        %v5081 = vsub.f32 1.0, %v5080
        %vm5082 = vcmp.ge.f32.partialorder %v5061, 0.0
        %v5083 = vsub.f32 0.0, %v5081
        %v5084 = vsel %vm5082, %v5081, %v5083
        %v5085 = vadd.f32 %v5084, 1.0
        %v5086 = vmul.f32 %v5060, %v5085
        %v5087 = vld [vmem:[%s73] sm:$0xff]
        %v5088 = vld [vmem:[%s73 + $0x8] sm:$0xff]
        %v5089 = vld [vmem:[%s73 + $0x10] sm:$0xff]
        %v5090 = vld [vmem:[%s73 + $0x18] sm:$0xff]
        %v5091 = vld [vmem:[%s73 + $0x20] sm:$0xff]
        %v5092 = vld [vmem:[%s73 + $0x28] sm:$0xff]
        %v5093 = vld [vmem:[%s73 + $0x30] sm:$0xff]
        %v5094 = vld [vmem:[%s73 + $0x38] sm:$0xff]
        %v5095 = vld [vmem:[#allocation7] sm:$0x1]
        %v5097 = vlaneseq
        %v5098 = vshrl.u32 %v5097, 7
        %v5099 = vsub.s32 0, %v5098
        %v5100 = vrot.slane %v5095, %v5099
        %v5103 = vsel %vm3450, %v5086, 0
        %5105 = vmatprep.subr.mxu0 0.0
        %5106 = vmatpush1.msra.mxu0 %v5087
        %5107 = vmatprep.subr.mxu0 0.0
        %5108 = vmatpush1.msra.mxu0 %v5088
        %5109 = vmatprep.subr.mxu0 0.0
        %5110 = vmatpush1.msra.mxu0 %v5089
        %5111 = vmatprep.subr.mxu0 0.0
        %5112 = vmatpush1.msra.mxu0 %v5090
        %5113 = vmatprep.subr.mxu0 0.0
        %5114 = vmatpush1.msra.mxu0 %v5091
        %5115 = vmatprep.subr.mxu0 0.0
        %5116 = vmatpush1.msra.mxu0 %v5092
        %5117 = vmatprep.subr.mxu0 0.0
        %5118 = vmatpush1.msra.mxu0 %v5093
        %5119 = vmatprep.subr.mxu0 0.0
        %5120 = vmatpush1.msra.mxu0 %v5094
        %5121 = vmatprep.subr.mxu0 0.0
        %5122 = vmatpush1.msra.mxu0 0.0
        %5123 = vmatprep.subr.mxu0 0.0
        %5124 = vmatpush1.msra.mxu0 0.0
        %5125 = vmatprep.subr.mxu0 0.0
        %5126 = vmatpush1.msra.mxu0 0.0
        %5127 = vmatprep.subr.mxu0 0.0
        %5128 = vmatpush1.msra.mxu0 0.0
        %5129 = vmatprep.subr.mxu0 0.0
        %5130 = vmatpush1.msra.mxu0 0.0
        %5131 = vmatprep.subr.mxu0 0.0
        %5132 = vmatpush1.msra.mxu0 0.0
        %5133 = vmatprep.subr.mxu0 0.0
        %5134 = vmatpush1.msra.mxu0 0.0
        %5135 = vmatprep.subr.mxu0 0.0
        %5136 = vmatpush1.msra.mxu0 0.0
        %5137 = vmatprep.subr.mxu0 0.0
        %5138 = vmatpush1.msra.mxu0 0.0
        %5139 = vmatprep.subr.mxu0 0.0
        %5140 = vmatpush1.msra.mxu0 0.0
        %5141 = vmatprep.subr.mxu0 0.0
        %5142 = vmatpush1.msra.mxu0 0.0
        %5143 = vmatprep.subr.mxu0 0.0
        %5144 = vmatpush1.msra.mxu0 0.0
        %5145 = vmatprep.subr.mxu0 0.0
        %5146 = vmatpush1.msra.mxu0 0.0
        %5147 = vmatprep.subr.mxu0 0.0
        %5148 = vmatpush1.msra.mxu0 0.0
        %5149 = vmatprep.subr.mxu0 0.0
        %5150 = vmatpush1.msra.mxu0 0.0
        %5151 = vmatprep.subr.mxu0 0.0
        %5152 = vmatpush1.msra.mxu0 0.0
        %5153 = vmatprep.subr.mxu0 0.0
        %5154 = vmatpush1.msra.mxu0 0.0
        %5155 = vmatprep.subr.mxu0 0.0
        %5156 = vmatpush1.msra.mxu0 0.0
        %5157 = vmatprep.subr.mxu0 0.0
        %5158 = vmatpush1.msra.mxu0 0.0
        %5159 = vmatprep.subr.mxu0 0.0
        %5160 = vmatpush1.msra.mxu0 0.0
        %5161 = vmatprep.subr.mxu0 0.0
        %5162 = vmatpush1.msra.mxu0 0.0
        %5163 = vmatprep.subr.mxu0 0.0
        %5164 = vmatpush1.msra.mxu0 0.0
        %5165 = vmatprep.subr.mxu0 0.0
        %5166 = vmatpush1.msra.mxu0 0.0
        %5167 = vmatprep.subr.mxu0 0.0
        %5168 = vmatpush1.msra.mxu0 0.0
        %5169 = vmatprep.mubr.f32.mxu0 0.0
        %5170 = vmatmul.mubr.f32.gmra.mrb[0].mxu0 %v5103
        %v5171 = vpop.f32.mrb[0].mxu0
        %v5172 = vadd.f32 %v5100, %v5171
        %v5173 = vpop.f32.mrb[0].mxu0
        %5174 = vdwg.mxu0
        %v5175 = vadd.f32 %v5172, %v4975
        %v5176 = vld [vmem:[#allocation9] sm:$0x1]
        %v5177 = vld [vmem:[#allocation10] sm:$0x1]
        %v5178 = vsel %vm1939, %v5175, 0.0
        %5179 = vadd.xlane.f32.xlu0 %v5178
        %v5180 = vpop.xlane.xlu0 %5179
        %v5181 = vmul.f32 %v5180, %v1943
        %v5182 = vsub.f32 %v5175, %v5181
        %v5183 = vmul.f32 %v5182, %v5182
        %v5184 = vsel %vm1939, %v5183, 0.0
        %5185 = vadd.xlane.f32.xlu0 %v5184
        %v5186 = vpop.xlane.xlu0 %5185
        %v5187 = vmul.f32 %v5186, %v1943
        %v5188 = vadd.f32 %v5187, 1e-12
        %v5189 = vrsqrt.pop %v5188
        %v5190 = vmul.f32 %v5182, %v5189
        %v5192 = vlaneseq
        %v5193 = vshrl.u32 %v5192, 7
        %v5194 = vsub.s32 0, %v5193
        %v5195 = vrot.slane %v5176, %v5194
        %v5197 = vmul.f32 %v5190, %v5195
        %v5199 = vlaneseq
        %v5200 = vshrl.u32 %v5199, 7
        %v5201 = vsub.s32 0, %v5200
        %v5202 = vrot.slane %v5177, %v5201
        %v5204 = vadd.f32 %v5197, %v5202
        %v5205 = vld [vmem:[%s81] sm:$0x3]
        %v5207 = vrot.slane %v5205, 1
        %v5208 = vsel %vm1970, %v5207, 0
        %5210 = vmatprep.subr.mxu0 0.0
        %5211 = vmatpush1.msra.mxu0 %v5204
        %5212 = vmatprep.subr.mxu0 0.0
        %5213 = vmatpush1.msra.mxu0 0.0
        %5214 = vmatprep.subr.mxu0 0.0
        %5215 = vmatpush1.msra.mxu0 0.0
        %5216 = vmatprep.subr.mxu0 0.0
        %5217 = vmatpush1.msra.mxu0 0.0
        %5218 = vmatprep.subr.mxu0 0.0
        %5219 = vmatpush1.msra.mxu0 0.0
        %5220 = vmatprep.subr.mxu0 0.0
        %5221 = vmatpush1.msra.mxu0 0.0
        %5222 = vmatprep.subr.mxu0 0.0
        %5223 = vmatpush1.msra.mxu0 0.0
        %5224 = vmatprep.subr.mxu0 0.0
        %5225 = vmatpush1.msra.mxu0 0.0
        %5226 = vmatprep.subr.mxu0 0.0
        %5227 = vmatpush1.msra.mxu0 0.0
        %5228 = vmatprep.subr.mxu0 0.0
        %5229 = vmatpush1.msra.mxu0 0.0
        %5230 = vmatprep.subr.mxu0 0.0
        %5231 = vmatpush1.msra.mxu0 0.0
        %5232 = vmatprep.subr.mxu0 0.0
        %5233 = vmatpush1.msra.mxu0 0.0
        %5234 = vmatprep.subr.mxu0 0.0
        %5235 = vmatpush1.msra.mxu0 0.0
        %5236 = vmatprep.subr.mxu0 0.0
        %5237 = vmatpush1.msra.mxu0 0.0
        %5238 = vmatprep.subr.mxu0 0.0
        %5239 = vmatpush1.msra.mxu0 0.0
        %5240 = vmatprep.subr.mxu0 0.0
        %5241 = vmatpush1.msra.mxu0 0.0
        %5242 = vmatprep.subr.mxu0 0.0
        %5243 = vmatpush1.msra.mxu0 0.0
        %5244 = vmatprep.subr.mxu0 0.0
        %5245 = vmatpush1.msra.mxu0 0.0
        %5246 = vmatprep.subr.mxu0 0.0
        %5247 = vmatpush1.msra.mxu0 0.0
        %5248 = vmatprep.subr.mxu0 0.0
        %5249 = vmatpush1.msra.mxu0 0.0
        %5250 = vmatprep.subr.mxu0 0.0
        %5251 = vmatpush1.msra.mxu0 0.0
        %5252 = vmatprep.subr.mxu0 0.0
        %5253 = vmatpush1.msra.mxu0 0.0
        %5254 = vmatprep.subr.mxu0 0.0
        %5255 = vmatpush1.msra.mxu0 0.0
        %5256 = vmatprep.subr.mxu0 0.0
        %5257 = vmatpush1.msra.mxu0 0.0
        %5258 = vmatprep.subr.mxu0 0.0
        %5259 = vmatpush1.msra.mxu0 0.0
        %5260 = vmatprep.subr.mxu0 0.0
        %5261 = vmatpush1.msra.mxu0 0.0
        %5262 = vmatprep.subr.mxu0 0.0
        %5263 = vmatpush1.msra.mxu0 0.0
        %5264 = vmatprep.subr.mxu0 0.0
        %5265 = vmatpush1.msra.mxu0 0.0
        %5266 = vmatprep.subr.mxu0 0.0
        %5267 = vmatpush1.msra.mxu0 0.0
        %5268 = vmatprep.subr.mxu0 0.0
        %5269 = vmatpush1.msra.mxu0 0.0
        %5270 = vmatprep.subr.mxu0 0.0
        %5271 = vmatpush1.msra.mxu0 0.0
        %5272 = vmatprep.subr.mxu0 0.0
        %5273 = vmatpush1.msra.mxu0 0.0
        %5274 = vmatprep.mubr.f32.mxu0 0.0
        %5275 = vmatmul.mubr.f32.gmra.mrb[0].mxu0 %v5208
        %v5276 = vpop.f32.mrb[0].mxu0
        %v5277 = vadd.f32 0.0, %v5276
        %v5278 = vpop.f32.mrb[0].mxu0
        %5279 = vdwg.mxu0
        %v5280 = vsel %vm1970, %v5205, 0
        %5282 = vmatprep.subr.mxu0 0.0
        %5283 = vmatpush1.msra.mxu0 %v3553
        %5284 = vmatprep.subr.mxu0 0.0
        %5285 = vmatpush1.msra.mxu0 0.0
        %5286 = vmatprep.subr.mxu0 0.0
        %5287 = vmatpush1.msra.mxu0 0.0
        %5288 = vmatprep.subr.mxu0 0.0
        %5289 = vmatpush1.msra.mxu0 0.0
        %5290 = vmatprep.subr.mxu0 0.0
        %5291 = vmatpush1.msra.mxu0 0.0
        %5292 = vmatprep.subr.mxu0 0.0
        %5293 = vmatpush1.msra.mxu0 0.0
        %5294 = vmatprep.subr.mxu0 0.0
        %5295 = vmatpush1.msra.mxu0 0.0
        %5296 = vmatprep.subr.mxu0 0.0
        %5297 = vmatpush1.msra.mxu0 0.0
        %5298 = vmatprep.subr.mxu0 0.0
        %5299 = vmatpush1.msra.mxu0 0.0
        %5300 = vmatprep.subr.mxu0 0.0
        %5301 = vmatpush1.msra.mxu0 0.0
        %5302 = vmatprep.subr.mxu0 0.0
        %5303 = vmatpush1.msra.mxu0 0.0
        %5304 = vmatprep.subr.mxu0 0.0
        %5305 = vmatpush1.msra.mxu0 0.0
        %5306 = vmatprep.subr.mxu0 0.0
        %5307 = vmatpush1.msra.mxu0 0.0
        %5308 = vmatprep.subr.mxu0 0.0
        %5309 = vmatpush1.msra.mxu0 0.0
        %5310 = vmatprep.subr.mxu0 0.0
        %5311 = vmatpush1.msra.mxu0 0.0
        %5312 = vmatprep.subr.mxu0 0.0
        %5313 = vmatpush1.msra.mxu0 0.0
        %5314 = vmatprep.subr.mxu0 0.0
        %5315 = vmatpush1.msra.mxu0 0.0
        %5316 = vmatprep.subr.mxu0 0.0
        %5317 = vmatpush1.msra.mxu0 0.0
        %5318 = vmatprep.subr.mxu0 0.0
        %5319 = vmatpush1.msra.mxu0 0.0
        %5320 = vmatprep.subr.mxu0 0.0
        %5321 = vmatpush1.msra.mxu0 0.0
        %5322 = vmatprep.subr.mxu0 0.0
        %5323 = vmatpush1.msra.mxu0 0.0
        %5324 = vmatprep.subr.mxu0 0.0
        %5325 = vmatpush1.msra.mxu0 0.0
        %5326 = vmatprep.subr.mxu0 0.0
        %5327 = vmatpush1.msra.mxu0 0.0
        %5328 = vmatprep.subr.mxu0 0.0
        %5329 = vmatpush1.msra.mxu0 0.0
        %5330 = vmatprep.subr.mxu0 0.0
        %5331 = vmatpush1.msra.mxu0 0.0
        %5332 = vmatprep.subr.mxu0 0.0
        %5333 = vmatpush1.msra.mxu0 0.0
        %5334 = vmatprep.subr.mxu0 0.0
        %5335 = vmatpush1.msra.mxu0 0.0
        %5336 = vmatprep.subr.mxu0 0.0
        %5337 = vmatpush1.msra.mxu0 0.0
        %5338 = vmatprep.subr.mxu0 0.0
        %5339 = vmatpush1.msra.mxu0 0.0
        %5340 = vmatprep.subr.mxu0 0.0
        %5341 = vmatpush1.msra.mxu0 0.0
        %5342 = vmatprep.subr.mxu0 0.0
        %5343 = vmatpush1.msra.mxu0 0.0
        %5344 = vmatprep.subr.mxu0 0.0
        %5345 = vmatpush1.msra.mxu0 0.0
        %5346 = vmatprep.mubr.f32.mxu0 0.0
        %5347 = vmatmul.mubr.f32.gmra.mrb[0].mxu0 %v5280
        %v5348 = vpop.f32.mrb[0].mxu0
        %v5349 = vadd.f32 %v5277, %v5348
        %v5350 = vpop.f32.mrb[0].mxu0
        %5351 = vdwg.mxu0
        %v5352 = vld [vmem:[#allocation12] sm:$0x1]
        %v5353 = vadd.f32 %v5349, %v5352
        %v5354 = vld [vmem:[%s85] sm:$0xff]
        %v5355 = vld [vmem:[%s85 + $0x8] sm:$0xff]
        %v5356 = vld [vmem:[%s85 + $0x10] sm:$0xff]
        %v5357 = vld [vmem:[%s85 + $0x18] sm:$0xff]
        %v5358 = vld [vmem:[#allocation13] sm:$0x1]
        %v5360 = vsel %vm1939, %v5353, 0
        %5362 = vmatprep.subr.mxu0 0.0
        %5363 = vmatpush1.msra.mxu0 %v5354
        %5364 = vmatprep.subr.mxu0 0.0
        %5365 = vmatpush1.msra.mxu0 %v5355
        %5366 = vmatprep.subr.mxu0 0.0
        %5367 = vmatpush1.msra.mxu0 %v5356
        %5368 = vmatprep.subr.mxu0 0.0
        %5369 = vmatpush1.msra.mxu0 %v5357
        %5370 = vmatprep.subr.mxu0 0.0
        %5371 = vmatpush1.msra.mxu0 0.0
        %5372 = vmatprep.subr.mxu0 0.0
        %5373 = vmatpush1.msra.mxu0 0.0
        %5374 = vmatprep.subr.mxu0 0.0
        %5375 = vmatpush1.msra.mxu0 0.0
        %5376 = vmatprep.subr.mxu0 0.0
        %5377 = vmatpush1.msra.mxu0 0.0
        %5378 = vmatprep.subr.mxu0 0.0
        %5379 = vmatpush1.msra.mxu0 0.0
        %5380 = vmatprep.subr.mxu0 0.0
        %5381 = vmatpush1.msra.mxu0 0.0
        %5382 = vmatprep.subr.mxu0 0.0
        %5383 = vmatpush1.msra.mxu0 0.0
        %5384 = vmatprep.subr.mxu0 0.0
        %5385 = vmatpush1.msra.mxu0 0.0
        %5386 = vmatprep.subr.mxu0 0.0
        %5387 = vmatpush1.msra.mxu0 0.0
        %5388 = vmatprep.subr.mxu0 0.0
        %5389 = vmatpush1.msra.mxu0 0.0
        %5390 = vmatprep.subr.mxu0 0.0
        %5391 = vmatpush1.msra.mxu0 0.0
        %5392 = vmatprep.subr.mxu0 0.0
        %5393 = vmatpush1.msra.mxu0 0.0
        %5394 = vmatprep.subr.mxu0 0.0
        %5395 = vmatpush1.msra.mxu0 0.0
        %5396 = vmatprep.subr.mxu0 0.0
        %5397 = vmatpush1.msra.mxu0 0.0
        %5398 = vmatprep.subr.mxu0 0.0
        %5399 = vmatpush1.msra.mxu0 0.0
        %5400 = vmatprep.subr.mxu0 0.0
        %5401 = vmatpush1.msra.mxu0 0.0
        %5402 = vmatprep.subr.mxu0 0.0
        %5403 = vmatpush1.msra.mxu0 0.0
        %5404 = vmatprep.subr.mxu0 0.0
        %5405 = vmatpush1.msra.mxu0 0.0
        %5406 = vmatprep.subr.mxu0 0.0
        %5407 = vmatpush1.msra.mxu0 0.0
        %5408 = vmatprep.subr.mxu0 0.0
        %5409 = vmatpush1.msra.mxu0 0.0
        %5410 = vmatprep.subr.mxu0 0.0
        %5411 = vmatpush1.msra.mxu0 0.0
        %5412 = vmatprep.subr.mxu0 0.0
        %5413 = vmatpush1.msra.mxu0 0.0
        %5414 = vmatprep.subr.mxu0 0.0
        %5415 = vmatpush1.msra.mxu0 0.0
        %5416 = vmatprep.subr.mxu0 0.0
        %5417 = vmatpush1.msra.mxu0 0.0
        %5418 = vmatprep.subr.mxu0 0.0
        %5419 = vmatpush1.msra.mxu0 0.0
        %5420 = vmatprep.subr.mxu0 0.0
        %5421 = vmatpush1.msra.mxu0 0.0
        %5422 = vmatprep.subr.mxu0 0.0
        %5423 = vmatpush1.msra.mxu0 0.0
        %5424 = vmatprep.subr.mxu0 0.0
        %5425 = vmatpush1.msra.mxu0 0.0
        %5426 = vmatprep.mubr.f32.mxu0 0.0
        %5427 = vmatmul.mubr.f32.gmra.mrb[0].mxu0 %v5360
        %v5428 = vpop.f32.mrb[0].mxu0
        %v5429 = vadd.f32 %v5358, %v5428
        %v5430 = vpop.f32.mrb[0].mxu0
        %5431 = vdwg.mxu0
        %v5432 = vmul.f32 %v5429, 0.5
        %v5433 = vmul.f32 %v5429, 0.70710677
        %v5434 = vand.u32 2147483647, %v5433
        %v5435 = vmul.f32 %v5434, 0.3275911
        %v5436 = vadd.f32 %v5435, 1.0
        %v5437 = vrcp.pop %v5436
        %v5438 = vmul.f32 1.0, %v5437
        %v5439 = vmul.f32 %v5438, 1.0614054
        %v5440 = vadd.f32 %v5439, -1.4531521
        %v5441 = vmul.f32 %v5438, %v5440
        %v5442 = vadd.f32 %v5441, 1.4214138
        %v5443 = vmul.f32 %v5438, %v5442
        %v5444 = vadd.f32 %v5443, -0.28449672
        %v5445 = vmul.f32 %v5438, %v5444
        %v5446 = vadd.f32 %v5445, 0.2548296
        %v5447 = vmul.f32 %v5438, %v5446
        %v5448 = vsub.f32 0.0, %v5434
        %v5449 = vmul.f32 %v5448, %v5434
        %v5450 = vmul.f32 %v5449, 1.442695
        %v5451 = vpow.pop %v5450
        %v5452 = vmul.f32 %v5447, %v5451
        %v5453 = vsub.f32 1.0, %v5452
        %vm5454 = vcmp.ge.f32.partialorder %v5433, 0.0
        %v5455 = vsub.f32 0.0, %v5453
        %v5456 = vsel %vm5454, %v5453, %v5455
        %v5457 = vadd.f32 %v5456, 1.0
        %v5458 = vmul.f32 %v5432, %v5457
        %v5459 = vld [vmem:[%s89] sm:$0xff]
        %v5460 = vld [vmem:[%s89 + $0x8] sm:$0xff]
        %v5461 = vld [vmem:[#allocation15] sm:$0x1]
        %v5463 = vsel %vm2152, %v5458, 0
        %5465 = vmatprep.subr.mxu0 0.0
        %5466 = vmatpush1.msra.mxu0 %v5459
        %5467 = vmatprep.subr.mxu0 0.0
        %5468 = vmatpush1.msra.mxu0 %v5460
        %5469 = vmatprep.subr.mxu0 0.0
        %5470 = vmatpush1.msra.mxu0 0.0
        %5471 = vmatprep.subr.mxu0 0.0
        %5472 = vmatpush1.msra.mxu0 0.0
        %5473 = vmatprep.subr.mxu0 0.0
        %5474 = vmatpush1.msra.mxu0 0.0
        %5475 = vmatprep.subr.mxu0 0.0
        %5476 = vmatpush1.msra.mxu0 0.0
        %5477 = vmatprep.subr.mxu0 0.0
        %5478 = vmatpush1.msra.mxu0 0.0
        %5479 = vmatprep.subr.mxu0 0.0
        %5480 = vmatpush1.msra.mxu0 0.0
        %5481 = vmatprep.subr.mxu0 0.0
        %5482 = vmatpush1.msra.mxu0 0.0
        %5483 = vmatprep.subr.mxu0 0.0
        %5484 = vmatpush1.msra.mxu0 0.0
        %5485 = vmatprep.subr.mxu0 0.0
        %5486 = vmatpush1.msra.mxu0 0.0
        %5487 = vmatprep.subr.mxu0 0.0
        %5488 = vmatpush1.msra.mxu0 0.0
        %5489 = vmatprep.subr.mxu0 0.0
        %5490 = vmatpush1.msra.mxu0 0.0
        %5491 = vmatprep.subr.mxu0 0.0
        %5492 = vmatpush1.msra.mxu0 0.0
        %5493 = vmatprep.subr.mxu0 0.0
        %5494 = vmatpush1.msra.mxu0 0.0
        %5495 = vmatprep.subr.mxu0 0.0
        %5496 = vmatpush1.msra.mxu0 0.0
        %5497 = vmatprep.subr.mxu0 0.0
        %5498 = vmatpush1.msra.mxu0 0.0
        %5499 = vmatprep.subr.mxu0 0.0
        %5500 = vmatpush1.msra.mxu0 0.0
        %5501 = vmatprep.subr.mxu0 0.0
        %5502 = vmatpush1.msra.mxu0 0.0
        %5503 = vmatprep.subr.mxu0 0.0
        %5504 = vmatpush1.msra.mxu0 0.0
        %5505 = vmatprep.subr.mxu0 0.0
        %5506 = vmatpush1.msra.mxu0 0.0
        %5507 = vmatprep.subr.mxu0 0.0
        %5508 = vmatpush1.msra.mxu0 0.0
        %5509 = vmatprep.subr.mxu0 0.0
        %5510 = vmatpush1.msra.mxu0 0.0
        %5511 = vmatprep.subr.mxu0 0.0
        %5512 = vmatpush1.msra.mxu0 0.0
        %5513 = vmatprep.subr.mxu0 0.0
        %5514 = vmatpush1.msra.mxu0 0.0
        %5515 = vmatprep.subr.mxu0 0.0
        %5516 = vmatpush1.msra.mxu0 0.0
        %5517 = vmatprep.subr.mxu0 0.0
        %5518 = vmatpush1.msra.mxu0 0.0
        %5519 = vmatprep.subr.mxu0 0.0
        %5520 = vmatpush1.msra.mxu0 0.0
        %5521 = vmatprep.subr.mxu0 0.0
        %5522 = vmatpush1.msra.mxu0 0.0
        %5523 = vmatprep.subr.mxu0 0.0
        %5524 = vmatpush1.msra.mxu0 0.0
        %5525 = vmatprep.subr.mxu0 0.0
        %5526 = vmatpush1.msra.mxu0 0.0
        %5527 = vmatprep.subr.mxu0 0.0
        %5528 = vmatpush1.msra.mxu0 0.0
        %5529 = vmatprep.mubr.f32.mxu0 0.0
        %5530 = vmatmul.mubr.f32.gmra.mrb[0].mxu0 %v5463
        %v5531 = vpop.f32.mrb[0].mxu0
        %v5532 = vadd.f32 %v5461, %v5531
        %v5533 = vpop.f32.mrb[0].mxu0
        %5534 = vdwg.mxu0
        %v5535 = vlaneseq
        %v5536 = vshrl.u32 %v5535, 7
        %v5537 = vsub.s32 0, %v5536
        %v5538 = vrot.slane %v5532, %v5537
        %v5539 = vadd.f32 %v5204, %v5538
        %v5540 = vld [vmem:[%s93] sm:$0xff]
        %v5541 = vld [vmem:[%s93 + $0x8] sm:$0xff]
        %v5542 = vld [vmem:[%s93 + $0x10] sm:$0xff]
        %v5543 = vld [vmem:[%s93 + $0x18] sm:$0xff]
        %v5544 = vld [vmem:[#allocation16] sm:$0x1]
        %v5546 = vlaneseq
        %v5547 = vshrl.u32 %v5546, 7
        %v5548 = vsub.s32 0, %v5547
        %v5549 = vrot.slane %v5544, %v5548
        %v5552 = vsel %vm1939, %v5539, 0
        %5554 = vmatprep.subr.mxu0 0.0
        %5555 = vmatpush1.msra.mxu0 %v5540
        %5556 = vmatprep.subr.mxu0 0.0
        %5557 = vmatpush1.msra.mxu0 %v5541
        %5558 = vmatprep.subr.mxu0 0.0
        %5559 = vmatpush1.msra.mxu0 %v5542
        %5560 = vmatprep.subr.mxu0 0.0
        %5561 = vmatpush1.msra.mxu0 %v5543
        %5562 = vmatprep.subr.mxu0 0.0
        %5563 = vmatpush1.msra.mxu0 0.0
        %5564 = vmatprep.subr.mxu0 0.0
        %5565 = vmatpush1.msra.mxu0 0.0
        %5566 = vmatprep.subr.mxu0 0.0
        %5567 = vmatpush1.msra.mxu0 0.0
        %5568 = vmatprep.subr.mxu0 0.0
        %5569 = vmatpush1.msra.mxu0 0.0
        %5570 = vmatprep.subr.mxu0 0.0
        %5571 = vmatpush1.msra.mxu0 0.0
        %5572 = vmatprep.subr.mxu0 0.0
        %5573 = vmatpush1.msra.mxu0 0.0
        %5574 = vmatprep.subr.mxu0 0.0
        %5575 = vmatpush1.msra.mxu0 0.0
        %5576 = vmatprep.subr.mxu0 0.0
        %5577 = vmatpush1.msra.mxu0 0.0
        %5578 = vmatprep.subr.mxu0 0.0
        %5579 = vmatpush1.msra.mxu0 0.0
        %5580 = vmatprep.subr.mxu0 0.0
        %5581 = vmatpush1.msra.mxu0 0.0
        %5582 = vmatprep.subr.mxu0 0.0
        %5583 = vmatpush1.msra.mxu0 0.0
        %5584 = vmatprep.subr.mxu0 0.0
        %5585 = vmatpush1.msra.mxu0 0.0
        %5586 = vmatprep.subr.mxu0 0.0
        %5587 = vmatpush1.msra.mxu0 0.0
        %5588 = vmatprep.subr.mxu0 0.0
        %5589 = vmatpush1.msra.mxu0 0.0
        %5590 = vmatprep.subr.mxu0 0.0
        %5591 = vmatpush1.msra.mxu0 0.0
        %5592 = vmatprep.subr.mxu0 0.0
        %5593 = vmatpush1.msra.mxu0 0.0
        %5594 = vmatprep.subr.mxu0 0.0
        %5595 = vmatpush1.msra.mxu0 0.0
        %5596 = vmatprep.subr.mxu0 0.0
        %5597 = vmatpush1.msra.mxu0 0.0
        %5598 = vmatprep.subr.mxu0 0.0
        %5599 = vmatpush1.msra.mxu0 0.0
        %5600 = vmatprep.subr.mxu0 0.0
        %5601 = vmatpush1.msra.mxu0 0.0
        %5602 = vmatprep.subr.mxu0 0.0
        %5603 = vmatpush1.msra.mxu0 0.0
        %5604 = vmatprep.subr.mxu0 0.0
        %5605 = vmatpush1.msra.mxu0 0.0
        %5606 = vmatprep.subr.mxu0 0.0
        %5607 = vmatpush1.msra.mxu0 0.0
        %5608 = vmatprep.subr.mxu0 0.0
        %5609 = vmatpush1.msra.mxu0 0.0
        %5610 = vmatprep.subr.mxu0 0.0
        %5611 = vmatpush1.msra.mxu0 0.0
        %5612 = vmatprep.subr.mxu0 0.0
        %5613 = vmatpush1.msra.mxu0 0.0
        %5614 = vmatprep.subr.mxu0 0.0
        %5615 = vmatpush1.msra.mxu0 0.0
        %5616 = vmatprep.subr.mxu0 0.0
        %5617 = vmatpush1.msra.mxu0 0.0
        %5618 = vmatprep.mubr.f32.mxu0 0.0
        %5619 = vmatmul.mubr.f32.gmra.mrb[0].mxu0 %v5552
        %v5620 = vpop.f32.mrb[0].mxu0
        %v5621 = vadd.f32 %v5549, %v5620
        %v5622 = vpop.f32.mrb[0].mxu0
        %5623 = vdwg.mxu0
        %v5624 = vld [vmem:[%s97] sm:$0xff]
        %v5625 = vld [vmem:[%s97 + $0x8] sm:$0xff]
        %v5626 = vld [vmem:[%s97 + $0x10] sm:$0xff]
        %v5627 = vld [vmem:[%s97 + $0x18] sm:$0xff]
        %5629 = vrot.lane.b32.xlu0 %v5621, 96
        %v5630 = vpop.permute.xlu0 %5629
        %v5631 = vsel %vm1970, %v5621, 0
        %v5633 = vsel %vm1970, %v5630, 0
        %5635 = vmatprep.subr.mxu0 0.0
        %5636 = vmatpush1.xpose.msra.mxu0 %v5633
        %5637 = vmatprep.subr.mxu0 0.0
        %5638 = vmatpush1.xpose.msra.mxu0 0.0
        %5639 = vmatprep.subr.mxu0 0.0
        %5640 = vmatpush1.xpose.msra.mxu0 0.0
        %5641 = vmatprep.subr.mxu0 0.0
        %5642 = vmatpush1.xpose.msra.mxu0 0.0
        %5643 = vmatprep.subr.mxu0 0.0
        %5644 = vmatpush1.xpose.msra.mxu0 0.0
        %5645 = vmatprep.subr.mxu0 0.0
        %5646 = vmatpush1.xpose.msra.mxu0 0.0
        %5647 = vmatprep.subr.mxu0 0.0
        %5648 = vmatpush1.xpose.msra.mxu0 0.0
        %5649 = vmatprep.subr.mxu0 0.0
        %5650 = vmatpush1.xpose.msra.mxu0 0.0
        %5651 = vmatprep.subr.mxu0 0.0
        %5652 = vmatpush1.xpose.msra.mxu0 0.0
        %5653 = vmatprep.subr.mxu0 0.0
        %5654 = vmatpush1.xpose.msra.mxu0 0.0
        %5655 = vmatprep.subr.mxu0 0.0
        %5656 = vmatpush1.xpose.msra.mxu0 0.0
        %5657 = vmatprep.subr.mxu0 0.0
        %5658 = vmatpush1.xpose.msra.mxu0 0.0
        %5659 = vmatprep.subr.mxu0 0.0
        %5660 = vmatpush1.xpose.msra.mxu0 0.0
        %5661 = vmatprep.subr.mxu0 0.0
        %5662 = vmatpush1.xpose.msra.mxu0 0.0
        %5663 = vmatprep.subr.mxu0 0.0
        %5664 = vmatpush1.xpose.msra.mxu0 0.0
        %5665 = vmatprep.subr.mxu0 0.0
        %5666 = vmatpush1.xpose.msra.mxu0 0.0
        %5667 = vmatprep.subr.mxu0 0.0
        %5668 = vmatpush1.xpose.msra.mxu0 0.0
        %5669 = vmatprep.subr.mxu0 0.0
        %5670 = vmatpush1.xpose.msra.mxu0 0.0
        %5671 = vmatprep.subr.mxu0 0.0
        %5672 = vmatpush1.xpose.msra.mxu0 0.0
        %5673 = vmatprep.subr.mxu0 0.0
        %5674 = vmatpush1.xpose.msra.mxu0 0.0
        %5675 = vmatprep.subr.mxu0 0.0
        %5676 = vmatpush1.xpose.msra.mxu0 0.0
        %5677 = vmatprep.subr.mxu0 0.0
        %5678 = vmatpush1.xpose.msra.mxu0 0.0
        %5679 = vmatprep.subr.mxu0 0.0
        %5680 = vmatpush1.xpose.msra.mxu0 0.0
        %5681 = vmatprep.subr.mxu0 0.0
        %5682 = vmatpush1.xpose.msra.mxu0 0.0
        %5683 = vmatprep.subr.mxu0 0.0
        %5684 = vmatpush1.xpose.msra.mxu0 0.0
        %5685 = vmatprep.subr.mxu0 0.0
        %5686 = vmatpush1.xpose.msra.mxu0 0.0
        %5687 = vmatprep.subr.mxu0 0.0
        %5688 = vmatpush1.xpose.msra.mxu0 0.0
        %5689 = vmatprep.subr.mxu0 0.0
        %5690 = vmatpush1.xpose.msra.mxu0 0.0
        %5691 = vmatprep.subr.mxu0 0.0
        %5692 = vmatpush1.xpose.msra.mxu0 0.0
        %5693 = vmatprep.subr.mxu0 0.0
        %5694 = vmatpush1.xpose.msra.mxu0 0.0
        %5695 = vmatprep.subr.mxu0 0.0
        %5696 = vmatpush1.xpose.msra.mxu0 0.0
        %5697 = vmatprep.subr.mxu0 0.0
        %5698 = vmatpush1.xpose.msra.mxu0 0.0
        %5699 = vmatprep.mubr.f32.mxu0 0.0
        %5700 = vmatmul.mubr.f32.gmra.mrb[0].mxu0 %v5631
        %v5701 = vpop.f32.mrb[0].mxu0
        %v5702 = vadd.f32 0.0, %v5701
        %v5703 = vpop.f32.mrb[0].mxu0
        %5704 = vdwg.mxu0
        %v5705 = vmul.f32 %v5702, 0.35355338
        %v5706 = vadd.f32 %v5705, %v2401
        %v5707 = vsel %vm1970, %v5706, -inf
        %5708 = vmax.xlane.f32.xlu0 %v5707
        %v5709 = vpop.xlane.xlu0 %5708
        %v5710 = vsub.f32 %v5706, %v5709
        %v5711 = vmul.f32 %v5710, 1.442695
        %v5712 = vpow.pop %v5711
        %v5713 = vsel %vm1970, %v5712, 0.0
        %5714 = vadd.xlane.f32.xlu0 %v5713
        %v5715 = vpop.xlane.xlu0 %5714
        %v5716 = vrcp.pop %v5715
        %v5717 = vmul.f32 %v5712, %v5716
        %5718 = vrot.lane.b32.xlu0 %v5621, 64
        %v5719 = vpop.permute.xlu0 %5718
        %v5722 = vsel %vm1970, %v5717, 0
        %5724 = vmatprep.subr.mxu0 0.0
        %5725 = vmatpush1.msra.mxu0 %v5719
        %5726 = vmatprep.subr.mxu0 0.0
        %5727 = vmatpush1.msra.mxu0 0.0
        %5728 = vmatprep.subr.mxu0 0.0
        %5729 = vmatpush1.msra.mxu0 0.0
        %5730 = vmatprep.subr.mxu0 0.0
        %5731 = vmatpush1.msra.mxu0 0.0
        %5732 = vmatprep.subr.mxu0 0.0
        %5733 = vmatpush1.msra.mxu0 0.0
        %5734 = vmatprep.subr.mxu0 0.0
        %5735 = vmatpush1.msra.mxu0 0.0
        %5736 = vmatprep.subr.mxu0 0.0
        %5737 = vmatpush1.msra.mxu0 0.0
        %5738 = vmatprep.subr.mxu0 0.0
        %5739 = vmatpush1.msra.mxu0 0.0
        %5740 = vmatprep.subr.mxu0 0.0
        %5741 = vmatpush1.msra.mxu0 0.0
        %5742 = vmatprep.subr.mxu0 0.0
        %5743 = vmatpush1.msra.mxu0 0.0
        %5744 = vmatprep.subr.mxu0 0.0
        %5745 = vmatpush1.msra.mxu0 0.0
        %5746 = vmatprep.subr.mxu0 0.0
        %5747 = vmatpush1.msra.mxu0 0.0
        %5748 = vmatprep.subr.mxu0 0.0
        %5749 = vmatpush1.msra.mxu0 0.0
        %5750 = vmatprep.subr.mxu0 0.0
        %5751 = vmatpush1.msra.mxu0 0.0
        %5752 = vmatprep.subr.mxu0 0.0
        %5753 = vmatpush1.msra.mxu0 0.0
        %5754 = vmatprep.subr.mxu0 0.0
        %5755 = vmatpush1.msra.mxu0 0.0
        %5756 = vmatprep.subr.mxu0 0.0
        %5757 = vmatpush1.msra.mxu0 0.0
        %5758 = vmatprep.subr.mxu0 0.0
        %5759 = vmatpush1.msra.mxu0 0.0
        %5760 = vmatprep.subr.mxu0 0.0
        %5761 = vmatpush1.msra.mxu0 0.0
        %5762 = vmatprep.subr.mxu0 0.0
        %5763 = vmatpush1.msra.mxu0 0.0
        %5764 = vmatprep.subr.mxu0 0.0
        %5765 = vmatpush1.msra.mxu0 0.0
        %5766 = vmatprep.subr.mxu0 0.0
        %5767 = vmatpush1.msra.mxu0 0.0
        %5768 = vmatprep.subr.mxu0 0.0
        %5769 = vmatpush1.msra.mxu0 0.0
        %5770 = vmatprep.subr.mxu0 0.0
        %5771 = vmatpush1.msra.mxu0 0.0
        %5772 = vmatprep.subr.mxu0 0.0
        %5773 = vmatpush1.msra.mxu0 0.0
        %5774 = vmatprep.subr.mxu0 0.0
        %5775 = vmatpush1.msra.mxu0 0.0
        %5776 = vmatprep.subr.mxu0 0.0
        %5777 = vmatpush1.msra.mxu0 0.0
        %5778 = vmatprep.subr.mxu0 0.0
        %5779 = vmatpush1.msra.mxu0 0.0
        %5780 = vmatprep.subr.mxu0 0.0
        %5781 = vmatpush1.msra.mxu0 0.0
        %5782 = vmatprep.subr.mxu0 0.0
        %5783 = vmatpush1.msra.mxu0 0.0
        %5784 = vmatprep.subr.mxu0 0.0
        %5785 = vmatpush1.msra.mxu0 0.0
        %5786 = vmatprep.subr.mxu0 0.0
        %5787 = vmatpush1.msra.mxu0 0.0
        %5788 = vmatprep.mubr.f32.mxu0 0.0
        %5789 = vmatmul.mubr.f32.gmra.mrb[0].mxu0 %v5722
        %v5790 = vpop.f32.mrb[0].mxu0
        %v5791 = vadd.f32 0.0, %v5790
        %v5792 = vpop.f32.mrb[0].mxu0
        %5793 = vdwg.mxu0
        %5794 = vrot.lane.b32.xlu0 %v5621, 120
        %v5795 = vpop.permute.xlu0 %5794
        %5796 = vrot.lane.b32.xlu0 %v5621, 88
        %v5797 = vpop.permute.xlu0 %5796
        %v5798 = vsel %vm1970, %v5795, 0
        %v5800 = vsel %vm1970, %v5797, 0
        %5802 = vmatprep.subr.mxu0 0.0
        %5803 = vmatpush1.xpose.msra.mxu0 %v5800
        %5804 = vmatprep.subr.mxu0 0.0
        %5805 = vmatpush1.xpose.msra.mxu0 0.0
        %5806 = vmatprep.subr.mxu0 0.0
        %5807 = vmatpush1.xpose.msra.mxu0 0.0
        %5808 = vmatprep.subr.mxu0 0.0
        %5809 = vmatpush1.xpose.msra.mxu0 0.0
        %5810 = vmatprep.subr.mxu0 0.0
        %5811 = vmatpush1.xpose.msra.mxu0 0.0
        %5812 = vmatprep.subr.mxu0 0.0
        %5813 = vmatpush1.xpose.msra.mxu0 0.0
        %5814 = vmatprep.subr.mxu0 0.0
        %5815 = vmatpush1.xpose.msra.mxu0 0.0
        %5816 = vmatprep.subr.mxu0 0.0
        %5817 = vmatpush1.xpose.msra.mxu0 0.0
        %5818 = vmatprep.subr.mxu0 0.0
        %5819 = vmatpush1.xpose.msra.mxu0 0.0
        %5820 = vmatprep.subr.mxu0 0.0
        %5821 = vmatpush1.xpose.msra.mxu0 0.0
        %5822 = vmatprep.subr.mxu0 0.0
        %5823 = vmatpush1.xpose.msra.mxu0 0.0
        %5824 = vmatprep.subr.mxu0 0.0
        %5825 = vmatpush1.xpose.msra.mxu0 0.0
        %5826 = vmatprep.subr.mxu0 0.0
        %5827 = vmatpush1.xpose.msra.mxu0 0.0
        %5828 = vmatprep.subr.mxu0 0.0
        %5829 = vmatpush1.xpose.msra.mxu0 0.0
        %5830 = vmatprep.subr.mxu0 0.0
        %5831 = vmatpush1.xpose.msra.mxu0 0.0
        %5832 = vmatprep.subr.mxu0 0.0
        %5833 = vmatpush1.xpose.msra.mxu0 0.0
        %5834 = vmatprep.subr.mxu0 0.0
        %5835 = vmatpush1.xpose.msra.mxu0 0.0
        %5836 = vmatprep.subr.mxu0 0.0
        %5837 = vmatpush1.xpose.msra.mxu0 0.0
        %5838 = vmatprep.subr.mxu0 0.0
        %5839 = vmatpush1.xpose.msra.mxu0 0.0
        %5840 = vmatprep.subr.mxu0 0.0
        %5841 = vmatpush1.xpose.msra.mxu0 0.0
        %5842 = vmatprep.subr.mxu0 0.0
        %5843 = vmatpush1.xpose.msra.mxu0 0.0
        %5844 = vmatprep.subr.mxu0 0.0
        %5845 = vmatpush1.xpose.msra.mxu0 0.0
        %5846 = vmatprep.subr.mxu0 0.0
        %5847 = vmatpush1.xpose.msra.mxu0 0.0
        %5848 = vmatprep.subr.mxu0 0.0
        %5849 = vmatpush1.xpose.msra.mxu0 0.0
        %5850 = vmatprep.subr.mxu0 0.0
        %5851 = vmatpush1.xpose.msra.mxu0 0.0
        %5852 = vmatprep.subr.mxu0 0.0
        %5853 = vmatpush1.xpose.msra.mxu0 0.0
        %5854 = vmatprep.subr.mxu0 0.0
        %5855 = vmatpush1.xpose.msra.mxu0 0.0
        %5856 = vmatprep.subr.mxu0 0.0
        %5857 = vmatpush1.xpose.msra.mxu0 0.0
        %5858 = vmatprep.subr.mxu0 0.0
        %5859 = vmatpush1.xpose.msra.mxu0 0.0
        %5860 = vmatprep.subr.mxu0 0.0
        %5861 = vmatpush1.xpose.msra.mxu0 0.0
        %5862 = vmatprep.subr.mxu0 0.0
        %5863 = vmatpush1.xpose.msra.mxu0 0.0
        %5864 = vmatprep.subr.mxu0 0.0
        %5865 = vmatpush1.xpose.msra.mxu0 0.0
        %5866 = vmatprep.mubr.f32.mxu0 0.0
        %5867 = vmatmul.mubr.f32.gmra.mrb[0].mxu0 %v5798
        %v5868 = vpop.f32.mrb[0].mxu0
        %v5869 = vadd.f32 0.0, %v5868
        %v5870 = vpop.f32.mrb[0].mxu0
        %5871 = vdwg.mxu0
        %v5872 = vmul.f32 %v5869, 0.35355338
        %v5873 = vadd.f32 %v5872, %v2401
        %v5874 = vsel %vm1970, %v5873, -inf
        %5875 = vmax.xlane.f32.xlu0 %v5874
        %v5876 = vpop.xlane.xlu0 %5875
        %v5877 = vsub.f32 %v5873, %v5876
        %v5878 = vmul.f32 %v5877, 1.442695
        %v5879 = vpow.pop %v5878
        %v5880 = vsel %vm1970, %v5879, 0.0
        %5881 = vadd.xlane.f32.xlu0 %v5880
        %v5882 = vpop.xlane.xlu0 %5881
        %v5883 = vrcp.pop %v5882
        %v5884 = vmul.f32 %v5879, %v5883
        %5885 = vrot.lane.b32.xlu0 %v5621, 56
        %v5886 = vpop.permute.xlu0 %5885
        %v5889 = vsel %vm1970, %v5884, 0
        %5891 = vmatprep.subr.mxu0 0.0
        %5892 = vmatpush1.msra.mxu0 %v5886
        %5893 = vmatprep.subr.mxu0 0.0
        %5894 = vmatpush1.msra.mxu0 0.0
        %5895 = vmatprep.subr.mxu0 0.0
        %5896 = vmatpush1.msra.mxu0 0.0
        %5897 = vmatprep.subr.mxu0 0.0
        %5898 = vmatpush1.msra.mxu0 0.0
        %5899 = vmatprep.subr.mxu0 0.0
        %5900 = vmatpush1.msra.mxu0 0.0
        %5901 = vmatprep.subr.mxu0 0.0
        %5902 = vmatpush1.msra.mxu0 0.0
        %5903 = vmatprep.subr.mxu0 0.0
        %5904 = vmatpush1.msra.mxu0 0.0
        %5905 = vmatprep.subr.mxu0 0.0
        %5906 = vmatpush1.msra.mxu0 0.0
        %5907 = vmatprep.subr.mxu0 0.0
        %5908 = vmatpush1.msra.mxu0 0.0
        %5909 = vmatprep.subr.mxu0 0.0
        %5910 = vmatpush1.msra.mxu0 0.0
        %5911 = vmatprep.subr.mxu0 0.0
        %5912 = vmatpush1.msra.mxu0 0.0
        %5913 = vmatprep.subr.mxu0 0.0
        %5914 = vmatpush1.msra.mxu0 0.0
        %5915 = vmatprep.subr.mxu0 0.0
        %5916 = vmatpush1.msra.mxu0 0.0
        %5917 = vmatprep.subr.mxu0 0.0
        %5918 = vmatpush1.msra.mxu0 0.0
        %5919 = vmatprep.subr.mxu0 0.0
        %5920 = vmatpush1.msra.mxu0 0.0
        %5921 = vmatprep.subr.mxu0 0.0
        %5922 = vmatpush1.msra.mxu0 0.0
        %5923 = vmatprep.subr.mxu0 0.0
        %5924 = vmatpush1.msra.mxu0 0.0
        %5925 = vmatprep.subr.mxu0 0.0
        %5926 = vmatpush1.msra.mxu0 0.0
        %5927 = vmatprep.subr.mxu0 0.0
        %5928 = vmatpush1.msra.mxu0 0.0
        %5929 = vmatprep.subr.mxu0 0.0
        %5930 = vmatpush1.msra.mxu0 0.0
        %5931 = vmatprep.subr.mxu0 0.0
        %5932 = vmatpush1.msra.mxu0 0.0
        %5933 = vmatprep.subr.mxu0 0.0
        %5934 = vmatpush1.msra.mxu0 0.0
        %5935 = vmatprep.subr.mxu0 0.0
        %5936 = vmatpush1.msra.mxu0 0.0
        %5937 = vmatprep.subr.mxu0 0.0
        %5938 = vmatpush1.msra.mxu0 0.0
        %5939 = vmatprep.subr.mxu0 0.0
        %5940 = vmatpush1.msra.mxu0 0.0
        %5941 = vmatprep.subr.mxu0 0.0
        %5942 = vmatpush1.msra.mxu0 0.0
        %5943 = vmatprep.subr.mxu0 0.0
        %5944 = vmatpush1.msra.mxu0 0.0
        %5945 = vmatprep.subr.mxu0 0.0
        %5946 = vmatpush1.msra.mxu0 0.0
        %5947 = vmatprep.subr.mxu0 0.0
        %5948 = vmatpush1.msra.mxu0 0.0
        %5949 = vmatprep.subr.mxu0 0.0
        %5950 = vmatpush1.msra.mxu0 0.0
        %5951 = vmatprep.subr.mxu0 0.0
        %5952 = vmatpush1.msra.mxu0 0.0
        %5953 = vmatprep.subr.mxu0 0.0
        %5954 = vmatpush1.msra.mxu0 0.0
        %5955 = vmatprep.mubr.f32.mxu0 0.0
        %5956 = vmatmul.mubr.f32.gmra.mrb[0].mxu0 %v5889
        %v5957 = vpop.f32.mrb[0].mxu0
        %v5958 = vadd.f32 0.0, %v5957
        %v5959 = vpop.f32.mrb[0].mxu0
        %5960 = vdwg.mxu0
        %v5962 = vsel %vm1970, %v5958, 0
        %5964 = vmatprep.subr.mxu0 0.0
        %5965 = vmatpush1.msra.mxu0 %v5625
        %5966 = vmatprep.subr.mxu0 0.0
        %5967 = vmatpush1.msra.mxu0 0.0
        %5968 = vmatprep.subr.mxu0 0.0
        %5969 = vmatpush1.msra.mxu0 0.0
        %5970 = vmatprep.subr.mxu0 0.0
        %5971 = vmatpush1.msra.mxu0 0.0
        %5972 = vmatprep.subr.mxu0 0.0
        %5973 = vmatpush1.msra.mxu0 0.0
        %5974 = vmatprep.subr.mxu0 0.0
        %5975 = vmatpush1.msra.mxu0 0.0
        %5976 = vmatprep.subr.mxu0 0.0
        %5977 = vmatpush1.msra.mxu0 0.0
        %5978 = vmatprep.subr.mxu0 0.0
        %5979 = vmatpush1.msra.mxu0 0.0
        %5980 = vmatprep.subr.mxu0 0.0
        %5981 = vmatpush1.msra.mxu0 0.0
        %5982 = vmatprep.subr.mxu0 0.0
        %5983 = vmatpush1.msra.mxu0 0.0
        %5984 = vmatprep.subr.mxu0 0.0
        %5985 = vmatpush1.msra.mxu0 0.0
        %5986 = vmatprep.subr.mxu0 0.0
        %5987 = vmatpush1.msra.mxu0 0.0
        %5988 = vmatprep.subr.mxu0 0.0
        %5989 = vmatpush1.msra.mxu0 0.0
        %5990 = vmatprep.subr.mxu0 0.0
        %5991 = vmatpush1.msra.mxu0 0.0
        %5992 = vmatprep.subr.mxu0 0.0
        %5993 = vmatpush1.msra.mxu0 0.0
        %5994 = vmatprep.subr.mxu0 0.0
        %5995 = vmatpush1.msra.mxu0 0.0
        %5996 = vmatprep.subr.mxu0 0.0
        %5997 = vmatpush1.msra.mxu0 0.0
        %5998 = vmatprep.subr.mxu0 0.0
        %5999 = vmatpush1.msra.mxu0 0.0
        %6000 = vmatprep.subr.mxu0 0.0
        %6001 = vmatpush1.msra.mxu0 0.0
        %6002 = vmatprep.subr.mxu0 0.0
        %6003 = vmatpush1.msra.mxu0 0.0
        %6004 = vmatprep.subr.mxu0 0.0
        %6005 = vmatpush1.msra.mxu0 0.0
        %6006 = vmatprep.subr.mxu0 0.0
        %6007 = vmatpush1.msra.mxu0 0.0
        %6008 = vmatprep.subr.mxu0 0.0
        %6009 = vmatpush1.msra.mxu0 0.0
        %6010 = vmatprep.subr.mxu0 0.0
        %6011 = vmatpush1.msra.mxu0 0.0
        %6012 = vmatprep.subr.mxu0 0.0
        %6013 = vmatpush1.msra.mxu0 0.0
        %6014 = vmatprep.subr.mxu0 0.0
        %6015 = vmatpush1.msra.mxu0 0.0
        %6016 = vmatprep.subr.mxu0 0.0
        %6017 = vmatpush1.msra.mxu0 0.0
        %6018 = vmatprep.subr.mxu0 0.0
        %6019 = vmatpush1.msra.mxu0 0.0
        %6020 = vmatprep.subr.mxu0 0.0
        %6021 = vmatpush1.msra.mxu0 0.0
        %6022 = vmatprep.subr.mxu0 0.0
        %6023 = vmatpush1.msra.mxu0 0.0
        %6024 = vmatprep.subr.mxu0 0.0
        %6025 = vmatpush1.msra.mxu0 0.0
        %6026 = vmatprep.subr.mxu0 0.0
        %6027 = vmatpush1.msra.mxu0 0.0
        %6028 = vmatprep.mubr.f32.mxu0 0.0
        %6029 = vmatmul.mubr.f32.gmra.mrb[0].mxu0 %v5962
        %v6030 = vpop.f32.mrb[0].mxu0
        %v6031 = vadd.f32 0.0, %v6030
        %v6032 = vpop.f32.mrb[0].mxu0
        %6033 = vdwg.mxu0
        %v6035 = vsel %vm1970, %v5791, 0
        %6037 = vmatprep.subr.mxu0 0.0
        %6038 = vmatpush1.msra.mxu0 %v5624
        %6039 = vmatprep.subr.mxu0 0.0
        %6040 = vmatpush1.msra.mxu0 0.0
        %6041 = vmatprep.subr.mxu0 0.0
        %6042 = vmatpush1.msra.mxu0 0.0
        %6043 = vmatprep.subr.mxu0 0.0
        %6044 = vmatpush1.msra.mxu0 0.0
        %6045 = vmatprep.subr.mxu0 0.0
        %6046 = vmatpush1.msra.mxu0 0.0
        %6047 = vmatprep.subr.mxu0 0.0
        %6048 = vmatpush1.msra.mxu0 0.0
        %6049 = vmatprep.subr.mxu0 0.0
        %6050 = vmatpush1.msra.mxu0 0.0
        %6051 = vmatprep.subr.mxu0 0.0
        %6052 = vmatpush1.msra.mxu0 0.0
        %6053 = vmatprep.subr.mxu0 0.0
        %6054 = vmatpush1.msra.mxu0 0.0
        %6055 = vmatprep.subr.mxu0 0.0
        %6056 = vmatpush1.msra.mxu0 0.0
        %6057 = vmatprep.subr.mxu0 0.0
        %6058 = vmatpush1.msra.mxu0 0.0
        %6059 = vmatprep.subr.mxu0 0.0
        %6060 = vmatpush1.msra.mxu0 0.0
        %6061 = vmatprep.subr.mxu0 0.0
        %6062 = vmatpush1.msra.mxu0 0.0
        %6063 = vmatprep.subr.mxu0 0.0
        %6064 = vmatpush1.msra.mxu0 0.0
        %6065 = vmatprep.subr.mxu0 0.0
        %6066 = vmatpush1.msra.mxu0 0.0
        %6067 = vmatprep.subr.mxu0 0.0
        %6068 = vmatpush1.msra.mxu0 0.0
        %6069 = vmatprep.subr.mxu0 0.0
        %6070 = vmatpush1.msra.mxu0 0.0
        %6071 = vmatprep.subr.mxu0 0.0
        %6072 = vmatpush1.msra.mxu0 0.0
        %6073 = vmatprep.subr.mxu0 0.0
        %6074 = vmatpush1.msra.mxu0 0.0
        %6075 = vmatprep.subr.mxu0 0.0
        %6076 = vmatpush1.msra.mxu0 0.0
        %6077 = vmatprep.subr.mxu0 0.0
        %6078 = vmatpush1.msra.mxu0 0.0
        %6079 = vmatprep.subr.mxu0 0.0
        %6080 = vmatpush1.msra.mxu0 0.0
        %6081 = vmatprep.subr.mxu0 0.0
        %6082 = vmatpush1.msra.mxu0 0.0
        %6083 = vmatprep.subr.mxu0 0.0
        %6084 = vmatpush1.msra.mxu0 0.0
        %6085 = vmatprep.subr.mxu0 0.0
        %6086 = vmatpush1.msra.mxu0 0.0
        %6087 = vmatprep.subr.mxu0 0.0
        %6088 = vmatpush1.msra.mxu0 0.0
        %6089 = vmatprep.subr.mxu0 0.0
        %6090 = vmatpush1.msra.mxu0 0.0
        %6091 = vmatprep.subr.mxu0 0.0
        %6092 = vmatpush1.msra.mxu0 0.0
        %6093 = vmatprep.subr.mxu0 0.0
        %6094 = vmatpush1.msra.mxu0 0.0
        %6095 = vmatprep.subr.mxu0 0.0
        %6096 = vmatpush1.msra.mxu0 0.0
        %6097 = vmatprep.subr.mxu0 0.0
        %6098 = vmatpush1.msra.mxu0 0.0
        %6099 = vmatprep.subr.mxu0 0.0
        %6100 = vmatpush1.msra.mxu0 0.0
        %6101 = vmatprep.mubr.f32.mxu0 0.0
        %6102 = vmatmul.mubr.f32.gmra.mrb[0].mxu0 %v6035
        %v6103 = vpop.f32.mrb[0].mxu0
        %v6104 = vadd.f32 %v6031, %v6103
        %v6105 = vpop.f32.mrb[0].mxu0
        %6106 = vdwg.mxu0
        %6107 = vrot.lane.b32.xlu0 %v5621, 112
        %v6108 = vpop.permute.xlu0 %6107
        %6109 = vrot.lane.b32.xlu0 %v5621, 80
        %v6110 = vpop.permute.xlu0 %6109
        %v6111 = vsel %vm1970, %v6108, 0
        %v6113 = vsel %vm1970, %v6110, 0
        %6115 = vmatprep.subr.mxu0 0.0
        %6116 = vmatpush1.xpose.msra.mxu0 %v6113
        %6117 = vmatprep.subr.mxu0 0.0
        %6118 = vmatpush1.xpose.msra.mxu0 0.0
        %6119 = vmatprep.subr.mxu0 0.0
        %6120 = vmatpush1.xpose.msra.mxu0 0.0
        %6121 = vmatprep.subr.mxu0 0.0
        %6122 = vmatpush1.xpose.msra.mxu0 0.0
        %6123 = vmatprep.subr.mxu0 0.0
        %6124 = vmatpush1.xpose.msra.mxu0 0.0
        %6125 = vmatprep.subr.mxu0 0.0
        %6126 = vmatpush1.xpose.msra.mxu0 0.0
        %6127 = vmatprep.subr.mxu0 0.0
        %6128 = vmatpush1.xpose.msra.mxu0 0.0
        %6129 = vmatprep.subr.mxu0 0.0
        %6130 = vmatpush1.xpose.msra.mxu0 0.0
        %6131 = vmatprep.subr.mxu0 0.0
        %6132 = vmatpush1.xpose.msra.mxu0 0.0
        %6133 = vmatprep.subr.mxu0 0.0
        %6134 = vmatpush1.xpose.msra.mxu0 0.0
        %6135 = vmatprep.subr.mxu0 0.0
        %6136 = vmatpush1.xpose.msra.mxu0 0.0
        %6137 = vmatprep.subr.mxu0 0.0
        %6138 = vmatpush1.xpose.msra.mxu0 0.0
        %6139 = vmatprep.subr.mxu0 0.0
        %6140 = vmatpush1.xpose.msra.mxu0 0.0
        %6141 = vmatprep.subr.mxu0 0.0
        %6142 = vmatpush1.xpose.msra.mxu0 0.0
        %6143 = vmatprep.subr.mxu0 0.0
        %6144 = vmatpush1.xpose.msra.mxu0 0.0
        %6145 = vmatprep.subr.mxu0 0.0
        %6146 = vmatpush1.xpose.msra.mxu0 0.0
        %6147 = vmatprep.subr.mxu0 0.0
        %6148 = vmatpush1.xpose.msra.mxu0 0.0
        %6149 = vmatprep.subr.mxu0 0.0
        %6150 = vmatpush1.xpose.msra.mxu0 0.0
        %6151 = vmatprep.subr.mxu0 0.0
        %6152 = vmatpush1.xpose.msra.mxu0 0.0
        %6153 = vmatprep.subr.mxu0 0.0
        %6154 = vmatpush1.xpose.msra.mxu0 0.0
        %6155 = vmatprep.subr.mxu0 0.0
        %6156 = vmatpush1.xpose.msra.mxu0 0.0
        %6157 = vmatprep.subr.mxu0 0.0
        %6158 = vmatpush1.xpose.msra.mxu0 0.0
        %6159 = vmatprep.subr.mxu0 0.0
        %6160 = vmatpush1.xpose.msra.mxu0 0.0
        %6161 = vmatprep.subr.mxu0 0.0
        %6162 = vmatpush1.xpose.msra.mxu0 0.0
        %6163 = vmatprep.subr.mxu0 0.0
        %6164 = vmatpush1.xpose.msra.mxu0 0.0
        %6165 = vmatprep.subr.mxu0 0.0
        %6166 = vmatpush1.xpose.msra.mxu0 0.0
        %6167 = vmatprep.subr.mxu0 0.0
        %6168 = vmatpush1.xpose.msra.mxu0 0.0
        %6169 = vmatprep.subr.mxu0 0.0
        %6170 = vmatpush1.xpose.msra.mxu0 0.0
        %6171 = vmatprep.subr.mxu0 0.0
        %6172 = vmatpush1.xpose.msra.mxu0 0.0
        %6173 = vmatprep.subr.mxu0 0.0
        %6174 = vmatpush1.xpose.msra.mxu0 0.0
        %6175 = vmatprep.subr.mxu0 0.0
        %6176 = vmatpush1.xpose.msra.mxu0 0.0
        %6177 = vmatprep.subr.mxu0 0.0
        %6178 = vmatpush1.xpose.msra.mxu0 0.0
        %6179 = vmatprep.mubr.f32.mxu0 0.0
        %6180 = vmatmul.mubr.f32.gmra.mrb[0].mxu0 %v6111
        %v6181 = vpop.f32.mrb[0].mxu0
        %v6182 = vadd.f32 0.0, %v6181
        %v6183 = vpop.f32.mrb[0].mxu0
        %6184 = vdwg.mxu0
        %v6185 = vmul.f32 %v6182, 0.35355338
        %v6186 = vadd.f32 %v6185, %v2401
        %v6187 = vsel %vm1970, %v6186, -inf
        %6188 = vmax.xlane.f32.xlu0 %v6187
        %v6189 = vpop.xlane.xlu0 %6188
        %v6190 = vsub.f32 %v6186, %v6189
        %v6191 = vmul.f32 %v6190, 1.442695
        %v6192 = vpow.pop %v6191
        %v6193 = vsel %vm1970, %v6192, 0.0
        %6194 = vadd.xlane.f32.xlu0 %v6193
        %v6195 = vpop.xlane.xlu0 %6194
        %v6196 = vrcp.pop %v6195
        %v6197 = vmul.f32 %v6192, %v6196
        %6198 = vrot.lane.b32.xlu0 %v5621, 48
        %v6199 = vpop.permute.xlu0 %6198
        %v6202 = vsel %vm1970, %v6197, 0
        %6204 = vmatprep.subr.mxu0 0.0
        %6205 = vmatpush1.msra.mxu0 %v6199
        %6206 = vmatprep.subr.mxu0 0.0
        %6207 = vmatpush1.msra.mxu0 0.0
        %6208 = vmatprep.subr.mxu0 0.0
        %6209 = vmatpush1.msra.mxu0 0.0
        %6210 = vmatprep.subr.mxu0 0.0
        %6211 = vmatpush1.msra.mxu0 0.0
        %6212 = vmatprep.subr.mxu0 0.0
        %6213 = vmatpush1.msra.mxu0 0.0
        %6214 = vmatprep.subr.mxu0 0.0
        %6215 = vmatpush1.msra.mxu0 0.0
        %6216 = vmatprep.subr.mxu0 0.0
        %6217 = vmatpush1.msra.mxu0 0.0
        %6218 = vmatprep.subr.mxu0 0.0
        %6219 = vmatpush1.msra.mxu0 0.0
        %6220 = vmatprep.subr.mxu0 0.0
        %6221 = vmatpush1.msra.mxu0 0.0
        %6222 = vmatprep.subr.mxu0 0.0
        %6223 = vmatpush1.msra.mxu0 0.0
        %6224 = vmatprep.subr.mxu0 0.0
        %6225 = vmatpush1.msra.mxu0 0.0
        %6226 = vmatprep.subr.mxu0 0.0
        %6227 = vmatpush1.msra.mxu0 0.0
        %6228 = vmatprep.subr.mxu0 0.0
        %6229 = vmatpush1.msra.mxu0 0.0
        %6230 = vmatprep.subr.mxu0 0.0
        %6231 = vmatpush1.msra.mxu0 0.0
        %6232 = vmatprep.subr.mxu0 0.0
        %6233 = vmatpush1.msra.mxu0 0.0
        %6234 = vmatprep.subr.mxu0 0.0
        %6235 = vmatpush1.msra.mxu0 0.0
        %6236 = vmatprep.subr.mxu0 0.0
        %6237 = vmatpush1.msra.mxu0 0.0
        %6238 = vmatprep.subr.mxu0 0.0
        %6239 = vmatpush1.msra.mxu0 0.0
        %6240 = vmatprep.subr.mxu0 0.0
        %6241 = vmatpush1.msra.mxu0 0.0
        %6242 = vmatprep.subr.mxu0 0.0
        %6243 = vmatpush1.msra.mxu0 0.0
        %6244 = vmatprep.subr.mxu0 0.0
        %6245 = vmatpush1.msra.mxu0 0.0
        %6246 = vmatprep.subr.mxu0 0.0
        %6247 = vmatpush1.msra.mxu0 0.0
        %6248 = vmatprep.subr.mxu0 0.0
        %6249 = vmatpush1.msra.mxu0 0.0
        %6250 = vmatprep.subr.mxu0 0.0
        %6251 = vmatpush1.msra.mxu0 0.0
        %6252 = vmatprep.subr.mxu0 0.0
        %6253 = vmatpush1.msra.mxu0 0.0
        %6254 = vmatprep.subr.mxu0 0.0
        %6255 = vmatpush1.msra.mxu0 0.0
        %6256 = vmatprep.subr.mxu0 0.0
        %6257 = vmatpush1.msra.mxu0 0.0
        %6258 = vmatprep.subr.mxu0 0.0
        %6259 = vmatpush1.msra.mxu0 0.0
        %6260 = vmatprep.subr.mxu0 0.0
        %6261 = vmatpush1.msra.mxu0 0.0
        %6262 = vmatprep.subr.mxu0 0.0
        %6263 = vmatpush1.msra.mxu0 0.0
        %6264 = vmatprep.subr.mxu0 0.0
        %6265 = vmatpush1.msra.mxu0 0.0
        %6266 = vmatprep.subr.mxu0 0.0
        %6267 = vmatpush1.msra.mxu0 0.0
        %6268 = vmatprep.mubr.f32.mxu0 0.0
        %6269 = vmatmul.mubr.f32.gmra.mrb[0].mxu0 %v6202
        %v6270 = vpop.f32.mrb[0].mxu0
        %v6271 = vadd.f32 0.0, %v6270
        %v6272 = vpop.f32.mrb[0].mxu0
        %6273 = vdwg.mxu0
        %v6275 = vsel %vm1970, %v6271, 0
        %6277 = vmatprep.subr.mxu0 0.0
        %6278 = vmatpush1.msra.mxu0 %v5626
        %6279 = vmatprep.subr.mxu0 0.0
        %6280 = vmatpush1.msra.mxu0 0.0
        %6281 = vmatprep.subr.mxu0 0.0
        %6282 = vmatpush1.msra.mxu0 0.0
        %6283 = vmatprep.subr.mxu0 0.0
        %6284 = vmatpush1.msra.mxu0 0.0
        %6285 = vmatprep.subr.mxu0 0.0
        %6286 = vmatpush1.msra.mxu0 0.0
        %6287 = vmatprep.subr.mxu0 0.0
        %6288 = vmatpush1.msra.mxu0 0.0
        %6289 = vmatprep.subr.mxu0 0.0
        %6290 = vmatpush1.msra.mxu0 0.0
        %6291 = vmatprep.subr.mxu0 0.0
        %6292 = vmatpush1.msra.mxu0 0.0
        %6293 = vmatprep.subr.mxu0 0.0
        %6294 = vmatpush1.msra.mxu0 0.0
        %6295 = vmatprep.subr.mxu0 0.0
        %6296 = vmatpush1.msra.mxu0 0.0
        %6297 = vmatprep.subr.mxu0 0.0
        %6298 = vmatpush1.msra.mxu0 0.0
        %6299 = vmatprep.subr.mxu0 0.0
        %6300 = vmatpush1.msra.mxu0 0.0
        %6301 = vmatprep.subr.mxu0 0.0
        %6302 = vmatpush1.msra.mxu0 0.0
        %6303 = vmatprep.subr.mxu0 0.0
        %6304 = vmatpush1.msra.mxu0 0.0
        %6305 = vmatprep.subr.mxu0 0.0
        %6306 = vmatpush1.msra.mxu0 0.0
        %6307 = vmatprep.subr.mxu0 0.0
        %6308 = vmatpush1.msra.mxu0 0.0
        %6309 = vmatprep.subr.mxu0 0.0
        %6310 = vmatpush1.msra.mxu0 0.0
        %6311 = vmatprep.subr.mxu0 0.0
        %6312 = vmatpush1.msra.mxu0 0.0
        %6313 = vmatprep.subr.mxu0 0.0
        %6314 = vmatpush1.msra.mxu0 0.0
        %6315 = vmatprep.subr.mxu0 0.0
        %6316 = vmatpush1.msra.mxu0 0.0
        %6317 = vmatprep.subr.mxu0 0.0
        %6318 = vmatpush1.msra.mxu0 0.0
        %6319 = vmatprep.subr.mxu0 0.0
        %6320 = vmatpush1.msra.mxu0 0.0
        %6321 = vmatprep.subr.mxu0 0.0
        %6322 = vmatpush1.msra.mxu0 0.0
        %6323 = vmatprep.subr.mxu0 0.0
        %6324 = vmatpush1.msra.mxu0 0.0
        %6325 = vmatprep.subr.mxu0 0.0
        %6326 = vmatpush1.msra.mxu0 0.0
        %6327 = vmatprep.subr.mxu0 0.0
        %6328 = vmatpush1.msra.mxu0 0.0
        %6329 = vmatprep.subr.mxu0 0.0
        %6330 = vmatpush1.msra.mxu0 0.0
        %6331 = vmatprep.subr.mxu0 0.0
        %6332 = vmatpush1.msra.mxu0 0.0
        %6333 = vmatprep.subr.mxu0 0.0
        %6334 = vmatpush1.msra.mxu0 0.0
        %6335 = vmatprep.subr.mxu0 0.0
        %6336 = vmatpush1.msra.mxu0 0.0
        %6337 = vmatprep.subr.mxu0 0.0
        %6338 = vmatpush1.msra.mxu0 0.0
        %6339 = vmatprep.subr.mxu0 0.0
        %6340 = vmatpush1.msra.mxu0 0.0
        %6341 = vmatprep.mubr.f32.mxu0 0.0
        %6342 = vmatmul.mubr.f32.gmra.mrb[0].mxu0 %v6275
        %v6343 = vpop.f32.mrb[0].mxu0
        %v6344 = vadd.f32 0.0, %v6343
        %v6345 = vpop.f32.mrb[0].mxu0
        %6346 = vdwg.mxu0
        %v6347 = vadd.f32 %v6104, %v6344
        %6348 = vrot.lane.b32.xlu0 %v5621, 104
        %v6349 = vpop.permute.xlu0 %6348
        %6350 = vrot.lane.b32.xlu0 %v5621, 72
        %v6351 = vpop.permute.xlu0 %6350
        %v6352 = vsel %vm1970, %v6349, 0
        %v6354 = vsel %vm1970, %v6351, 0
        %6356 = vmatprep.subr.mxu0 0.0
        %6357 = vmatpush1.xpose.msra.mxu0 %v6354
        %6358 = vmatprep.subr.mxu0 0.0
        %6359 = vmatpush1.xpose.msra.mxu0 0.0
        %6360 = vmatprep.subr.mxu0 0.0
        %6361 = vmatpush1.xpose.msra.mxu0 0.0
        %6362 = vmatprep.subr.mxu0 0.0
        %6363 = vmatpush1.xpose.msra.mxu0 0.0
        %6364 = vmatprep.subr.mxu0 0.0
        %6365 = vmatpush1.xpose.msra.mxu0 0.0
        %6366 = vmatprep.subr.mxu0 0.0
        %6367 = vmatpush1.xpose.msra.mxu0 0.0
        %6368 = vmatprep.subr.mxu0 0.0
        %6369 = vmatpush1.xpose.msra.mxu0 0.0
        %6370 = vmatprep.subr.mxu0 0.0
        %6371 = vmatpush1.xpose.msra.mxu0 0.0
        %6372 = vmatprep.subr.mxu0 0.0
        %6373 = vmatpush1.xpose.msra.mxu0 0.0
        %6374 = vmatprep.subr.mxu0 0.0
        %6375 = vmatpush1.xpose.msra.mxu0 0.0
        %6376 = vmatprep.subr.mxu0 0.0
        %6377 = vmatpush1.xpose.msra.mxu0 0.0
        %6378 = vmatprep.subr.mxu0 0.0
        %6379 = vmatpush1.xpose.msra.mxu0 0.0
        %6380 = vmatprep.subr.mxu0 0.0
        %6381 = vmatpush1.xpose.msra.mxu0 0.0
        %6382 = vmatprep.subr.mxu0 0.0
        %6383 = vmatpush1.xpose.msra.mxu0 0.0
        %6384 = vmatprep.subr.mxu0 0.0
        %6385 = vmatpush1.xpose.msra.mxu0 0.0
        %6386 = vmatprep.subr.mxu0 0.0
        %6387 = vmatpush1.xpose.msra.mxu0 0.0
        %6388 = vmatprep.subr.mxu0 0.0
        %6389 = vmatpush1.xpose.msra.mxu0 0.0
        %6390 = vmatprep.subr.mxu0 0.0
        %6391 = vmatpush1.xpose.msra.mxu0 0.0
        %6392 = vmatprep.subr.mxu0 0.0
        %6393 = vmatpush1.xpose.msra.mxu0 0.0
        %6394 = vmatprep.subr.mxu0 0.0
        %6395 = vmatpush1.xpose.msra.mxu0 0.0
        %6396 = vmatprep.subr.mxu0 0.0
        %6397 = vmatpush1.xpose.msra.mxu0 0.0
        %6398 = vmatprep.subr.mxu0 0.0
        %6399 = vmatpush1.xpose.msra.mxu0 0.0
        %6400 = vmatprep.subr.mxu0 0.0
        %6401 = vmatpush1.xpose.msra.mxu0 0.0
        %6402 = vmatprep.subr.mxu0 0.0
        %6403 = vmatpush1.xpose.msra.mxu0 0.0
        %6404 = vmatprep.subr.mxu0 0.0
        %6405 = vmatpush1.xpose.msra.mxu0 0.0
        %6406 = vmatprep.subr.mxu0 0.0
        %6407 = vmatpush1.xpose.msra.mxu0 0.0
        %6408 = vmatprep.subr.mxu0 0.0
        %6409 = vmatpush1.xpose.msra.mxu0 0.0
        %6410 = vmatprep.subr.mxu0 0.0
        %6411 = vmatpush1.xpose.msra.mxu0 0.0
        %6412 = vmatprep.subr.mxu0 0.0
        %6413 = vmatpush1.xpose.msra.mxu0 0.0
        %6414 = vmatprep.subr.mxu0 0.0
        %6415 = vmatpush1.xpose.msra.mxu0 0.0
        %6416 = vmatprep.subr.mxu0 0.0
        %6417 = vmatpush1.xpose.msra.mxu0 0.0
        %6418 = vmatprep.subr.mxu0 0.0
        %6419 = vmatpush1.xpose.msra.mxu0 0.0
        %6420 = vmatprep.mubr.f32.mxu0 0.0
        %6421 = vmatmul.mubr.f32.gmra.mrb[0].mxu0 %v6352
        %v6422 = vpop.f32.mrb[0].mxu0
        %v6423 = vadd.f32 0.0, %v6422
        %v6424 = vpop.f32.mrb[0].mxu0
        %6425 = vdwg.mxu0
        %v6426 = vmul.f32 %v6423, 0.35355338
        %v6427 = vadd.f32 %v6426, %v2401
        %v6428 = vsel %vm1970, %v6427, -inf
        %6429 = vmax.xlane.f32.xlu0 %v6428
        %v6430 = vpop.xlane.xlu0 %6429
        %v6431 = vsub.f32 %v6427, %v6430
        %v6432 = vmul.f32 %v6431, 1.442695
        %v6433 = vpow.pop %v6432
        %v6434 = vsel %vm1970, %v6433, 0.0
        %6435 = vadd.xlane.f32.xlu0 %v6434
        %v6436 = vpop.xlane.xlu0 %6435
        %v6437 = vrcp.pop %v6436
        %v6438 = vmul.f32 %v6433, %v6437
        %6439 = vrot.lane.b32.xlu0 %v5621, 40
        %v6440 = vpop.permute.xlu0 %6439
        %v6443 = vsel %vm1970, %v6438, 0
        %6445 = vmatprep.subr.mxu0 0.0
        %6446 = vmatpush1.msra.mxu0 %v6440
        %6447 = vmatprep.subr.mxu0 0.0
        %6448 = vmatpush1.msra.mxu0 0.0
        %6449 = vmatprep.subr.mxu0 0.0
        %6450 = vmatpush1.msra.mxu0 0.0
        %6451 = vmatprep.subr.mxu0 0.0
        %6452 = vmatpush1.msra.mxu0 0.0
        %6453 = vmatprep.subr.mxu0 0.0
        %6454 = vmatpush1.msra.mxu0 0.0
        %6455 = vmatprep.subr.mxu0 0.0
        %6456 = vmatpush1.msra.mxu0 0.0
        %6457 = vmatprep.subr.mxu0 0.0
        %6458 = vmatpush1.msra.mxu0 0.0
        %6459 = vmatprep.subr.mxu0 0.0
        %6460 = vmatpush1.msra.mxu0 0.0
        %6461 = vmatprep.subr.mxu0 0.0
        %6462 = vmatpush1.msra.mxu0 0.0
        %6463 = vmatprep.subr.mxu0 0.0
        %6464 = vmatpush1.msra.mxu0 0.0
        %6465 = vmatprep.subr.mxu0 0.0
        %6466 = vmatpush1.msra.mxu0 0.0
        %6467 = vmatprep.subr.mxu0 0.0
        %6468 = vmatpush1.msra.mxu0 0.0
        %6469 = vmatprep.subr.mxu0 0.0
        %6470 = vmatpush1.msra.mxu0 0.0
        %6471 = vmatprep.subr.mxu0 0.0
        %6472 = vmatpush1.msra.mxu0 0.0
        %6473 = vmatprep.subr.mxu0 0.0
        %6474 = vmatpush1.msra.mxu0 0.0
        %6475 = vmatprep.subr.mxu0 0.0
        %6476 = vmatpush1.msra.mxu0 0.0
        %6477 = vmatprep.subr.mxu0 0.0
        %6478 = vmatpush1.msra.mxu0 0.0
        %6479 = vmatprep.subr.mxu0 0.0
        %6480 = vmatpush1.msra.mxu0 0.0
        %6481 = vmatprep.subr.mxu0 0.0
        %6482 = vmatpush1.msra.mxu0 0.0
        %6483 = vmatprep.subr.mxu0 0.0
        %6484 = vmatpush1.msra.mxu0 0.0
        %6485 = vmatprep.subr.mxu0 0.0
        %6486 = vmatpush1.msra.mxu0 0.0
        %6487 = vmatprep.subr.mxu0 0.0
        %6488 = vmatpush1.msra.mxu0 0.0
        %6489 = vmatprep.subr.mxu0 0.0
        %6490 = vmatpush1.msra.mxu0 0.0
        %6491 = vmatprep.subr.mxu0 0.0
        %6492 = vmatpush1.msra.mxu0 0.0
        %6493 = vmatprep.subr.mxu0 0.0
        %6494 = vmatpush1.msra.mxu0 0.0
        %6495 = vmatprep.subr.mxu0 0.0
        %6496 = vmatpush1.msra.mxu0 0.0
        %6497 = vmatprep.subr.mxu0 0.0
        %6498 = vmatpush1.msra.mxu0 0.0
        %6499 = vmatprep.subr.mxu0 0.0
        %6500 = vmatpush1.msra.mxu0 0.0
        %6501 = vmatprep.subr.mxu0 0.0
        %6502 = vmatpush1.msra.mxu0 0.0
        %6503 = vmatprep.subr.mxu0 0.0
        %6504 = vmatpush1.msra.mxu0 0.0
        %6505 = vmatprep.subr.mxu0 0.0
        %6506 = vmatpush1.msra.mxu0 0.0
        %6507 = vmatprep.subr.mxu0 0.0
        %6508 = vmatpush1.msra.mxu0 0.0
        %6509 = vmatprep.mubr.f32.mxu0 0.0
        %6510 = vmatmul.mubr.f32.gmra.mrb[0].mxu0 %v6443
        %v6511 = vpop.f32.mrb[0].mxu0
        %v6512 = vadd.f32 0.0, %v6511
        %v6513 = vpop.f32.mrb[0].mxu0
        %6514 = vdwg.mxu0
        %v6516 = vsel %vm1970, %v6512, 0
        %6518 = vmatprep.subr.mxu0 0.0
        %6519 = vmatpush1.msra.mxu0 %v5627
        %6520 = vmatprep.subr.mxu0 0.0
        %6521 = vmatpush1.msra.mxu0 0.0
        %6522 = vmatprep.subr.mxu0 0.0
        %6523 = vmatpush1.msra.mxu0 0.0
        %6524 = vmatprep.subr.mxu0 0.0
        %6525 = vmatpush1.msra.mxu0 0.0
        %6526 = vmatprep.subr.mxu0 0.0
        %6527 = vmatpush1.msra.mxu0 0.0
        %6528 = vmatprep.subr.mxu0 0.0
        %6529 = vmatpush1.msra.mxu0 0.0
        %6530 = vmatprep.subr.mxu0 0.0
        %6531 = vmatpush1.msra.mxu0 0.0
        %6532 = vmatprep.subr.mxu0 0.0
        %6533 = vmatpush1.msra.mxu0 0.0
        %6534 = vmatprep.subr.mxu0 0.0
        %6535 = vmatpush1.msra.mxu0 0.0
        %6536 = vmatprep.subr.mxu0 0.0
        %6537 = vmatpush1.msra.mxu0 0.0
        %6538 = vmatprep.subr.mxu0 0.0
        %6539 = vmatpush1.msra.mxu0 0.0
        %6540 = vmatprep.subr.mxu0 0.0
        %6541 = vmatpush1.msra.mxu0 0.0
        %6542 = vmatprep.subr.mxu0 0.0
        %6543 = vmatpush1.msra.mxu0 0.0
        %6544 = vmatprep.subr.mxu0 0.0
        %6545 = vmatpush1.msra.mxu0 0.0
        %6546 = vmatprep.subr.mxu0 0.0
        %6547 = vmatpush1.msra.mxu0 0.0
        %6548 = vmatprep.subr.mxu0 0.0
        %6549 = vmatpush1.msra.mxu0 0.0
        %6550 = vmatprep.subr.mxu0 0.0
        %6551 = vmatpush1.msra.mxu0 0.0
        %6552 = vmatprep.subr.mxu0 0.0
        %6553 = vmatpush1.msra.mxu0 0.0
        %6554 = vmatprep.subr.mxu0 0.0
        %6555 = vmatpush1.msra.mxu0 0.0
        %6556 = vmatprep.subr.mxu0 0.0
        %6557 = vmatpush1.msra.mxu0 0.0
        %6558 = vmatprep.subr.mxu0 0.0
        %6559 = vmatpush1.msra.mxu0 0.0
        %6560 = vmatprep.subr.mxu0 0.0
        %6561 = vmatpush1.msra.mxu0 0.0
        %6562 = vmatprep.subr.mxu0 0.0
        %6563 = vmatpush1.msra.mxu0 0.0
        %6564 = vmatprep.subr.mxu0 0.0
        %6565 = vmatpush1.msra.mxu0 0.0
        %6566 = vmatprep.subr.mxu0 0.0
        %6567 = vmatpush1.msra.mxu0 0.0
        %6568 = vmatprep.subr.mxu0 0.0
        %6569 = vmatpush1.msra.mxu0 0.0
        %6570 = vmatprep.subr.mxu0 0.0
        %6571 = vmatpush1.msra.mxu0 0.0
        %6572 = vmatprep.subr.mxu0 0.0
        %6573 = vmatpush1.msra.mxu0 0.0
        %6574 = vmatprep.subr.mxu0 0.0
        %6575 = vmatpush1.msra.mxu0 0.0
        %6576 = vmatprep.subr.mxu0 0.0
        %6577 = vmatpush1.msra.mxu0 0.0
        %6578 = vmatprep.subr.mxu0 0.0
        %6579 = vmatpush1.msra.mxu0 0.0
        %6580 = vmatprep.subr.mxu0 0.0
        %6581 = vmatpush1.msra.mxu0 0.0
        %6582 = vmatprep.mubr.f32.mxu0 0.0
        %6583 = vmatmul.mubr.f32.gmra.mrb[0].mxu0 %v6516
        %v6584 = vpop.f32.mrb[0].mxu0
        %v6585 = vadd.f32 0.0, %v6584
        %v6586 = vpop.f32.mrb[0].mxu0
        %6587 = vdwg.mxu0
        %v6588 = vadd.f32 %v6347, %v6585
        %v6589 = vld [vmem:[#allocation18] sm:$0x1]
        %v6591 = vlaneseq
        %v6592 = vshrl.u32 %v6591, 7
        %v6593 = vsub.s32 0, %v6592
        %v6594 = vrot.slane %v6589, %v6593
        %v6596 = vadd.f32 %v6588, %v6594
        %v6597 = vadd.f32 %v6596, %v5539
        %v6598 = vld [vmem:[#allocation19] sm:$0x1]
        %v6599 = vld [vmem:[#allocation21] sm:$0x1]
        %v6600 = vsel %vm1939, %v6597, 0.0
        %6601 = vadd.xlane.f32.xlu0 %v6600
        %v6602 = vpop.xlane.xlu0 %6601
        %v6603 = vmul.f32 %v6602, %v1943
        %v6604 = vsub.f32 %v6597, %v6603
        %v6605 = vmul.f32 %v6604, %v6604
        %v6606 = vsel %vm1939, %v6605, 0.0
        %6607 = vadd.xlane.f32.xlu0 %v6606
        %v6608 = vpop.xlane.xlu0 %6607
        %v6609 = vmul.f32 %v6608, %v1943
        %v6610 = vadd.f32 %v6609, 1e-12
        %v6611 = vrsqrt.pop %v6610
        %v6612 = vmul.f32 %v6604, %v6611
        %v6614 = vlaneseq
        %v6615 = vshrl.u32 %v6614, 7
        %v6616 = vsub.s32 0, %v6615
        %v6617 = vrot.slane %v6598, %v6616
        %v6619 = vmul.f32 %v6612, %v6617
        %v6621 = vlaneseq
        %v6622 = vshrl.u32 %v6621, 7
        %v6623 = vsub.s32 0, %v6622
        %v6624 = vrot.slane %v6599, %v6623
        %v6626 = vadd.f32 %v6619, %v6624
        %v6627 = vld [vmem:[%s105] sm:$0xff]
        %v6628 = vld [vmem:[%s105 + $0x8] sm:$0xff]
        %v6629 = vld [vmem:[%s105 + $0x10] sm:$0xff]
        %v6630 = vld [vmem:[%s105 + $0x18] sm:$0xff]
        %v6631 = vld [vmem:[#allocation22] sm:$0x1]
        %v6633 = vlaneseq
        %v6634 = vshrl.u32 %v6633, 7
        %v6635 = vsub.s32 0, %v6634
        %v6636 = vrot.slane %v6631, %v6635
        %v6639 = vsel %vm1939, %v6626, 0
        %6641 = vmatprep.subr.mxu0 0.0
        %6642 = vmatpush1.msra.mxu0 %v6627
        %6643 = vmatprep.subr.mxu0 0.0
        %6644 = vmatpush1.msra.mxu0 %v6628
        %6645 = vmatprep.subr.mxu0 0.0
        %6646 = vmatpush1.msra.mxu0 %v6629
        %6647 = vmatprep.subr.mxu0 0.0
        %6648 = vmatpush1.msra.mxu0 %v6630
        %6649 = vmatprep.subr.mxu0 0.0
        %6650 = vmatpush1.msra.mxu0 0.0
        %6651 = vmatprep.subr.mxu0 0.0
        %6652 = vmatpush1.msra.mxu0 0.0
        %6653 = vmatprep.subr.mxu0 0.0
        %6654 = vmatpush1.msra.mxu0 0.0
        %6655 = vmatprep.subr.mxu0 0.0
        %6656 = vmatpush1.msra.mxu0 0.0
        %6657 = vmatprep.subr.mxu0 0.0
        %6658 = vmatpush1.msra.mxu0 0.0
        %6659 = vmatprep.subr.mxu0 0.0
        %6660 = vmatpush1.msra.mxu0 0.0
        %6661 = vmatprep.subr.mxu0 0.0
        %6662 = vmatpush1.msra.mxu0 0.0
        %6663 = vmatprep.subr.mxu0 0.0
        %6664 = vmatpush1.msra.mxu0 0.0
        %6665 = vmatprep.subr.mxu0 0.0
        %6666 = vmatpush1.msra.mxu0 0.0
        %6667 = vmatprep.subr.mxu0 0.0
        %6668 = vmatpush1.msra.mxu0 0.0
        %6669 = vmatprep.subr.mxu0 0.0
        %6670 = vmatpush1.msra.mxu0 0.0
        %6671 = vmatprep.subr.mxu0 0.0
        %6672 = vmatpush1.msra.mxu0 0.0
        %6673 = vmatprep.subr.mxu0 0.0
        %6674 = vmatpush1.msra.mxu0 0.0
        %6675 = vmatprep.subr.mxu0 0.0
        %6676 = vmatpush1.msra.mxu0 0.0
        %6677 = vmatprep.subr.mxu0 0.0
        %6678 = vmatpush1.msra.mxu0 0.0
        %6679 = vmatprep.subr.mxu0 0.0
        %6680 = vmatpush1.msra.mxu0 0.0
        %6681 = vmatprep.subr.mxu0 0.0
        %6682 = vmatpush1.msra.mxu0 0.0
        %6683 = vmatprep.subr.mxu0 0.0
        %6684 = vmatpush1.msra.mxu0 0.0
        %6685 = vmatprep.subr.mxu0 0.0
        %6686 = vmatpush1.msra.mxu0 0.0
        %6687 = vmatprep.subr.mxu0 0.0
        %6688 = vmatpush1.msra.mxu0 0.0
        %6689 = vmatprep.subr.mxu0 0.0
        %6690 = vmatpush1.msra.mxu0 0.0
        %6691 = vmatprep.subr.mxu0 0.0
        %6692 = vmatpush1.msra.mxu0 0.0
        %6693 = vmatprep.subr.mxu0 0.0
        %6694 = vmatpush1.msra.mxu0 0.0
        %6695 = vmatprep.subr.mxu0 0.0
        %6696 = vmatpush1.msra.mxu0 0.0
        %6697 = vmatprep.subr.mxu0 0.0
        %6698 = vmatpush1.msra.mxu0 0.0
        %6699 = vmatprep.subr.mxu0 0.0
        %6700 = vmatpush1.msra.mxu0 0.0
        %6701 = vmatprep.subr.mxu0 0.0
        %6702 = vmatpush1.msra.mxu0 0.0
        %6703 = vmatprep.subr.mxu0 0.0
        %6704 = vmatpush1.msra.mxu0 0.0
        %6705 = vmatprep.mubr.f32.mxu0 0.0
        %6706 = vmatmul.mubr.f32.gmra.mrb[0].mxu0 %v6639
        %v6707 = vpop.f32.mrb[0].mxu0
        %v6708 = vadd.f32 %v6636, %v6707
        %v6709 = vpop.f32.mrb[0].mxu0
        %6710 = vdwg.mxu0
        %v6711 = vmul.f32 %v6708, 0.5
        %v6712 = vmul.f32 %v6708, 0.70710677
        %v6713 = vand.u32 2147483647, %v6712
        %v6714 = vmul.f32 %v6713, 0.3275911
        %v6715 = vadd.f32 %v6714, 1.0
        %v6716 = vrcp.pop %v6715
        %v6717 = vmul.f32 1.0, %v6716
        %v6718 = vmul.f32 %v6717, 1.0614054
        %v6719 = vadd.f32 %v6718, -1.4531521
        %v6720 = vmul.f32 %v6717, %v6719
        %v6721 = vadd.f32 %v6720, 1.4214138
        %v6722 = vmul.f32 %v6717, %v6721
        %v6723 = vadd.f32 %v6722, -0.28449672
        %v6724 = vmul.f32 %v6717, %v6723
        %v6725 = vadd.f32 %v6724, 0.2548296
        %v6726 = vmul.f32 %v6717, %v6725
        %v6727 = vsub.f32 0.0, %v6713
        %v6728 = vmul.f32 %v6727, %v6713
        %v6729 = vmul.f32 %v6728, 1.442695
        %v6730 = vpow.pop %v6729
        %v6731 = vmul.f32 %v6726, %v6730
        %v6732 = vsub.f32 1.0, %v6731
        %vm6733 = vcmp.ge.f32.partialorder %v6712, 0.0
        %v6734 = vsub.f32 0.0, %v6732
        %v6735 = vsel %vm6733, %v6732, %v6734
        %v6736 = vadd.f32 %v6735, 1.0
        %v6737 = vmul.f32 %v6711, %v6736
        %v6738 = vld [vmem:[%s109] sm:$0xff]
        %v6739 = vld [vmem:[%s109 + $0x8] sm:$0xff]
        %v6740 = vld [vmem:[%s109 + $0x10] sm:$0xff]
        %v6741 = vld [vmem:[%s109 + $0x18] sm:$0xff]
        %v6742 = vld [vmem:[%s109 + $0x20] sm:$0xff]
        %v6743 = vld [vmem:[%s109 + $0x28] sm:$0xff]
        %v6744 = vld [vmem:[%s109 + $0x30] sm:$0xff]
        %v6745 = vld [vmem:[%s109 + $0x38] sm:$0xff]
        %v6746 = vld [vmem:[#allocation24] sm:$0x1]
        %v6748 = vlaneseq
        %v6749 = vshrl.u32 %v6748, 7
        %v6750 = vsub.s32 0, %v6749
        %v6751 = vrot.slane %v6746, %v6750
        %v6754 = vsel %vm3450, %v6737, 0
        %6756 = vmatprep.subr.mxu0 0.0
        %6757 = vmatpush1.msra.mxu0 %v6738
        %6758 = vmatprep.subr.mxu0 0.0
        %6759 = vmatpush1.msra.mxu0 %v6739
        %6760 = vmatprep.subr.mxu0 0.0
        %6761 = vmatpush1.msra.mxu0 %v6740
        %6762 = vmatprep.subr.mxu0 0.0
        %6763 = vmatpush1.msra.mxu0 %v6741
        %6764 = vmatprep.subr.mxu0 0.0
        %6765 = vmatpush1.msra.mxu0 %v6742
        %6766 = vmatprep.subr.mxu0 0.0
        %6767 = vmatpush1.msra.mxu0 %v6743
        %6768 = vmatprep.subr.mxu0 0.0
        %6769 = vmatpush1.msra.mxu0 %v6744
        %6770 = vmatprep.subr.mxu0 0.0
        %6771 = vmatpush1.msra.mxu0 %v6745
        %6772 = vmatprep.subr.mxu0 0.0
        %6773 = vmatpush1.msra.mxu0 0.0
        %6774 = vmatprep.subr.mxu0 0.0
        %6775 = vmatpush1.msra.mxu0 0.0
        %6776 = vmatprep.subr.mxu0 0.0
        %6777 = vmatpush1.msra.mxu0 0.0
        %6778 = vmatprep.subr.mxu0 0.0
        %6779 = vmatpush1.msra.mxu0 0.0
        %6780 = vmatprep.subr.mxu0 0.0
        %6781 = vmatpush1.msra.mxu0 0.0
        %6782 = vmatprep.subr.mxu0 0.0
        %6783 = vmatpush1.msra.mxu0 0.0
        %6784 = vmatprep.subr.mxu0 0.0
        %6785 = vmatpush1.msra.mxu0 0.0
        %6786 = vmatprep.subr.mxu0 0.0
        %6787 = vmatpush1.msra.mxu0 0.0
        %6788 = vmatprep.subr.mxu0 0.0
        %6789 = vmatpush1.msra.mxu0 0.0
        %6790 = vmatprep.subr.mxu0 0.0
        %6791 = vmatpush1.msra.mxu0 0.0
        %6792 = vmatprep.subr.mxu0 0.0
        %6793 = vmatpush1.msra.mxu0 0.0
        %6794 = vmatprep.subr.mxu0 0.0
        %6795 = vmatpush1.msra.mxu0 0.0
        %6796 = vmatprep.subr.mxu0 0.0
        %6797 = vmatpush1.msra.mxu0 0.0
        %6798 = vmatprep.subr.mxu0 0.0
        %6799 = vmatpush1.msra.mxu0 0.0
        %6800 = vmatprep.subr.mxu0 0.0
        %6801 = vmatpush1.msra.mxu0 0.0
        %6802 = vmatprep.subr.mxu0 0.0
        %6803 = vmatpush1.msra.mxu0 0.0
        %6804 = vmatprep.subr.mxu0 0.0
        %6805 = vmatpush1.msra.mxu0 0.0
        %6806 = vmatprep.subr.mxu0 0.0
        %6807 = vmatpush1.msra.mxu0 0.0
        %6808 = vmatprep.subr.mxu0 0.0
        %6809 = vmatpush1.msra.mxu0 0.0
        %6810 = vmatprep.subr.mxu0 0.0
        %6811 = vmatpush1.msra.mxu0 0.0
        %6812 = vmatprep.subr.mxu0 0.0
        %6813 = vmatpush1.msra.mxu0 0.0
        %6814 = vmatprep.subr.mxu0 0.0
        %6815 = vmatpush1.msra.mxu0 0.0
        %6816 = vmatprep.subr.mxu0 0.0
        %6817 = vmatpush1.msra.mxu0 0.0
        %6818 = vmatprep.subr.mxu0 0.0
        %6819 = vmatpush1.msra.mxu0 0.0
        %6820 = vmatprep.mubr.f32.mxu0 0.0
        %6821 = vmatmul.mubr.f32.gmra.mrb[0].mxu0 %v6754
        %v6822 = vpop.f32.mrb[0].mxu0
        %v6823 = vadd.f32 %v6751, %v6822
        %v6824 = vpop.f32.mrb[0].mxu0
        %6825 = vdwg.mxu0
        %v6826 = vadd.f32 %v6823, %v6626
        %v6827 = vld [vmem:[#allocation25] sm:$0x1]
        %v6828 = vld [vmem:[#allocation27] sm:$0x1]
        %v6829 = vsel %vm1939, %v6826, 0.0
        %6830 = vadd.xlane.f32.xlu0 %v6829
        %v6831 = vpop.xlane.xlu0 %6830
        %v6832 = vmul.f32 %v6831, %v1943
        %v6833 = vsub.f32 %v6826, %v6832
        %v6834 = vmul.f32 %v6833, %v6833
        %v6835 = vsel %vm1939, %v6834, 0.0
        %6836 = vadd.xlane.f32.xlu0 %v6835
        %v6837 = vpop.xlane.xlu0 %6836
        %v6838 = vmul.f32 %v6837, %v1943
        %v6839 = vadd.f32 %v6838, 1e-12
        %v6840 = vrsqrt.pop %v6839
        %v6841 = vmul.f32 %v6833, %v6840
        %v6843 = vlaneseq
        %v6844 = vshrl.u32 %v6843, 7
        %v6845 = vsub.s32 0, %v6844
        %v6846 = vrot.slane %v6827, %v6845
        %v6848 = vmul.f32 %v6841, %v6846
        %v6850 = vlaneseq
        %v6851 = vshrl.u32 %v6850, 7
        %v6852 = vsub.s32 0, %v6851
        %v6853 = vrot.slane %v6828, %v6852
        %v6855 = vadd.f32 %v6848, %v6853
        %vm6856 = vcmask 253952
        %6857 = vst.msk [vmem:[%s1934] sm:$0x1] %vm6856, %v6855
        %p6858 = scmp.lt.s32.totalorder %s137, 1
        %s6859 = scalar_select %p6858, %s137, 1
        %s6860 = scalar_lea.vmem %s117, %s6859
        // Predicated region
        $region321: #{model_forward.1} parent=251 // pred_check
          %p6861 = pneg %p1383
        $region322: #{model_forward.1} parent=251 // pred_check_branch
          %6863 = sbr.rel (%p6861) target = $region324
        $region323: #{model_forward.1} parent=251 // pred_region
          _
        $region324: #{model_forward.1} parent=251 // pred_fallthru
          _
      $region252: #{model_forward.1} parent=5 // pred_fallthru
        _
      %p6864 = scmp.le.s32.totalorder 2, %s132
      // Predicated region
      $region325: #{model_forward.1} parent=5 // pred_check
        %p6865 = pneg %p6864
      $region326: #{model_forward.1} parent=5 // pred_check_branch
        %6867 = sbr.rel (%p6865) target = $region328
      $region327: #{model_forward.1} parent=5 // pred_region
        %s6868 = ssub.s32 %s132, 2
        // Predicated region
        $region329: #{model_forward.1} parent=327 // pred_check
          %p6869 = pneg %p1389
        $region330: #{model_forward.1} parent=327 // pred_check_branch
          %6871 = sbr.rel (%p6869) target = $region332
        $region331: #{model_forward.1} parent=327 // pred_region
          %p6872 = scmp.lt.s32.totalorder %s138, 1
          %s6873 = scalar_select %p6872, %s138, 1
          %s6874 = scalar_lea.vmem %s117, %s6873
        $region332: #{model_forward.1} parent=327 // pred_fallthru
          _
      $region328: #{model_forward.1} parent=5 // pred_fallthru
        _
    $region6: #{model_forward.1} parent=1 // loop_footer
      %s136 = sadd.s32 1, %s132
    $region7: #{model_forward.1} parent=1 // loop_footer_branch
      %131 = sbr.rel target = $region3
    $region8: #{model_forward.1} parent=1 // loop_exit
      _
    %6875 = vsyncpa [#allocation3], 1
    %s6876 = scalar_lea.sflag [#allocation3], 1
    %6877 = vsyncpa %s6876, 1
    %6878 = vsyncpa [#allocation5], 1
    %6879 = vsyncpa [#allocation8], 1
    %6880 = vsyncpa [#allocation11], 1
    %6881 = vsyncpa [#allocation14], 1
    %6882 = vsyncpa [#allocation17], 1
    %6883 = vsyncpa [#allocation20], 1
    %6884 = vsyncpa [#allocation23], 1
    %6885 = vsyncpa [#allocation26], 1

</llo_original>
